<compile_context>
chip_gen: v7x
topology: tpu7x:2x2x1
jax: 0.10.0
libtpu: 0.0.40
codegen_flags: <defaults>
</compile_context>

<pallas_src>
import math

import jax
import jax.numpy as jnp
from jax.experimental import pallas as pl
from jax.experimental.pallas import tpu as pltpu

# ----------------------------- config -----------------------------------
N = 2              # batch
L = 8              # target sequence length
LK = 8             # encoder (source) sequence length
E = 32             # embeddingSize
H = 4              # numberHeads
DH = E // H        # dimsHead
FWD = 2            # forwardExp
F = FWD * E        # feed-forward hidden
NUM_LAYERS = 2     # numberLayers
V = 128            # targetVocabSize (128 -> lane-dense logits)
MAX_LEN = 16       # maxLength
EPS = 1e-5         # nn.LayerNorm default eps
SCALE = 1.0 / math.sqrt(E)
NEG = -1e20        # matches torch masked_fill(mask == 0, -1e20)

_APPROX_RECIP = True   # pl.reciprocal(approx=True) in softmax denom (EUP slot)

# wmat column layout (per layer, E rows):
#   [0,3E)       fused self-attn QKV (block-diag, SCALE folded into Q)
#   [3E,4E)      self-attn output projection wfc1
#   [4E,5E)      cross-attn Q (block-diag, SCALE folded)
#   [5E,7E)      fused cross-attn K/V (block-diag)
#   [7E,8E)      cross-attn output projection wfc2
#   [8E,8E+F)    FFN up-projection w1
_WCOLS = 8 * E + F


# ----------------------------- kernel ------------------------------------
def _decoder_kernel(tok_ref, pos_ref, enc_ref, srcb_ref, wemb_ref,
                    wout_ref, bout_ref, wmat_ref, w2_ref, vec_ref, out_ref):
  nl = N * L

  def layer_norm(v, g, b):
    mu = jnp.mean(v, axis=-1, keepdims=True)
    var = jnp.mean((v - mu) * (v - mu), axis=-1, keepdims=True)
    return (v - mu) * jax.lax.rsqrt(var + EPS) * g + b

  def split_heads(t2d, col0, ln):
    """(N*ln, C) -> head-major (H*N, ln, DH); head h, batch n lands at row h*N+n."""
    t3 = t2d.reshape(N, ln, -1)
    return jnp.concatenate(
        [t3[:, :, col0 + h * DH: col0 + (h + 1) * DH] for h in range(H)], axis=0)

  def merge_heads(ctx, lq):
    """(H*N, lq, DH) -> (N*lq, E) with heads h-major along lanes."""
    return jnp.concatenate(
        [ctx[h * N:(h + 1) * N] for h in range(H)], axis=-1).reshape(N * lq, E)

  def attend(qh, kh, vh, bias):
    """qh:(B,lq,DH) kh,vh:(B,lk,DH); bias additive, broadcastable to (B,lq,lk)."""
    e = jnp.einsum("bqd,bkd->bqk", qh, kh,
                   preferred_element_type=jnp.float32)          # (B, lq, lk)
    e = e + bias                                                 # scale already in Q
    e = e - jnp.max(e, axis=-1, keepdims=True)
    p = jnp.exp(e)
    s = jnp.sum(p, axis=-1, keepdims=True)
    p = p * pl.reciprocal(s, approx=True) if _APPROX_RECIP else p / s
    return jnp.einsum("bqk,bkd->bqd", p, vh,
                      preferred_element_type=jnp.float32)        # (B, lq, DH)

  # ---- word embedding (one-hot matmul, tokens from SMEM) + positions ----
  lane_iota = jax.lax.broadcasted_iota(jnp.int32, (1, V), 1)
  onehot = jnp.concatenate(
      [(lane_iota == tok_ref[i]).astype(jnp.float32) for i in range(nl)], axis=0)
  x = jnp.dot(onehot, wemb_ref[...],
              preferred_element_type=jnp.float32) + pos_ref[...]   # (N*L, E)
  # dropout = identity (inference mode)

  # ---- additive masks, built once and hoisted out of the layer loop ----
  row = jax.lax.broadcasted_iota(jnp.int32, (L, L), 0)
  col = jax.lax.broadcasted_iota(jnp.int32, (L, L), 1)
  causal_bias = jnp.where(row >= col, 0.0, NEG)                   # (L, L)
  src_bias = srcb_ref[...]                                        # (H*N, 1, LK)

  enc = enc_ref[...]                                              # (N*LK, E)

  # ---- stacked DecoderBlocks ----
  for li in range(NUM_LAYERS):
    wqkv1 = wmat_ref[li, :, 0:3 * E]
    wfc1  = wmat_ref[li, :, 3 * E:4 * E]
    wq2   = wmat_ref[li, :, 4 * E:5 * E]
    wkv2  = wmat_ref[li, :, 5 * E:7 * E]
    wfc2  = wmat_ref[li, :, 7 * E:8 * E]
    w1    = wmat_ref[li, :, 8 * E:8 * E + F]
    w2    = w2_ref[li]                                            # (F, E)
    vecs  = vec_ref[li]                                           # (10, F)
    bfc1, g0, b0  = vecs[0:1, :E], vecs[1:2, :E], vecs[2:3, :E]
    bfc2, g1, be1 = vecs[3:4, :E], vecs[4:5, :E], vecs[5:6, :E]
    g2, be2, bb2  = vecs[6:7, :E], vecs[7:8, :E], vecs[8:9, :E]
    bb1 = vecs[9:10, :]

    # DecoderBlock: masked self-attention over x, add & LayerNorm.
    qkv = jnp.dot(x, wqkv1, preferred_element_type=jnp.float32)   # (N*L, 3E)
    ctx = attend(split_heads(qkv, 0, L),
                 split_heads(qkv, E, L),
                 split_heads(qkv, 2 * E, L), causal_bias)
    attn1 = jnp.dot(merge_heads(ctx, L), wfc1,
                    preferred_element_type=jnp.float32) + bfc1
    query = layer_norm(attn1 + x, g0, b0)

    # TransformerBlock: cross-attention(value=enc, key=enc, query), add & norm.
    q2  = jnp.dot(query, wq2, preferred_element_type=jnp.float32)  # (N*L, E)
    kv2 = jnp.dot(enc, wkv2, preferred_element_type=jnp.float32)   # (N*LK, 2E)
    ctx2 = attend(split_heads(q2, 0, L),
                  split_heads(kv2, 0, LK),
                  split_heads(kv2, E, LK), src_bias)
    attn2 = jnp.dot(merge_heads(ctx2, L), wfc2,
                    preferred_element_type=jnp.float32) + bfc2
    xm = layer_norm(attn2 + query, g1, be1)

    # feed-forward + add & norm
    ff = jnp.maximum(
        jnp.dot(xm, w1, preferred_element_type=jnp.float32) + bb1, 0.0)
    ff = jnp.dot(ff, w2, preferred_element_type=jnp.float32) + bb2
    x = layer_norm(ff + xm, g2, be2)

  # ---- final vocab projection: lane-dense (N*L, V) slab ----
  logits = jnp.dot(x, wout_ref[...],
                   preferred_element_type=jnp.float32) + bout_ref[...]
  out_ref[...] = logits.astype(out_ref.dtype)


# ----------------------------- wrapper ------------------------------------
def decoder_forward(tokens, encoded, src_keep, params):
  """tokens:(N,L) int32; encoded:(N,LK,E) f32; src_keep:(N,LK) {0,1} key-keep mask."""
  n, l = tokens.shape
  lk = encoded.shape[1]
  assert (n, l, lk) == (N, L, LK)

  tok = tokens.reshape(n * l).astype(jnp.int32)                    # SMEM scalars
  pos = jnp.tile(params["pemb"][:l], (n, 1)).astype(jnp.float32)   # (N*L, E)
  enc_flat = encoded.reshape(n * lk, E).astype(jnp.float32)

  # source key-padding additive bias, pre-tiled to the (head*batch) layout.
  bias_n = jnp.where(src_keep > 0.5, 0.0, NEG).astype(jnp.float32)  # (N, LK)
  src_bias = jnp.tile(bias_n.reshape(1, n, 1, lk),
                      (H, 1, 1, 1)).reshape(H * n, 1, lk)           # (H*N, 1, LK)

  eye_h = jnp.eye(H, dtype=jnp.float32)
  bd = lambda w: jnp.kron(eye_h, w)          # (DH,DH) -> block-diag (E,E)
  pad_f = lambda v: jnp.pad(v, ((0, 0), (0, F - E)))               # (1,E)->(1,F)

  wmat_l, w2_l, vec_l = [], [], []
  for lp in params["layers"]:
    wqkv1 = jnp.concatenate(
        [bd(lp["wq1"]) * SCALE, bd(lp["wk1"]), bd(lp["wv1"])], axis=1)  # (E,3E)
    wkv2 = jnp.concatenate([bd(lp["wk2"]), bd(lp["wv2"])], axis=1)      # (E,2E)
    wmat_l.append(jnp.concatenate(
        [wqkv1, lp["wfc1"], bd(lp["wq2"]) * SCALE, wkv2, lp["wfc2"], lp["w1"]],
        axis=1))                                                        # (E, 8E+F)
    w2_l.append(lp["w2"])                                               # (F, E)
    vec_l.append(jnp.concatenate(
        [pad_f(lp["bfc1"]), pad_f(lp["g0"]), pad_f(lp["b0"]),
         pad_f(lp["bfc2"]), pad_f(lp["g1"]), pad_f(lp["be1"]),
         pad_f(lp["g2"]), pad_f(lp["be2"]), pad_f(lp["bb2"]),
         lp["bb1"]], axis=0))                                           # (10, F)
  wmat = jnp.stack(wmat_l)          # (NUM_LAYERS, E, 8E+F)
  w2s = jnp.stack(w2_l)             # (NUM_LAYERS, F, E)
  vecs = jnp.stack(vec_l)           # (NUM_LAYERS, 10, F)

  vmem = lambda: pl.BlockSpec(memory_space=pltpu.MemorySpace.VMEM)
  smem = lambda: pl.BlockSpec(memory_space=pltpu.MemorySpace.SMEM)
  out_flat = pl.pallas_call(
      _decoder_kernel,
      out_shape=jax.ShapeDtypeStruct((n * l, V), jnp.float32),
      in_specs=[smem(), vmem(), vmem(), vmem(), vmem(),
                vmem(), vmem(), vmem(), vmem(), vmem()],
      out_specs=vmem(),
  )(tok, pos, enc_flat, src_bias, params["wemb"], params["wout"],
    params["bout"], wmat, w2s, vecs)
  return out_flat.reshape(n, l, V)


# ----------------------------- pure-JAX reference --------------------------
def _layer_norm_ref(v, g, b):
  mu = jnp.mean(v, axis=-1, keepdims=True)
  var = jnp.mean((v - mu) ** 2, axis=-1, keepdims=True)
  return (v - mu) / jnp.sqrt(var + EPS) * g + b


def _self_attention_ref(values, keys, query, mask, wq, wk, wv, wfc, bfc):
  n, lv, _ = values.shape
  lk, lq = keys.shape[1], query.shape[1]
  v = values.reshape(n, lv, H, DH) @ wv
  k = keys.reshape(n, lk, H, DH) @ wk
  q = query.reshape(n, lq, H, DH) @ wq
  energy = jnp.einsum("nqhd,nkhd->nhqk", q, k)
  energy = jnp.where(mask == 0, NEG, energy)
  attn = jax.nn.softmax(energy * SCALE, axis=3)
  out = jnp.einsum("nhql,nlhd->nqhd", attn, v).reshape(n, lq, E)
  return out @ wfc + bfc


def decoder_ref(tokens, encoded, source_mask, target_mask, params):
  n, l = tokens.shape
  pos = jnp.arange(l)
  x = params["wemb"][tokens] + params["pemb"][pos][None, :, :]
  for lp in params["layers"]:
    attn = _self_attention_ref(x, x, x, target_mask,
                               lp["wq1"], lp["wk1"], lp["wv1"],
                               lp["wfc1"], lp["bfc1"])
    query = _layer_norm_ref(attn + x, lp["g0"], lp["b0"])
    attn2 = _self_attention_ref(encoded, encoded, query, source_mask,
                                lp["wq2"], lp["wk2"], lp["wv2"],
                                lp["wfc2"], lp["bfc2"])
    xm = _layer_norm_ref(attn2 + query, lp["g1"], lp["be1"])
    ff = jnp.maximum(xm @ lp["w1"] + lp["bb1"], 0.0) @ lp["w2"] + lp["bb2"]
    x = _layer_norm_ref(ff + xm, lp["g2"], lp["be2"])
  return x @ params["wout"] + params["bout"]


# ----------------------------- main ----------------------------------------
if __name__ == "__main__":
  keys = iter(jax.random.split(jax.random.PRNGKey(0), 64))

  def rnd(shape, scale=0.05):
    return jax.random.normal(next(keys), shape, dtype=jnp.float32) * scale

  def layer_params():
    return {
        "wq1": rnd((DH, DH)), "wk1": rnd((DH, DH)), "wv1": rnd((DH, DH)),
        "wfc1": rnd((E, E)), "bfc1": rnd((1, E)),
        "g0": 1.0 + rnd((1, E), 0.1), "b0": rnd((1, E), 0.1),
        "wq2": rnd((DH, DH)), "wk2": rnd((DH, DH)), "wv2": rnd((DH, DH)),
        "wfc2": rnd((E, E)), "bfc2": rnd((1, E)),
        "g1": 1.0 + rnd((1, E), 0.1), "be1": rnd((1, E), 0.1),
        "g2": 1.0 + rnd((1, E), 0.1), "be2": rnd((1, E), 0.1),
        "w1": rnd((E, F)), "bb1": rnd((1, F)),
        "w2": rnd((F, E)), "bb2": rnd((1, E)),
    }

  params = {
      "wemb": rnd((V, E), 0.5),
      "pemb": rnd((MAX_LEN, E), 0.5),
      "wout": rnd((E, V)),
      "bout": rnd((1, V)),
      "layers": [layer_params() for _ in range(NUM_LAYERS)],
  }

  tokens = jax.random.randint(next(keys), (N, L), 0, V, dtype=jnp.int32)
  encoded = jax.random.normal(next(keys), (N, LK, E), dtype=jnp.float32)

  # source key-padding mask: batch 0 keeps all keys, batch 1 masks the last two.
  src_keep = jnp.array([[1.0] * LK,
                        [1.0] * (LK - 2) + [0.0, 0.0]], dtype=jnp.float32)

  out = decoder_forward(tokens, encoded, src_keep, params)
  out = jax.block_until_ready(out)

  # PyTorch-layout masks for the pure-JAX reference.
  causal = jnp.tril(jnp.ones((L, L), jnp.float32))
  target_mask = jnp.broadcast_to(causal[None, None], (N, 1, L, L))
  source_mask = src_keep[:, None, None, :]                        # (N,1,1,LK)

  ref = decoder_ref(tokens, encoded, source_mask, target_mask, params)
  ref = jax.block_until_ready(ref)

  err = float(jnp.max(jnp.abs(out - ref)))
  if not jnp.allclose(out, ref, atol=2e-3, rtol=2e-3):
    raise AssertionError(f"mismatch: max abs err {err}")
  print("KERNEL_OK")
</pallas_src>

<mosaic_0001>
module attributes {stable_mosaic.version = 11 : i64} {
  func.func @_decoder_kernel(%arg0: memref<16xi32, #tpu.memory_space<smem>>, %arg1: memref<16x32xf32, #tpu.memory_space<vmem>>, %arg2: memref<16x32xf32, #tpu.memory_space<vmem>>, %arg3: memref<8x1x8xf32, #tpu.memory_space<vmem>>, %arg4: memref<128x32xf32, #tpu.memory_space<vmem>>, %arg5: memref<32x128xf32, #tpu.memory_space<vmem>>, %arg6: memref<1x128xf32, #tpu.memory_space<vmem>>, %arg7: memref<2x32x320xf32, #tpu.memory_space<vmem>>, %arg8: memref<2x64x32xf32, #tpu.memory_space<vmem>>, %arg9: memref<2x10x64xf32, #tpu.memory_space<vmem>>, %arg10: memref<16x128xf32, #tpu.memory_space<vmem>>) attributes {dimension_semantics = [], scalar_prefetch = 0 : i64, scratch_operands = 0 : i64, tpu.core_type = #tpu.core_type<tc>} {
    %0 = tpu.iota {dimensions = array<i32: 1>} : vector<1x128xi32>
    %c0 = arith.constant 0 : index
    %1 = memref.load %arg0[%c0] : memref<16xi32, #tpu.memory_space<smem>>
    %2 = vector.broadcast %1 : i32 to vector<1x128xi32>
    %3 = arith.cmpi eq, %0, %2 : vector<1x128xi32>
    %4 = arith.extui %3 : vector<1x128xi1> to vector<1x128xi32>
    %5 = arith.sitofp %4 : vector<1x128xi32> to vector<1x128xf32>
    %c1 = arith.constant 1 : index
    %6 = memref.load %arg0[%c1] : memref<16xi32, #tpu.memory_space<smem>>
    %7 = vector.broadcast %6 : i32 to vector<1x128xi32>
    %8 = arith.cmpi eq, %0, %7 : vector<1x128xi32>
    %9 = arith.extui %8 : vector<1x128xi1> to vector<1x128xi32>
    %10 = arith.sitofp %9 : vector<1x128xi32> to vector<1x128xf32>
    %c2 = arith.constant 2 : index
    %11 = memref.load %arg0[%c2] : memref<16xi32, #tpu.memory_space<smem>>
    %12 = vector.broadcast %11 : i32 to vector<1x128xi32>
    %13 = arith.cmpi eq, %0, %12 : vector<1x128xi32>
    %14 = arith.extui %13 : vector<1x128xi1> to vector<1x128xi32>
    %15 = arith.sitofp %14 : vector<1x128xi32> to vector<1x128xf32>
    %c3 = arith.constant 3 : index
    %16 = memref.load %arg0[%c3] : memref<16xi32, #tpu.memory_space<smem>>
    %17 = vector.broadcast %16 : i32 to vector<1x128xi32>
    %18 = arith.cmpi eq, %0, %17 : vector<1x128xi32>
    %19 = arith.extui %18 : vector<1x128xi1> to vector<1x128xi32>
    %20 = arith.sitofp %19 : vector<1x128xi32> to vector<1x128xf32>
    %c4 = arith.constant 4 : index
    %21 = memref.load %arg0[%c4] : memref<16xi32, #tpu.memory_space<smem>>
    %22 = vector.broadcast %21 : i32 to vector<1x128xi32>
    %23 = arith.cmpi eq, %0, %22 : vector<1x128xi32>
    %24 = arith.extui %23 : vector<1x128xi1> to vector<1x128xi32>
    %25 = arith.sitofp %24 : vector<1x128xi32> to vector<1x128xf32>
    %c5 = arith.constant 5 : index
    %26 = memref.load %arg0[%c5] : memref<16xi32, #tpu.memory_space<smem>>
    %27 = vector.broadcast %26 : i32 to vector<1x128xi32>
    %28 = arith.cmpi eq, %0, %27 : vector<1x128xi32>
    %29 = arith.extui %28 : vector<1x128xi1> to vector<1x128xi32>
    %30 = arith.sitofp %29 : vector<1x128xi32> to vector<1x128xf32>
    %c6 = arith.constant 6 : index
    %31 = memref.load %arg0[%c6] : memref<16xi32, #tpu.memory_space<smem>>
    %32 = vector.broadcast %31 : i32 to vector<1x128xi32>
    %33 = arith.cmpi eq, %0, %32 : vector<1x128xi32>
    %34 = arith.extui %33 : vector<1x128xi1> to vector<1x128xi32>
    %35 = arith.sitofp %34 : vector<1x128xi32> to vector<1x128xf32>
    %c7 = arith.constant 7 : index
    %36 = memref.load %arg0[%c7] : memref<16xi32, #tpu.memory_space<smem>>
    %37 = vector.broadcast %36 : i32 to vector<1x128xi32>
    %38 = arith.cmpi eq, %0, %37 : vector<1x128xi32>
    %39 = arith.extui %38 : vector<1x128xi1> to vector<1x128xi32>
    %40 = arith.sitofp %39 : vector<1x128xi32> to vector<1x128xf32>
    %c8 = arith.constant 8 : index
    %41 = memref.load %arg0[%c8] : memref<16xi32, #tpu.memory_space<smem>>
    %42 = vector.broadcast %41 : i32 to vector<1x128xi32>
    %43 = arith.cmpi eq, %0, %42 : vector<1x128xi32>
    %44 = arith.extui %43 : vector<1x128xi1> to vector<1x128xi32>
    %45 = arith.sitofp %44 : vector<1x128xi32> to vector<1x128xf32>
    %c9 = arith.constant 9 : index
    %46 = memref.load %arg0[%c9] : memref<16xi32, #tpu.memory_space<smem>>
    %47 = vector.broadcast %46 : i32 to vector<1x128xi32>
    %48 = arith.cmpi eq, %0, %47 : vector<1x128xi32>
    %49 = arith.extui %48 : vector<1x128xi1> to vector<1x128xi32>
    %50 = arith.sitofp %49 : vector<1x128xi32> to vector<1x128xf32>
    %c10 = arith.constant 10 : index
    %51 = memref.load %arg0[%c10] : memref<16xi32, #tpu.memory_space<smem>>
    %52 = vector.broadcast %51 : i32 to vector<1x128xi32>
    %53 = arith.cmpi eq, %0, %52 : vector<1x128xi32>
    %54 = arith.extui %53 : vector<1x128xi1> to vector<1x128xi32>
    %55 = arith.sitofp %54 : vector<1x128xi32> to vector<1x128xf32>
    %c11 = arith.constant 11 : index
    %56 = memref.load %arg0[%c11] : memref<16xi32, #tpu.memory_space<smem>>
    %57 = vector.broadcast %56 : i32 to vector<1x128xi32>
    %58 = arith.cmpi eq, %0, %57 : vector<1x128xi32>
    %59 = arith.extui %58 : vector<1x128xi1> to vector<1x128xi32>
    %60 = arith.sitofp %59 : vector<1x128xi32> to vector<1x128xf32>
    %c12 = arith.constant 12 : index
    %61 = memref.load %arg0[%c12] : memref<16xi32, #tpu.memory_space<smem>>
    %62 = vector.broadcast %61 : i32 to vector<1x128xi32>
    %63 = arith.cmpi eq, %0, %62 : vector<1x128xi32>
    %64 = arith.extui %63 : vector<1x128xi1> to vector<1x128xi32>
    %65 = arith.sitofp %64 : vector<1x128xi32> to vector<1x128xf32>
    %c13 = arith.constant 13 : index
    %66 = memref.load %arg0[%c13] : memref<16xi32, #tpu.memory_space<smem>>
    %67 = vector.broadcast %66 : i32 to vector<1x128xi32>
    %68 = arith.cmpi eq, %0, %67 : vector<1x128xi32>
    %69 = arith.extui %68 : vector<1x128xi1> to vector<1x128xi32>
    %70 = arith.sitofp %69 : vector<1x128xi32> to vector<1x128xf32>
    %c14 = arith.constant 14 : index
    %71 = memref.load %arg0[%c14] : memref<16xi32, #tpu.memory_space<smem>>
    %72 = vector.broadcast %71 : i32 to vector<1x128xi32>
    %73 = arith.cmpi eq, %0, %72 : vector<1x128xi32>
    %74 = arith.extui %73 : vector<1x128xi1> to vector<1x128xi32>
    %75 = arith.sitofp %74 : vector<1x128xi32> to vector<1x128xf32>
    %c15 = arith.constant 15 : index
    %76 = memref.load %arg0[%c15] : memref<16xi32, #tpu.memory_space<smem>>
    %77 = vector.broadcast %76 : i32 to vector<1x128xi32>
    %78 = arith.cmpi eq, %0, %77 : vector<1x128xi32>
    %79 = arith.extui %78 : vector<1x128xi1> to vector<1x128xi32>
    %80 = arith.sitofp %79 : vector<1x128xi32> to vector<1x128xf32>
    %81 = tpu.concatenate %5, %10, %15, %20, %25, %30, %35, %40, %45, %50, %55, %60, %65, %70, %75, %80 in 0 : vector<1x128xf32>, vector<1x128xf32>, vector<1x128xf32>, vector<1x128xf32>, vector<1x128xf32>, vector<1x128xf32>, vector<1x128xf32>, vector<1x128xf32>, vector<1x128xf32>, vector<1x128xf32>, vector<1x128xf32>, vector<1x128xf32>, vector<1x128xf32>, vector<1x128xf32>, vector<1x128xf32>, vector<1x128xf32> -> vector<16x128xf32>
    %c0_0 = arith.constant 0 : index
    %c0_1 = arith.constant 0 : index
    %82 = vector.load %arg4[%c0_0, %c0_1] : memref<128x32xf32, #tpu.memory_space<vmem>>, vector<128x32xf32>
    %cst = arith.constant dense<0.000000e+00> : vector<16x32xf32>
    %83 = tpu.matmul %81, %82, %cst {dimension_numbers = #tpu.dot_dimension_numbers<[1], [0], [0], [1], [0, 0, 1, 1], [], []>} : vector<16x128xf32>, vector<128x32xf32>, vector<16x32xf32> -> vector<16x32xf32>
    %c0_2 = arith.constant 0 : index
    %c0_3 = arith.constant 0 : index
    %84 = vector.load %arg1[%c0_2, %c0_3] : memref<16x32xf32, #tpu.memory_space<vmem>>, vector<16x32xf32>
    %85 = arith.addf %83, %84 : vector<16x32xf32>
    %86 = tpu.iota {dimensions = array<i32: 0>} : vector<8x8xi32>
    %87 = tpu.iota {dimensions = array<i32: 1>} : vector<8x8xi32>
    %88 = arith.cmpi sge, %86, %87 : vector<8x8xi32>
    %cst_4 = arith.constant 0.000000e+00 : f32
    %cst_5 = arith.constant -1.000000e+20 : f32
    %89 = vector.broadcast %cst_4 : f32 to vector<8x8xf32>
    %90 = vector.broadcast %cst_5 : f32 to vector<8x8xf32>
    %91 = arith.select %88, %89, %90 : vector<8x8xi1>, vector<8x8xf32>
    %c0_6 = arith.constant 0 : index
    %c0_7 = arith.constant 0 : index
    %c0_8 = arith.constant 0 : index
    %92 = vector.load %arg3[%c0_6, %c0_7, %c0_8] : memref<8x1x8xf32, #tpu.memory_space<vmem>>, vector<8x1x8xf32>
    %c0_9 = arith.constant 0 : index
    %c0_10 = arith.constant 0 : index
    %93 = vector.load %arg2[%c0_9, %c0_10] : memref<16x32xf32, #tpu.memory_space<vmem>>, vector<16x32xf32>
    %c0_11 = arith.constant 0 : index
    %c0_12 = arith.constant 0 : index
    %c0_13 = arith.constant 0 : index
    %94 = vector.load %arg7[%c0_11, %c0_12, %c0_13] : memref<2x32x320xf32, #tpu.memory_space<vmem>>, vector<1x32x96xf32>
    %95 = vector.shape_cast %94 : vector<1x32x96xf32> to vector<32x96xf32>
    %c0_14 = arith.constant 0 : index
    %c0_15 = arith.constant 0 : index
    %c96 = arith.constant 96 : index
    %96 = vector.load %arg7[%c0_14, %c0_15, %c96] : memref<2x32x320xf32, #tpu.memory_space<vmem>>, vector<1x32x32xf32>
    %97 = vector.shape_cast %96 : vector<1x32x32xf32> to vector<32x32xf32>
    %c0_16 = arith.constant 0 : index
    %c0_17 = arith.constant 0 : index
    %c128 = arith.constant 128 : index
    %98 = vector.load %arg7[%c0_16, %c0_17, %c128] : memref<2x32x320xf32, #tpu.memory_space<vmem>>, vector<1x32x32xf32>
    %99 = vector.shape_cast %98 : vector<1x32x32xf32> to vector<32x32xf32>
    %c0_18 = arith.constant 0 : index
    %c0_19 = arith.constant 0 : index
    %c160 = arith.constant 160 : index
    %100 = vector.load %arg7[%c0_18, %c0_19, %c160] : memref<2x32x320xf32, #tpu.memory_space<vmem>>, vector<1x32x64xf32>
    %101 = vector.shape_cast %100 : vector<1x32x64xf32> to vector<32x64xf32>
    %c0_20 = arith.constant 0 : index
    %c0_21 = arith.constant 0 : index
    %c224 = arith.constant 224 : index
    %102 = vector.load %arg7[%c0_20, %c0_21, %c224] : memref<2x32x320xf32, #tpu.memory_space<vmem>>, vector<1x32x32xf32>
    %103 = vector.shape_cast %102 : vector<1x32x32xf32> to vector<32x32xf32>
    %c0_22 = arith.constant 0 : index
    %c0_23 = arith.constant 0 : index
    %c256 = arith.constant 256 : index
    %104 = vector.load %arg7[%c0_22, %c0_23, %c256] : memref<2x32x320xf32, #tpu.memory_space<vmem>>, vector<1x32x64xf32>
    %105 = vector.shape_cast %104 : vector<1x32x64xf32> to vector<32x64xf32>
    %c0_24 = arith.constant 0 : index
    %c0_25 = arith.constant 0 : index
    %c0_26 = arith.constant 0 : index
    %106 = vector.load %arg8[%c0_24, %c0_25, %c0_26] : memref<2x64x32xf32, #tpu.memory_space<vmem>>, vector<1x64x32xf32>
    %107 = vector.shape_cast %106 : vector<1x64x32xf32> to vector<64x32xf32>
    %c0_27 = arith.constant 0 : index
    %c0_28 = arith.constant 0 : index
    %c0_29 = arith.constant 0 : index
    %108 = vector.load %arg9[%c0_27, %c0_28, %c0_29] : memref<2x10x64xf32, #tpu.memory_space<vmem>>, vector<1x10x64xf32>
    %109 = vector.shape_cast %108 : vector<1x10x64xf32> to vector<10x64xf32>
    %110 = vector.extract_strided_slice %109 {offsets = [0, 0], sizes = [1, 32], strides = [1, 1]} : vector<10x64xf32> to vector<1x32xf32>
    %111 = vector.extract_strided_slice %109 {offsets = [1, 0], sizes = [1, 32], strides = [1, 1]} : vector<10x64xf32> to vector<1x32xf32>
    %112 = vector.extract_strided_slice %109 {offsets = [2, 0], sizes = [1, 32], strides = [1, 1]} : vector<10x64xf32> to vector<1x32xf32>
    %113 = vector.extract_strided_slice %109 {offsets = [3, 0], sizes = [1, 32], strides = [1, 1]} : vector<10x64xf32> to vector<1x32xf32>
    %114 = vector.extract_strided_slice %109 {offsets = [4, 0], sizes = [1, 32], strides = [1, 1]} : vector<10x64xf32> to vector<1x32xf32>
    %115 = vector.extract_strided_slice %109 {offsets = [5, 0], sizes = [1, 32], strides = [1, 1]} : vector<10x64xf32> to vector<1x32xf32>
    %116 = vector.extract_strided_slice %109 {offsets = [6, 0], sizes = [1, 32], strides = [1, 1]} : vector<10x64xf32> to vector<1x32xf32>
    %117 = vector.extract_strided_slice %109 {offsets = [7, 0], sizes = [1, 32], strides = [1, 1]} : vector<10x64xf32> to vector<1x32xf32>
    %118 = vector.extract_strided_slice %109 {offsets = [8, 0], sizes = [1, 32], strides = [1, 1]} : vector<10x64xf32> to vector<1x32xf32>
    %119 = vector.extract_strided_slice %109 {offsets = [9, 0], sizes = [1, 64], strides = [1, 1]} : vector<10x64xf32> to vector<1x64xf32>
    %cst_30 = arith.constant dense<0.000000e+00> : vector<16x96xf32>
    %120 = tpu.matmul %85, %95, %cst_30 {dimension_numbers = #tpu.dot_dimension_numbers<[1], [0], [0], [1], [0, 0, 1, 1], [], []>} : vector<16x32xf32>, vector<32x96xf32>, vector<16x96xf32> -> vector<16x96xf32>
    %121 = vector.shape_cast %120 : vector<16x96xf32> to vector<2x8x96xf32>
    %122 = vector.extract_strided_slice %121 {offsets = [0, 0, 0], sizes = [2, 8, 8], strides = [1, 1, 1]} : vector<2x8x96xf32> to vector<2x8x8xf32>
    %123 = vector.extract_strided_slice %121 {offsets = [0, 0, 8], sizes = [2, 8, 8], strides = [1, 1, 1]} : vector<2x8x96xf32> to vector<2x8x8xf32>
    %124 = vector.extract_strided_slice %121 {offsets = [0, 0, 16], sizes = [2, 8, 8], strides = [1, 1, 1]} : vector<2x8x96xf32> to vector<2x8x8xf32>
    %125 = vector.extract_strided_slice %121 {offsets = [0, 0, 24], sizes = [2, 8, 8], strides = [1, 1, 1]} : vector<2x8x96xf32> to vector<2x8x8xf32>
    %126 = tpu.concatenate %122, %123, %124, %125 in 0 : vector<2x8x8xf32>, vector<2x8x8xf32>, vector<2x8x8xf32>, vector<2x8x8xf32> -> vector<8x8x8xf32>
    %127 = vector.shape_cast %120 : vector<16x96xf32> to vector<2x8x96xf32>
    %128 = vector.extract_strided_slice %127 {offsets = [0, 0, 32], sizes = [2, 8, 8], strides = [1, 1, 1]} : vector<2x8x96xf32> to vector<2x8x8xf32>
    %129 = vector.extract_strided_slice %127 {offsets = [0, 0, 40], sizes = [2, 8, 8], strides = [1, 1, 1]} : vector<2x8x96xf32> to vector<2x8x8xf32>
    %130 = vector.extract_strided_slice %127 {offsets = [0, 0, 48], sizes = [2, 8, 8], strides = [1, 1, 1]} : vector<2x8x96xf32> to vector<2x8x8xf32>
    %131 = vector.extract_strided_slice %127 {offsets = [0, 0, 56], sizes = [2, 8, 8], strides = [1, 1, 1]} : vector<2x8x96xf32> to vector<2x8x8xf32>
    %132 = tpu.concatenate %128, %129, %130, %131 in 0 : vector<2x8x8xf32>, vector<2x8x8xf32>, vector<2x8x8xf32>, vector<2x8x8xf32> -> vector<8x8x8xf32>
    %133 = vector.shape_cast %120 : vector<16x96xf32> to vector<2x8x96xf32>
    %134 = vector.extract_strided_slice %133 {offsets = [0, 0, 64], sizes = [2, 8, 8], strides = [1, 1, 1]} : vector<2x8x96xf32> to vector<2x8x8xf32>
    %135 = vector.extract_strided_slice %133 {offsets = [0, 0, 72], sizes = [2, 8, 8], strides = [1, 1, 1]} : vector<2x8x96xf32> to vector<2x8x8xf32>
    %136 = vector.extract_strided_slice %133 {offsets = [0, 0, 80], sizes = [2, 8, 8], strides = [1, 1, 1]} : vector<2x8x96xf32> to vector<2x8x8xf32>
    %137 = vector.extract_strided_slice %133 {offsets = [0, 0, 88], sizes = [2, 8, 8], strides = [1, 1, 1]} : vector<2x8x96xf32> to vector<2x8x8xf32>
    %138 = tpu.concatenate %134, %135, %136, %137 in 0 : vector<2x8x8xf32>, vector<2x8x8xf32>, vector<2x8x8xf32>, vector<2x8x8xf32> -> vector<8x8x8xf32>
    "tpu.trace_start"() <{level = 10 : i32, message = "bqd,bkd->bqk"}> : () -> ()
    %cst_31 = arith.constant dense<0.000000e+00> : vector<8x8x8xf32>
    %139 = tpu.matmul %126, %132, %cst_31 {dimension_numbers = #tpu.dot_dimension_numbers<[2], [2], [1], [1], [0, 0, 0, 1, 1, 1], [0], [0]>} : vector<8x8x8xf32>, vector<8x8x8xf32>, vector<8x8x8xf32> -> vector<8x8x8xf32>
    "tpu.trace_stop"() : () -> ()
    %140 = vector.shape_cast %91 : vector<8x8xf32> to vector<1x8x8xf32>
    %141 = vector.broadcast %140 : vector<1x8x8xf32> to vector<8x8x8xf32>
    %142 = arith.addf %139, %141 : vector<8x8x8xf32>
    %cst_32 = arith.constant dense<0xFF800000> : vector<8x8xf32>
    %143 = vector.multi_reduction <maximumf>, %142, %cst_32 [2] : vector<8x8x8xf32> to vector<8x8xf32>
    %144 = vector.shape_cast %143 : vector<8x8xf32> to vector<8x8x1xf32>
    %145 = vector.broadcast %144 : vector<8x8x1xf32> to vector<8x8x8xf32>
    %146 = arith.subf %142, %145 : vector<8x8x8xf32>
    %147 = math.exp %146 : vector<8x8x8xf32>
    %cst_33 = arith.constant dense<0.000000e+00> : vector<8x8xf32>
    %148 = vector.multi_reduction <add>, %147, %cst_33 [2] : vector<8x8x8xf32> to vector<8x8xf32>
    %149 = vector.shape_cast %148 : vector<8x8xf32> to vector<8x8x1xf32>
    %150 = tpu.reciprocal %149 {approx = true} : vector<8x8x1xf32> -> vector<8x8x1xf32>
    %151 = vector.broadcast %150 : vector<8x8x1xf32> to vector<8x8x8xf32>
    %152 = arith.mulf %147, %151 : vector<8x8x8xf32>
    "tpu.trace_start"() <{level = 10 : i32, message = "bqk,bkd->bqd"}> : () -> ()
    %cst_34 = arith.constant dense<0.000000e+00> : vector<8x8x8xf32>
    %153 = tpu.matmul %152, %138, %cst_34 {dimension_numbers = #tpu.dot_dimension_numbers<[2], [1], [1], [2], [0, 0, 0, 1, 1, 2], [0], [0]>} : vector<8x8x8xf32>, vector<8x8x8xf32>, vector<8x8x8xf32> -> vector<8x8x8xf32>
    "tpu.trace_stop"() : () -> ()
    %154 = vector.extract_strided_slice %153 {offsets = [0, 0, 0], sizes = [2, 8, 8], strides = [1, 1, 1]} : vector<8x8x8xf32> to vector<2x8x8xf32>
    %155 = vector.extract_strided_slice %153 {offsets = [2, 0, 0], sizes = [2, 8, 8], strides = [1, 1, 1]} : vector<8x8x8xf32> to vector<2x8x8xf32>
    %156 = vector.extract_strided_slice %153 {offsets = [4, 0, 0], sizes = [2, 8, 8], strides = [1, 1, 1]} : vector<8x8x8xf32> to vector<2x8x8xf32>
    %157 = vector.extract_strided_slice %153 {offsets = [6, 0, 0], sizes = [2, 8, 8], strides = [1, 1, 1]} : vector<8x8x8xf32> to vector<2x8x8xf32>
    %158 = tpu.concatenate %154, %155, %156, %157 in 2 : vector<2x8x8xf32>, vector<2x8x8xf32>, vector<2x8x8xf32>, vector<2x8x8xf32> -> vector<2x8x32xf32>
    %159 = vector.shape_cast %158 : vector<2x8x32xf32> to vector<16x32xf32>
    %cst_35 = arith.constant dense<0.000000e+00> : vector<16x32xf32>
    %160 = tpu.matmul %159, %97, %cst_35 {dimension_numbers = #tpu.dot_dimension_numbers<[1], [0], [0], [1], [0, 0, 1, 1], [], []>} : vector<16x32xf32>, vector<32x32xf32>, vector<16x32xf32> -> vector<16x32xf32>
    %161 = vector.broadcast %110 : vector<1x32xf32> to vector<16x32xf32>
    %162 = arith.addf %160, %161 : vector<16x32xf32>
    %163 = arith.addf %162, %85 : vector<16x32xf32>
    %cst_36 = arith.constant dense<0.000000e+00> : vector<16xf32>
    %164 = vector.multi_reduction <add>, %163, %cst_36 [1] : vector<16x32xf32> to vector<16xf32>
    %165 = vector.shape_cast %164 : vector<16xf32> to vector<16x1xf32>
    %cst_37 = arith.constant 3.200000e+01 : f32
    %166 = vector.broadcast %cst_37 : f32 to vector<16x1xf32>
    %167 = arith.divf %165, %166 : vector<16x1xf32>
    %168 = vector.broadcast %167 : vector<16x1xf32> to vector<16x32xf32>
    %169 = arith.subf %163, %168 : vector<16x32xf32>
    %170 = vector.broadcast %167 : vector<16x1xf32> to vector<16x32xf32>
    %171 = arith.subf %163, %170 : vector<16x32xf32>
    %172 = arith.mulf %169, %171 : vector<16x32xf32>
    %cst_38 = arith.constant dense<0.000000e+00> : vector<16xf32>
    %173 = vector.multi_reduction <add>, %172, %cst_38 [1] : vector<16x32xf32> to vector<16xf32>
    %174 = vector.shape_cast %173 : vector<16xf32> to vector<16x1xf32>
    %cst_39 = arith.constant 3.200000e+01 : f32
    %175 = vector.broadcast %cst_39 : f32 to vector<16x1xf32>
    %176 = arith.divf %174, %175 : vector<16x1xf32>
    %177 = vector.broadcast %167 : vector<16x1xf32> to vector<16x32xf32>
    %178 = arith.subf %163, %177 : vector<16x32xf32>
    %cst_40 = arith.constant 9.99999974E-6 : f32
    %179 = vector.broadcast %cst_40 : f32 to vector<16x1xf32>
    %180 = arith.addf %176, %179 : vector<16x1xf32>
    %181 = math.rsqrt %180 : vector<16x1xf32>
    %182 = vector.broadcast %181 : vector<16x1xf32> to vector<16x32xf32>
    %183 = arith.mulf %178, %182 : vector<16x32xf32>
    %184 = vector.broadcast %111 : vector<1x32xf32> to vector<16x32xf32>
    %185 = arith.mulf %183, %184 : vector<16x32xf32>
    %186 = vector.broadcast %112 : vector<1x32xf32> to vector<16x32xf32>
    %187 = arith.addf %185, %186 : vector<16x32xf32>
    %cst_41 = arith.constant dense<0.000000e+00> : vector<16x32xf32>
    %188 = tpu.matmul %187, %99, %cst_41 {dimension_numbers = #tpu.dot_dimension_numbers<[1], [0], [0], [1], [0, 0, 1, 1], [], []>} : vector<16x32xf32>, vector<32x32xf32>, vector<16x32xf32> -> vector<16x32xf32>
    %cst_42 = arith.constant dense<0.000000e+00> : vector<16x64xf32>
    %189 = tpu.matmul %93, %101, %cst_42 {dimension_numbers = #tpu.dot_dimension_numbers<[1], [0], [0], [1], [0, 0, 1, 1], [], []>} : vector<16x32xf32>, vector<32x64xf32>, vector<16x64xf32> -> vector<16x64xf32>
    %190 = vector.shape_cast %188 : vector<16x32xf32> to vector<2x8x32xf32>
    %191 = vector.extract_strided_slice %190 {offsets = [0, 0, 0], sizes = [2, 8, 8], strides = [1, 1, 1]} : vector<2x8x32xf32> to vector<2x8x8xf32>
    %192 = vector.extract_strided_slice %190 {offsets = [0, 0, 8], sizes = [2, 8, 8], strides = [1, 1, 1]} : vector<2x8x32xf32> to vector<2x8x8xf32>
    %193 = vector.extract_strided_slice %190 {offsets = [0, 0, 16], sizes = [2, 8, 8], strides = [1, 1, 1]} : vector<2x8x32xf32> to vector<2x8x8xf32>
    %194 = vector.extract_strided_slice %190 {offsets = [0, 0, 24], sizes = [2, 8, 8], strides = [1, 1, 1]} : vector<2x8x32xf32> to vector<2x8x8xf32>
    %195 = tpu.concatenate %191, %192, %193, %194 in 0 : vector<2x8x8xf32>, vector<2x8x8xf32>, vector<2x8x8xf32>, vector<2x8x8xf32> -> vector<8x8x8xf32>
    %196 = vector.shape_cast %189 : vector<16x64xf32> to vector<2x8x64xf32>
    %197 = vector.extract_strided_slice %196 {offsets = [0, 0, 0], sizes = [2, 8, 8], strides = [1, 1, 1]} : vector<2x8x64xf32> to vector<2x8x8xf32>
    %198 = vector.extract_strided_slice %196 {offsets = [0, 0, 8], sizes = [2, 8, 8], strides = [1, 1, 1]} : vector<2x8x64xf32> to vector<2x8x8xf32>
    %199 = vector.extract_strided_slice %196 {offsets = [0, 0, 16], sizes = [2, 8, 8], strides = [1, 1, 1]} : vector<2x8x64xf32> to vector<2x8x8xf32>
    %200 = vector.extract_strided_slice %196 {offsets = [0, 0, 24], sizes = [2, 8, 8], strides = [1, 1, 1]} : vector<2x8x64xf32> to vector<2x8x8xf32>
    %201 = tpu.concatenate %197, %198, %199, %200 in 0 : vector<2x8x8xf32>, vector<2x8x8xf32>, vector<2x8x8xf32>, vector<2x8x8xf32> -> vector<8x8x8xf32>
    %202 = vector.shape_cast %189 : vector<16x64xf32> to vector<2x8x64xf32>
    %203 = vector.extract_strided_slice %202 {offsets = [0, 0, 32], sizes = [2, 8, 8], strides = [1, 1, 1]} : vector<2x8x64xf32> to vector<2x8x8xf32>
    %204 = vector.extract_strided_slice %202 {offsets = [0, 0, 40], sizes = [2, 8, 8], strides = [1, 1, 1]} : vector<2x8x64xf32> to vector<2x8x8xf32>
    %205 = vector.extract_strided_slice %202 {offsets = [0, 0, 48], sizes = [2, 8, 8], strides = [1, 1, 1]} : vector<2x8x64xf32> to vector<2x8x8xf32>
    %206 = vector.extract_strided_slice %202 {offsets = [0, 0, 56], sizes = [2, 8, 8], strides = [1, 1, 1]} : vector<2x8x64xf32> to vector<2x8x8xf32>
    %207 = tpu.concatenate %203, %204, %205, %206 in 0 : vector<2x8x8xf32>, vector<2x8x8xf32>, vector<2x8x8xf32>, vector<2x8x8xf32> -> vector<8x8x8xf32>
    "tpu.trace_start"() <{level = 10 : i32, message = "bqd,bkd->bqk"}> : () -> ()
    %cst_43 = arith.constant dense<0.000000e+00> : vector<8x8x8xf32>
    %208 = tpu.matmul %195, %201, %cst_43 {dimension_numbers = #tpu.dot_dimension_numbers<[2], [2], [1], [1], [0, 0, 0, 1, 1, 1], [0], [0]>} : vector<8x8x8xf32>, vector<8x8x8xf32>, vector<8x8x8xf32> -> vector<8x8x8xf32>
    "tpu.trace_stop"() : () -> ()
    %209 = vector.broadcast %92 : vector<8x1x8xf32> to vector<8x8x8xf32>
    %210 = arith.addf %208, %209 : vector<8x8x8xf32>
    %cst_44 = arith.constant dense<0xFF800000> : vector<8x8xf32>
    %211 = vector.multi_reduction <maximumf>, %210, %cst_44 [2] : vector<8x8x8xf32> to vector<8x8xf32>
    %212 = vector.shape_cast %211 : vector<8x8xf32> to vector<8x8x1xf32>
    %213 = vector.broadcast %212 : vector<8x8x1xf32> to vector<8x8x8xf32>
    %214 = arith.subf %210, %213 : vector<8x8x8xf32>
    %215 = math.exp %214 : vector<8x8x8xf32>
    %cst_45 = arith.constant dense<0.000000e+00> : vector<8x8xf32>
    %216 = vector.multi_reduction <add>, %215, %cst_45 [2] : vector<8x8x8xf32> to vector<8x8xf32>
    %217 = vector.shape_cast %216 : vector<8x8xf32> to vector<8x8x1xf32>
    %218 = tpu.reciprocal %217 {approx = true} : vector<8x8x1xf32> -> vector<8x8x1xf32>
    %219 = vector.broadcast %218 : vector<8x8x1xf32> to vector<8x8x8xf32>
    %220 = arith.mulf %215, %219 : vector<8x8x8xf32>
    "tpu.trace_start"() <{level = 10 : i32, message = "bqk,bkd->bqd"}> : () -> ()
    %cst_46 = arith.constant dense<0.000000e+00> : vector<8x8x8xf32>
    %221 = tpu.matmul %220, %207, %cst_46 {dimension_numbers = #tpu.dot_dimension_numbers<[2], [1], [1], [2], [0, 0, 0, 1, 1, 2], [0], [0]>} : vector<8x8x8xf32>, vector<8x8x8xf32>, vector<8x8x8xf32> -> vector<8x8x8xf32>
    "tpu.trace_stop"() : () -> ()
    %222 = vector.extract_strided_slice %221 {offsets = [0, 0, 0], sizes = [2, 8, 8], strides = [1, 1, 1]} : vector<8x8x8xf32> to vector<2x8x8xf32>
    %223 = vector.extract_strided_slice %221 {offsets = [2, 0, 0], sizes = [2, 8, 8], strides = [1, 1, 1]} : vector<8x8x8xf32> to vector<2x8x8xf32>
    %224 = vector.extract_strided_slice %221 {offsets = [4, 0, 0], sizes = [2, 8, 8], strides = [1, 1, 1]} : vector<8x8x8xf32> to vector<2x8x8xf32>
    %225 = vector.extract_strided_slice %221 {offsets = [6, 0, 0], sizes = [2, 8, 8], strides = [1, 1, 1]} : vector<8x8x8xf32> to vector<2x8x8xf32>
    %226 = tpu.concatenate %222, %223, %224, %225 in 2 : vector<2x8x8xf32>, vector<2x8x8xf32>, vector<2x8x8xf32>, vector<2x8x8xf32> -> vector<2x8x32xf32>
    %227 = vector.shape_cast %226 : vector<2x8x32xf32> to vector<16x32xf32>
    %cst_47 = arith.constant dense<0.000000e+00> : vector<16x32xf32>
    %228 = tpu.matmul %227, %103, %cst_47 {dimension_numbers = #tpu.dot_dimension_numbers<[1], [0], [0], [1], [0, 0, 1, 1], [], []>} : vector<16x32xf32>, vector<32x32xf32>, vector<16x32xf32> -> vector<16x32xf32>
    %229 = vector.broadcast %113 : vector<1x32xf32> to vector<16x32xf32>
    %230 = arith.addf %228, %229 : vector<16x32xf32>
    %231 = arith.addf %230, %187 : vector<16x32xf32>
    %cst_48 = arith.constant dense<0.000000e+00> : vector<16xf32>
    %232 = vector.multi_reduction <add>, %231, %cst_48 [1] : vector<16x32xf32> to vector<16xf32>
    %233 = vector.shape_cast %232 : vector<16xf32> to vector<16x1xf32>
    %cst_49 = arith.constant 3.200000e+01 : f32
    %234 = vector.broadcast %cst_49 : f32 to vector<16x1xf32>
    %235 = arith.divf %233, %234 : vector<16x1xf32>
    %236 = vector.broadcast %235 : vector<16x1xf32> to vector<16x32xf32>
    %237 = arith.subf %231, %236 : vector<16x32xf32>
    %238 = vector.broadcast %235 : vector<16x1xf32> to vector<16x32xf32>
    %239 = arith.subf %231, %238 : vector<16x32xf32>
    %240 = arith.mulf %237, %239 : vector<16x32xf32>
    %cst_50 = arith.constant dense<0.000000e+00> : vector<16xf32>
    %241 = vector.multi_reduction <add>, %240, %cst_50 [1] : vector<16x32xf32> to vector<16xf32>
    %242 = vector.shape_cast %241 : vector<16xf32> to vector<16x1xf32>
    %cst_51 = arith.constant 3.200000e+01 : f32
    %243 = vector.broadcast %cst_51 : f32 to vector<16x1xf32>
    %244 = arith.divf %242, %243 : vector<16x1xf32>
    %245 = vector.broadcast %235 : vector<16x1xf32> to vector<16x32xf32>
    %246 = arith.subf %231, %245 : vector<16x32xf32>
    %cst_52 = arith.constant 9.99999974E-6 : f32
    %247 = vector.broadcast %cst_52 : f32 to vector<16x1xf32>
    %248 = arith.addf %244, %247 : vector<16x1xf32>
    %249 = math.rsqrt %248 : vector<16x1xf32>
    %250 = vector.broadcast %249 : vector<16x1xf32> to vector<16x32xf32>
    %251 = arith.mulf %246, %250 : vector<16x32xf32>
    %252 = vector.broadcast %114 : vector<1x32xf32> to vector<16x32xf32>
    %253 = arith.mulf %251, %252 : vector<16x32xf32>
    %254 = vector.broadcast %115 : vector<1x32xf32> to vector<16x32xf32>
    %255 = arith.addf %253, %254 : vector<16x32xf32>
    %cst_53 = arith.constant dense<0.000000e+00> : vector<16x64xf32>
    %256 = tpu.matmul %255, %105, %cst_53 {dimension_numbers = #tpu.dot_dimension_numbers<[1], [0], [0], [1], [0, 0, 1, 1], [], []>} : vector<16x32xf32>, vector<32x64xf32>, vector<16x64xf32> -> vector<16x64xf32>
    %257 = vector.broadcast %119 : vector<1x64xf32> to vector<16x64xf32>
    %258 = arith.addf %256, %257 : vector<16x64xf32>
    %cst_54 = arith.constant 0.000000e+00 : f32
    %259 = vector.broadcast %cst_54 : f32 to vector<16x64xf32>
    %260 = arith.maximumf %258, %259 : vector<16x64xf32>
    %cst_55 = arith.constant dense<0.000000e+00> : vector<16x32xf32>
    %261 = tpu.matmul %260, %107, %cst_55 {dimension_numbers = #tpu.dot_dimension_numbers<[1], [0], [0], [1], [0, 0, 1, 1], [], []>} : vector<16x64xf32>, vector<64x32xf32>, vector<16x32xf32> -> vector<16x32xf32>
    %262 = vector.broadcast %118 : vector<1x32xf32> to vector<16x32xf32>
    %263 = arith.addf %261, %262 : vector<16x32xf32>
    %264 = arith.addf %263, %255 : vector<16x32xf32>
    %cst_56 = arith.constant dense<0.000000e+00> : vector<16xf32>
    %265 = vector.multi_reduction <add>, %264, %cst_56 [1] : vector<16x32xf32> to vector<16xf32>
    %266 = vector.shape_cast %265 : vector<16xf32> to vector<16x1xf32>
    %cst_57 = arith.constant 3.200000e+01 : f32
    %267 = vector.broadcast %cst_57 : f32 to vector<16x1xf32>
    %268 = arith.divf %266, %267 : vector<16x1xf32>
    %269 = vector.broadcast %268 : vector<16x1xf32> to vector<16x32xf32>
    %270 = arith.subf %264, %269 : vector<16x32xf32>
    %271 = vector.broadcast %268 : vector<16x1xf32> to vector<16x32xf32>
    %272 = arith.subf %264, %271 : vector<16x32xf32>
    %273 = arith.mulf %270, %272 : vector<16x32xf32>
    %cst_58 = arith.constant dense<0.000000e+00> : vector<16xf32>
    %274 = vector.multi_reduction <add>, %273, %cst_58 [1] : vector<16x32xf32> to vector<16xf32>
    %275 = vector.shape_cast %274 : vector<16xf32> to vector<16x1xf32>
    %cst_59 = arith.constant 3.200000e+01 : f32
    %276 = vector.broadcast %cst_59 : f32 to vector<16x1xf32>
    %277 = arith.divf %275, %276 : vector<16x1xf32>
    %278 = vector.broadcast %268 : vector<16x1xf32> to vector<16x32xf32>
    %279 = arith.subf %264, %278 : vector<16x32xf32>
    %cst_60 = arith.constant 9.99999974E-6 : f32
    %280 = vector.broadcast %cst_60 : f32 to vector<16x1xf32>
    %281 = arith.addf %277, %280 : vector<16x1xf32>
    %282 = math.rsqrt %281 : vector<16x1xf32>
    %283 = vector.broadcast %282 : vector<16x1xf32> to vector<16x32xf32>
    %284 = arith.mulf %279, %283 : vector<16x32xf32>
    %285 = vector.broadcast %116 : vector<1x32xf32> to vector<16x32xf32>
    %286 = arith.mulf %284, %285 : vector<16x32xf32>
    %287 = vector.broadcast %117 : vector<1x32xf32> to vector<16x32xf32>
    %288 = arith.addf %286, %287 : vector<16x32xf32>
    %c1_61 = arith.constant 1 : index
    %c0_62 = arith.constant 0 : index
    %c0_63 = arith.constant 0 : index
    %289 = vector.load %arg7[%c1_61, %c0_62, %c0_63] : memref<2x32x320xf32, #tpu.memory_space<vmem>>, vector<1x32x96xf32>
    %290 = vector.shape_cast %289 : vector<1x32x96xf32> to vector<32x96xf32>
    %c1_64 = arith.constant 1 : index
    %c0_65 = arith.constant 0 : index
    %c96_66 = arith.constant 96 : index
    %291 = vector.load %arg7[%c1_64, %c0_65, %c96_66] : memref<2x32x320xf32, #tpu.memory_space<vmem>>, vector<1x32x32xf32>
    %292 = vector.shape_cast %291 : vector<1x32x32xf32> to vector<32x32xf32>
    %c1_67 = arith.constant 1 : index
    %c0_68 = arith.constant 0 : index
    %c128_69 = arith.constant 128 : index
    %293 = vector.load %arg7[%c1_67, %c0_68, %c128_69] : memref<2x32x320xf32, #tpu.memory_space<vmem>>, vector<1x32x32xf32>
    %294 = vector.shape_cast %293 : vector<1x32x32xf32> to vector<32x32xf32>
    %c1_70 = arith.constant 1 : index
    %c0_71 = arith.constant 0 : index
    %c160_72 = arith.constant 160 : index
    %295 = vector.load %arg7[%c1_70, %c0_71, %c160_72] : memref<2x32x320xf32, #tpu.memory_space<vmem>>, vector<1x32x64xf32>
    %296 = vector.shape_cast %295 : vector<1x32x64xf32> to vector<32x64xf32>
    %c1_73 = arith.constant 1 : index
    %c0_74 = arith.constant 0 : index
    %c224_75 = arith.constant 224 : index
    %297 = vector.load %arg7[%c1_73, %c0_74, %c224_75] : memref<2x32x320xf32, #tpu.memory_space<vmem>>, vector<1x32x32xf32>
    %298 = vector.shape_cast %297 : vector<1x32x32xf32> to vector<32x32xf32>
    %c1_76 = arith.constant 1 : index
    %c0_77 = arith.constant 0 : index
    %c256_78 = arith.constant 256 : index
    %299 = vector.load %arg7[%c1_76, %c0_77, %c256_78] : memref<2x32x320xf32, #tpu.memory_space<vmem>>, vector<1x32x64xf32>
    %300 = vector.shape_cast %299 : vector<1x32x64xf32> to vector<32x64xf32>
    %c1_79 = arith.constant 1 : index
    %c0_80 = arith.constant 0 : index
    %c0_81 = arith.constant 0 : index
    %301 = vector.load %arg8[%c1_79, %c0_80, %c0_81] : memref<2x64x32xf32, #tpu.memory_space<vmem>>, vector<1x64x32xf32>
    %302 = vector.shape_cast %301 : vector<1x64x32xf32> to vector<64x32xf32>
    %c1_82 = arith.constant 1 : index
    %c0_83 = arith.constant 0 : index
    %c0_84 = arith.constant 0 : index
    %303 = vector.load %arg9[%c1_82, %c0_83, %c0_84] : memref<2x10x64xf32, #tpu.memory_space<vmem>>, vector<1x10x64xf32>
    %304 = vector.shape_cast %303 : vector<1x10x64xf32> to vector<10x64xf32>
    %305 = vector.extract_strided_slice %304 {offsets = [0, 0], sizes = [1, 32], strides = [1, 1]} : vector<10x64xf32> to vector<1x32xf32>
    %306 = vector.extract_strided_slice %304 {offsets = [1, 0], sizes = [1, 32], strides = [1, 1]} : vector<10x64xf32> to vector<1x32xf32>
    %307 = vector.extract_strided_slice %304 {offsets = [2, 0], sizes = [1, 32], strides = [1, 1]} : vector<10x64xf32> to vector<1x32xf32>
    %308 = vector.extract_strided_slice %304 {offsets = [3, 0], sizes = [1, 32], strides = [1, 1]} : vector<10x64xf32> to vector<1x32xf32>
    %309 = vector.extract_strided_slice %304 {offsets = [4, 0], sizes = [1, 32], strides = [1, 1]} : vector<10x64xf32> to vector<1x32xf32>
    %310 = vector.extract_strided_slice %304 {offsets = [5, 0], sizes = [1, 32], strides = [1, 1]} : vector<10x64xf32> to vector<1x32xf32>
    %311 = vector.extract_strided_slice %304 {offsets = [6, 0], sizes = [1, 32], strides = [1, 1]} : vector<10x64xf32> to vector<1x32xf32>
    %312 = vector.extract_strided_slice %304 {offsets = [7, 0], sizes = [1, 32], strides = [1, 1]} : vector<10x64xf32> to vector<1x32xf32>
    %313 = vector.extract_strided_slice %304 {offsets = [8, 0], sizes = [1, 32], strides = [1, 1]} : vector<10x64xf32> to vector<1x32xf32>
    %314 = vector.extract_strided_slice %304 {offsets = [9, 0], sizes = [1, 64], strides = [1, 1]} : vector<10x64xf32> to vector<1x64xf32>
    %cst_85 = arith.constant dense<0.000000e+00> : vector<16x96xf32>
    %315 = tpu.matmul %288, %290, %cst_85 {dimension_numbers = #tpu.dot_dimension_numbers<[1], [0], [0], [1], [0, 0, 1, 1], [], []>} : vector<16x32xf32>, vector<32x96xf32>, vector<16x96xf32> -> vector<16x96xf32>
    %316 = vector.shape_cast %315 : vector<16x96xf32> to vector<2x8x96xf32>
    %317 = vector.extract_strided_slice %316 {offsets = [0, 0, 0], sizes = [2, 8, 8], strides = [1, 1, 1]} : vector<2x8x96xf32> to vector<2x8x8xf32>
    %318 = vector.extract_strided_slice %316 {offsets = [0, 0, 8], sizes = [2, 8, 8], strides = [1, 1, 1]} : vector<2x8x96xf32> to vector<2x8x8xf32>
    %319 = vector.extract_strided_slice %316 {offsets = [0, 0, 16], sizes = [2, 8, 8], strides = [1, 1, 1]} : vector<2x8x96xf32> to vector<2x8x8xf32>
    %320 = vector.extract_strided_slice %316 {offsets = [0, 0, 24], sizes = [2, 8, 8], strides = [1, 1, 1]} : vector<2x8x96xf32> to vector<2x8x8xf32>
    %321 = tpu.concatenate %317, %318, %319, %320 in 0 : vector<2x8x8xf32>, vector<2x8x8xf32>, vector<2x8x8xf32>, vector<2x8x8xf32> -> vector<8x8x8xf32>
    %322 = vector.shape_cast %315 : vector<16x96xf32> to vector<2x8x96xf32>
    %323 = vector.extract_strided_slice %322 {offsets = [0, 0, 32], sizes = [2, 8, 8], strides = [1, 1, 1]} : vector<2x8x96xf32> to vector<2x8x8xf32>
    %324 = vector.extract_strided_slice %322 {offsets = [0, 0, 40], sizes = [2, 8, 8], strides = [1, 1, 1]} : vector<2x8x96xf32> to vector<2x8x8xf32>
    %325 = vector.extract_strided_slice %322 {offsets = [0, 0, 48], sizes = [2, 8, 8], strides = [1, 1, 1]} : vector<2x8x96xf32> to vector<2x8x8xf32>
    %326 = vector.extract_strided_slice %322 {offsets = [0, 0, 56], sizes = [2, 8, 8], strides = [1, 1, 1]} : vector<2x8x96xf32> to vector<2x8x8xf32>
    %327 = tpu.concatenate %323, %324, %325, %326 in 0 : vector<2x8x8xf32>, vector<2x8x8xf32>, vector<2x8x8xf32>, vector<2x8x8xf32> -> vector<8x8x8xf32>
    %328 = vector.shape_cast %315 : vector<16x96xf32> to vector<2x8x96xf32>
    %329 = vector.extract_strided_slice %328 {offsets = [0, 0, 64], sizes = [2, 8, 8], strides = [1, 1, 1]} : vector<2x8x96xf32> to vector<2x8x8xf32>
    %330 = vector.extract_strided_slice %328 {offsets = [0, 0, 72], sizes = [2, 8, 8], strides = [1, 1, 1]} : vector<2x8x96xf32> to vector<2x8x8xf32>
    %331 = vector.extract_strided_slice %328 {offsets = [0, 0, 80], sizes = [2, 8, 8], strides = [1, 1, 1]} : vector<2x8x96xf32> to vector<2x8x8xf32>
    %332 = vector.extract_strided_slice %328 {offsets = [0, 0, 88], sizes = [2, 8, 8], strides = [1, 1, 1]} : vector<2x8x96xf32> to vector<2x8x8xf32>
    %333 = tpu.concatenate %329, %330, %331, %332 in 0 : vector<2x8x8xf32>, vector<2x8x8xf32>, vector<2x8x8xf32>, vector<2x8x8xf32> -> vector<8x8x8xf32>
    "tpu.trace_start"() <{level = 10 : i32, message = "bqd,bkd->bqk"}> : () -> ()
    %cst_86 = arith.constant dense<0.000000e+00> : vector<8x8x8xf32>
    %334 = tpu.matmul %321, %327, %cst_86 {dimension_numbers = #tpu.dot_dimension_numbers<[2], [2], [1], [1], [0, 0, 0, 1, 1, 1], [0], [0]>} : vector<8x8x8xf32>, vector<8x8x8xf32>, vector<8x8x8xf32> -> vector<8x8x8xf32>
    "tpu.trace_stop"() : () -> ()
    %335 = vector.shape_cast %91 : vector<8x8xf32> to vector<1x8x8xf32>
    %336 = vector.broadcast %335 : vector<1x8x8xf32> to vector<8x8x8xf32>
    %337 = arith.addf %334, %336 : vector<8x8x8xf32>
    %cst_87 = arith.constant dense<0xFF800000> : vector<8x8xf32>
    %338 = vector.multi_reduction <maximumf>, %337, %cst_87 [2] : vector<8x8x8xf32> to vector<8x8xf32>
    %339 = vector.shape_cast %338 : vector<8x8xf32> to vector<8x8x1xf32>
    %340 = vector.broadcast %339 : vector<8x8x1xf32> to vector<8x8x8xf32>
    %341 = arith.subf %337, %340 : vector<8x8x8xf32>
    %342 = math.exp %341 : vector<8x8x8xf32>
    %cst_88 = arith.constant dense<0.000000e+00> : vector<8x8xf32>
    %343 = vector.multi_reduction <add>, %342, %cst_88 [2] : vector<8x8x8xf32> to vector<8x8xf32>
    %344 = vector.shape_cast %343 : vector<8x8xf32> to vector<8x8x1xf32>
    %345 = tpu.reciprocal %344 {approx = true} : vector<8x8x1xf32> -> vector<8x8x1xf32>
    %346 = vector.broadcast %345 : vector<8x8x1xf32> to vector<8x8x8xf32>
    %347 = arith.mulf %342, %346 : vector<8x8x8xf32>
    "tpu.trace_start"() <{level = 10 : i32, message = "bqk,bkd->bqd"}> : () -> ()
    %cst_89 = arith.constant dense<0.000000e+00> : vector<8x8x8xf32>
    %348 = tpu.matmul %347, %333, %cst_89 {dimension_numbers = #tpu.dot_dimension_numbers<[2], [1], [1], [2], [0, 0, 0, 1, 1, 2], [0], [0]>} : vector<8x8x8xf32>, vector<8x8x8xf32>, vector<8x8x8xf32> -> vector<8x8x8xf32>
    "tpu.trace_stop"() : () -> ()
    %349 = vector.extract_strided_slice %348 {offsets = [0, 0, 0], sizes = [2, 8, 8], strides = [1, 1, 1]} : vector<8x8x8xf32> to vector<2x8x8xf32>
    %350 = vector.extract_strided_slice %348 {offsets = [2, 0, 0], sizes = [2, 8, 8], strides = [1, 1, 1]} : vector<8x8x8xf32> to vector<2x8x8xf32>
    %351 = vector.extract_strided_slice %348 {offsets = [4, 0, 0], sizes = [2, 8, 8], strides = [1, 1, 1]} : vector<8x8x8xf32> to vector<2x8x8xf32>
    %352 = vector.extract_strided_slice %348 {offsets = [6, 0, 0], sizes = [2, 8, 8], strides = [1, 1, 1]} : vector<8x8x8xf32> to vector<2x8x8xf32>
    %353 = tpu.concatenate %349, %350, %351, %352 in 2 : vector<2x8x8xf32>, vector<2x8x8xf32>, vector<2x8x8xf32>, vector<2x8x8xf32> -> vector<2x8x32xf32>
    %354 = vector.shape_cast %353 : vector<2x8x32xf32> to vector<16x32xf32>
    %cst_90 = arith.constant dense<0.000000e+00> : vector<16x32xf32>
    %355 = tpu.matmul %354, %292, %cst_90 {dimension_numbers = #tpu.dot_dimension_numbers<[1], [0], [0], [1], [0, 0, 1, 1], [], []>} : vector<16x32xf32>, vector<32x32xf32>, vector<16x32xf32> -> vector<16x32xf32>
    %356 = vector.broadcast %305 : vector<1x32xf32> to vector<16x32xf32>
    %357 = arith.addf %355, %356 : vector<16x32xf32>
    %358 = arith.addf %357, %288 : vector<16x32xf32>
    %cst_91 = arith.constant dense<0.000000e+00> : vector<16xf32>
    %359 = vector.multi_reduction <add>, %358, %cst_91 [1] : vector<16x32xf32> to vector<16xf32>
    %360 = vector.shape_cast %359 : vector<16xf32> to vector<16x1xf32>
    %cst_92 = arith.constant 3.200000e+01 : f32
    %361 = vector.broadcast %cst_92 : f32 to vector<16x1xf32>
    %362 = arith.divf %360, %361 : vector<16x1xf32>
    %363 = vector.broadcast %362 : vector<16x1xf32> to vector<16x32xf32>
    %364 = arith.subf %358, %363 : vector<16x32xf32>
    %365 = vector.broadcast %362 : vector<16x1xf32> to vector<16x32xf32>
    %366 = arith.subf %358, %365 : vector<16x32xf32>
    %367 = arith.mulf %364, %366 : vector<16x32xf32>
    %cst_93 = arith.constant dense<0.000000e+00> : vector<16xf32>
    %368 = vector.multi_reduction <add>, %367, %cst_93 [1] : vector<16x32xf32> to vector<16xf32>
    %369 = vector.shape_cast %368 : vector<16xf32> to vector<16x1xf32>
    %cst_94 = arith.constant 3.200000e+01 : f32
    %370 = vector.broadcast %cst_94 : f32 to vector<16x1xf32>
    %371 = arith.divf %369, %370 : vector<16x1xf32>
    %372 = vector.broadcast %362 : vector<16x1xf32> to vector<16x32xf32>
    %373 = arith.subf %358, %372 : vector<16x32xf32>
    %cst_95 = arith.constant 9.99999974E-6 : f32
    %374 = vector.broadcast %cst_95 : f32 to vector<16x1xf32>
    %375 = arith.addf %371, %374 : vector<16x1xf32>
    %376 = math.rsqrt %375 : vector<16x1xf32>
    %377 = vector.broadcast %376 : vector<16x1xf32> to vector<16x32xf32>
    %378 = arith.mulf %373, %377 : vector<16x32xf32>
    %379 = vector.broadcast %306 : vector<1x32xf32> to vector<16x32xf32>
    %380 = arith.mulf %378, %379 : vector<16x32xf32>
    %381 = vector.broadcast %307 : vector<1x32xf32> to vector<16x32xf32>
    %382 = arith.addf %380, %381 : vector<16x32xf32>
    %cst_96 = arith.constant dense<0.000000e+00> : vector<16x32xf32>
    %383 = tpu.matmul %382, %294, %cst_96 {dimension_numbers = #tpu.dot_dimension_numbers<[1], [0], [0], [1], [0, 0, 1, 1], [], []>} : vector<16x32xf32>, vector<32x32xf32>, vector<16x32xf32> -> vector<16x32xf32>
    %cst_97 = arith.constant dense<0.000000e+00> : vector<16x64xf32>
    %384 = tpu.matmul %93, %296, %cst_97 {dimension_numbers = #tpu.dot_dimension_numbers<[1], [0], [0], [1], [0, 0, 1, 1], [], []>} : vector<16x32xf32>, vector<32x64xf32>, vector<16x64xf32> -> vector<16x64xf32>
    %385 = vector.shape_cast %383 : vector<16x32xf32> to vector<2x8x32xf32>
    %386 = vector.extract_strided_slice %385 {offsets = [0, 0, 0], sizes = [2, 8, 8], strides = [1, 1, 1]} : vector<2x8x32xf32> to vector<2x8x8xf32>
    %387 = vector.extract_strided_slice %385 {offsets = [0, 0, 8], sizes = [2, 8, 8], strides = [1, 1, 1]} : vector<2x8x32xf32> to vector<2x8x8xf32>
    %388 = vector.extract_strided_slice %385 {offsets = [0, 0, 16], sizes = [2, 8, 8], strides = [1, 1, 1]} : vector<2x8x32xf32> to vector<2x8x8xf32>
    %389 = vector.extract_strided_slice %385 {offsets = [0, 0, 24], sizes = [2, 8, 8], strides = [1, 1, 1]} : vector<2x8x32xf32> to vector<2x8x8xf32>
    %390 = tpu.concatenate %386, %387, %388, %389 in 0 : vector<2x8x8xf32>, vector<2x8x8xf32>, vector<2x8x8xf32>, vector<2x8x8xf32> -> vector<8x8x8xf32>
    %391 = vector.shape_cast %384 : vector<16x64xf32> to vector<2x8x64xf32>
    %392 = vector.extract_strided_slice %391 {offsets = [0, 0, 0], sizes = [2, 8, 8], strides = [1, 1, 1]} : vector<2x8x64xf32> to vector<2x8x8xf32>
    %393 = vector.extract_strided_slice %391 {offsets = [0, 0, 8], sizes = [2, 8, 8], strides = [1, 1, 1]} : vector<2x8x64xf32> to vector<2x8x8xf32>
    %394 = vector.extract_strided_slice %391 {offsets = [0, 0, 16], sizes = [2, 8, 8], strides = [1, 1, 1]} : vector<2x8x64xf32> to vector<2x8x8xf32>
    %395 = vector.extract_strided_slice %391 {offsets = [0, 0, 24], sizes = [2, 8, 8], strides = [1, 1, 1]} : vector<2x8x64xf32> to vector<2x8x8xf32>
    %396 = tpu.concatenate %392, %393, %394, %395 in 0 : vector<2x8x8xf32>, vector<2x8x8xf32>, vector<2x8x8xf32>, vector<2x8x8xf32> -> vector<8x8x8xf32>
    %397 = vector.shape_cast %384 : vector<16x64xf32> to vector<2x8x64xf32>
    %398 = vector.extract_strided_slice %397 {offsets = [0, 0, 32], sizes = [2, 8, 8], strides = [1, 1, 1]} : vector<2x8x64xf32> to vector<2x8x8xf32>
    %399 = vector.extract_strided_slice %397 {offsets = [0, 0, 40], sizes = [2, 8, 8], strides = [1, 1, 1]} : vector<2x8x64xf32> to vector<2x8x8xf32>
    %400 = vector.extract_strided_slice %397 {offsets = [0, 0, 48], sizes = [2, 8, 8], strides = [1, 1, 1]} : vector<2x8x64xf32> to vector<2x8x8xf32>
    %401 = vector.extract_strided_slice %397 {offsets = [0, 0, 56], sizes = [2, 8, 8], strides = [1, 1, 1]} : vector<2x8x64xf32> to vector<2x8x8xf32>
    %402 = tpu.concatenate %398, %399, %400, %401 in 0 : vector<2x8x8xf32>, vector<2x8x8xf32>, vector<2x8x8xf32>, vector<2x8x8xf32> -> vector<8x8x8xf32>
    "tpu.trace_start"() <{level = 10 : i32, message = "bqd,bkd->bqk"}> : () -> ()
    %cst_98 = arith.constant dense<0.000000e+00> : vector<8x8x8xf32>
    %403 = tpu.matmul %390, %396, %cst_98 {dimension_numbers = #tpu.dot_dimension_numbers<[2], [2], [1], [1], [0, 0, 0, 1, 1, 1], [0], [0]>} : vector<8x8x8xf32>, vector<8x8x8xf32>, vector<8x8x8xf32> -> vector<8x8x8xf32>
    "tpu.trace_stop"() : () -> ()
    %404 = vector.broadcast %92 : vector<8x1x8xf32> to vector<8x8x8xf32>
    %405 = arith.addf %403, %404 : vector<8x8x8xf32>
    %cst_99 = arith.constant dense<0xFF800000> : vector<8x8xf32>
    %406 = vector.multi_reduction <maximumf>, %405, %cst_99 [2] : vector<8x8x8xf32> to vector<8x8xf32>
    %407 = vector.shape_cast %406 : vector<8x8xf32> to vector<8x8x1xf32>
    %408 = vector.broadcast %407 : vector<8x8x1xf32> to vector<8x8x8xf32>
    %409 = arith.subf %405, %408 : vector<8x8x8xf32>
    %410 = math.exp %409 : vector<8x8x8xf32>
    %cst_100 = arith.constant dense<0.000000e+00> : vector<8x8xf32>
    %411 = vector.multi_reduction <add>, %410, %cst_100 [2] : vector<8x8x8xf32> to vector<8x8xf32>
    %412 = vector.shape_cast %411 : vector<8x8xf32> to vector<8x8x1xf32>
    %413 = tpu.reciprocal %412 {approx = true} : vector<8x8x1xf32> -> vector<8x8x1xf32>
    %414 = vector.broadcast %413 : vector<8x8x1xf32> to vector<8x8x8xf32>
    %415 = arith.mulf %410, %414 : vector<8x8x8xf32>
    "tpu.trace_start"() <{level = 10 : i32, message = "bqk,bkd->bqd"}> : () -> ()
    %cst_101 = arith.constant dense<0.000000e+00> : vector<8x8x8xf32>
    %416 = tpu.matmul %415, %402, %cst_101 {dimension_numbers = #tpu.dot_dimension_numbers<[2], [1], [1], [2], [0, 0, 0, 1, 1, 2], [0], [0]>} : vector<8x8x8xf32>, vector<8x8x8xf32>, vector<8x8x8xf32> -> vector<8x8x8xf32>
    "tpu.trace_stop"() : () -> ()
    %417 = vector.extract_strided_slice %416 {offsets = [0, 0, 0], sizes = [2, 8, 8], strides = [1, 1, 1]} : vector<8x8x8xf32> to vector<2x8x8xf32>
    %418 = vector.extract_strided_slice %416 {offsets = [2, 0, 0], sizes = [2, 8, 8], strides = [1, 1, 1]} : vector<8x8x8xf32> to vector<2x8x8xf32>
    %419 = vector.extract_strided_slice %416 {offsets = [4, 0, 0], sizes = [2, 8, 8], strides = [1, 1, 1]} : vector<8x8x8xf32> to vector<2x8x8xf32>
    %420 = vector.extract_strided_slice %416 {offsets = [6, 0, 0], sizes = [2, 8, 8], strides = [1, 1, 1]} : vector<8x8x8xf32> to vector<2x8x8xf32>
    %421 = tpu.concatenate %417, %418, %419, %420 in 2 : vector<2x8x8xf32>, vector<2x8x8xf32>, vector<2x8x8xf32>, vector<2x8x8xf32> -> vector<2x8x32xf32>
    %422 = vector.shape_cast %421 : vector<2x8x32xf32> to vector<16x32xf32>
    %cst_102 = arith.constant dense<0.000000e+00> : vector<16x32xf32>
    %423 = tpu.matmul %422, %298, %cst_102 {dimension_numbers = #tpu.dot_dimension_numbers<[1], [0], [0], [1], [0, 0, 1, 1], [], []>} : vector<16x32xf32>, vector<32x32xf32>, vector<16x32xf32> -> vector<16x32xf32>
    %424 = vector.broadcast %308 : vector<1x32xf32> to vector<16x32xf32>
    %425 = arith.addf %423, %424 : vector<16x32xf32>
    %426 = arith.addf %425, %382 : vector<16x32xf32>
    %cst_103 = arith.constant dense<0.000000e+00> : vector<16xf32>
    %427 = vector.multi_reduction <add>, %426, %cst_103 [1] : vector<16x32xf32> to vector<16xf32>
    %428 = vector.shape_cast %427 : vector<16xf32> to vector<16x1xf32>
    %cst_104 = arith.constant 3.200000e+01 : f32
    %429 = vector.broadcast %cst_104 : f32 to vector<16x1xf32>
    %430 = arith.divf %428, %429 : vector<16x1xf32>
    %431 = vector.broadcast %430 : vector<16x1xf32> to vector<16x32xf32>
    %432 = arith.subf %426, %431 : vector<16x32xf32>
    %433 = vector.broadcast %430 : vector<16x1xf32> to vector<16x32xf32>
    %434 = arith.subf %426, %433 : vector<16x32xf32>
    %435 = arith.mulf %432, %434 : vector<16x32xf32>
    %cst_105 = arith.constant dense<0.000000e+00> : vector<16xf32>
    %436 = vector.multi_reduction <add>, %435, %cst_105 [1] : vector<16x32xf32> to vector<16xf32>
    %437 = vector.shape_cast %436 : vector<16xf32> to vector<16x1xf32>
    %cst_106 = arith.constant 3.200000e+01 : f32
    %438 = vector.broadcast %cst_106 : f32 to vector<16x1xf32>
    %439 = arith.divf %437, %438 : vector<16x1xf32>
    %440 = vector.broadcast %430 : vector<16x1xf32> to vector<16x32xf32>
    %441 = arith.subf %426, %440 : vector<16x32xf32>
    %cst_107 = arith.constant 9.99999974E-6 : f32
    %442 = vector.broadcast %cst_107 : f32 to vector<16x1xf32>
    %443 = arith.addf %439, %442 : vector<16x1xf32>
    %444 = math.rsqrt %443 : vector<16x1xf32>
    %445 = vector.broadcast %444 : vector<16x1xf32> to vector<16x32xf32>
    %446 = arith.mulf %441, %445 : vector<16x32xf32>
    %447 = vector.broadcast %309 : vector<1x32xf32> to vector<16x32xf32>
    %448 = arith.mulf %446, %447 : vector<16x32xf32>
    %449 = vector.broadcast %310 : vector<1x32xf32> to vector<16x32xf32>
    %450 = arith.addf %448, %449 : vector<16x32xf32>
    %cst_108 = arith.constant dense<0.000000e+00> : vector<16x64xf32>
    %451 = tpu.matmul %450, %300, %cst_108 {dimension_numbers = #tpu.dot_dimension_numbers<[1], [0], [0], [1], [0, 0, 1, 1], [], []>} : vector<16x32xf32>, vector<32x64xf32>, vector<16x64xf32> -> vector<16x64xf32>
    %452 = vector.broadcast %314 : vector<1x64xf32> to vector<16x64xf32>
    %453 = arith.addf %451, %452 : vector<16x64xf32>
    %cst_109 = arith.constant 0.000000e+00 : f32
    %454 = vector.broadcast %cst_109 : f32 to vector<16x64xf32>
    %455 = arith.maximumf %453, %454 : vector<16x64xf32>
    %cst_110 = arith.constant dense<0.000000e+00> : vector<16x32xf32>
    %456 = tpu.matmul %455, %302, %cst_110 {dimension_numbers = #tpu.dot_dimension_numbers<[1], [0], [0], [1], [0, 0, 1, 1], [], []>} : vector<16x64xf32>, vector<64x32xf32>, vector<16x32xf32> -> vector<16x32xf32>
    %457 = vector.broadcast %313 : vector<1x32xf32> to vector<16x32xf32>
    %458 = arith.addf %456, %457 : vector<16x32xf32>
    %459 = arith.addf %458, %450 : vector<16x32xf32>
    %cst_111 = arith.constant dense<0.000000e+00> : vector<16xf32>
    %460 = vector.multi_reduction <add>, %459, %cst_111 [1] : vector<16x32xf32> to vector<16xf32>
    %461 = vector.shape_cast %460 : vector<16xf32> to vector<16x1xf32>
    %cst_112 = arith.constant 3.200000e+01 : f32
    %462 = vector.broadcast %cst_112 : f32 to vector<16x1xf32>
    %463 = arith.divf %461, %462 : vector<16x1xf32>
    %464 = vector.broadcast %463 : vector<16x1xf32> to vector<16x32xf32>
    %465 = arith.subf %459, %464 : vector<16x32xf32>
    %466 = vector.broadcast %463 : vector<16x1xf32> to vector<16x32xf32>
    %467 = arith.subf %459, %466 : vector<16x32xf32>
    %468 = arith.mulf %465, %467 : vector<16x32xf32>
    %cst_113 = arith.constant dense<0.000000e+00> : vector<16xf32>
    %469 = vector.multi_reduction <add>, %468, %cst_113 [1] : vector<16x32xf32> to vector<16xf32>
    %470 = vector.shape_cast %469 : vector<16xf32> to vector<16x1xf32>
    %cst_114 = arith.constant 3.200000e+01 : f32
    %471 = vector.broadcast %cst_114 : f32 to vector<16x1xf32>
    %472 = arith.divf %470, %471 : vector<16x1xf32>
    %473 = vector.broadcast %463 : vector<16x1xf32> to vector<16x32xf32>
    %474 = arith.subf %459, %473 : vector<16x32xf32>
    %cst_115 = arith.constant 9.99999974E-6 : f32
    %475 = vector.broadcast %cst_115 : f32 to vector<16x1xf32>
    %476 = arith.addf %472, %475 : vector<16x1xf32>
    %477 = math.rsqrt %476 : vector<16x1xf32>
    %478 = vector.broadcast %477 : vector<16x1xf32> to vector<16x32xf32>
    %479 = arith.mulf %474, %478 : vector<16x32xf32>
    %480 = vector.broadcast %311 : vector<1x32xf32> to vector<16x32xf32>
    %481 = arith.mulf %479, %480 : vector<16x32xf32>
    %482 = vector.broadcast %312 : vector<1x32xf32> to vector<16x32xf32>
    %483 = arith.addf %481, %482 : vector<16x32xf32>
    %c0_116 = arith.constant 0 : index
    %c0_117 = arith.constant 0 : index
    %484 = vector.load %arg5[%c0_116, %c0_117] : memref<32x128xf32, #tpu.memory_space<vmem>>, vector<32x128xf32>
    %cst_118 = arith.constant dense<0.000000e+00> : vector<16x128xf32>
    %485 = tpu.matmul %483, %484, %cst_118 {dimension_numbers = #tpu.dot_dimension_numbers<[1], [0], [0], [1], [0, 0, 1, 1], [], []>} : vector<16x32xf32>, vector<32x128xf32>, vector<16x128xf32> -> vector<16x128xf32>
    %c0_119 = arith.constant 0 : index
    %c0_120 = arith.constant 0 : index
    %486 = vector.load %arg6[%c0_119, %c0_120] : memref<1x128xf32, #tpu.memory_space<vmem>>, vector<1x128xf32>
    %487 = vector.broadcast %486 : vector<1x128xf32> to vector<16x128xf32>
    %488 = arith.addf %485, %487 : vector<16x128xf32>
    %c0_121 = arith.constant 0 : index
    %c0_122 = arith.constant 0 : index
    %489 = vector.load %arg10[%c0_121, %c0_122] : memref<16x128xf32, #tpu.memory_space<vmem>>, vector<16x128xf32>
    tpu.vector_store %arg10[%c0_121, %c0_122], %488 {strides = array<i32>} : memref<16x128xf32, #tpu.memory_space<vmem>>, vector<16x128xf32>,
    return
  }
}

</mosaic_0001>

<llo_original>
// kernel: tpu_custom_call.1
$region0: #{tpu_custom_call.1}
  #allocation0 [shape = 'u32[]', space=smem, size = 0x4, offset = 0x4, fixed_abs, tag = 'smem constant byte address 0x4 - core index']
  #allocation1 [shape = 'u32[144,128]{1,0:T(1,128)}', space=vmem, size = 0x12000, scoped, tag = 'internal scratch']
  %s0 = inlined_call_operand.vmem [shape: s32[16], index: 0, kind: input, shape index: {}]
  %s1 = inlined_call_operand.vmem [shape: f32[16,32], index: 1, kind: input, shape index: {}]
  %s2 = inlined_call_operand.vmem [shape: f32[16,32], index: 2, kind: input, shape index: {}]
  %s3 = inlined_call_operand.vmem [shape: f32[8,1,8], index: 3, kind: input, shape index: {}]
  %s4 = inlined_call_operand.vmem [shape: f32[128,32], index: 4, kind: input, shape index: {}]
  %s5 = inlined_call_operand.vmem [shape: f32[32,128], index: 5, kind: input, shape index: {}]
  %s6 = inlined_call_operand.vmem [shape: f32[1,128], index: 6, kind: input, shape index: {}]
  %s7 = inlined_call_operand.vmem [shape: f32[2,32,320], index: 7, kind: input, shape index: {}]
  %s8 = inlined_call_operand.vmem [shape: f32[2,64,32], index: 8, kind: input, shape index: {}]
  %s9 = inlined_call_operand.vmem [shape: f32[2,10,64], index: 9, kind: input, shape index: {}]
  %s10 = inlined_call_operand.hbm [shape: f32[16,128], index: 10, kind: output, shape index: {}]
  %s11 = sld [smem:[#allocation0]]
  $region54: #{tpu_custom_call.1} parent=0
    _
  %s13 = ssub.s32 1, %s11
  %s14 = scalar_select 0, %s13, %s11
  $region1: #{tpu_custom_call.1} parent=0
    #allocation2 [shape = 'u8[512]{0}', space=smem, size = 0x200, scoped, tag = 'input window, operand 0, single buffered']
    #allocation3 [shape = 's32[1]{0}', space=sflag, size = 0x4, scoped, tag = 'scoped memory for tpu_custom_call.1']
    #allocation4 [shape = 's32[1]{0}', space=sflag, size = 0x4, scoped, tag = 'scoped memory for tpu_custom_call.1']
    #allocation5 [shape = 'u8[8192]{0}', space=vmem, size = 0x2000, scoped, tag = 'output window, operand 0, single buffered']
    %15 = vsyncpa [#allocation4], 0
    %16 = vsyncpa [#allocation3], 0
    // Predicated region
    $region2: #{tpu_custom_call.1} parent=1 // pred_check
      _
    $region3: #{tpu_custom_call.1} parent=1 // pred_check_branch
      %18 = sbr.rel (0) target = $region5
    $region4: #{tpu_custom_call.1} parent=1 // pred_region
      %s20 = ssub.s32 16, 16
      %21 = vsyncadd [#allocation4], %s20
      %s23 = sshll.u32 %s0, 4
      %s24 = int_to_ptr.vmem [resolvable:$true] %s23
      %26 = dma.vmem_to_smem %s24, 16, [#allocation2], [#allocation4]
    $region5: #{tpu_custom_call.1} parent=1 // pred_fallthru
      _
    // Predicated region
    $region6: #{tpu_custom_call.1} parent=1 // pred_check
      _
    $region7: #{tpu_custom_call.1} parent=1 // pred_check_branch
      %28 = sbr.rel (0) target = $region9
    $region8: #{tpu_custom_call.1} parent=1 // pred_region
      _
    $region9: #{tpu_custom_call.1} parent=1 // pred_fallthru
      _
    // Predicated region
    $region10: #{tpu_custom_call.1} parent=1 // pred_check
      _
    $region11: #{tpu_custom_call.1} parent=1 // pred_check_branch
      %30 = sbr.rel (0) target = $region13
    $region12: #{tpu_custom_call.1} parent=1 // pred_region
      _
    $region13: #{tpu_custom_call.1} parent=1 // pred_fallthru
      _
    // Predicated region
    $region14: #{tpu_custom_call.1} parent=1 // pred_check
      _
    $region15: #{tpu_custom_call.1} parent=1 // pred_check_branch
      %32 = sbr.rel (0) target = $region17
    $region16: #{tpu_custom_call.1} parent=1 // pred_region
      _
    $region17: #{tpu_custom_call.1} parent=1 // pred_fallthru
      _
    // Predicated region
    $region18: #{tpu_custom_call.1} parent=1 // pred_check
      _
    $region19: #{tpu_custom_call.1} parent=1 // pred_check_branch
      %34 = sbr.rel (0) target = $region21
    $region20: #{tpu_custom_call.1} parent=1 // pred_region
      _
    $region21: #{tpu_custom_call.1} parent=1 // pred_fallthru
      _
    // Predicated region
    $region22: #{tpu_custom_call.1} parent=1 // pred_check
      _
    $region23: #{tpu_custom_call.1} parent=1 // pred_check_branch
      %36 = sbr.rel (0) target = $region25
    $region24: #{tpu_custom_call.1} parent=1 // pred_region
      _
    $region25: #{tpu_custom_call.1} parent=1 // pred_fallthru
      _
    // Predicated region
    $region26: #{tpu_custom_call.1} parent=1 // pred_check
      _
    $region27: #{tpu_custom_call.1} parent=1 // pred_check_branch
      %38 = sbr.rel (0) target = $region29
    $region28: #{tpu_custom_call.1} parent=1 // pred_region
      _
    $region29: #{tpu_custom_call.1} parent=1 // pred_fallthru
      _
    // Predicated region
    $region30: #{tpu_custom_call.1} parent=1 // pred_check
      _
    $region31: #{tpu_custom_call.1} parent=1 // pred_check_branch
      %40 = sbr.rel (0) target = $region33
    $region32: #{tpu_custom_call.1} parent=1 // pred_region
      _
    $region33: #{tpu_custom_call.1} parent=1 // pred_fallthru
      _
    // Predicated region
    $region34: #{tpu_custom_call.1} parent=1 // pred_check
      _
    $region35: #{tpu_custom_call.1} parent=1 // pred_check_branch
      %42 = sbr.rel (0) target = $region37
    $region36: #{tpu_custom_call.1} parent=1 // pred_region
      _
    $region37: #{tpu_custom_call.1} parent=1 // pred_fallthru
      _
    // Predicated region
    $region38: #{tpu_custom_call.1} parent=1 // pred_check
      _
    $region39: #{tpu_custom_call.1} parent=1 // pred_check_branch
      %44 = sbr.rel (0) target = $region41
    $region40: #{tpu_custom_call.1} parent=1 // pred_region
      _
    $region41: #{tpu_custom_call.1} parent=1 // pred_fallthru
      _
    // Predicated region
    $region42: #{tpu_custom_call.1} parent=1 // pred_check
      _
    $region43: #{tpu_custom_call.1} parent=1 // pred_check_branch
      %46 = sbr.rel (0) target = $region45
    $region44: #{tpu_custom_call.1} parent=1 // pred_region
      %47 = dma.done [#allocation4], 16
    $region45: #{tpu_custom_call.1} parent=1 // pred_fallthru
      _
    %48 = sfence
    %v49 = vlaneseq
    %v50 = vand.u32 %v49, 127
    %s51 = sld [smem:[#allocation2]]
    %v52 = vstv %s51
    %vm53 = vcmp.eq.s32.totalorder %v50, %v52
    %v54 = vsel %vm53, 1, 0
    %v55 = vcvt.s32.f32 %v54
    %s56 = sld [smem:[#allocation2 + $0x1]]
    %v57 = vstv %s56
    %vm58 = vcmp.eq.s32.totalorder %v50, %v57
    %v59 = vsel %vm58, 1, 0
    %v60 = vcvt.s32.f32 %v59
    %s61 = sld [smem:[#allocation2 + $0x2]]
    %v62 = vstv %s61
    %vm63 = vcmp.eq.s32.totalorder %v50, %v62
    %v64 = vsel %vm63, 1, 0
    %v65 = vcvt.s32.f32 %v64
    %s66 = sld [smem:[#allocation2 + $0x3]]
    %v67 = vstv %s66
    %vm68 = vcmp.eq.s32.totalorder %v50, %v67
    %v69 = vsel %vm68, 1, 0
    %v70 = vcvt.s32.f32 %v69
    %s71 = sld [smem:[#allocation2 + $0x4]]
    %v72 = vstv %s71
    %vm73 = vcmp.eq.s32.totalorder %v50, %v72
    %v74 = vsel %vm73, 1, 0
    %v75 = vcvt.s32.f32 %v74
    %s76 = sld [smem:[#allocation2 + $0x5]]
    %v77 = vstv %s76
    %vm78 = vcmp.eq.s32.totalorder %v50, %v77
    %v79 = vsel %vm78, 1, 0
    %v80 = vcvt.s32.f32 %v79
    %s81 = sld [smem:[#allocation2 + $0x6]]
    %v82 = vstv %s81
    %vm83 = vcmp.eq.s32.totalorder %v50, %v82
    %v84 = vsel %vm83, 1, 0
    %v85 = vcvt.s32.f32 %v84
    %s86 = sld [smem:[#allocation2 + $0x7]]
    %v87 = vstv %s86
    %vm88 = vcmp.eq.s32.totalorder %v50, %v87
    %v89 = vsel %vm88, 1, 0
    %v90 = vcvt.s32.f32 %v89
    %s91 = sld [smem:[#allocation2 + $0x8]]
    %v92 = vstv %s91
    %vm93 = vcmp.eq.s32.totalorder %v50, %v92
    %v94 = vsel %vm93, 1, 0
    %v95 = vcvt.s32.f32 %v94
    %s96 = sld [smem:[#allocation2 + $0x9]]
    %v97 = vstv %s96
    %vm98 = vcmp.eq.s32.totalorder %v50, %v97
    %v99 = vsel %vm98, 1, 0
    %v100 = vcvt.s32.f32 %v99
    %s101 = sld [smem:[#allocation2 + $0xa]]
    %v102 = vstv %s101
    %vm103 = vcmp.eq.s32.totalorder %v50, %v102
    %v104 = vsel %vm103, 1, 0
    %v105 = vcvt.s32.f32 %v104
    %s106 = sld [smem:[#allocation2 + $0xb]]
    %v107 = vstv %s106
    %vm108 = vcmp.eq.s32.totalorder %v50, %v107
    %v109 = vsel %vm108, 1, 0
    %v110 = vcvt.s32.f32 %v109
    %s111 = sld [smem:[#allocation2 + $0xc]]
    %v112 = vstv %s111
    %vm113 = vcmp.eq.s32.totalorder %v50, %v112
    %v114 = vsel %vm113, 1, 0
    %v115 = vcvt.s32.f32 %v114
    %s116 = sld [smem:[#allocation2 + $0xd]]
    %v117 = vstv %s116
    %vm118 = vcmp.eq.s32.totalorder %v50, %v117
    %v119 = vsel %vm118, 1, 0
    %v120 = vcvt.s32.f32 %v119
    %s121 = sld [smem:[#allocation2 + $0xe]]
    %v122 = vstv %s121
    %vm123 = vcmp.eq.s32.totalorder %v50, %v122
    %v124 = vsel %vm123, 1, 0
    %v125 = vcvt.s32.f32 %v124
    %s126 = sld [smem:[#allocation2 + $0xf]]
    %v127 = vstv %s126
    %vm128 = vcmp.eq.s32.totalorder %v50, %v127
    %v129 = vsel %vm128, 1, 0
    %v130 = vcvt.s32.f32 %v129
    %vm131 = vcmask 1040384
    %v132 = vsel %vm131, %v55, %v60
    %vm133 = vcmask 1041408
    %v134 = vsel %vm133, %v132, %v65
    %vm135 = vcmask 1042432
    %v136 = vsel %vm135, %v134, %v70
    %vm137 = vcmask 1043456
    %v138 = vsel %vm137, %v136, %v75
    %vm139 = vcmask 1044480
    %v140 = vsel %vm139, %v138, %v80
    %vm141 = vcmask 1045504
    %v142 = vsel %vm141, %v140, %v85
    %vm143 = vcmask 1046528
    %v144 = vsel %vm143, %v142, %v90
    %v145 = vsel %vm131, %v95, %v100
    %v146 = vsel %vm133, %v145, %v105
    %v147 = vsel %vm135, %v146, %v110
    %v148 = vsel %vm137, %v147, %v115
    %v149 = vsel %vm139, %v148, %v120
    %v150 = vsel %vm141, %v149, %v125
    %v151 = vsel %vm143, %v150, %v130
    %v152 = vld [vmem:[%s4] sm:$0xff]
    %v153 = vld [vmem:[%s4 + $0x8] sm:$0xff]
    %v154 = vld [vmem:[%s4 + $0x10] sm:$0xff]
    %v155 = vld [vmem:[%s4 + $0x18] sm:$0xff]
    %v156 = vld [vmem:[%s4 + $0x20] sm:$0xff]
    %v157 = vld [vmem:[%s4 + $0x28] sm:$0xff]
    %v158 = vld [vmem:[%s4 + $0x30] sm:$0xff]
    %v159 = vld [vmem:[%s4 + $0x38] sm:$0xff]
    %v160 = vld [vmem:[%s4 + $0x40] sm:$0xff]
    %v161 = vld [vmem:[%s4 + $0x48] sm:$0xff]
    %v162 = vld [vmem:[%s4 + $0x50] sm:$0xff]
    %v163 = vld [vmem:[%s4 + $0x58] sm:$0xff]
    %v164 = vld [vmem:[%s4 + $0x60] sm:$0xff]
    %v165 = vld [vmem:[%s4 + $0x68] sm:$0xff]
    %v166 = vld [vmem:[%s4 + $0x70] sm:$0xff]
    %v167 = vld [vmem:[%s4 + $0x78] sm:$0xff]
    %v168 = vld [vmem:[%s1] sm:$0xff]
    %v169 = vld [vmem:[%s1 + $0x8] sm:$0xff]
    %170 = vmatprep.subr.mxu0 0.0
    %171 = vmatpush1.msra.mxu0 %v152
    %172 = vmatprep.subr.mxu0 0.0
    %173 = vmatpush1.msra.mxu0 %v153
    %174 = vmatprep.subr.mxu0 0.0
    %175 = vmatpush1.msra.mxu0 %v154
    %176 = vmatprep.subr.mxu0 0.0
    %177 = vmatpush1.msra.mxu0 %v155
    %178 = vmatprep.subr.mxu0 0.0
    %179 = vmatpush1.msra.mxu0 %v156
    %180 = vmatprep.subr.mxu0 0.0
    %181 = vmatpush1.msra.mxu0 %v157
    %182 = vmatprep.subr.mxu0 0.0
    %183 = vmatpush1.msra.mxu0 %v158
    %184 = vmatprep.subr.mxu0 0.0
    %185 = vmatpush1.msra.mxu0 %v159
    %186 = vmatprep.subr.mxu0 0.0
    %187 = vmatpush1.msra.mxu0 %v160
    %188 = vmatprep.subr.mxu0 0.0
    %189 = vmatpush1.msra.mxu0 %v161
    %190 = vmatprep.subr.mxu0 0.0
    %191 = vmatpush1.msra.mxu0 %v162
    %192 = vmatprep.subr.mxu0 0.0
    %193 = vmatpush1.msra.mxu0 %v163
    %194 = vmatprep.subr.mxu0 0.0
    %195 = vmatpush1.msra.mxu0 %v164
    %196 = vmatprep.subr.mxu0 0.0
    %197 = vmatpush1.msra.mxu0 %v165
    %198 = vmatprep.subr.mxu0 0.0
    %199 = vmatpush1.msra.mxu0 %v166
    %200 = vmatprep.subr.mxu0 0.0
    %201 = vmatpush1.msra.mxu0 %v167
    %202 = vmatprep.subr.mxu0 0.0
    %203 = vmatpush1.msra.mxu0 0.0
    %204 = vmatprep.subr.mxu0 0.0
    %205 = vmatpush1.msra.mxu0 0.0
    %206 = vmatprep.subr.mxu0 0.0
    %207 = vmatpush1.msra.mxu0 0.0
    %208 = vmatprep.subr.mxu0 0.0
    %209 = vmatpush1.msra.mxu0 0.0
    %210 = vmatprep.subr.mxu0 0.0
    %211 = vmatpush1.msra.mxu0 0.0
    %212 = vmatprep.subr.mxu0 0.0
    %213 = vmatpush1.msra.mxu0 0.0
    %214 = vmatprep.subr.mxu0 0.0
    %215 = vmatpush1.msra.mxu0 0.0
    %216 = vmatprep.subr.mxu0 0.0
    %217 = vmatpush1.msra.mxu0 0.0
    %218 = vmatprep.subr.mxu0 0.0
    %219 = vmatpush1.msra.mxu0 0.0
    %220 = vmatprep.subr.mxu0 0.0
    %221 = vmatpush1.msra.mxu0 0.0
    %222 = vmatprep.subr.mxu0 0.0
    %223 = vmatpush1.msra.mxu0 0.0
    %224 = vmatprep.subr.mxu0 0.0
    %225 = vmatpush1.msra.mxu0 0.0
    %226 = vmatprep.subr.mxu0 0.0
    %227 = vmatpush1.msra.mxu0 0.0
    %228 = vmatprep.subr.mxu0 0.0
    %229 = vmatpush1.msra.mxu0 0.0
    %230 = vmatprep.subr.mxu0 0.0
    %231 = vmatpush1.msra.mxu0 0.0
    %232 = vmatprep.subr.mxu0 0.0
    %233 = vmatpush1.msra.mxu0 0.0
    %234 = vmatprep.mubr.f32.mxu0 0.0
    %235 = vmatmul.mubr.f32.gmra.mrb[0].mxu0 %v144
    %v236 = vpop.f32.mrb[0].mxu0
    %v237 = vadd.f32 %v168, %v236
    %v238 = vpop.f32.mrb[0].mxu0
    %239 = vmatprep.mubr.f32.mxu0 0.0
    %240 = vmatmul.mubr.f32.gmra.mrb[0].mxu0 %v151
    %v241 = vpop.f32.mrb[0].mxu0
    %v242 = vadd.f32 %v169, %v241
    %v243 = vpop.f32.mrb[0].mxu0
    %244 = vdwg.mxu0
    %v245 = vlaneseq
    %v246 = vshrl.u32 %v245, 7
    %vm247 = vcmp.ge.s32.totalorder %v246, %v50
    %v248 = vsel %vm247, 0.0, -1e+20
    %v249 = vld [vmem:[%s3] sm:$0x1]
    %v250 = vld [vmem:[%s3 + $0x1] sm:$0x1]
    %v251 = vld [vmem:[%s3 + $0x2] sm:$0x1]
    %v252 = vld [vmem:[%s3 + $0x3] sm:$0x1]
    %v253 = vld [vmem:[%s3 + $0x4] sm:$0x1]
    %v254 = vld [vmem:[%s3 + $0x5] sm:$0x1]
    %v255 = vld [vmem:[%s3 + $0x6] sm:$0x1]
    %v256 = vld [vmem:[%s3 + $0x7] sm:$0x1]
    %v257 = vld [vmem:[%s2] sm:$0xff]
    %v258 = vld [vmem:[%s2 + $0x8] sm:$0xff]
    %v259 = vld [vmem:[%s7] sm:$0xff]
    %v260 = vld [vmem:[%s7 + $0x18] sm:$0xff]
    %v261 = vld [vmem:[%s7 + $0x30] sm:$0xff]
    %v262 = vld [vmem:[%s7 + $0x48] sm:$0xff]
    %v263 = vld [vmem:[%s7 + $0x8] sm:$0xff]
    %v264 = vld [vmem:[%s7 + $0x20] sm:$0xff]
    %v265 = vld [vmem:[%s7 + $0x38] sm:$0xff]
    %v266 = vld [vmem:[%s7 + $0x50] sm:$0xff]
    %v267 = vld [vmem:[%s7 + $0x10] sm:$0xff]
    %v268 = vld [vmem:[%s7 + $0x28] sm:$0xff]
    %v269 = vld [vmem:[%s7 + $0x40] sm:$0xff]
    %v270 = vld [vmem:[%s7 + $0x58] sm:$0xff]
    %v271 = vld [vmem:[%s8] sm:$0xff]
    %v272 = vld [vmem:[%s8 + $0x8] sm:$0xff]
    %v273 = vld [vmem:[%s8 + $0x10] sm:$0xff]
    %v274 = vld [vmem:[%s8 + $0x18] sm:$0xff]
    %v275 = vld [vmem:[%s8 + $0x20] sm:$0xff]
    %v276 = vld [vmem:[%s8 + $0x28] sm:$0xff]
    %v277 = vld [vmem:[%s8 + $0x30] sm:$0xff]
    %v278 = vld [vmem:[%s8 + $0x38] sm:$0xff]
    %v279 = vld [vmem:[%s9] sm:$0xff]
    %v280 = vld [vmem:[%s9 + $0x8] sm:$0x3]
    %vm281 = vcmask 261120
    %v283 = vsel %vm281, %v237, 0
    %v286 = vsel %vm281, %v242, 0
    %288 = vmatprep.subr.mxu0 0.0
    %289 = vmatpush1.msra.mxu0 %v259
    %290 = vmatprep.subr.mxu0 0.0
    %291 = vmatpush1.msra.mxu0 %v260
    %292 = vmatprep.subr.mxu0 0.0
    %293 = vmatpush1.msra.mxu0 %v261
    %294 = vmatprep.subr.mxu0 0.0
    %295 = vmatpush1.msra.mxu0 %v262
    %296 = vmatprep.subr.mxu0 0.0
    %297 = vmatpush1.msra.mxu0 0.0
    %298 = vmatprep.subr.mxu0 0.0
    %299 = vmatpush1.msra.mxu0 0.0
    %300 = vmatprep.subr.mxu0 0.0
    %301 = vmatpush1.msra.mxu0 0.0
    %302 = vmatprep.subr.mxu0 0.0
    %303 = vmatpush1.msra.mxu0 0.0
    %304 = vmatprep.subr.mxu0 0.0
    %305 = vmatpush1.msra.mxu0 0.0
    %306 = vmatprep.subr.mxu0 0.0
    %307 = vmatpush1.msra.mxu0 0.0
    %308 = vmatprep.subr.mxu0 0.0
    %309 = vmatpush1.msra.mxu0 0.0
    %310 = vmatprep.subr.mxu0 0.0
    %311 = vmatpush1.msra.mxu0 0.0
    %312 = vmatprep.subr.mxu0 0.0
    %313 = vmatpush1.msra.mxu0 0.0
    %314 = vmatprep.subr.mxu0 0.0
    %315 = vmatpush1.msra.mxu0 0.0
    %316 = vmatprep.subr.mxu0 0.0
    %317 = vmatpush1.msra.mxu0 0.0
    %318 = vmatprep.subr.mxu0 0.0
    %319 = vmatpush1.msra.mxu0 0.0
    %320 = vmatprep.subr.mxu0 0.0
    %321 = vmatpush1.msra.mxu0 0.0
    %322 = vmatprep.subr.mxu0 0.0
    %323 = vmatpush1.msra.mxu0 0.0
    %324 = vmatprep.subr.mxu0 0.0
    %325 = vmatpush1.msra.mxu0 0.0
    %326 = vmatprep.subr.mxu0 0.0
    %327 = vmatpush1.msra.mxu0 0.0
    %328 = vmatprep.subr.mxu0 0.0
    %329 = vmatpush1.msra.mxu0 0.0
    %330 = vmatprep.subr.mxu0 0.0
    %331 = vmatpush1.msra.mxu0 0.0
    %332 = vmatprep.subr.mxu0 0.0
    %333 = vmatpush1.msra.mxu0 0.0
    %334 = vmatprep.subr.mxu0 0.0
    %335 = vmatpush1.msra.mxu0 0.0
    %336 = vmatprep.subr.mxu0 0.0
    %337 = vmatpush1.msra.mxu0 0.0
    %338 = vmatprep.subr.mxu0 0.0
    %339 = vmatpush1.msra.mxu0 0.0
    %340 = vmatprep.subr.mxu0 0.0
    %341 = vmatpush1.msra.mxu0 0.0
    %342 = vmatprep.subr.mxu0 0.0
    %343 = vmatpush1.msra.mxu0 0.0
    %344 = vmatprep.subr.mxu0 0.0
    %345 = vmatpush1.msra.mxu0 0.0
    %346 = vmatprep.subr.mxu0 0.0
    %347 = vmatpush1.msra.mxu0 0.0
    %348 = vmatprep.subr.mxu0 0.0
    %349 = vmatpush1.msra.mxu0 0.0
    %350 = vmatprep.subr.mxu0 0.0
    %351 = vmatpush1.msra.mxu0 0.0
    %352 = vmatprep.mubr.f32.mxu0 0.0
    %353 = vmatmul.mubr.f32.gmra.mrb[0].mxu0 %v283
    %v354 = vpop.f32.mrb[0].mxu0
    %v355 = vadd.f32 0.0, %v354
    %v356 = vpop.f32.mrb[0].mxu0
    %357 = vmatprep.mubr.f32.mxu0 0.0
    %358 = vmatmul.mubr.f32.gmra.mrb[0].mxu0 %v286
    %v359 = vpop.f32.mrb[0].mxu0
    %v360 = vadd.f32 0.0, %v359
    %v361 = vpop.f32.mrb[0].mxu0
    %362 = vdwg.mxu0
    %365 = vrot.lane.b32.xlu0 %v355, 120
    %v366 = vpop.permute.xlu0 %365
    %367 = vrot.lane.b32.xlu0 %v360, 120
    %v368 = vpop.permute.xlu0 %367
    %369 = vrot.lane.b32.xlu0 %v355, 112
    %v370 = vpop.permute.xlu0 %369
    %371 = vrot.lane.b32.xlu0 %v360, 112
    %v372 = vpop.permute.xlu0 %371
    %373 = vrot.lane.b32.xlu0 %v355, 104
    %v374 = vpop.permute.xlu0 %373
    %375 = vrot.lane.b32.xlu0 %v360, 104
    %v376 = vpop.permute.xlu0 %375
    %377 = vrot.lane.b32.xlu0 %v355, 96
    %v378 = vpop.permute.xlu0 %377
    %vm379 = vcmask 64512
    %v380 = vsel %vm379, %v355, 0
    %v382 = vsel %vm379, %v378, 0
    %384 = vmatprep.subr.mxu0 0.0
    %385 = vmatpush1.xpose.msra.mxu0 %v382
    %386 = vmatprep.subr.mxu0 0.0
    %387 = vmatpush1.xpose.msra.mxu0 0.0
    %388 = vmatprep.subr.mxu0 0.0
    %389 = vmatpush1.xpose.msra.mxu0 0.0
    %390 = vmatprep.subr.mxu0 0.0
    %391 = vmatpush1.xpose.msra.mxu0 0.0
    %392 = vmatprep.subr.mxu0 0.0
    %393 = vmatpush1.xpose.msra.mxu0 0.0
    %394 = vmatprep.subr.mxu0 0.0
    %395 = vmatpush1.xpose.msra.mxu0 0.0
    %396 = vmatprep.subr.mxu0 0.0
    %397 = vmatpush1.xpose.msra.mxu0 0.0
    %398 = vmatprep.subr.mxu0 0.0
    %399 = vmatpush1.xpose.msra.mxu0 0.0
    %400 = vmatprep.subr.mxu0 0.0
    %401 = vmatpush1.xpose.msra.mxu0 0.0
    %402 = vmatprep.subr.mxu0 0.0
    %403 = vmatpush1.xpose.msra.mxu0 0.0
    %404 = vmatprep.subr.mxu0 0.0
    %405 = vmatpush1.xpose.msra.mxu0 0.0
    %406 = vmatprep.subr.mxu0 0.0
    %407 = vmatpush1.xpose.msra.mxu0 0.0
    %408 = vmatprep.subr.mxu0 0.0
    %409 = vmatpush1.xpose.msra.mxu0 0.0
    %410 = vmatprep.subr.mxu0 0.0
    %411 = vmatpush1.xpose.msra.mxu0 0.0
    %412 = vmatprep.subr.mxu0 0.0
    %413 = vmatpush1.xpose.msra.mxu0 0.0
    %414 = vmatprep.subr.mxu0 0.0
    %415 = vmatpush1.xpose.msra.mxu0 0.0
    %416 = vmatprep.subr.mxu0 0.0
    %417 = vmatpush1.xpose.msra.mxu0 0.0
    %418 = vmatprep.subr.mxu0 0.0
    %419 = vmatpush1.xpose.msra.mxu0 0.0
    %420 = vmatprep.subr.mxu0 0.0
    %421 = vmatpush1.xpose.msra.mxu0 0.0
    %422 = vmatprep.subr.mxu0 0.0
    %423 = vmatpush1.xpose.msra.mxu0 0.0
    %424 = vmatprep.subr.mxu0 0.0
    %425 = vmatpush1.xpose.msra.mxu0 0.0
    %426 = vmatprep.subr.mxu0 0.0
    %427 = vmatpush1.xpose.msra.mxu0 0.0
    %428 = vmatprep.subr.mxu0 0.0
    %429 = vmatpush1.xpose.msra.mxu0 0.0
    %430 = vmatprep.subr.mxu0 0.0
    %431 = vmatpush1.xpose.msra.mxu0 0.0
    %432 = vmatprep.subr.mxu0 0.0
    %433 = vmatpush1.xpose.msra.mxu0 0.0
    %434 = vmatprep.subr.mxu0 0.0
    %435 = vmatpush1.xpose.msra.mxu0 0.0
    %436 = vmatprep.subr.mxu0 0.0
    %437 = vmatpush1.xpose.msra.mxu0 0.0
    %438 = vmatprep.subr.mxu0 0.0
    %439 = vmatpush1.xpose.msra.mxu0 0.0
    %440 = vmatprep.subr.mxu0 0.0
    %441 = vmatpush1.xpose.msra.mxu0 0.0
    %442 = vmatprep.subr.mxu0 0.0
    %443 = vmatpush1.xpose.msra.mxu0 0.0
    %444 = vmatprep.subr.mxu0 0.0
    %445 = vmatpush1.xpose.msra.mxu0 0.0
    %446 = vmatprep.subr.mxu0 0.0
    %447 = vmatpush1.xpose.msra.mxu0 0.0
    %448 = vmatprep.mubr.f32.mxu0 0.0
    %449 = vmatmul.mubr.f32.gmra.mrb[0].mxu0 %v380
    %v450 = vpop.f32.mrb[0].mxu0
    %v451 = vadd.f32 %v248, %v450
    %v452 = vpop.f32.mrb[0].mxu0
    %453 = vdwg.mxu0
    %454 = vrot.lane.b32.xlu0 %v360, 96
    %v455 = vpop.permute.xlu0 %454
    %v456 = vsel %vm379, %v360, 0
    %v458 = vsel %vm379, %v455, 0
    %460 = vmatprep.subr.mxu0 0.0
    %461 = vmatpush1.xpose.msra.mxu0 %v458
    %462 = vmatprep.subr.mxu0 0.0
    %463 = vmatpush1.xpose.msra.mxu0 0.0
    %464 = vmatprep.subr.mxu0 0.0
    %465 = vmatpush1.xpose.msra.mxu0 0.0
    %466 = vmatprep.subr.mxu0 0.0
    %467 = vmatpush1.xpose.msra.mxu0 0.0
    %468 = vmatprep.subr.mxu0 0.0
    %469 = vmatpush1.xpose.msra.mxu0 0.0
    %470 = vmatprep.subr.mxu0 0.0
    %471 = vmatpush1.xpose.msra.mxu0 0.0
    %472 = vmatprep.subr.mxu0 0.0
    %473 = vmatpush1.xpose.msra.mxu0 0.0
    %474 = vmatprep.subr.mxu0 0.0
    %475 = vmatpush1.xpose.msra.mxu0 0.0
    %476 = vmatprep.subr.mxu0 0.0
    %477 = vmatpush1.xpose.msra.mxu0 0.0
    %478 = vmatprep.subr.mxu0 0.0
    %479 = vmatpush1.xpose.msra.mxu0 0.0
    %480 = vmatprep.subr.mxu0 0.0
    %481 = vmatpush1.xpose.msra.mxu0 0.0
    %482 = vmatprep.subr.mxu0 0.0
    %483 = vmatpush1.xpose.msra.mxu0 0.0
    %484 = vmatprep.subr.mxu0 0.0
    %485 = vmatpush1.xpose.msra.mxu0 0.0
    %486 = vmatprep.subr.mxu0 0.0
    %487 = vmatpush1.xpose.msra.mxu0 0.0
    %488 = vmatprep.subr.mxu0 0.0
    %489 = vmatpush1.xpose.msra.mxu0 0.0
    %490 = vmatprep.subr.mxu0 0.0
    %491 = vmatpush1.xpose.msra.mxu0 0.0
    %492 = vmatprep.subr.mxu0 0.0
    %493 = vmatpush1.xpose.msra.mxu0 0.0
    %494 = vmatprep.subr.mxu0 0.0
    %495 = vmatpush1.xpose.msra.mxu0 0.0
    %496 = vmatprep.subr.mxu0 0.0
    %497 = vmatpush1.xpose.msra.mxu0 0.0
    %498 = vmatprep.subr.mxu0 0.0
    %499 = vmatpush1.xpose.msra.mxu0 0.0
    %500 = vmatprep.subr.mxu0 0.0
    %501 = vmatpush1.xpose.msra.mxu0 0.0
    %502 = vmatprep.subr.mxu0 0.0
    %503 = vmatpush1.xpose.msra.mxu0 0.0
    %504 = vmatprep.subr.mxu0 0.0
    %505 = vmatpush1.xpose.msra.mxu0 0.0
    %506 = vmatprep.subr.mxu0 0.0
    %507 = vmatpush1.xpose.msra.mxu0 0.0
    %508 = vmatprep.subr.mxu0 0.0
    %509 = vmatpush1.xpose.msra.mxu0 0.0
    %510 = vmatprep.subr.mxu0 0.0
    %511 = vmatpush1.xpose.msra.mxu0 0.0
    %512 = vmatprep.subr.mxu0 0.0
    %513 = vmatpush1.xpose.msra.mxu0 0.0
    %514 = vmatprep.subr.mxu0 0.0
    %515 = vmatpush1.xpose.msra.mxu0 0.0
    %516 = vmatprep.subr.mxu0 0.0
    %517 = vmatpush1.xpose.msra.mxu0 0.0
    %518 = vmatprep.subr.mxu0 0.0
    %519 = vmatpush1.xpose.msra.mxu0 0.0
    %520 = vmatprep.subr.mxu0 0.0
    %521 = vmatpush1.xpose.msra.mxu0 0.0
    %522 = vmatprep.subr.mxu0 0.0
    %523 = vmatpush1.xpose.msra.mxu0 0.0
    %524 = vmatprep.mubr.f32.mxu0 0.0
    %525 = vmatmul.mubr.f32.gmra.mrb[0].mxu0 %v456
    %v526 = vpop.f32.mrb[0].mxu0
    %v527 = vadd.f32 %v248, %v526
    %v528 = vpop.f32.mrb[0].mxu0
    %529 = vdwg.mxu0
    %530 = vrot.lane.b32.xlu0 %v366, 96
    %v531 = vpop.permute.xlu0 %530
    %v532 = vsel %vm379, %v366, 0
    %v534 = vsel %vm379, %v531, 0
    %536 = vmatprep.subr.mxu0 0.0
    %537 = vmatpush1.xpose.msra.mxu0 %v534
    %538 = vmatprep.subr.mxu0 0.0
    %539 = vmatpush1.xpose.msra.mxu0 0.0
    %540 = vmatprep.subr.mxu0 0.0
    %541 = vmatpush1.xpose.msra.mxu0 0.0
    %542 = vmatprep.subr.mxu0 0.0
    %543 = vmatpush1.xpose.msra.mxu0 0.0
    %544 = vmatprep.subr.mxu0 0.0
    %545 = vmatpush1.xpose.msra.mxu0 0.0
    %546 = vmatprep.subr.mxu0 0.0
    %547 = vmatpush1.xpose.msra.mxu0 0.0
    %548 = vmatprep.subr.mxu0 0.0
    %549 = vmatpush1.xpose.msra.mxu0 0.0
    %550 = vmatprep.subr.mxu0 0.0
    %551 = vmatpush1.xpose.msra.mxu0 0.0
    %552 = vmatprep.subr.mxu0 0.0
    %553 = vmatpush1.xpose.msra.mxu0 0.0
    %554 = vmatprep.subr.mxu0 0.0
    %555 = vmatpush1.xpose.msra.mxu0 0.0
    %556 = vmatprep.subr.mxu0 0.0
    %557 = vmatpush1.xpose.msra.mxu0 0.0
    %558 = vmatprep.subr.mxu0 0.0
    %559 = vmatpush1.xpose.msra.mxu0 0.0
    %560 = vmatprep.subr.mxu0 0.0
    %561 = vmatpush1.xpose.msra.mxu0 0.0
    %562 = vmatprep.subr.mxu0 0.0
    %563 = vmatpush1.xpose.msra.mxu0 0.0
    %564 = vmatprep.subr.mxu0 0.0
    %565 = vmatpush1.xpose.msra.mxu0 0.0
    %566 = vmatprep.subr.mxu0 0.0
    %567 = vmatpush1.xpose.msra.mxu0 0.0
    %568 = vmatprep.subr.mxu0 0.0
    %569 = vmatpush1.xpose.msra.mxu0 0.0
    %570 = vmatprep.subr.mxu0 0.0
    %571 = vmatpush1.xpose.msra.mxu0 0.0
    %572 = vmatprep.subr.mxu0 0.0
    %573 = vmatpush1.xpose.msra.mxu0 0.0
    %574 = vmatprep.subr.mxu0 0.0
    %575 = vmatpush1.xpose.msra.mxu0 0.0
    %576 = vmatprep.subr.mxu0 0.0
    %577 = vmatpush1.xpose.msra.mxu0 0.0
    %578 = vmatprep.subr.mxu0 0.0
    %579 = vmatpush1.xpose.msra.mxu0 0.0
    %580 = vmatprep.subr.mxu0 0.0
    %581 = vmatpush1.xpose.msra.mxu0 0.0
    %582 = vmatprep.subr.mxu0 0.0
    %583 = vmatpush1.xpose.msra.mxu0 0.0
    %584 = vmatprep.subr.mxu0 0.0
    %585 = vmatpush1.xpose.msra.mxu0 0.0
    %586 = vmatprep.subr.mxu0 0.0
    %587 = vmatpush1.xpose.msra.mxu0 0.0
    %588 = vmatprep.subr.mxu0 0.0
    %589 = vmatpush1.xpose.msra.mxu0 0.0
    %590 = vmatprep.subr.mxu0 0.0
    %591 = vmatpush1.xpose.msra.mxu0 0.0
    %592 = vmatprep.subr.mxu0 0.0
    %593 = vmatpush1.xpose.msra.mxu0 0.0
    %594 = vmatprep.subr.mxu0 0.0
    %595 = vmatpush1.xpose.msra.mxu0 0.0
    %596 = vmatprep.subr.mxu0 0.0
    %597 = vmatpush1.xpose.msra.mxu0 0.0
    %598 = vmatprep.subr.mxu0 0.0
    %599 = vmatpush1.xpose.msra.mxu0 0.0
    %600 = vmatprep.mubr.f32.mxu0 0.0
    %601 = vmatmul.mubr.f32.gmra.mrb[0].mxu0 %v532
    %v602 = vpop.f32.mrb[0].mxu0
    %v603 = vadd.f32 %v248, %v602
    %v604 = vpop.f32.mrb[0].mxu0
    %605 = vdwg.mxu0
    %606 = vrot.lane.b32.xlu0 %v368, 96
    %v607 = vpop.permute.xlu0 %606
    %v608 = vsel %vm379, %v368, 0
    %v610 = vsel %vm379, %v607, 0
    %612 = vmatprep.subr.mxu0 0.0
    %613 = vmatpush1.xpose.msra.mxu0 %v610
    %614 = vmatprep.subr.mxu0 0.0
    %615 = vmatpush1.xpose.msra.mxu0 0.0
    %616 = vmatprep.subr.mxu0 0.0
    %617 = vmatpush1.xpose.msra.mxu0 0.0
    %618 = vmatprep.subr.mxu0 0.0
    %619 = vmatpush1.xpose.msra.mxu0 0.0
    %620 = vmatprep.subr.mxu0 0.0
    %621 = vmatpush1.xpose.msra.mxu0 0.0
    %622 = vmatprep.subr.mxu0 0.0
    %623 = vmatpush1.xpose.msra.mxu0 0.0
    %624 = vmatprep.subr.mxu0 0.0
    %625 = vmatpush1.xpose.msra.mxu0 0.0
    %626 = vmatprep.subr.mxu0 0.0
    %627 = vmatpush1.xpose.msra.mxu0 0.0
    %628 = vmatprep.subr.mxu0 0.0
    %629 = vmatpush1.xpose.msra.mxu0 0.0
    %630 = vmatprep.subr.mxu0 0.0
    %631 = vmatpush1.xpose.msra.mxu0 0.0
    %632 = vmatprep.subr.mxu0 0.0
    %633 = vmatpush1.xpose.msra.mxu0 0.0
    %634 = vmatprep.subr.mxu0 0.0
    %635 = vmatpush1.xpose.msra.mxu0 0.0
    %636 = vmatprep.subr.mxu0 0.0
    %637 = vmatpush1.xpose.msra.mxu0 0.0
    %638 = vmatprep.subr.mxu0 0.0
    %639 = vmatpush1.xpose.msra.mxu0 0.0
    %640 = vmatprep.subr.mxu0 0.0
    %641 = vmatpush1.xpose.msra.mxu0 0.0
    %642 = vmatprep.subr.mxu0 0.0
    %643 = vmatpush1.xpose.msra.mxu0 0.0
    %644 = vmatprep.subr.mxu0 0.0
    %645 = vmatpush1.xpose.msra.mxu0 0.0
    %646 = vmatprep.subr.mxu0 0.0
    %647 = vmatpush1.xpose.msra.mxu0 0.0
    %648 = vmatprep.subr.mxu0 0.0
    %649 = vmatpush1.xpose.msra.mxu0 0.0
    %650 = vmatprep.subr.mxu0 0.0
    %651 = vmatpush1.xpose.msra.mxu0 0.0
    %652 = vmatprep.subr.mxu0 0.0
    %653 = vmatpush1.xpose.msra.mxu0 0.0
    %654 = vmatprep.subr.mxu0 0.0
    %655 = vmatpush1.xpose.msra.mxu0 0.0
    %656 = vmatprep.subr.mxu0 0.0
    %657 = vmatpush1.xpose.msra.mxu0 0.0
    %658 = vmatprep.subr.mxu0 0.0
    %659 = vmatpush1.xpose.msra.mxu0 0.0
    %660 = vmatprep.subr.mxu0 0.0
    %661 = vmatpush1.xpose.msra.mxu0 0.0
    %662 = vmatprep.subr.mxu0 0.0
    %663 = vmatpush1.xpose.msra.mxu0 0.0
    %664 = vmatprep.subr.mxu0 0.0
    %665 = vmatpush1.xpose.msra.mxu0 0.0
    %666 = vmatprep.subr.mxu0 0.0
    %667 = vmatpush1.xpose.msra.mxu0 0.0
    %668 = vmatprep.subr.mxu0 0.0
    %669 = vmatpush1.xpose.msra.mxu0 0.0
    %670 = vmatprep.subr.mxu0 0.0
    %671 = vmatpush1.xpose.msra.mxu0 0.0
    %672 = vmatprep.subr.mxu0 0.0
    %673 = vmatpush1.xpose.msra.mxu0 0.0
    %674 = vmatprep.subr.mxu0 0.0
    %675 = vmatpush1.xpose.msra.mxu0 0.0
    %676 = vmatprep.mubr.f32.mxu0 0.0
    %677 = vmatmul.mubr.f32.gmra.mrb[0].mxu0 %v608
    %v678 = vpop.f32.mrb[0].mxu0
    %v679 = vadd.f32 %v248, %v678
    %v680 = vpop.f32.mrb[0].mxu0
    %681 = vdwg.mxu0
    %682 = vrot.lane.b32.xlu0 %v370, 96
    %v683 = vpop.permute.xlu0 %682
    %v684 = vsel %vm379, %v370, 0
    %v686 = vsel %vm379, %v683, 0
    %688 = vmatprep.subr.mxu0 0.0
    %689 = vmatpush1.xpose.msra.mxu0 %v686
    %690 = vmatprep.subr.mxu0 0.0
    %691 = vmatpush1.xpose.msra.mxu0 0.0
    %692 = vmatprep.subr.mxu0 0.0
    %693 = vmatpush1.xpose.msra.mxu0 0.0
    %694 = vmatprep.subr.mxu0 0.0
    %695 = vmatpush1.xpose.msra.mxu0 0.0
    %696 = vmatprep.subr.mxu0 0.0
    %697 = vmatpush1.xpose.msra.mxu0 0.0
    %698 = vmatprep.subr.mxu0 0.0
    %699 = vmatpush1.xpose.msra.mxu0 0.0
    %700 = vmatprep.subr.mxu0 0.0
    %701 = vmatpush1.xpose.msra.mxu0 0.0
    %702 = vmatprep.subr.mxu0 0.0
    %703 = vmatpush1.xpose.msra.mxu0 0.0
    %704 = vmatprep.subr.mxu0 0.0
    %705 = vmatpush1.xpose.msra.mxu0 0.0
    %706 = vmatprep.subr.mxu0 0.0
    %707 = vmatpush1.xpose.msra.mxu0 0.0
    %708 = vmatprep.subr.mxu0 0.0
    %709 = vmatpush1.xpose.msra.mxu0 0.0
    %710 = vmatprep.subr.mxu0 0.0
    %711 = vmatpush1.xpose.msra.mxu0 0.0
    %712 = vmatprep.subr.mxu0 0.0
    %713 = vmatpush1.xpose.msra.mxu0 0.0
    %714 = vmatprep.subr.mxu0 0.0
    %715 = vmatpush1.xpose.msra.mxu0 0.0
    %716 = vmatprep.subr.mxu0 0.0
    %717 = vmatpush1.xpose.msra.mxu0 0.0
    %718 = vmatprep.subr.mxu0 0.0
    %719 = vmatpush1.xpose.msra.mxu0 0.0
    %720 = vmatprep.subr.mxu0 0.0
    %721 = vmatpush1.xpose.msra.mxu0 0.0
    %722 = vmatprep.subr.mxu0 0.0
    %723 = vmatpush1.xpose.msra.mxu0 0.0
    %724 = vmatprep.subr.mxu0 0.0
    %725 = vmatpush1.xpose.msra.mxu0 0.0
    %726 = vmatprep.subr.mxu0 0.0
    %727 = vmatpush1.xpose.msra.mxu0 0.0
    %728 = vmatprep.subr.mxu0 0.0
    %729 = vmatpush1.xpose.msra.mxu0 0.0
    %730 = vmatprep.subr.mxu0 0.0
    %731 = vmatpush1.xpose.msra.mxu0 0.0
    %732 = vmatprep.subr.mxu0 0.0
    %733 = vmatpush1.xpose.msra.mxu0 0.0
    %734 = vmatprep.subr.mxu0 0.0
    %735 = vmatpush1.xpose.msra.mxu0 0.0
    %736 = vmatprep.subr.mxu0 0.0
    %737 = vmatpush1.xpose.msra.mxu0 0.0
    %738 = vmatprep.subr.mxu0 0.0
    %739 = vmatpush1.xpose.msra.mxu0 0.0
    %740 = vmatprep.subr.mxu0 0.0
    %741 = vmatpush1.xpose.msra.mxu0 0.0
    %742 = vmatprep.subr.mxu0 0.0
    %743 = vmatpush1.xpose.msra.mxu0 0.0
    %744 = vmatprep.subr.mxu0 0.0
    %745 = vmatpush1.xpose.msra.mxu0 0.0
    %746 = vmatprep.subr.mxu0 0.0
    %747 = vmatpush1.xpose.msra.mxu0 0.0
    %748 = vmatprep.subr.mxu0 0.0
    %749 = vmatpush1.xpose.msra.mxu0 0.0
    %750 = vmatprep.subr.mxu0 0.0
    %751 = vmatpush1.xpose.msra.mxu0 0.0
    %752 = vmatprep.mubr.f32.mxu0 0.0
    %753 = vmatmul.mubr.f32.gmra.mrb[0].mxu0 %v684
    %v754 = vpop.f32.mrb[0].mxu0
    %v755 = vadd.f32 %v248, %v754
    %v756 = vpop.f32.mrb[0].mxu0
    %757 = vdwg.mxu0
    %758 = vrot.lane.b32.xlu0 %v372, 96
    %v759 = vpop.permute.xlu0 %758
    %v760 = vsel %vm379, %v372, 0
    %v762 = vsel %vm379, %v759, 0
    %764 = vmatprep.subr.mxu0 0.0
    %765 = vmatpush1.xpose.msra.mxu0 %v762
    %766 = vmatprep.subr.mxu0 0.0
    %767 = vmatpush1.xpose.msra.mxu0 0.0
    %768 = vmatprep.subr.mxu0 0.0
    %769 = vmatpush1.xpose.msra.mxu0 0.0
    %770 = vmatprep.subr.mxu0 0.0
    %771 = vmatpush1.xpose.msra.mxu0 0.0
    %772 = vmatprep.subr.mxu0 0.0
    %773 = vmatpush1.xpose.msra.mxu0 0.0
    %774 = vmatprep.subr.mxu0 0.0
    %775 = vmatpush1.xpose.msra.mxu0 0.0
    %776 = vmatprep.subr.mxu0 0.0
    %777 = vmatpush1.xpose.msra.mxu0 0.0
    %778 = vmatprep.subr.mxu0 0.0
    %779 = vmatpush1.xpose.msra.mxu0 0.0
    %780 = vmatprep.subr.mxu0 0.0
    %781 = vmatpush1.xpose.msra.mxu0 0.0
    %782 = vmatprep.subr.mxu0 0.0
    %783 = vmatpush1.xpose.msra.mxu0 0.0
    %784 = vmatprep.subr.mxu0 0.0
    %785 = vmatpush1.xpose.msra.mxu0 0.0
    %786 = vmatprep.subr.mxu0 0.0
    %787 = vmatpush1.xpose.msra.mxu0 0.0
    %788 = vmatprep.subr.mxu0 0.0
    %789 = vmatpush1.xpose.msra.mxu0 0.0
    %790 = vmatprep.subr.mxu0 0.0
    %791 = vmatpush1.xpose.msra.mxu0 0.0
    %792 = vmatprep.subr.mxu0 0.0
    %793 = vmatpush1.xpose.msra.mxu0 0.0
    %794 = vmatprep.subr.mxu0 0.0
    %795 = vmatpush1.xpose.msra.mxu0 0.0
    %796 = vmatprep.subr.mxu0 0.0
    %797 = vmatpush1.xpose.msra.mxu0 0.0
    %798 = vmatprep.subr.mxu0 0.0
    %799 = vmatpush1.xpose.msra.mxu0 0.0
    %800 = vmatprep.subr.mxu0 0.0
    %801 = vmatpush1.xpose.msra.mxu0 0.0
    %802 = vmatprep.subr.mxu0 0.0
    %803 = vmatpush1.xpose.msra.mxu0 0.0
    %804 = vmatprep.subr.mxu0 0.0
    %805 = vmatpush1.xpose.msra.mxu0 0.0
    %806 = vmatprep.subr.mxu0 0.0
    %807 = vmatpush1.xpose.msra.mxu0 0.0
    %808 = vmatprep.subr.mxu0 0.0
    %809 = vmatpush1.xpose.msra.mxu0 0.0
    %810 = vmatprep.subr.mxu0 0.0
    %811 = vmatpush1.xpose.msra.mxu0 0.0
    %812 = vmatprep.subr.mxu0 0.0
    %813 = vmatpush1.xpose.msra.mxu0 0.0
    %814 = vmatprep.subr.mxu0 0.0
    %815 = vmatpush1.xpose.msra.mxu0 0.0
    %816 = vmatprep.subr.mxu0 0.0
    %817 = vmatpush1.xpose.msra.mxu0 0.0
    %818 = vmatprep.subr.mxu0 0.0
    %819 = vmatpush1.xpose.msra.mxu0 0.0
    %820 = vmatprep.subr.mxu0 0.0
    %821 = vmatpush1.xpose.msra.mxu0 0.0
    %822 = vmatprep.subr.mxu0 0.0
    %823 = vmatpush1.xpose.msra.mxu0 0.0
    %824 = vmatprep.subr.mxu0 0.0
    %825 = vmatpush1.xpose.msra.mxu0 0.0
    %826 = vmatprep.subr.mxu0 0.0
    %827 = vmatpush1.xpose.msra.mxu0 0.0
    %828 = vmatprep.mubr.f32.mxu0 0.0
    %829 = vmatmul.mubr.f32.gmra.mrb[0].mxu0 %v760
    %v830 = vpop.f32.mrb[0].mxu0
    %v831 = vadd.f32 %v248, %v830
    %v832 = vpop.f32.mrb[0].mxu0
    %833 = vdwg.mxu0
    %834 = vrot.lane.b32.xlu0 %v374, 96
    %v835 = vpop.permute.xlu0 %834
    %v836 = vsel %vm379, %v374, 0
    %v838 = vsel %vm379, %v835, 0
    %840 = vmatprep.subr.mxu0 0.0
    %841 = vmatpush1.xpose.msra.mxu0 %v838
    %842 = vmatprep.subr.mxu0 0.0
    %843 = vmatpush1.xpose.msra.mxu0 0.0
    %844 = vmatprep.subr.mxu0 0.0
    %845 = vmatpush1.xpose.msra.mxu0 0.0
    %846 = vmatprep.subr.mxu0 0.0
    %847 = vmatpush1.xpose.msra.mxu0 0.0
    %848 = vmatprep.subr.mxu0 0.0
    %849 = vmatpush1.xpose.msra.mxu0 0.0
    %850 = vmatprep.subr.mxu0 0.0
    %851 = vmatpush1.xpose.msra.mxu0 0.0
    %852 = vmatprep.subr.mxu0 0.0
    %853 = vmatpush1.xpose.msra.mxu0 0.0
    %854 = vmatprep.subr.mxu0 0.0
    %855 = vmatpush1.xpose.msra.mxu0 0.0
    %856 = vmatprep.subr.mxu0 0.0
    %857 = vmatpush1.xpose.msra.mxu0 0.0
    %858 = vmatprep.subr.mxu0 0.0
    %859 = vmatpush1.xpose.msra.mxu0 0.0
    %860 = vmatprep.subr.mxu0 0.0
    %861 = vmatpush1.xpose.msra.mxu0 0.0
    %862 = vmatprep.subr.mxu0 0.0
    %863 = vmatpush1.xpose.msra.mxu0 0.0
    %864 = vmatprep.subr.mxu0 0.0
    %865 = vmatpush1.xpose.msra.mxu0 0.0
    %866 = vmatprep.subr.mxu0 0.0
    %867 = vmatpush1.xpose.msra.mxu0 0.0
    %868 = vmatprep.subr.mxu0 0.0
    %869 = vmatpush1.xpose.msra.mxu0 0.0
    %870 = vmatprep.subr.mxu0 0.0
    %871 = vmatpush1.xpose.msra.mxu0 0.0
    %872 = vmatprep.subr.mxu0 0.0
    %873 = vmatpush1.xpose.msra.mxu0 0.0
    %874 = vmatprep.subr.mxu0 0.0
    %875 = vmatpush1.xpose.msra.mxu0 0.0
    %876 = vmatprep.subr.mxu0 0.0
    %877 = vmatpush1.xpose.msra.mxu0 0.0
    %878 = vmatprep.subr.mxu0 0.0
    %879 = vmatpush1.xpose.msra.mxu0 0.0
    %880 = vmatprep.subr.mxu0 0.0
    %881 = vmatpush1.xpose.msra.mxu0 0.0
    %882 = vmatprep.subr.mxu0 0.0
    %883 = vmatpush1.xpose.msra.mxu0 0.0
    %884 = vmatprep.subr.mxu0 0.0
    %885 = vmatpush1.xpose.msra.mxu0 0.0
    %886 = vmatprep.subr.mxu0 0.0
    %887 = vmatpush1.xpose.msra.mxu0 0.0
    %888 = vmatprep.subr.mxu0 0.0
    %889 = vmatpush1.xpose.msra.mxu0 0.0
    %890 = vmatprep.subr.mxu0 0.0
    %891 = vmatpush1.xpose.msra.mxu0 0.0
    %892 = vmatprep.subr.mxu0 0.0
    %893 = vmatpush1.xpose.msra.mxu0 0.0
    %894 = vmatprep.subr.mxu0 0.0
    %895 = vmatpush1.xpose.msra.mxu0 0.0
    %896 = vmatprep.subr.mxu0 0.0
    %897 = vmatpush1.xpose.msra.mxu0 0.0
    %898 = vmatprep.subr.mxu0 0.0
    %899 = vmatpush1.xpose.msra.mxu0 0.0
    %900 = vmatprep.subr.mxu0 0.0
    %901 = vmatpush1.xpose.msra.mxu0 0.0
    %902 = vmatprep.subr.mxu0 0.0
    %903 = vmatpush1.xpose.msra.mxu0 0.0
    %904 = vmatprep.mubr.f32.mxu0 0.0
    %905 = vmatmul.mubr.f32.gmra.mrb[0].mxu0 %v836
    %v906 = vpop.f32.mrb[0].mxu0
    %v907 = vadd.f32 %v248, %v906
    %v908 = vpop.f32.mrb[0].mxu0
    %909 = vdwg.mxu0
    %910 = vrot.lane.b32.xlu0 %v376, 96
    %v911 = vpop.permute.xlu0 %910
    %v912 = vsel %vm379, %v376, 0
    %v914 = vsel %vm379, %v911, 0
    %916 = vmatprep.subr.mxu0 0.0
    %917 = vmatpush1.xpose.msra.mxu0 %v914
    %918 = vmatprep.subr.mxu0 0.0
    %919 = vmatpush1.xpose.msra.mxu0 0.0
    %920 = vmatprep.subr.mxu0 0.0
    %921 = vmatpush1.xpose.msra.mxu0 0.0
    %922 = vmatprep.subr.mxu0 0.0
    %923 = vmatpush1.xpose.msra.mxu0 0.0
    %924 = vmatprep.subr.mxu0 0.0
    %925 = vmatpush1.xpose.msra.mxu0 0.0
    %926 = vmatprep.subr.mxu0 0.0
    %927 = vmatpush1.xpose.msra.mxu0 0.0
    %928 = vmatprep.subr.mxu0 0.0
    %929 = vmatpush1.xpose.msra.mxu0 0.0
    %930 = vmatprep.subr.mxu0 0.0
    %931 = vmatpush1.xpose.msra.mxu0 0.0
    %932 = vmatprep.subr.mxu0 0.0
    %933 = vmatpush1.xpose.msra.mxu0 0.0
    %934 = vmatprep.subr.mxu0 0.0
    %935 = vmatpush1.xpose.msra.mxu0 0.0
    %936 = vmatprep.subr.mxu0 0.0
    %937 = vmatpush1.xpose.msra.mxu0 0.0
    %938 = vmatprep.subr.mxu0 0.0
    %939 = vmatpush1.xpose.msra.mxu0 0.0
    %940 = vmatprep.subr.mxu0 0.0
    %941 = vmatpush1.xpose.msra.mxu0 0.0
    %942 = vmatprep.subr.mxu0 0.0
    %943 = vmatpush1.xpose.msra.mxu0 0.0
    %944 = vmatprep.subr.mxu0 0.0
    %945 = vmatpush1.xpose.msra.mxu0 0.0
    %946 = vmatprep.subr.mxu0 0.0
    %947 = vmatpush1.xpose.msra.mxu0 0.0
    %948 = vmatprep.subr.mxu0 0.0
    %949 = vmatpush1.xpose.msra.mxu0 0.0
    %950 = vmatprep.subr.mxu0 0.0
    %951 = vmatpush1.xpose.msra.mxu0 0.0
    %952 = vmatprep.subr.mxu0 0.0
    %953 = vmatpush1.xpose.msra.mxu0 0.0
    %954 = vmatprep.subr.mxu0 0.0
    %955 = vmatpush1.xpose.msra.mxu0 0.0
    %956 = vmatprep.subr.mxu0 0.0
    %957 = vmatpush1.xpose.msra.mxu0 0.0
    %958 = vmatprep.subr.mxu0 0.0
    %959 = vmatpush1.xpose.msra.mxu0 0.0
    %960 = vmatprep.subr.mxu0 0.0
    %961 = vmatpush1.xpose.msra.mxu0 0.0
    %962 = vmatprep.subr.mxu0 0.0
    %963 = vmatpush1.xpose.msra.mxu0 0.0
    %964 = vmatprep.subr.mxu0 0.0
    %965 = vmatpush1.xpose.msra.mxu0 0.0
    %966 = vmatprep.subr.mxu0 0.0
    %967 = vmatpush1.xpose.msra.mxu0 0.0
    %968 = vmatprep.subr.mxu0 0.0
    %969 = vmatpush1.xpose.msra.mxu0 0.0
    %970 = vmatprep.subr.mxu0 0.0
    %971 = vmatpush1.xpose.msra.mxu0 0.0
    %972 = vmatprep.subr.mxu0 0.0
    %973 = vmatpush1.xpose.msra.mxu0 0.0
    %974 = vmatprep.subr.mxu0 0.0
    %975 = vmatpush1.xpose.msra.mxu0 0.0
    %976 = vmatprep.subr.mxu0 0.0
    %977 = vmatpush1.xpose.msra.mxu0 0.0
    %978 = vmatprep.subr.mxu0 0.0
    %979 = vmatpush1.xpose.msra.mxu0 0.0
    %980 = vmatprep.mubr.f32.mxu0 0.0
    %981 = vmatmul.mubr.f32.gmra.mrb[0].mxu0 %v912
    %v982 = vpop.f32.mrb[0].mxu0
    %v983 = vadd.f32 %v248, %v982
    %v984 = vpop.f32.mrb[0].mxu0
    %985 = vdwg.mxu0
    %v986 = vsel %vm379, %v451, -inf
    %987 = vmax.xlane.f32.xlu0 %v986
    %v988 = vpop.xlane.xlu0 %987
    %v989 = vsel %vm379, %v527, -inf
    %990 = vmax.xlane.f32.xlu0 %v989
    %v991 = vpop.xlane.xlu0 %990
    %v992 = vsel %vm379, %v603, -inf
    %993 = vmax.xlane.f32.xlu0 %v992
    %v994 = vpop.xlane.xlu0 %993
    %v995 = vsel %vm379, %v679, -inf
    %996 = vmax.xlane.f32.xlu0 %v995
    %v997 = vpop.xlane.xlu0 %996
    %v998 = vsel %vm379, %v755, -inf
    %999 = vmax.xlane.f32.xlu0 %v998
    %v1000 = vpop.xlane.xlu0 %999
    %v1001 = vsel %vm379, %v831, -inf
    %1002 = vmax.xlane.f32.xlu0 %v1001
    %v1003 = vpop.xlane.xlu0 %1002
    %v1004 = vsel %vm379, %v907, -inf
    %1005 = vmax.xlane.f32.xlu0 %v1004
    %v1006 = vpop.xlane.xlu0 %1005
    %v1007 = vsel %vm379, %v983, -inf
    %1008 = vmax.xlane.f32.xlu0 %v1007
    %v1009 = vpop.xlane.xlu0 %1008
    %v1010 = vsub.f32 %v451, %v988
    %v1011 = vsub.f32 %v527, %v991
    %v1012 = vsub.f32 %v603, %v994
    %v1013 = vsub.f32 %v679, %v997
    %v1014 = vsub.f32 %v755, %v1000
    %v1015 = vsub.f32 %v831, %v1003
    %v1016 = vsub.f32 %v907, %v1006
    %v1017 = vsub.f32 %v983, %v1009
    %v1018 = vmul.f32 %v1010, 1.442695
    %v1019 = vpow.pop %v1018
    %v1020 = vmul.f32 %v1011, 1.442695
    %v1021 = vpow.pop %v1020
    %v1022 = vmul.f32 %v1012, 1.442695
    %v1023 = vpow.pop %v1022
    %v1024 = vmul.f32 %v1013, 1.442695
    %v1025 = vpow.pop %v1024
    %v1026 = vmul.f32 %v1014, 1.442695
    %v1027 = vpow.pop %v1026
    %v1028 = vmul.f32 %v1015, 1.442695
    %v1029 = vpow.pop %v1028
    %v1030 = vmul.f32 %v1016, 1.442695
    %v1031 = vpow.pop %v1030
    %v1032 = vmul.f32 %v1017, 1.442695
    %v1033 = vpow.pop %v1032
    %v1034 = vsel %vm379, %v1019, 0.0
    %1035 = vadd.xlane.f32.xlu0 %v1034
    %v1036 = vpop.xlane.xlu0 %1035
    %v1037 = vsel %vm379, %v1021, 0.0
    %1038 = vadd.xlane.f32.xlu0 %v1037
    %v1039 = vpop.xlane.xlu0 %1038
    %v1040 = vsel %vm379, %v1023, 0.0
    %1041 = vadd.xlane.f32.xlu0 %v1040
    %v1042 = vpop.xlane.xlu0 %1041
    %v1043 = vsel %vm379, %v1025, 0.0
    %1044 = vadd.xlane.f32.xlu0 %v1043
    %v1045 = vpop.xlane.xlu0 %1044
    %v1046 = vsel %vm379, %v1027, 0.0
    %1047 = vadd.xlane.f32.xlu0 %v1046
    %v1048 = vpop.xlane.xlu0 %1047
    %v1049 = vsel %vm379, %v1029, 0.0
    %1050 = vadd.xlane.f32.xlu0 %v1049
    %v1051 = vpop.xlane.xlu0 %1050
    %v1052 = vsel %vm379, %v1031, 0.0
    %1053 = vadd.xlane.f32.xlu0 %v1052
    %v1054 = vpop.xlane.xlu0 %1053
    %v1055 = vsel %vm379, %v1033, 0.0
    %1056 = vadd.xlane.f32.xlu0 %v1055
    %v1057 = vpop.xlane.xlu0 %1056
    %v1058 = vrcp.pop %v1036
    %v1059 = vrcp.pop %v1039
    %v1060 = vrcp.pop %v1042
    %v1061 = vrcp.pop %v1045
    %v1062 = vrcp.pop %v1048
    %v1063 = vrcp.pop %v1051
    %v1064 = vrcp.pop %v1054
    %v1065 = vrcp.pop %v1057
    %v1066 = vmul.f32 %v1019, %v1058
    %v1067 = vmul.f32 %v1021, %v1059
    %v1068 = vmul.f32 %v1023, %v1060
    %v1069 = vmul.f32 %v1025, %v1061
    %v1070 = vmul.f32 %v1027, %v1062
    %v1071 = vmul.f32 %v1029, %v1063
    %v1072 = vmul.f32 %v1031, %v1064
    %v1073 = vmul.f32 %v1033, %v1065
    %1074 = vrot.lane.b32.xlu0 %v355, 64
    %v1075 = vpop.permute.xlu0 %1074
    %v1078 = vsel %vm379, %v1066, 0
    %1080 = vmatprep.subr.mxu0 0.0
    %1081 = vmatpush1.msra.mxu0 %v1075
    %1082 = vmatprep.subr.mxu0 0.0
    %1083 = vmatpush1.msra.mxu0 0.0
    %1084 = vmatprep.subr.mxu0 0.0
    %1085 = vmatpush1.msra.mxu0 0.0
    %1086 = vmatprep.subr.mxu0 0.0
    %1087 = vmatpush1.msra.mxu0 0.0
    %1088 = vmatprep.subr.mxu0 0.0
    %1089 = vmatpush1.msra.mxu0 0.0
    %1090 = vmatprep.subr.mxu0 0.0
    %1091 = vmatpush1.msra.mxu0 0.0
    %1092 = vmatprep.subr.mxu0 0.0
    %1093 = vmatpush1.msra.mxu0 0.0
    %1094 = vmatprep.subr.mxu0 0.0
    %1095 = vmatpush1.msra.mxu0 0.0
    %1096 = vmatprep.subr.mxu0 0.0
    %1097 = vmatpush1.msra.mxu0 0.0
    %1098 = vmatprep.subr.mxu0 0.0
    %1099 = vmatpush1.msra.mxu0 0.0
    %1100 = vmatprep.subr.mxu0 0.0
    %1101 = vmatpush1.msra.mxu0 0.0
    %1102 = vmatprep.subr.mxu0 0.0
    %1103 = vmatpush1.msra.mxu0 0.0
    %1104 = vmatprep.subr.mxu0 0.0
    %1105 = vmatpush1.msra.mxu0 0.0
    %1106 = vmatprep.subr.mxu0 0.0
    %1107 = vmatpush1.msra.mxu0 0.0
    %1108 = vmatprep.subr.mxu0 0.0
    %1109 = vmatpush1.msra.mxu0 0.0
    %1110 = vmatprep.subr.mxu0 0.0
    %1111 = vmatpush1.msra.mxu0 0.0
    %1112 = vmatprep.subr.mxu0 0.0
    %1113 = vmatpush1.msra.mxu0 0.0
    %1114 = vmatprep.subr.mxu0 0.0
    %1115 = vmatpush1.msra.mxu0 0.0
    %1116 = vmatprep.subr.mxu0 0.0
    %1117 = vmatpush1.msra.mxu0 0.0
    %1118 = vmatprep.subr.mxu0 0.0
    %1119 = vmatpush1.msra.mxu0 0.0
    %1120 = vmatprep.subr.mxu0 0.0
    %1121 = vmatpush1.msra.mxu0 0.0
    %1122 = vmatprep.subr.mxu0 0.0
    %1123 = vmatpush1.msra.mxu0 0.0
    %1124 = vmatprep.subr.mxu0 0.0
    %1125 = vmatpush1.msra.mxu0 0.0
    %1126 = vmatprep.subr.mxu0 0.0
    %1127 = vmatpush1.msra.mxu0 0.0
    %1128 = vmatprep.subr.mxu0 0.0
    %1129 = vmatpush1.msra.mxu0 0.0
    %1130 = vmatprep.subr.mxu0 0.0
    %1131 = vmatpush1.msra.mxu0 0.0
    %1132 = vmatprep.subr.mxu0 0.0
    %1133 = vmatpush1.msra.mxu0 0.0
    %1134 = vmatprep.subr.mxu0 0.0
    %1135 = vmatpush1.msra.mxu0 0.0
    %1136 = vmatprep.subr.mxu0 0.0
    %1137 = vmatpush1.msra.mxu0 0.0
    %1138 = vmatprep.subr.mxu0 0.0
    %1139 = vmatpush1.msra.mxu0 0.0
    %1140 = vmatprep.subr.mxu0 0.0
    %1141 = vmatpush1.msra.mxu0 0.0
    %1142 = vmatprep.subr.mxu0 0.0
    %1143 = vmatpush1.msra.mxu0 0.0
    %1144 = vmatprep.mubr.f32.mxu0 0.0
    %1145 = vmatmul.mubr.f32.gmra.mrb[0].mxu0 %v1078
    %v1146 = vpop.f32.mrb[0].mxu0
    %v1147 = vadd.f32 0.0, %v1146
    %v1148 = vpop.f32.mrb[0].mxu0
    %1149 = vdwg.mxu0
    %1150 = vrot.lane.b32.xlu0 %v360, 64
    %v1151 = vpop.permute.xlu0 %1150
    %v1154 = vsel %vm379, %v1067, 0
    %1156 = vmatprep.subr.mxu0 0.0
    %1157 = vmatpush1.msra.mxu0 %v1151
    %1158 = vmatprep.subr.mxu0 0.0
    %1159 = vmatpush1.msra.mxu0 0.0
    %1160 = vmatprep.subr.mxu0 0.0
    %1161 = vmatpush1.msra.mxu0 0.0
    %1162 = vmatprep.subr.mxu0 0.0
    %1163 = vmatpush1.msra.mxu0 0.0
    %1164 = vmatprep.subr.mxu0 0.0
    %1165 = vmatpush1.msra.mxu0 0.0
    %1166 = vmatprep.subr.mxu0 0.0
    %1167 = vmatpush1.msra.mxu0 0.0
    %1168 = vmatprep.subr.mxu0 0.0
    %1169 = vmatpush1.msra.mxu0 0.0
    %1170 = vmatprep.subr.mxu0 0.0
    %1171 = vmatpush1.msra.mxu0 0.0
    %1172 = vmatprep.subr.mxu0 0.0
    %1173 = vmatpush1.msra.mxu0 0.0
    %1174 = vmatprep.subr.mxu0 0.0
    %1175 = vmatpush1.msra.mxu0 0.0
    %1176 = vmatprep.subr.mxu0 0.0
    %1177 = vmatpush1.msra.mxu0 0.0
    %1178 = vmatprep.subr.mxu0 0.0
    %1179 = vmatpush1.msra.mxu0 0.0
    %1180 = vmatprep.subr.mxu0 0.0
    %1181 = vmatpush1.msra.mxu0 0.0
    %1182 = vmatprep.subr.mxu0 0.0
    %1183 = vmatpush1.msra.mxu0 0.0
    %1184 = vmatprep.subr.mxu0 0.0
    %1185 = vmatpush1.msra.mxu0 0.0
    %1186 = vmatprep.subr.mxu0 0.0
    %1187 = vmatpush1.msra.mxu0 0.0
    %1188 = vmatprep.subr.mxu0 0.0
    %1189 = vmatpush1.msra.mxu0 0.0
    %1190 = vmatprep.subr.mxu0 0.0
    %1191 = vmatpush1.msra.mxu0 0.0
    %1192 = vmatprep.subr.mxu0 0.0
    %1193 = vmatpush1.msra.mxu0 0.0
    %1194 = vmatprep.subr.mxu0 0.0
    %1195 = vmatpush1.msra.mxu0 0.0
    %1196 = vmatprep.subr.mxu0 0.0
    %1197 = vmatpush1.msra.mxu0 0.0
    %1198 = vmatprep.subr.mxu0 0.0
    %1199 = vmatpush1.msra.mxu0 0.0
    %1200 = vmatprep.subr.mxu0 0.0
    %1201 = vmatpush1.msra.mxu0 0.0
    %1202 = vmatprep.subr.mxu0 0.0
    %1203 = vmatpush1.msra.mxu0 0.0
    %1204 = vmatprep.subr.mxu0 0.0
    %1205 = vmatpush1.msra.mxu0 0.0
    %1206 = vmatprep.subr.mxu0 0.0
    %1207 = vmatpush1.msra.mxu0 0.0
    %1208 = vmatprep.subr.mxu0 0.0
    %1209 = vmatpush1.msra.mxu0 0.0
    %1210 = vmatprep.subr.mxu0 0.0
    %1211 = vmatpush1.msra.mxu0 0.0
    %1212 = vmatprep.subr.mxu0 0.0
    %1213 = vmatpush1.msra.mxu0 0.0
    %1214 = vmatprep.subr.mxu0 0.0
    %1215 = vmatpush1.msra.mxu0 0.0
    %1216 = vmatprep.subr.mxu0 0.0
    %1217 = vmatpush1.msra.mxu0 0.0
    %1218 = vmatprep.subr.mxu0 0.0
    %1219 = vmatpush1.msra.mxu0 0.0
    %1220 = vmatprep.mubr.f32.mxu0 0.0
    %1221 = vmatmul.mubr.f32.gmra.mrb[0].mxu0 %v1154
    %v1222 = vpop.f32.mrb[0].mxu0
    %v1223 = vadd.f32 0.0, %v1222
    %v1224 = vpop.f32.mrb[0].mxu0
    %1225 = vdwg.mxu0
    %1226 = vrot.lane.b32.xlu0 %v366, 64
    %v1227 = vpop.permute.xlu0 %1226
    %v1230 = vsel %vm379, %v1068, 0
    %1232 = vmatprep.subr.mxu0 0.0
    %1233 = vmatpush1.msra.mxu0 %v1227
    %1234 = vmatprep.subr.mxu0 0.0
    %1235 = vmatpush1.msra.mxu0 0.0
    %1236 = vmatprep.subr.mxu0 0.0
    %1237 = vmatpush1.msra.mxu0 0.0
    %1238 = vmatprep.subr.mxu0 0.0
    %1239 = vmatpush1.msra.mxu0 0.0
    %1240 = vmatprep.subr.mxu0 0.0
    %1241 = vmatpush1.msra.mxu0 0.0
    %1242 = vmatprep.subr.mxu0 0.0
    %1243 = vmatpush1.msra.mxu0 0.0
    %1244 = vmatprep.subr.mxu0 0.0
    %1245 = vmatpush1.msra.mxu0 0.0
    %1246 = vmatprep.subr.mxu0 0.0
    %1247 = vmatpush1.msra.mxu0 0.0
    %1248 = vmatprep.subr.mxu0 0.0
    %1249 = vmatpush1.msra.mxu0 0.0
    %1250 = vmatprep.subr.mxu0 0.0
    %1251 = vmatpush1.msra.mxu0 0.0
    %1252 = vmatprep.subr.mxu0 0.0
    %1253 = vmatpush1.msra.mxu0 0.0
    %1254 = vmatprep.subr.mxu0 0.0
    %1255 = vmatpush1.msra.mxu0 0.0
    %1256 = vmatprep.subr.mxu0 0.0
    %1257 = vmatpush1.msra.mxu0 0.0
    %1258 = vmatprep.subr.mxu0 0.0
    %1259 = vmatpush1.msra.mxu0 0.0
    %1260 = vmatprep.subr.mxu0 0.0
    %1261 = vmatpush1.msra.mxu0 0.0
    %1262 = vmatprep.subr.mxu0 0.0
    %1263 = vmatpush1.msra.mxu0 0.0
    %1264 = vmatprep.subr.mxu0 0.0
    %1265 = vmatpush1.msra.mxu0 0.0
    %1266 = vmatprep.subr.mxu0 0.0
    %1267 = vmatpush1.msra.mxu0 0.0
    %1268 = vmatprep.subr.mxu0 0.0
    %1269 = vmatpush1.msra.mxu0 0.0
    %1270 = vmatprep.subr.mxu0 0.0
    %1271 = vmatpush1.msra.mxu0 0.0
    %1272 = vmatprep.subr.mxu0 0.0
    %1273 = vmatpush1.msra.mxu0 0.0
    %1274 = vmatprep.subr.mxu0 0.0
    %1275 = vmatpush1.msra.mxu0 0.0
    %1276 = vmatprep.subr.mxu0 0.0
    %1277 = vmatpush1.msra.mxu0 0.0
    %1278 = vmatprep.subr.mxu0 0.0
    %1279 = vmatpush1.msra.mxu0 0.0
    %1280 = vmatprep.subr.mxu0 0.0
    %1281 = vmatpush1.msra.mxu0 0.0
    %1282 = vmatprep.subr.mxu0 0.0
    %1283 = vmatpush1.msra.mxu0 0.0
    %1284 = vmatprep.subr.mxu0 0.0
    %1285 = vmatpush1.msra.mxu0 0.0
    %1286 = vmatprep.subr.mxu0 0.0
    %1287 = vmatpush1.msra.mxu0 0.0
    %1288 = vmatprep.subr.mxu0 0.0
    %1289 = vmatpush1.msra.mxu0 0.0
    %1290 = vmatprep.subr.mxu0 0.0
    %1291 = vmatpush1.msra.mxu0 0.0
    %1292 = vmatprep.subr.mxu0 0.0
    %1293 = vmatpush1.msra.mxu0 0.0
    %1294 = vmatprep.subr.mxu0 0.0
    %1295 = vmatpush1.msra.mxu0 0.0
    %1296 = vmatprep.mubr.f32.mxu0 0.0
    %1297 = vmatmul.mubr.f32.gmra.mrb[0].mxu0 %v1230
    %v1298 = vpop.f32.mrb[0].mxu0
    %v1299 = vadd.f32 0.0, %v1298
    %v1300 = vpop.f32.mrb[0].mxu0
    %1301 = vdwg.mxu0
    %1302 = vrot.lane.b32.xlu0 %v368, 64
    %v1303 = vpop.permute.xlu0 %1302
    %v1306 = vsel %vm379, %v1069, 0
    %1308 = vmatprep.subr.mxu0 0.0
    %1309 = vmatpush1.msra.mxu0 %v1303
    %1310 = vmatprep.subr.mxu0 0.0
    %1311 = vmatpush1.msra.mxu0 0.0
    %1312 = vmatprep.subr.mxu0 0.0
    %1313 = vmatpush1.msra.mxu0 0.0
    %1314 = vmatprep.subr.mxu0 0.0
    %1315 = vmatpush1.msra.mxu0 0.0
    %1316 = vmatprep.subr.mxu0 0.0
    %1317 = vmatpush1.msra.mxu0 0.0
    %1318 = vmatprep.subr.mxu0 0.0
    %1319 = vmatpush1.msra.mxu0 0.0
    %1320 = vmatprep.subr.mxu0 0.0
    %1321 = vmatpush1.msra.mxu0 0.0
    %1322 = vmatprep.subr.mxu0 0.0
    %1323 = vmatpush1.msra.mxu0 0.0
    %1324 = vmatprep.subr.mxu0 0.0
    %1325 = vmatpush1.msra.mxu0 0.0
    %1326 = vmatprep.subr.mxu0 0.0
    %1327 = vmatpush1.msra.mxu0 0.0
    %1328 = vmatprep.subr.mxu0 0.0
    %1329 = vmatpush1.msra.mxu0 0.0
    %1330 = vmatprep.subr.mxu0 0.0
    %1331 = vmatpush1.msra.mxu0 0.0
    %1332 = vmatprep.subr.mxu0 0.0
    %1333 = vmatpush1.msra.mxu0 0.0
    %1334 = vmatprep.subr.mxu0 0.0
    %1335 = vmatpush1.msra.mxu0 0.0
    %1336 = vmatprep.subr.mxu0 0.0
    %1337 = vmatpush1.msra.mxu0 0.0
    %1338 = vmatprep.subr.mxu0 0.0
    %1339 = vmatpush1.msra.mxu0 0.0
    %1340 = vmatprep.subr.mxu0 0.0
    %1341 = vmatpush1.msra.mxu0 0.0
    %1342 = vmatprep.subr.mxu0 0.0
    %1343 = vmatpush1.msra.mxu0 0.0
    %1344 = vmatprep.subr.mxu0 0.0
    %1345 = vmatpush1.msra.mxu0 0.0
    %1346 = vmatprep.subr.mxu0 0.0
    %1347 = vmatpush1.msra.mxu0 0.0
    %1348 = vmatprep.subr.mxu0 0.0
    %1349 = vmatpush1.msra.mxu0 0.0
    %1350 = vmatprep.subr.mxu0 0.0
    %1351 = vmatpush1.msra.mxu0 0.0
    %1352 = vmatprep.subr.mxu0 0.0
    %1353 = vmatpush1.msra.mxu0 0.0
    %1354 = vmatprep.subr.mxu0 0.0
    %1355 = vmatpush1.msra.mxu0 0.0
    %1356 = vmatprep.subr.mxu0 0.0
    %1357 = vmatpush1.msra.mxu0 0.0
    %1358 = vmatprep.subr.mxu0 0.0
    %1359 = vmatpush1.msra.mxu0 0.0
    %1360 = vmatprep.subr.mxu0 0.0
    %1361 = vmatpush1.msra.mxu0 0.0
    %1362 = vmatprep.subr.mxu0 0.0
    %1363 = vmatpush1.msra.mxu0 0.0
    %1364 = vmatprep.subr.mxu0 0.0
    %1365 = vmatpush1.msra.mxu0 0.0
    %1366 = vmatprep.subr.mxu0 0.0
    %1367 = vmatpush1.msra.mxu0 0.0
    %1368 = vmatprep.subr.mxu0 0.0
    %1369 = vmatpush1.msra.mxu0 0.0
    %1370 = vmatprep.subr.mxu0 0.0
    %1371 = vmatpush1.msra.mxu0 0.0
    %1372 = vmatprep.mubr.f32.mxu0 0.0
    %1373 = vmatmul.mubr.f32.gmra.mrb[0].mxu0 %v1306
    %v1374 = vpop.f32.mrb[0].mxu0
    %v1375 = vadd.f32 0.0, %v1374
    %v1376 = vpop.f32.mrb[0].mxu0
    %1377 = vdwg.mxu0
    %1378 = vrot.lane.b32.xlu0 %v370, 64
    %v1379 = vpop.permute.xlu0 %1378
    %v1382 = vsel %vm379, %v1070, 0
    %1384 = vmatprep.subr.mxu0 0.0
    %1385 = vmatpush1.msra.mxu0 %v1379
    %1386 = vmatprep.subr.mxu0 0.0
    %1387 = vmatpush1.msra.mxu0 0.0
    %1388 = vmatprep.subr.mxu0 0.0
    %1389 = vmatpush1.msra.mxu0 0.0
    %1390 = vmatprep.subr.mxu0 0.0
    %1391 = vmatpush1.msra.mxu0 0.0
    %1392 = vmatprep.subr.mxu0 0.0
    %1393 = vmatpush1.msra.mxu0 0.0
    %1394 = vmatprep.subr.mxu0 0.0
    %1395 = vmatpush1.msra.mxu0 0.0
    %1396 = vmatprep.subr.mxu0 0.0
    %1397 = vmatpush1.msra.mxu0 0.0
    %1398 = vmatprep.subr.mxu0 0.0
    %1399 = vmatpush1.msra.mxu0 0.0
    %1400 = vmatprep.subr.mxu0 0.0
    %1401 = vmatpush1.msra.mxu0 0.0
    %1402 = vmatprep.subr.mxu0 0.0
    %1403 = vmatpush1.msra.mxu0 0.0
    %1404 = vmatprep.subr.mxu0 0.0
    %1405 = vmatpush1.msra.mxu0 0.0
    %1406 = vmatprep.subr.mxu0 0.0
    %1407 = vmatpush1.msra.mxu0 0.0
    %1408 = vmatprep.subr.mxu0 0.0
    %1409 = vmatpush1.msra.mxu0 0.0
    %1410 = vmatprep.subr.mxu0 0.0
    %1411 = vmatpush1.msra.mxu0 0.0
    %1412 = vmatprep.subr.mxu0 0.0
    %1413 = vmatpush1.msra.mxu0 0.0
    %1414 = vmatprep.subr.mxu0 0.0
    %1415 = vmatpush1.msra.mxu0 0.0
    %1416 = vmatprep.subr.mxu0 0.0
    %1417 = vmatpush1.msra.mxu0 0.0
    %1418 = vmatprep.subr.mxu0 0.0
    %1419 = vmatpush1.msra.mxu0 0.0
    %1420 = vmatprep.subr.mxu0 0.0
    %1421 = vmatpush1.msra.mxu0 0.0
    %1422 = vmatprep.subr.mxu0 0.0
    %1423 = vmatpush1.msra.mxu0 0.0
    %1424 = vmatprep.subr.mxu0 0.0
    %1425 = vmatpush1.msra.mxu0 0.0
    %1426 = vmatprep.subr.mxu0 0.0
    %1427 = vmatpush1.msra.mxu0 0.0
    %1428 = vmatprep.subr.mxu0 0.0
    %1429 = vmatpush1.msra.mxu0 0.0
    %1430 = vmatprep.subr.mxu0 0.0
    %1431 = vmatpush1.msra.mxu0 0.0
    %1432 = vmatprep.subr.mxu0 0.0
    %1433 = vmatpush1.msra.mxu0 0.0
    %1434 = vmatprep.subr.mxu0 0.0
    %1435 = vmatpush1.msra.mxu0 0.0
    %1436 = vmatprep.subr.mxu0 0.0
    %1437 = vmatpush1.msra.mxu0 0.0
    %1438 = vmatprep.subr.mxu0 0.0
    %1439 = vmatpush1.msra.mxu0 0.0
    %1440 = vmatprep.subr.mxu0 0.0
    %1441 = vmatpush1.msra.mxu0 0.0
    %1442 = vmatprep.subr.mxu0 0.0
    %1443 = vmatpush1.msra.mxu0 0.0
    %1444 = vmatprep.subr.mxu0 0.0
    %1445 = vmatpush1.msra.mxu0 0.0
    %1446 = vmatprep.subr.mxu0 0.0
    %1447 = vmatpush1.msra.mxu0 0.0
    %1448 = vmatprep.mubr.f32.mxu0 0.0
    %1449 = vmatmul.mubr.f32.gmra.mrb[0].mxu0 %v1382
    %v1450 = vpop.f32.mrb[0].mxu0
    %v1451 = vadd.f32 0.0, %v1450
    %v1452 = vpop.f32.mrb[0].mxu0
    %1453 = vdwg.mxu0
    %1454 = vrot.lane.b32.xlu0 %v372, 64
    %v1455 = vpop.permute.xlu0 %1454
    %v1458 = vsel %vm379, %v1071, 0
    %1460 = vmatprep.subr.mxu0 0.0
    %1461 = vmatpush1.msra.mxu0 %v1455
    %1462 = vmatprep.subr.mxu0 0.0
    %1463 = vmatpush1.msra.mxu0 0.0
    %1464 = vmatprep.subr.mxu0 0.0
    %1465 = vmatpush1.msra.mxu0 0.0
    %1466 = vmatprep.subr.mxu0 0.0
    %1467 = vmatpush1.msra.mxu0 0.0
    %1468 = vmatprep.subr.mxu0 0.0
    %1469 = vmatpush1.msra.mxu0 0.0
    %1470 = vmatprep.subr.mxu0 0.0
    %1471 = vmatpush1.msra.mxu0 0.0
    %1472 = vmatprep.subr.mxu0 0.0
    %1473 = vmatpush1.msra.mxu0 0.0
    %1474 = vmatprep.subr.mxu0 0.0
    %1475 = vmatpush1.msra.mxu0 0.0
    %1476 = vmatprep.subr.mxu0 0.0
    %1477 = vmatpush1.msra.mxu0 0.0
    %1478 = vmatprep.subr.mxu0 0.0
    %1479 = vmatpush1.msra.mxu0 0.0
    %1480 = vmatprep.subr.mxu0 0.0
    %1481 = vmatpush1.msra.mxu0 0.0
    %1482 = vmatprep.subr.mxu0 0.0
    %1483 = vmatpush1.msra.mxu0 0.0
    %1484 = vmatprep.subr.mxu0 0.0
    %1485 = vmatpush1.msra.mxu0 0.0
    %1486 = vmatprep.subr.mxu0 0.0
    %1487 = vmatpush1.msra.mxu0 0.0
    %1488 = vmatprep.subr.mxu0 0.0
    %1489 = vmatpush1.msra.mxu0 0.0
    %1490 = vmatprep.subr.mxu0 0.0
    %1491 = vmatpush1.msra.mxu0 0.0
    %1492 = vmatprep.subr.mxu0 0.0
    %1493 = vmatpush1.msra.mxu0 0.0
    %1494 = vmatprep.subr.mxu0 0.0
    %1495 = vmatpush1.msra.mxu0 0.0
    %1496 = vmatprep.subr.mxu0 0.0
    %1497 = vmatpush1.msra.mxu0 0.0
    %1498 = vmatprep.subr.mxu0 0.0
    %1499 = vmatpush1.msra.mxu0 0.0
    %1500 = vmatprep.subr.mxu0 0.0
    %1501 = vmatpush1.msra.mxu0 0.0
    %1502 = vmatprep.subr.mxu0 0.0
    %1503 = vmatpush1.msra.mxu0 0.0
    %1504 = vmatprep.subr.mxu0 0.0
    %1505 = vmatpush1.msra.mxu0 0.0
    %1506 = vmatprep.subr.mxu0 0.0
    %1507 = vmatpush1.msra.mxu0 0.0
    %1508 = vmatprep.subr.mxu0 0.0
    %1509 = vmatpush1.msra.mxu0 0.0
    %1510 = vmatprep.subr.mxu0 0.0
    %1511 = vmatpush1.msra.mxu0 0.0
    %1512 = vmatprep.subr.mxu0 0.0
    %1513 = vmatpush1.msra.mxu0 0.0
    %1514 = vmatprep.subr.mxu0 0.0
    %1515 = vmatpush1.msra.mxu0 0.0
    %1516 = vmatprep.subr.mxu0 0.0
    %1517 = vmatpush1.msra.mxu0 0.0
    %1518 = vmatprep.subr.mxu0 0.0
    %1519 = vmatpush1.msra.mxu0 0.0
    %1520 = vmatprep.subr.mxu0 0.0
    %1521 = vmatpush1.msra.mxu0 0.0
    %1522 = vmatprep.subr.mxu0 0.0
    %1523 = vmatpush1.msra.mxu0 0.0
    %1524 = vmatprep.mubr.f32.mxu0 0.0
    %1525 = vmatmul.mubr.f32.gmra.mrb[0].mxu0 %v1458
    %v1526 = vpop.f32.mrb[0].mxu0
    %v1527 = vadd.f32 0.0, %v1526
    %v1528 = vpop.f32.mrb[0].mxu0
    %1529 = vdwg.mxu0
    %1530 = vrot.lane.b32.xlu0 %v374, 64
    %v1531 = vpop.permute.xlu0 %1530
    %v1534 = vsel %vm379, %v1072, 0
    %1536 = vmatprep.subr.mxu0 0.0
    %1537 = vmatpush1.msra.mxu0 %v1531
    %1538 = vmatprep.subr.mxu0 0.0
    %1539 = vmatpush1.msra.mxu0 0.0
    %1540 = vmatprep.subr.mxu0 0.0
    %1541 = vmatpush1.msra.mxu0 0.0
    %1542 = vmatprep.subr.mxu0 0.0
    %1543 = vmatpush1.msra.mxu0 0.0
    %1544 = vmatprep.subr.mxu0 0.0
    %1545 = vmatpush1.msra.mxu0 0.0
    %1546 = vmatprep.subr.mxu0 0.0
    %1547 = vmatpush1.msra.mxu0 0.0
    %1548 = vmatprep.subr.mxu0 0.0
    %1549 = vmatpush1.msra.mxu0 0.0
    %1550 = vmatprep.subr.mxu0 0.0
    %1551 = vmatpush1.msra.mxu0 0.0
    %1552 = vmatprep.subr.mxu0 0.0
    %1553 = vmatpush1.msra.mxu0 0.0
    %1554 = vmatprep.subr.mxu0 0.0
    %1555 = vmatpush1.msra.mxu0 0.0
    %1556 = vmatprep.subr.mxu0 0.0
    %1557 = vmatpush1.msra.mxu0 0.0
    %1558 = vmatprep.subr.mxu0 0.0
    %1559 = vmatpush1.msra.mxu0 0.0
    %1560 = vmatprep.subr.mxu0 0.0
    %1561 = vmatpush1.msra.mxu0 0.0
    %1562 = vmatprep.subr.mxu0 0.0
    %1563 = vmatpush1.msra.mxu0 0.0
    %1564 = vmatprep.subr.mxu0 0.0
    %1565 = vmatpush1.msra.mxu0 0.0
    %1566 = vmatprep.subr.mxu0 0.0
    %1567 = vmatpush1.msra.mxu0 0.0
    %1568 = vmatprep.subr.mxu0 0.0
    %1569 = vmatpush1.msra.mxu0 0.0
    %1570 = vmatprep.subr.mxu0 0.0
    %1571 = vmatpush1.msra.mxu0 0.0
    %1572 = vmatprep.subr.mxu0 0.0
    %1573 = vmatpush1.msra.mxu0 0.0
    %1574 = vmatprep.subr.mxu0 0.0
    %1575 = vmatpush1.msra.mxu0 0.0
    %1576 = vmatprep.subr.mxu0 0.0
    %1577 = vmatpush1.msra.mxu0 0.0
    %1578 = vmatprep.subr.mxu0 0.0
    %1579 = vmatpush1.msra.mxu0 0.0
    %1580 = vmatprep.subr.mxu0 0.0
    %1581 = vmatpush1.msra.mxu0 0.0
    %1582 = vmatprep.subr.mxu0 0.0
    %1583 = vmatpush1.msra.mxu0 0.0
    %1584 = vmatprep.subr.mxu0 0.0
    %1585 = vmatpush1.msra.mxu0 0.0
    %1586 = vmatprep.subr.mxu0 0.0
    %1587 = vmatpush1.msra.mxu0 0.0
    %1588 = vmatprep.subr.mxu0 0.0
    %1589 = vmatpush1.msra.mxu0 0.0
    %1590 = vmatprep.subr.mxu0 0.0
    %1591 = vmatpush1.msra.mxu0 0.0
    %1592 = vmatprep.subr.mxu0 0.0
    %1593 = vmatpush1.msra.mxu0 0.0
    %1594 = vmatprep.subr.mxu0 0.0
    %1595 = vmatpush1.msra.mxu0 0.0
    %1596 = vmatprep.subr.mxu0 0.0
    %1597 = vmatpush1.msra.mxu0 0.0
    %1598 = vmatprep.subr.mxu0 0.0
    %1599 = vmatpush1.msra.mxu0 0.0
    %1600 = vmatprep.mubr.f32.mxu0 0.0
    %1601 = vmatmul.mubr.f32.gmra.mrb[0].mxu0 %v1534
    %v1602 = vpop.f32.mrb[0].mxu0
    %v1603 = vadd.f32 0.0, %v1602
    %v1604 = vpop.f32.mrb[0].mxu0
    %1605 = vdwg.mxu0
    %1606 = vrot.lane.b32.xlu0 %v376, 64
    %v1607 = vpop.permute.xlu0 %1606
    %v1610 = vsel %vm379, %v1073, 0
    %1612 = vmatprep.subr.mxu0 0.0
    %1613 = vmatpush1.msra.mxu0 %v1607
    %1614 = vmatprep.subr.mxu0 0.0
    %1615 = vmatpush1.msra.mxu0 0.0
    %1616 = vmatprep.subr.mxu0 0.0
    %1617 = vmatpush1.msra.mxu0 0.0
    %1618 = vmatprep.subr.mxu0 0.0
    %1619 = vmatpush1.msra.mxu0 0.0
    %1620 = vmatprep.subr.mxu0 0.0
    %1621 = vmatpush1.msra.mxu0 0.0
    %1622 = vmatprep.subr.mxu0 0.0
    %1623 = vmatpush1.msra.mxu0 0.0
    %1624 = vmatprep.subr.mxu0 0.0
    %1625 = vmatpush1.msra.mxu0 0.0
    %1626 = vmatprep.subr.mxu0 0.0
    %1627 = vmatpush1.msra.mxu0 0.0
    %1628 = vmatprep.subr.mxu0 0.0
    %1629 = vmatpush1.msra.mxu0 0.0
    %1630 = vmatprep.subr.mxu0 0.0
    %1631 = vmatpush1.msra.mxu0 0.0
    %1632 = vmatprep.subr.mxu0 0.0
    %1633 = vmatpush1.msra.mxu0 0.0
    %1634 = vmatprep.subr.mxu0 0.0
    %1635 = vmatpush1.msra.mxu0 0.0
    %1636 = vmatprep.subr.mxu0 0.0
    %1637 = vmatpush1.msra.mxu0 0.0
    %1638 = vmatprep.subr.mxu0 0.0
    %1639 = vmatpush1.msra.mxu0 0.0
    %1640 = vmatprep.subr.mxu0 0.0
    %1641 = vmatpush1.msra.mxu0 0.0
    %1642 = vmatprep.subr.mxu0 0.0
    %1643 = vmatpush1.msra.mxu0 0.0
    %1644 = vmatprep.subr.mxu0 0.0
    %1645 = vmatpush1.msra.mxu0 0.0
    %1646 = vmatprep.subr.mxu0 0.0
    %1647 = vmatpush1.msra.mxu0 0.0
    %1648 = vmatprep.subr.mxu0 0.0
    %1649 = vmatpush1.msra.mxu0 0.0
    %1650 = vmatprep.subr.mxu0 0.0
    %1651 = vmatpush1.msra.mxu0 0.0
    %1652 = vmatprep.subr.mxu0 0.0
    %1653 = vmatpush1.msra.mxu0 0.0
    %1654 = vmatprep.subr.mxu0 0.0
    %1655 = vmatpush1.msra.mxu0 0.0
    %1656 = vmatprep.subr.mxu0 0.0
    %1657 = vmatpush1.msra.mxu0 0.0
    %1658 = vmatprep.subr.mxu0 0.0
    %1659 = vmatpush1.msra.mxu0 0.0
    %1660 = vmatprep.subr.mxu0 0.0
    %1661 = vmatpush1.msra.mxu0 0.0
    %1662 = vmatprep.subr.mxu0 0.0
    %1663 = vmatpush1.msra.mxu0 0.0
    %1664 = vmatprep.subr.mxu0 0.0
    %1665 = vmatpush1.msra.mxu0 0.0
    %1666 = vmatprep.subr.mxu0 0.0
    %1667 = vmatpush1.msra.mxu0 0.0
    %1668 = vmatprep.subr.mxu0 0.0
    %1669 = vmatpush1.msra.mxu0 0.0
    %1670 = vmatprep.subr.mxu0 0.0
    %1671 = vmatpush1.msra.mxu0 0.0
    %1672 = vmatprep.subr.mxu0 0.0
    %1673 = vmatpush1.msra.mxu0 0.0
    %1674 = vmatprep.subr.mxu0 0.0
    %1675 = vmatpush1.msra.mxu0 0.0
    %1676 = vmatprep.mubr.f32.mxu0 0.0
    %1677 = vmatmul.mubr.f32.gmra.mrb[0].mxu0 %v1610
    %v1678 = vpop.f32.mrb[0].mxu0
    %v1679 = vadd.f32 0.0, %v1678
    %v1680 = vpop.f32.mrb[0].mxu0
    %1681 = vdwg.mxu0
    %1684 = vrot.lane.b32.xlu0 %v1299, 8
    %v1685 = vpop.permute.xlu0 %1684
    %1686 = vrot.lane.b32.xlu0 %v1375, 8
    %v1687 = vpop.permute.xlu0 %1686
    %1692 = vrot.lane.b32.xlu0 %v1451, 16
    %v1693 = vpop.permute.xlu0 %1692
    %1694 = vrot.lane.b32.xlu0 %v1527, 16
    %v1695 = vpop.permute.xlu0 %1694
    %1700 = vrot.lane.b32.xlu0 %v1603, 24
    %v1701 = vpop.permute.xlu0 %1700
    %1702 = vrot.lane.b32.xlu0 %v1679, 24
    %v1703 = vpop.permute.xlu0 %1702
    %v1706 = vsel %vm379, %v1147, %v1685
    %v1707 = vsel %vm379, %v1223, %v1687
    %vm1708 = vcmask 130048
    %v1709 = vsel %vm1708, %v1706, %v1693
    %v1710 = vsel %vm1708, %v1707, %v1695
    %vm1711 = vcmask 195584
    %v1712 = vsel %vm1711, %v1709, %v1701
    %v1713 = vsel %vm1711, %v1710, %v1703
    %v1714 = vlaneseq
    %v1715 = vshrl.u32 %v1714, 7
    %v1716 = vsub.s32 0, %v1715
    %v1717 = vrot.slane %v279, %v1716
    %1722 = vrot.lane.b32.xlu0 %v259, 32
    %v1723 = vpop.permute.xlu0 %1722
    %1724 = vrot.lane.b32.xlu0 %v260, 32
    %v1725 = vpop.permute.xlu0 %1724
    %1726 = vrot.lane.b32.xlu0 %v261, 32
    %v1727 = vpop.permute.xlu0 %1726
    %1728 = vrot.lane.b32.xlu0 %v262, 32
    %v1729 = vpop.permute.xlu0 %1728
    %v1735 = vsel %vm281, %v1712, 0
    %v1738 = vsel %vm281, %v1713, 0
    %1740 = vmatprep.subr.mxu0 0.0
    %1741 = vmatpush1.msra.mxu0 %v1723
    %1742 = vmatprep.subr.mxu0 0.0
    %1743 = vmatpush1.msra.mxu0 %v1725
    %1744 = vmatprep.subr.mxu0 0.0
    %1745 = vmatpush1.msra.mxu0 %v1727
    %1746 = vmatprep.subr.mxu0 0.0
    %1747 = vmatpush1.msra.mxu0 %v1729
    %1748 = vmatprep.subr.mxu0 0.0
    %1749 = vmatpush1.msra.mxu0 0.0
    %1750 = vmatprep.subr.mxu0 0.0
    %1751 = vmatpush1.msra.mxu0 0.0
    %1752 = vmatprep.subr.mxu0 0.0
    %1753 = vmatpush1.msra.mxu0 0.0
    %1754 = vmatprep.subr.mxu0 0.0
    %1755 = vmatpush1.msra.mxu0 0.0
    %1756 = vmatprep.subr.mxu0 0.0
    %1757 = vmatpush1.msra.mxu0 0.0
    %1758 = vmatprep.subr.mxu0 0.0
    %1759 = vmatpush1.msra.mxu0 0.0
    %1760 = vmatprep.subr.mxu0 0.0
    %1761 = vmatpush1.msra.mxu0 0.0
    %1762 = vmatprep.subr.mxu0 0.0
    %1763 = vmatpush1.msra.mxu0 0.0
    %1764 = vmatprep.subr.mxu0 0.0
    %1765 = vmatpush1.msra.mxu0 0.0
    %1766 = vmatprep.subr.mxu0 0.0
    %1767 = vmatpush1.msra.mxu0 0.0
    %1768 = vmatprep.subr.mxu0 0.0
    %1769 = vmatpush1.msra.mxu0 0.0
    %1770 = vmatprep.subr.mxu0 0.0
    %1771 = vmatpush1.msra.mxu0 0.0
    %1772 = vmatprep.subr.mxu0 0.0
    %1773 = vmatpush1.msra.mxu0 0.0
    %1774 = vmatprep.subr.mxu0 0.0
    %1775 = vmatpush1.msra.mxu0 0.0
    %1776 = vmatprep.subr.mxu0 0.0
    %1777 = vmatpush1.msra.mxu0 0.0
    %1778 = vmatprep.subr.mxu0 0.0
    %1779 = vmatpush1.msra.mxu0 0.0
    %1780 = vmatprep.subr.mxu0 0.0
    %1781 = vmatpush1.msra.mxu0 0.0
    %1782 = vmatprep.subr.mxu0 0.0
    %1783 = vmatpush1.msra.mxu0 0.0
    %1784 = vmatprep.subr.mxu0 0.0
    %1785 = vmatpush1.msra.mxu0 0.0
    %1786 = vmatprep.subr.mxu0 0.0
    %1787 = vmatpush1.msra.mxu0 0.0
    %1788 = vmatprep.subr.mxu0 0.0
    %1789 = vmatpush1.msra.mxu0 0.0
    %1790 = vmatprep.subr.mxu0 0.0
    %1791 = vmatpush1.msra.mxu0 0.0
    %1792 = vmatprep.subr.mxu0 0.0
    %1793 = vmatpush1.msra.mxu0 0.0
    %1794 = vmatprep.subr.mxu0 0.0
    %1795 = vmatpush1.msra.mxu0 0.0
    %1796 = vmatprep.subr.mxu0 0.0
    %1797 = vmatpush1.msra.mxu0 0.0
    %1798 = vmatprep.subr.mxu0 0.0
    %1799 = vmatpush1.msra.mxu0 0.0
    %1800 = vmatprep.subr.mxu0 0.0
    %1801 = vmatpush1.msra.mxu0 0.0
    %1802 = vmatprep.subr.mxu0 0.0
    %1803 = vmatpush1.msra.mxu0 0.0
    %1804 = vmatprep.mubr.f32.mxu0 0.0
    %1805 = vmatmul.mubr.f32.gmra.mrb[0].mxu0 %v1735
    %v1806 = vpop.f32.mrb[0].mxu0
    %v1807 = vadd.f32 %v1717, %v1806
    %v1808 = vpop.f32.mrb[0].mxu0
    %1809 = vmatprep.mubr.f32.mxu0 0.0
    %1810 = vmatmul.mubr.f32.gmra.mrb[0].mxu0 %v1738
    %v1811 = vpop.f32.mrb[0].mxu0
    %v1812 = vadd.f32 %v1717, %v1811
    %v1813 = vpop.f32.mrb[0].mxu0
    %1814 = vdwg.mxu0
    %v1815 = vadd.f32 %v1807, %v237
    %v1816 = vadd.f32 %v1812, %v242
    %v1817 = vsel %vm281, %v1815, 0.0
    %1818 = vadd.xlane.f32.xlu0 %v1817
    %v1819 = vpop.xlane.xlu0 %1818
    %v1820 = vsel %vm281, %v1816, 0.0
    %1821 = vadd.xlane.f32.xlu0 %v1820
    %v1822 = vpop.xlane.xlu0 %1821
    %v1823 = vrcp.pop 32.0
    %v1824 = vmul.f32 %v1819, %v1823
    %v1825 = vmul.f32 %v1822, %v1823
    %v1826 = vsub.f32 %v1815, %v1824
    %v1827 = vsub.f32 %v1816, %v1825
    %v1828 = vmul.f32 %v1826, %v1826
    %v1829 = vmul.f32 %v1827, %v1827
    %v1830 = vsel %vm281, %v1828, 0.0
    %1831 = vadd.xlane.f32.xlu0 %v1830
    %v1832 = vpop.xlane.xlu0 %1831
    %v1833 = vsel %vm281, %v1829, 0.0
    %1834 = vadd.xlane.f32.xlu0 %v1833
    %v1835 = vpop.xlane.xlu0 %1834
    %v1836 = vmul.f32 %v1832, %v1823
    %v1837 = vmul.f32 %v1835, %v1823
    %v1838 = vadd.f32 %v1836, 1e-05
    %v1839 = vadd.f32 %v1837, 1e-05
    %v1840 = vrsqrt.pop %v1838
    %v1841 = vrsqrt.pop %v1839
    %v1842 = vmul.f32 %v1826, %v1840
    %v1843 = vmul.f32 %v1827, %v1841
    %v1844 = vlaneseq
    %v1845 = vshrl.u32 %v1844, 7
    %v1846 = vsub.s32 1, %v1845
    %v1847 = vrot.slane %v279, %v1846
    %v1848 = vmul.f32 %v1842, %v1847
    %v1849 = vmul.f32 %v1843, %v1847
    %v1850 = vlaneseq
    %v1851 = vshrl.u32 %v1850, 7
    %v1852 = vsub.s32 2, %v1851
    %v1853 = vrot.slane %v279, %v1852
    %v1854 = vadd.f32 %v1848, %v1853
    %v1855 = vadd.f32 %v1849, %v1853
    %v1857 = vsel %vm281, %v1854, 0
    %v1860 = vsel %vm281, %v1855, 0
    %1862 = vmatprep.subr.mxu0 0.0
    %1863 = vmatpush1.msra.mxu0 %v263
    %1864 = vmatprep.subr.mxu0 0.0
    %1865 = vmatpush1.msra.mxu0 %v264
    %1866 = vmatprep.subr.mxu0 0.0
    %1867 = vmatpush1.msra.mxu0 %v265
    %1868 = vmatprep.subr.mxu0 0.0
    %1869 = vmatpush1.msra.mxu0 %v266
    %1870 = vmatprep.subr.mxu0 0.0
    %1871 = vmatpush1.msra.mxu0 0.0
    %1872 = vmatprep.subr.mxu0 0.0
    %1873 = vmatpush1.msra.mxu0 0.0
    %1874 = vmatprep.subr.mxu0 0.0
    %1875 = vmatpush1.msra.mxu0 0.0
    %1876 = vmatprep.subr.mxu0 0.0
    %1877 = vmatpush1.msra.mxu0 0.0
    %1878 = vmatprep.subr.mxu0 0.0
    %1879 = vmatpush1.msra.mxu0 0.0
    %1880 = vmatprep.subr.mxu0 0.0
    %1881 = vmatpush1.msra.mxu0 0.0
    %1882 = vmatprep.subr.mxu0 0.0
    %1883 = vmatpush1.msra.mxu0 0.0
    %1884 = vmatprep.subr.mxu0 0.0
    %1885 = vmatpush1.msra.mxu0 0.0
    %1886 = vmatprep.subr.mxu0 0.0
    %1887 = vmatpush1.msra.mxu0 0.0
    %1888 = vmatprep.subr.mxu0 0.0
    %1889 = vmatpush1.msra.mxu0 0.0
    %1890 = vmatprep.subr.mxu0 0.0
    %1891 = vmatpush1.msra.mxu0 0.0
    %1892 = vmatprep.subr.mxu0 0.0
    %1893 = vmatpush1.msra.mxu0 0.0
    %1894 = vmatprep.subr.mxu0 0.0
    %1895 = vmatpush1.msra.mxu0 0.0
    %1896 = vmatprep.subr.mxu0 0.0
    %1897 = vmatpush1.msra.mxu0 0.0
    %1898 = vmatprep.subr.mxu0 0.0
    %1899 = vmatpush1.msra.mxu0 0.0
    %1900 = vmatprep.subr.mxu0 0.0
    %1901 = vmatpush1.msra.mxu0 0.0
    %1902 = vmatprep.subr.mxu0 0.0
    %1903 = vmatpush1.msra.mxu0 0.0
    %1904 = vmatprep.subr.mxu0 0.0
    %1905 = vmatpush1.msra.mxu0 0.0
    %1906 = vmatprep.subr.mxu0 0.0
    %1907 = vmatpush1.msra.mxu0 0.0
    %1908 = vmatprep.subr.mxu0 0.0
    %1909 = vmatpush1.msra.mxu0 0.0
    %1910 = vmatprep.subr.mxu0 0.0
    %1911 = vmatpush1.msra.mxu0 0.0
    %1912 = vmatprep.subr.mxu0 0.0
    %1913 = vmatpush1.msra.mxu0 0.0
    %1914 = vmatprep.subr.mxu0 0.0
    %1915 = vmatpush1.msra.mxu0 0.0
    %1916 = vmatprep.subr.mxu0 0.0
    %1917 = vmatpush1.msra.mxu0 0.0
    %1918 = vmatprep.subr.mxu0 0.0
    %1919 = vmatpush1.msra.mxu0 0.0
    %1920 = vmatprep.subr.mxu0 0.0
    %1921 = vmatpush1.msra.mxu0 0.0
    %1922 = vmatprep.subr.mxu0 0.0
    %1923 = vmatpush1.msra.mxu0 0.0
    %1924 = vmatprep.subr.mxu0 0.0
    %1925 = vmatpush1.msra.mxu0 0.0
    %1926 = vmatprep.mubr.f32.mxu0 0.0
    %1927 = vmatmul.mubr.f32.gmra.mrb[0].mxu0 %v1857
    %v1928 = vpop.f32.mrb[0].mxu0
    %v1929 = vadd.f32 0.0, %v1928
    %v1930 = vpop.f32.mrb[0].mxu0
    %1931 = vmatprep.mubr.f32.mxu0 0.0
    %1932 = vmatmul.mubr.f32.gmra.mrb[0].mxu0 %v1860
    %v1933 = vpop.f32.mrb[0].mxu0
    %v1934 = vadd.f32 0.0, %v1933
    %v1935 = vpop.f32.mrb[0].mxu0
    %1936 = vdwg.mxu0
    %1941 = vrot.lane.b32.xlu0 %v263, 96
    %v1942 = vpop.permute.xlu0 %1941
    %1943 = vrot.lane.b32.xlu0 %v264, 96
    %v1944 = vpop.permute.xlu0 %1943
    %1945 = vrot.lane.b32.xlu0 %v265, 96
    %v1946 = vpop.permute.xlu0 %1945
    %1947 = vrot.lane.b32.xlu0 %v266, 96
    %v1948 = vpop.permute.xlu0 %1947
    %v1954 = vsel %vm281, %v257, 0
    %v1957 = vsel %vm281, %v258, 0
    %1959 = vmatprep.subr.mxu0 0.0
    %1960 = vmatpush1.msra.mxu0 %v1942
    %1961 = vmatprep.subr.mxu0 0.0
    %1962 = vmatpush1.msra.mxu0 %v1944
    %1963 = vmatprep.subr.mxu0 0.0
    %1964 = vmatpush1.msra.mxu0 %v1946
    %1965 = vmatprep.subr.mxu0 0.0
    %1966 = vmatpush1.msra.mxu0 %v1948
    %1967 = vmatprep.subr.mxu0 0.0
    %1968 = vmatpush1.msra.mxu0 0.0
    %1969 = vmatprep.subr.mxu0 0.0
    %1970 = vmatpush1.msra.mxu0 0.0
    %1971 = vmatprep.subr.mxu0 0.0
    %1972 = vmatpush1.msra.mxu0 0.0
    %1973 = vmatprep.subr.mxu0 0.0
    %1974 = vmatpush1.msra.mxu0 0.0
    %1975 = vmatprep.subr.mxu0 0.0
    %1976 = vmatpush1.msra.mxu0 0.0
    %1977 = vmatprep.subr.mxu0 0.0
    %1978 = vmatpush1.msra.mxu0 0.0
    %1979 = vmatprep.subr.mxu0 0.0
    %1980 = vmatpush1.msra.mxu0 0.0
    %1981 = vmatprep.subr.mxu0 0.0
    %1982 = vmatpush1.msra.mxu0 0.0
    %1983 = vmatprep.subr.mxu0 0.0
    %1984 = vmatpush1.msra.mxu0 0.0
    %1985 = vmatprep.subr.mxu0 0.0
    %1986 = vmatpush1.msra.mxu0 0.0
    %1987 = vmatprep.subr.mxu0 0.0
    %1988 = vmatpush1.msra.mxu0 0.0
    %1989 = vmatprep.subr.mxu0 0.0
    %1990 = vmatpush1.msra.mxu0 0.0
    %1991 = vmatprep.subr.mxu0 0.0
    %1992 = vmatpush1.msra.mxu0 0.0
    %1993 = vmatprep.subr.mxu0 0.0
    %1994 = vmatpush1.msra.mxu0 0.0
    %1995 = vmatprep.subr.mxu0 0.0
    %1996 = vmatpush1.msra.mxu0 0.0
    %1997 = vmatprep.subr.mxu0 0.0
    %1998 = vmatpush1.msra.mxu0 0.0
    %1999 = vmatprep.subr.mxu0 0.0
    %2000 = vmatpush1.msra.mxu0 0.0
    %2001 = vmatprep.subr.mxu0 0.0
    %2002 = vmatpush1.msra.mxu0 0.0
    %2003 = vmatprep.subr.mxu0 0.0
    %2004 = vmatpush1.msra.mxu0 0.0
    %2005 = vmatprep.subr.mxu0 0.0
    %2006 = vmatpush1.msra.mxu0 0.0
    %2007 = vmatprep.subr.mxu0 0.0
    %2008 = vmatpush1.msra.mxu0 0.0
    %2009 = vmatprep.subr.mxu0 0.0
    %2010 = vmatpush1.msra.mxu0 0.0
    %2011 = vmatprep.subr.mxu0 0.0
    %2012 = vmatpush1.msra.mxu0 0.0
    %2013 = vmatprep.subr.mxu0 0.0
    %2014 = vmatpush1.msra.mxu0 0.0
    %2015 = vmatprep.subr.mxu0 0.0
    %2016 = vmatpush1.msra.mxu0 0.0
    %2017 = vmatprep.subr.mxu0 0.0
    %2018 = vmatpush1.msra.mxu0 0.0
    %2019 = vmatprep.subr.mxu0 0.0
    %2020 = vmatpush1.msra.mxu0 0.0
    %2021 = vmatprep.subr.mxu0 0.0
    %2022 = vmatpush1.msra.mxu0 0.0
    %2023 = vmatprep.mubr.f32.mxu0 0.0
    %2024 = vmatmul.mubr.f32.gmra.mrb[0].mxu0 %v1954
    %v2025 = vpop.f32.mrb[0].mxu0
    %v2026 = vadd.f32 0.0, %v2025
    %v2027 = vpop.f32.mrb[0].mxu0
    %2028 = vmatprep.mubr.f32.mxu0 0.0
    %2029 = vmatmul.mubr.f32.gmra.mrb[0].mxu0 %v1957
    %v2030 = vpop.f32.mrb[0].mxu0
    %v2031 = vadd.f32 0.0, %v2030
    %v2032 = vpop.f32.mrb[0].mxu0
    %2033 = vdwg.mxu0
    %2036 = vrot.lane.b32.xlu0 %v1929, 120
    %v2037 = vpop.permute.xlu0 %2036
    %2038 = vrot.lane.b32.xlu0 %v1934, 120
    %v2039 = vpop.permute.xlu0 %2038
    %2040 = vrot.lane.b32.xlu0 %v1929, 112
    %v2041 = vpop.permute.xlu0 %2040
    %2042 = vrot.lane.b32.xlu0 %v1934, 112
    %v2043 = vpop.permute.xlu0 %2042
    %2044 = vrot.lane.b32.xlu0 %v1929, 104
    %v2045 = vpop.permute.xlu0 %2044
    %2046 = vrot.lane.b32.xlu0 %v1934, 104
    %v2047 = vpop.permute.xlu0 %2046
    %2050 = vrot.lane.b32.xlu0 %v2026, 120
    %v2051 = vpop.permute.xlu0 %2050
    %2052 = vrot.lane.b32.xlu0 %v2031, 120
    %v2053 = vpop.permute.xlu0 %2052
    %2054 = vrot.lane.b32.xlu0 %v2026, 112
    %v2055 = vpop.permute.xlu0 %2054
    %2056 = vrot.lane.b32.xlu0 %v2031, 112
    %v2057 = vpop.permute.xlu0 %2056
    %2058 = vrot.lane.b32.xlu0 %v2026, 104
    %v2059 = vpop.permute.xlu0 %2058
    %2060 = vrot.lane.b32.xlu0 %v2031, 104
    %v2061 = vpop.permute.xlu0 %2060
    %v2070 = vlaneseq
    %v2071 = vshrl.u32 %v2070, 7
    %v2072 = vsub.s32 0, %v2071
    %v2073 = vrot.slane %v249, %v2072
    %v2074 = vlaneseq
    %v2075 = vshrl.u32 %v2074, 7
    %v2076 = vsub.s32 0, %v2075
    %v2077 = vrot.slane %v250, %v2076
    %v2078 = vlaneseq
    %v2079 = vshrl.u32 %v2078, 7
    %v2080 = vsub.s32 0, %v2079
    %v2081 = vrot.slane %v251, %v2080
    %v2082 = vlaneseq
    %v2083 = vshrl.u32 %v2082, 7
    %v2084 = vsub.s32 0, %v2083
    %v2085 = vrot.slane %v252, %v2084
    %v2086 = vlaneseq
    %v2087 = vshrl.u32 %v2086, 7
    %v2088 = vsub.s32 0, %v2087
    %v2089 = vrot.slane %v253, %v2088
    %v2090 = vlaneseq
    %v2091 = vshrl.u32 %v2090, 7
    %v2092 = vsub.s32 0, %v2091
    %v2093 = vrot.slane %v254, %v2092
    %v2094 = vlaneseq
    %v2095 = vshrl.u32 %v2094, 7
    %v2096 = vsub.s32 0, %v2095
    %v2097 = vrot.slane %v255, %v2096
    %v2098 = vlaneseq
    %v2099 = vshrl.u32 %v2098, 7
    %v2100 = vsub.s32 0, %v2099
    %v2101 = vrot.slane %v256, %v2100
    %v2110 = vsel %vm379, %v1929, 0
    %v2112 = vsel %vm379, %v2026, 0
    %2114 = vmatprep.subr.mxu0 0.0
    %2115 = vmatpush1.xpose.msra.mxu0 %v2112
    %2116 = vmatprep.subr.mxu0 0.0
    %2117 = vmatpush1.xpose.msra.mxu0 0.0
    %2118 = vmatprep.subr.mxu0 0.0
    %2119 = vmatpush1.xpose.msra.mxu0 0.0
    %2120 = vmatprep.subr.mxu0 0.0
    %2121 = vmatpush1.xpose.msra.mxu0 0.0
    %2122 = vmatprep.subr.mxu0 0.0
    %2123 = vmatpush1.xpose.msra.mxu0 0.0
    %2124 = vmatprep.subr.mxu0 0.0
    %2125 = vmatpush1.xpose.msra.mxu0 0.0
    %2126 = vmatprep.subr.mxu0 0.0
    %2127 = vmatpush1.xpose.msra.mxu0 0.0
    %2128 = vmatprep.subr.mxu0 0.0
    %2129 = vmatpush1.xpose.msra.mxu0 0.0
    %2130 = vmatprep.subr.mxu0 0.0
    %2131 = vmatpush1.xpose.msra.mxu0 0.0
    %2132 = vmatprep.subr.mxu0 0.0
    %2133 = vmatpush1.xpose.msra.mxu0 0.0
    %2134 = vmatprep.subr.mxu0 0.0
    %2135 = vmatpush1.xpose.msra.mxu0 0.0
    %2136 = vmatprep.subr.mxu0 0.0
    %2137 = vmatpush1.xpose.msra.mxu0 0.0
    %2138 = vmatprep.subr.mxu0 0.0
    %2139 = vmatpush1.xpose.msra.mxu0 0.0
    %2140 = vmatprep.subr.mxu0 0.0
    %2141 = vmatpush1.xpose.msra.mxu0 0.0
    %2142 = vmatprep.subr.mxu0 0.0
    %2143 = vmatpush1.xpose.msra.mxu0 0.0
    %2144 = vmatprep.subr.mxu0 0.0
    %2145 = vmatpush1.xpose.msra.mxu0 0.0
    %2146 = vmatprep.subr.mxu0 0.0
    %2147 = vmatpush1.xpose.msra.mxu0 0.0
    %2148 = vmatprep.subr.mxu0 0.0
    %2149 = vmatpush1.xpose.msra.mxu0 0.0
    %2150 = vmatprep.subr.mxu0 0.0
    %2151 = vmatpush1.xpose.msra.mxu0 0.0
    %2152 = vmatprep.subr.mxu0 0.0
    %2153 = vmatpush1.xpose.msra.mxu0 0.0
    %2154 = vmatprep.subr.mxu0 0.0
    %2155 = vmatpush1.xpose.msra.mxu0 0.0
    %2156 = vmatprep.subr.mxu0 0.0
    %2157 = vmatpush1.xpose.msra.mxu0 0.0
    %2158 = vmatprep.subr.mxu0 0.0
    %2159 = vmatpush1.xpose.msra.mxu0 0.0
    %2160 = vmatprep.subr.mxu0 0.0
    %2161 = vmatpush1.xpose.msra.mxu0 0.0
    %2162 = vmatprep.subr.mxu0 0.0
    %2163 = vmatpush1.xpose.msra.mxu0 0.0
    %2164 = vmatprep.subr.mxu0 0.0
    %2165 = vmatpush1.xpose.msra.mxu0 0.0
    %2166 = vmatprep.subr.mxu0 0.0
    %2167 = vmatpush1.xpose.msra.mxu0 0.0
    %2168 = vmatprep.subr.mxu0 0.0
    %2169 = vmatpush1.xpose.msra.mxu0 0.0
    %2170 = vmatprep.subr.mxu0 0.0
    %2171 = vmatpush1.xpose.msra.mxu0 0.0
    %2172 = vmatprep.subr.mxu0 0.0
    %2173 = vmatpush1.xpose.msra.mxu0 0.0
    %2174 = vmatprep.subr.mxu0 0.0
    %2175 = vmatpush1.xpose.msra.mxu0 0.0
    %2176 = vmatprep.subr.mxu0 0.0
    %2177 = vmatpush1.xpose.msra.mxu0 0.0
    %2178 = vmatprep.mubr.f32.mxu0 0.0
    %2179 = vmatmul.mubr.f32.gmra.mrb[0].mxu0 %v2110
    %v2180 = vpop.f32.mrb[0].mxu0
    %v2181 = vadd.f32 %v2073, %v2180
    %v2182 = vpop.f32.mrb[0].mxu0
    %2183 = vdwg.mxu0
    %v2184 = vsel %vm379, %v1934, 0
    %v2186 = vsel %vm379, %v2031, 0
    %2188 = vmatprep.subr.mxu0 0.0
    %2189 = vmatpush1.xpose.msra.mxu0 %v2186
    %2190 = vmatprep.subr.mxu0 0.0
    %2191 = vmatpush1.xpose.msra.mxu0 0.0
    %2192 = vmatprep.subr.mxu0 0.0
    %2193 = vmatpush1.xpose.msra.mxu0 0.0
    %2194 = vmatprep.subr.mxu0 0.0
    %2195 = vmatpush1.xpose.msra.mxu0 0.0
    %2196 = vmatprep.subr.mxu0 0.0
    %2197 = vmatpush1.xpose.msra.mxu0 0.0
    %2198 = vmatprep.subr.mxu0 0.0
    %2199 = vmatpush1.xpose.msra.mxu0 0.0
    %2200 = vmatprep.subr.mxu0 0.0
    %2201 = vmatpush1.xpose.msra.mxu0 0.0
    %2202 = vmatprep.subr.mxu0 0.0
    %2203 = vmatpush1.xpose.msra.mxu0 0.0
    %2204 = vmatprep.subr.mxu0 0.0
    %2205 = vmatpush1.xpose.msra.mxu0 0.0
    %2206 = vmatprep.subr.mxu0 0.0
    %2207 = vmatpush1.xpose.msra.mxu0 0.0
    %2208 = vmatprep.subr.mxu0 0.0
    %2209 = vmatpush1.xpose.msra.mxu0 0.0
    %2210 = vmatprep.subr.mxu0 0.0
    %2211 = vmatpush1.xpose.msra.mxu0 0.0
    %2212 = vmatprep.subr.mxu0 0.0
    %2213 = vmatpush1.xpose.msra.mxu0 0.0
    %2214 = vmatprep.subr.mxu0 0.0
    %2215 = vmatpush1.xpose.msra.mxu0 0.0
    %2216 = vmatprep.subr.mxu0 0.0
    %2217 = vmatpush1.xpose.msra.mxu0 0.0
    %2218 = vmatprep.subr.mxu0 0.0
    %2219 = vmatpush1.xpose.msra.mxu0 0.0
    %2220 = vmatprep.subr.mxu0 0.0
    %2221 = vmatpush1.xpose.msra.mxu0 0.0
    %2222 = vmatprep.subr.mxu0 0.0
    %2223 = vmatpush1.xpose.msra.mxu0 0.0
    %2224 = vmatprep.subr.mxu0 0.0
    %2225 = vmatpush1.xpose.msra.mxu0 0.0
    %2226 = vmatprep.subr.mxu0 0.0
    %2227 = vmatpush1.xpose.msra.mxu0 0.0
    %2228 = vmatprep.subr.mxu0 0.0
    %2229 = vmatpush1.xpose.msra.mxu0 0.0
    %2230 = vmatprep.subr.mxu0 0.0
    %2231 = vmatpush1.xpose.msra.mxu0 0.0
    %2232 = vmatprep.subr.mxu0 0.0
    %2233 = vmatpush1.xpose.msra.mxu0 0.0
    %2234 = vmatprep.subr.mxu0 0.0
    %2235 = vmatpush1.xpose.msra.mxu0 0.0
    %2236 = vmatprep.subr.mxu0 0.0
    %2237 = vmatpush1.xpose.msra.mxu0 0.0
    %2238 = vmatprep.subr.mxu0 0.0
    %2239 = vmatpush1.xpose.msra.mxu0 0.0
    %2240 = vmatprep.subr.mxu0 0.0
    %2241 = vmatpush1.xpose.msra.mxu0 0.0
    %2242 = vmatprep.subr.mxu0 0.0
    %2243 = vmatpush1.xpose.msra.mxu0 0.0
    %2244 = vmatprep.subr.mxu0 0.0
    %2245 = vmatpush1.xpose.msra.mxu0 0.0
    %2246 = vmatprep.subr.mxu0 0.0
    %2247 = vmatpush1.xpose.msra.mxu0 0.0
    %2248 = vmatprep.subr.mxu0 0.0
    %2249 = vmatpush1.xpose.msra.mxu0 0.0
    %2250 = vmatprep.subr.mxu0 0.0
    %2251 = vmatpush1.xpose.msra.mxu0 0.0
    %2252 = vmatprep.mubr.f32.mxu0 0.0
    %2253 = vmatmul.mubr.f32.gmra.mrb[0].mxu0 %v2184
    %v2254 = vpop.f32.mrb[0].mxu0
    %v2255 = vadd.f32 %v2077, %v2254
    %v2256 = vpop.f32.mrb[0].mxu0
    %2257 = vdwg.mxu0
    %v2258 = vsel %vm379, %v2037, 0
    %v2260 = vsel %vm379, %v2051, 0
    %2262 = vmatprep.subr.mxu0 0.0
    %2263 = vmatpush1.xpose.msra.mxu0 %v2260
    %2264 = vmatprep.subr.mxu0 0.0
    %2265 = vmatpush1.xpose.msra.mxu0 0.0
    %2266 = vmatprep.subr.mxu0 0.0
    %2267 = vmatpush1.xpose.msra.mxu0 0.0
    %2268 = vmatprep.subr.mxu0 0.0
    %2269 = vmatpush1.xpose.msra.mxu0 0.0
    %2270 = vmatprep.subr.mxu0 0.0
    %2271 = vmatpush1.xpose.msra.mxu0 0.0
    %2272 = vmatprep.subr.mxu0 0.0
    %2273 = vmatpush1.xpose.msra.mxu0 0.0
    %2274 = vmatprep.subr.mxu0 0.0
    %2275 = vmatpush1.xpose.msra.mxu0 0.0
    %2276 = vmatprep.subr.mxu0 0.0
    %2277 = vmatpush1.xpose.msra.mxu0 0.0
    %2278 = vmatprep.subr.mxu0 0.0
    %2279 = vmatpush1.xpose.msra.mxu0 0.0
    %2280 = vmatprep.subr.mxu0 0.0
    %2281 = vmatpush1.xpose.msra.mxu0 0.0
    %2282 = vmatprep.subr.mxu0 0.0
    %2283 = vmatpush1.xpose.msra.mxu0 0.0
    %2284 = vmatprep.subr.mxu0 0.0
    %2285 = vmatpush1.xpose.msra.mxu0 0.0
    %2286 = vmatprep.subr.mxu0 0.0
    %2287 = vmatpush1.xpose.msra.mxu0 0.0
    %2288 = vmatprep.subr.mxu0 0.0
    %2289 = vmatpush1.xpose.msra.mxu0 0.0
    %2290 = vmatprep.subr.mxu0 0.0
    %2291 = vmatpush1.xpose.msra.mxu0 0.0
    %2292 = vmatprep.subr.mxu0 0.0
    %2293 = vmatpush1.xpose.msra.mxu0 0.0
    %2294 = vmatprep.subr.mxu0 0.0
    %2295 = vmatpush1.xpose.msra.mxu0 0.0
    %2296 = vmatprep.subr.mxu0 0.0
    %2297 = vmatpush1.xpose.msra.mxu0 0.0
    %2298 = vmatprep.subr.mxu0 0.0
    %2299 = vmatpush1.xpose.msra.mxu0 0.0
    %2300 = vmatprep.subr.mxu0 0.0
    %2301 = vmatpush1.xpose.msra.mxu0 0.0
    %2302 = vmatprep.subr.mxu0 0.0
    %2303 = vmatpush1.xpose.msra.mxu0 0.0
    %2304 = vmatprep.subr.mxu0 0.0
    %2305 = vmatpush1.xpose.msra.mxu0 0.0
    %2306 = vmatprep.subr.mxu0 0.0
    %2307 = vmatpush1.xpose.msra.mxu0 0.0
    %2308 = vmatprep.subr.mxu0 0.0
    %2309 = vmatpush1.xpose.msra.mxu0 0.0
    %2310 = vmatprep.subr.mxu0 0.0
    %2311 = vmatpush1.xpose.msra.mxu0 0.0
    %2312 = vmatprep.subr.mxu0 0.0
    %2313 = vmatpush1.xpose.msra.mxu0 0.0
    %2314 = vmatprep.subr.mxu0 0.0
    %2315 = vmatpush1.xpose.msra.mxu0 0.0
    %2316 = vmatprep.subr.mxu0 0.0
    %2317 = vmatpush1.xpose.msra.mxu0 0.0
    %2318 = vmatprep.subr.mxu0 0.0
    %2319 = vmatpush1.xpose.msra.mxu0 0.0
    %2320 = vmatprep.subr.mxu0 0.0
    %2321 = vmatpush1.xpose.msra.mxu0 0.0
    %2322 = vmatprep.subr.mxu0 0.0
    %2323 = vmatpush1.xpose.msra.mxu0 0.0
    %2324 = vmatprep.subr.mxu0 0.0
    %2325 = vmatpush1.xpose.msra.mxu0 0.0
    %2326 = vmatprep.mubr.f32.mxu0 0.0
    %2327 = vmatmul.mubr.f32.gmra.mrb[0].mxu0 %v2258
    %v2328 = vpop.f32.mrb[0].mxu0
    %v2329 = vadd.f32 %v2081, %v2328
    %v2330 = vpop.f32.mrb[0].mxu0
    %2331 = vdwg.mxu0
    %v2332 = vsel %vm379, %v2039, 0
    %v2334 = vsel %vm379, %v2053, 0
    %2336 = vmatprep.subr.mxu0 0.0
    %2337 = vmatpush1.xpose.msra.mxu0 %v2334
    %2338 = vmatprep.subr.mxu0 0.0
    %2339 = vmatpush1.xpose.msra.mxu0 0.0
    %2340 = vmatprep.subr.mxu0 0.0
    %2341 = vmatpush1.xpose.msra.mxu0 0.0
    %2342 = vmatprep.subr.mxu0 0.0
    %2343 = vmatpush1.xpose.msra.mxu0 0.0
    %2344 = vmatprep.subr.mxu0 0.0
    %2345 = vmatpush1.xpose.msra.mxu0 0.0
    %2346 = vmatprep.subr.mxu0 0.0
    %2347 = vmatpush1.xpose.msra.mxu0 0.0
    %2348 = vmatprep.subr.mxu0 0.0
    %2349 = vmatpush1.xpose.msra.mxu0 0.0
    %2350 = vmatprep.subr.mxu0 0.0
    %2351 = vmatpush1.xpose.msra.mxu0 0.0
    %2352 = vmatprep.subr.mxu0 0.0
    %2353 = vmatpush1.xpose.msra.mxu0 0.0
    %2354 = vmatprep.subr.mxu0 0.0
    %2355 = vmatpush1.xpose.msra.mxu0 0.0
    %2356 = vmatprep.subr.mxu0 0.0
    %2357 = vmatpush1.xpose.msra.mxu0 0.0
    %2358 = vmatprep.subr.mxu0 0.0
    %2359 = vmatpush1.xpose.msra.mxu0 0.0
    %2360 = vmatprep.subr.mxu0 0.0
    %2361 = vmatpush1.xpose.msra.mxu0 0.0
    %2362 = vmatprep.subr.mxu0 0.0
    %2363 = vmatpush1.xpose.msra.mxu0 0.0
    %2364 = vmatprep.subr.mxu0 0.0
    %2365 = vmatpush1.xpose.msra.mxu0 0.0
    %2366 = vmatprep.subr.mxu0 0.0
    %2367 = vmatpush1.xpose.msra.mxu0 0.0
    %2368 = vmatprep.subr.mxu0 0.0
    %2369 = vmatpush1.xpose.msra.mxu0 0.0
    %2370 = vmatprep.subr.mxu0 0.0
    %2371 = vmatpush1.xpose.msra.mxu0 0.0
    %2372 = vmatprep.subr.mxu0 0.0
    %2373 = vmatpush1.xpose.msra.mxu0 0.0
    %2374 = vmatprep.subr.mxu0 0.0
    %2375 = vmatpush1.xpose.msra.mxu0 0.0
    %2376 = vmatprep.subr.mxu0 0.0
    %2377 = vmatpush1.xpose.msra.mxu0 0.0
    %2378 = vmatprep.subr.mxu0 0.0
    %2379 = vmatpush1.xpose.msra.mxu0 0.0
    %2380 = vmatprep.subr.mxu0 0.0
    %2381 = vmatpush1.xpose.msra.mxu0 0.0
    %2382 = vmatprep.subr.mxu0 0.0
    %2383 = vmatpush1.xpose.msra.mxu0 0.0
    %2384 = vmatprep.subr.mxu0 0.0
    %2385 = vmatpush1.xpose.msra.mxu0 0.0
    %2386 = vmatprep.subr.mxu0 0.0
    %2387 = vmatpush1.xpose.msra.mxu0 0.0
    %2388 = vmatprep.subr.mxu0 0.0
    %2389 = vmatpush1.xpose.msra.mxu0 0.0
    %2390 = vmatprep.subr.mxu0 0.0
    %2391 = vmatpush1.xpose.msra.mxu0 0.0
    %2392 = vmatprep.subr.mxu0 0.0
    %2393 = vmatpush1.xpose.msra.mxu0 0.0
    %2394 = vmatprep.subr.mxu0 0.0
    %2395 = vmatpush1.xpose.msra.mxu0 0.0
    %2396 = vmatprep.subr.mxu0 0.0
    %2397 = vmatpush1.xpose.msra.mxu0 0.0
    %2398 = vmatprep.subr.mxu0 0.0
    %2399 = vmatpush1.xpose.msra.mxu0 0.0
    %2400 = vmatprep.mubr.f32.mxu0 0.0
    %2401 = vmatmul.mubr.f32.gmra.mrb[0].mxu0 %v2332
    %v2402 = vpop.f32.mrb[0].mxu0
    %v2403 = vadd.f32 %v2085, %v2402
    %v2404 = vpop.f32.mrb[0].mxu0
    %2405 = vdwg.mxu0
    %v2406 = vsel %vm379, %v2041, 0
    %v2408 = vsel %vm379, %v2055, 0
    %2410 = vmatprep.subr.mxu0 0.0
    %2411 = vmatpush1.xpose.msra.mxu0 %v2408
    %2412 = vmatprep.subr.mxu0 0.0
    %2413 = vmatpush1.xpose.msra.mxu0 0.0
    %2414 = vmatprep.subr.mxu0 0.0
    %2415 = vmatpush1.xpose.msra.mxu0 0.0
    %2416 = vmatprep.subr.mxu0 0.0
    %2417 = vmatpush1.xpose.msra.mxu0 0.0
    %2418 = vmatprep.subr.mxu0 0.0
    %2419 = vmatpush1.xpose.msra.mxu0 0.0
    %2420 = vmatprep.subr.mxu0 0.0
    %2421 = vmatpush1.xpose.msra.mxu0 0.0
    %2422 = vmatprep.subr.mxu0 0.0
    %2423 = vmatpush1.xpose.msra.mxu0 0.0
    %2424 = vmatprep.subr.mxu0 0.0
    %2425 = vmatpush1.xpose.msra.mxu0 0.0
    %2426 = vmatprep.subr.mxu0 0.0
    %2427 = vmatpush1.xpose.msra.mxu0 0.0
    %2428 = vmatprep.subr.mxu0 0.0
    %2429 = vmatpush1.xpose.msra.mxu0 0.0
    %2430 = vmatprep.subr.mxu0 0.0
    %2431 = vmatpush1.xpose.msra.mxu0 0.0
    %2432 = vmatprep.subr.mxu0 0.0
    %2433 = vmatpush1.xpose.msra.mxu0 0.0
    %2434 = vmatprep.subr.mxu0 0.0
    %2435 = vmatpush1.xpose.msra.mxu0 0.0
    %2436 = vmatprep.subr.mxu0 0.0
    %2437 = vmatpush1.xpose.msra.mxu0 0.0
    %2438 = vmatprep.subr.mxu0 0.0
    %2439 = vmatpush1.xpose.msra.mxu0 0.0
    %2440 = vmatprep.subr.mxu0 0.0
    %2441 = vmatpush1.xpose.msra.mxu0 0.0
    %2442 = vmatprep.subr.mxu0 0.0
    %2443 = vmatpush1.xpose.msra.mxu0 0.0
    %2444 = vmatprep.subr.mxu0 0.0
    %2445 = vmatpush1.xpose.msra.mxu0 0.0
    %2446 = vmatprep.subr.mxu0 0.0
    %2447 = vmatpush1.xpose.msra.mxu0 0.0
    %2448 = vmatprep.subr.mxu0 0.0
    %2449 = vmatpush1.xpose.msra.mxu0 0.0
    %2450 = vmatprep.subr.mxu0 0.0
    %2451 = vmatpush1.xpose.msra.mxu0 0.0
    %2452 = vmatprep.subr.mxu0 0.0
    %2453 = vmatpush1.xpose.msra.mxu0 0.0
    %2454 = vmatprep.subr.mxu0 0.0
    %2455 = vmatpush1.xpose.msra.mxu0 0.0
    %2456 = vmatprep.subr.mxu0 0.0
    %2457 = vmatpush1.xpose.msra.mxu0 0.0
    %2458 = vmatprep.subr.mxu0 0.0
    %2459 = vmatpush1.xpose.msra.mxu0 0.0
    %2460 = vmatprep.subr.mxu0 0.0
    %2461 = vmatpush1.xpose.msra.mxu0 0.0
    %2462 = vmatprep.subr.mxu0 0.0
    %2463 = vmatpush1.xpose.msra.mxu0 0.0
    %2464 = vmatprep.subr.mxu0 0.0
    %2465 = vmatpush1.xpose.msra.mxu0 0.0
    %2466 = vmatprep.subr.mxu0 0.0
    %2467 = vmatpush1.xpose.msra.mxu0 0.0
    %2468 = vmatprep.subr.mxu0 0.0
    %2469 = vmatpush1.xpose.msra.mxu0 0.0
    %2470 = vmatprep.subr.mxu0 0.0
    %2471 = vmatpush1.xpose.msra.mxu0 0.0
    %2472 = vmatprep.subr.mxu0 0.0
    %2473 = vmatpush1.xpose.msra.mxu0 0.0
    %2474 = vmatprep.mubr.f32.mxu0 0.0
    %2475 = vmatmul.mubr.f32.gmra.mrb[0].mxu0 %v2406
    %v2476 = vpop.f32.mrb[0].mxu0
    %v2477 = vadd.f32 %v2089, %v2476
    %v2478 = vpop.f32.mrb[0].mxu0
    %2479 = vdwg.mxu0
    %v2480 = vsel %vm379, %v2043, 0
    %v2482 = vsel %vm379, %v2057, 0
    %2484 = vmatprep.subr.mxu0 0.0
    %2485 = vmatpush1.xpose.msra.mxu0 %v2482
    %2486 = vmatprep.subr.mxu0 0.0
    %2487 = vmatpush1.xpose.msra.mxu0 0.0
    %2488 = vmatprep.subr.mxu0 0.0
    %2489 = vmatpush1.xpose.msra.mxu0 0.0
    %2490 = vmatprep.subr.mxu0 0.0
    %2491 = vmatpush1.xpose.msra.mxu0 0.0
    %2492 = vmatprep.subr.mxu0 0.0
    %2493 = vmatpush1.xpose.msra.mxu0 0.0
    %2494 = vmatprep.subr.mxu0 0.0
    %2495 = vmatpush1.xpose.msra.mxu0 0.0
    %2496 = vmatprep.subr.mxu0 0.0
    %2497 = vmatpush1.xpose.msra.mxu0 0.0
    %2498 = vmatprep.subr.mxu0 0.0
    %2499 = vmatpush1.xpose.msra.mxu0 0.0
    %2500 = vmatprep.subr.mxu0 0.0
    %2501 = vmatpush1.xpose.msra.mxu0 0.0
    %2502 = vmatprep.subr.mxu0 0.0
    %2503 = vmatpush1.xpose.msra.mxu0 0.0
    %2504 = vmatprep.subr.mxu0 0.0
    %2505 = vmatpush1.xpose.msra.mxu0 0.0
    %2506 = vmatprep.subr.mxu0 0.0
    %2507 = vmatpush1.xpose.msra.mxu0 0.0
    %2508 = vmatprep.subr.mxu0 0.0
    %2509 = vmatpush1.xpose.msra.mxu0 0.0
    %2510 = vmatprep.subr.mxu0 0.0
    %2511 = vmatpush1.xpose.msra.mxu0 0.0
    %2512 = vmatprep.subr.mxu0 0.0
    %2513 = vmatpush1.xpose.msra.mxu0 0.0
    %2514 = vmatprep.subr.mxu0 0.0
    %2515 = vmatpush1.xpose.msra.mxu0 0.0
    %2516 = vmatprep.subr.mxu0 0.0
    %2517 = vmatpush1.xpose.msra.mxu0 0.0
    %2518 = vmatprep.subr.mxu0 0.0
    %2519 = vmatpush1.xpose.msra.mxu0 0.0
    %2520 = vmatprep.subr.mxu0 0.0
    %2521 = vmatpush1.xpose.msra.mxu0 0.0
    %2522 = vmatprep.subr.mxu0 0.0
    %2523 = vmatpush1.xpose.msra.mxu0 0.0
    %2524 = vmatprep.subr.mxu0 0.0
    %2525 = vmatpush1.xpose.msra.mxu0 0.0
    %2526 = vmatprep.subr.mxu0 0.0
    %2527 = vmatpush1.xpose.msra.mxu0 0.0
    %2528 = vmatprep.subr.mxu0 0.0
    %2529 = vmatpush1.xpose.msra.mxu0 0.0
    %2530 = vmatprep.subr.mxu0 0.0
    %2531 = vmatpush1.xpose.msra.mxu0 0.0
    %2532 = vmatprep.subr.mxu0 0.0
    %2533 = vmatpush1.xpose.msra.mxu0 0.0
    %2534 = vmatprep.subr.mxu0 0.0
    %2535 = vmatpush1.xpose.msra.mxu0 0.0
    %2536 = vmatprep.subr.mxu0 0.0
    %2537 = vmatpush1.xpose.msra.mxu0 0.0
    %2538 = vmatprep.subr.mxu0 0.0
    %2539 = vmatpush1.xpose.msra.mxu0 0.0
    %2540 = vmatprep.subr.mxu0 0.0
    %2541 = vmatpush1.xpose.msra.mxu0 0.0
    %2542 = vmatprep.subr.mxu0 0.0
    %2543 = vmatpush1.xpose.msra.mxu0 0.0
    %2544 = vmatprep.subr.mxu0 0.0
    %2545 = vmatpush1.xpose.msra.mxu0 0.0
    %2546 = vmatprep.subr.mxu0 0.0
    %2547 = vmatpush1.xpose.msra.mxu0 0.0
    %2548 = vmatprep.mubr.f32.mxu0 0.0
    %2549 = vmatmul.mubr.f32.gmra.mrb[0].mxu0 %v2480
    %v2550 = vpop.f32.mrb[0].mxu0
    %v2551 = vadd.f32 %v2093, %v2550
    %v2552 = vpop.f32.mrb[0].mxu0
    %2553 = vdwg.mxu0
    %v2554 = vsel %vm379, %v2045, 0
    %v2556 = vsel %vm379, %v2059, 0
    %2558 = vmatprep.subr.mxu0 0.0
    %2559 = vmatpush1.xpose.msra.mxu0 %v2556
    %2560 = vmatprep.subr.mxu0 0.0
    %2561 = vmatpush1.xpose.msra.mxu0 0.0
    %2562 = vmatprep.subr.mxu0 0.0
    %2563 = vmatpush1.xpose.msra.mxu0 0.0
    %2564 = vmatprep.subr.mxu0 0.0
    %2565 = vmatpush1.xpose.msra.mxu0 0.0
    %2566 = vmatprep.subr.mxu0 0.0
    %2567 = vmatpush1.xpose.msra.mxu0 0.0
    %2568 = vmatprep.subr.mxu0 0.0
    %2569 = vmatpush1.xpose.msra.mxu0 0.0
    %2570 = vmatprep.subr.mxu0 0.0
    %2571 = vmatpush1.xpose.msra.mxu0 0.0
    %2572 = vmatprep.subr.mxu0 0.0
    %2573 = vmatpush1.xpose.msra.mxu0 0.0
    %2574 = vmatprep.subr.mxu0 0.0
    %2575 = vmatpush1.xpose.msra.mxu0 0.0
    %2576 = vmatprep.subr.mxu0 0.0
    %2577 = vmatpush1.xpose.msra.mxu0 0.0
    %2578 = vmatprep.subr.mxu0 0.0
    %2579 = vmatpush1.xpose.msra.mxu0 0.0
    %2580 = vmatprep.subr.mxu0 0.0
    %2581 = vmatpush1.xpose.msra.mxu0 0.0
    %2582 = vmatprep.subr.mxu0 0.0
    %2583 = vmatpush1.xpose.msra.mxu0 0.0
    %2584 = vmatprep.subr.mxu0 0.0
    %2585 = vmatpush1.xpose.msra.mxu0 0.0
    %2586 = vmatprep.subr.mxu0 0.0
    %2587 = vmatpush1.xpose.msra.mxu0 0.0
    %2588 = vmatprep.subr.mxu0 0.0
    %2589 = vmatpush1.xpose.msra.mxu0 0.0
    %2590 = vmatprep.subr.mxu0 0.0
    %2591 = vmatpush1.xpose.msra.mxu0 0.0
    %2592 = vmatprep.subr.mxu0 0.0
    %2593 = vmatpush1.xpose.msra.mxu0 0.0
    %2594 = vmatprep.subr.mxu0 0.0
    %2595 = vmatpush1.xpose.msra.mxu0 0.0
    %2596 = vmatprep.subr.mxu0 0.0
    %2597 = vmatpush1.xpose.msra.mxu0 0.0
    %2598 = vmatprep.subr.mxu0 0.0
    %2599 = vmatpush1.xpose.msra.mxu0 0.0
    %2600 = vmatprep.subr.mxu0 0.0
    %2601 = vmatpush1.xpose.msra.mxu0 0.0
    %2602 = vmatprep.subr.mxu0 0.0
    %2603 = vmatpush1.xpose.msra.mxu0 0.0
    %2604 = vmatprep.subr.mxu0 0.0
    %2605 = vmatpush1.xpose.msra.mxu0 0.0
    %2606 = vmatprep.subr.mxu0 0.0
    %2607 = vmatpush1.xpose.msra.mxu0 0.0
    %2608 = vmatprep.subr.mxu0 0.0
    %2609 = vmatpush1.xpose.msra.mxu0 0.0
    %2610 = vmatprep.subr.mxu0 0.0
    %2611 = vmatpush1.xpose.msra.mxu0 0.0
    %2612 = vmatprep.subr.mxu0 0.0
    %2613 = vmatpush1.xpose.msra.mxu0 0.0
    %2614 = vmatprep.subr.mxu0 0.0
    %2615 = vmatpush1.xpose.msra.mxu0 0.0
    %2616 = vmatprep.subr.mxu0 0.0
    %2617 = vmatpush1.xpose.msra.mxu0 0.0
    %2618 = vmatprep.subr.mxu0 0.0
    %2619 = vmatpush1.xpose.msra.mxu0 0.0
    %2620 = vmatprep.subr.mxu0 0.0
    %2621 = vmatpush1.xpose.msra.mxu0 0.0
    %2622 = vmatprep.mubr.f32.mxu0 0.0
    %2623 = vmatmul.mubr.f32.gmra.mrb[0].mxu0 %v2554
    %v2624 = vpop.f32.mrb[0].mxu0
    %v2625 = vadd.f32 %v2097, %v2624
    %v2626 = vpop.f32.mrb[0].mxu0
    %2627 = vdwg.mxu0
    %v2628 = vsel %vm379, %v2047, 0
    %v2630 = vsel %vm379, %v2061, 0
    %2632 = vmatprep.subr.mxu0 0.0
    %2633 = vmatpush1.xpose.msra.mxu0 %v2630
    %2634 = vmatprep.subr.mxu0 0.0
    %2635 = vmatpush1.xpose.msra.mxu0 0.0
    %2636 = vmatprep.subr.mxu0 0.0
    %2637 = vmatpush1.xpose.msra.mxu0 0.0
    %2638 = vmatprep.subr.mxu0 0.0
    %2639 = vmatpush1.xpose.msra.mxu0 0.0
    %2640 = vmatprep.subr.mxu0 0.0
    %2641 = vmatpush1.xpose.msra.mxu0 0.0
    %2642 = vmatprep.subr.mxu0 0.0
    %2643 = vmatpush1.xpose.msra.mxu0 0.0
    %2644 = vmatprep.subr.mxu0 0.0
    %2645 = vmatpush1.xpose.msra.mxu0 0.0
    %2646 = vmatprep.subr.mxu0 0.0
    %2647 = vmatpush1.xpose.msra.mxu0 0.0
    %2648 = vmatprep.subr.mxu0 0.0
    %2649 = vmatpush1.xpose.msra.mxu0 0.0
    %2650 = vmatprep.subr.mxu0 0.0
    %2651 = vmatpush1.xpose.msra.mxu0 0.0
    %2652 = vmatprep.subr.mxu0 0.0
    %2653 = vmatpush1.xpose.msra.mxu0 0.0
    %2654 = vmatprep.subr.mxu0 0.0
    %2655 = vmatpush1.xpose.msra.mxu0 0.0
    %2656 = vmatprep.subr.mxu0 0.0
    %2657 = vmatpush1.xpose.msra.mxu0 0.0
    %2658 = vmatprep.subr.mxu0 0.0
    %2659 = vmatpush1.xpose.msra.mxu0 0.0
    %2660 = vmatprep.subr.mxu0 0.0
    %2661 = vmatpush1.xpose.msra.mxu0 0.0
    %2662 = vmatprep.subr.mxu0 0.0
    %2663 = vmatpush1.xpose.msra.mxu0 0.0
    %2664 = vmatprep.subr.mxu0 0.0
    %2665 = vmatpush1.xpose.msra.mxu0 0.0
    %2666 = vmatprep.subr.mxu0 0.0
    %2667 = vmatpush1.xpose.msra.mxu0 0.0
    %2668 = vmatprep.subr.mxu0 0.0
    %2669 = vmatpush1.xpose.msra.mxu0 0.0
    %2670 = vmatprep.subr.mxu0 0.0
    %2671 = vmatpush1.xpose.msra.mxu0 0.0
    %2672 = vmatprep.subr.mxu0 0.0
    %2673 = vmatpush1.xpose.msra.mxu0 0.0
    %2674 = vmatprep.subr.mxu0 0.0
    %2675 = vmatpush1.xpose.msra.mxu0 0.0
    %2676 = vmatprep.subr.mxu0 0.0
    %2677 = vmatpush1.xpose.msra.mxu0 0.0
    %2678 = vmatprep.subr.mxu0 0.0
    %2679 = vmatpush1.xpose.msra.mxu0 0.0
    %2680 = vmatprep.subr.mxu0 0.0
    %2681 = vmatpush1.xpose.msra.mxu0 0.0
    %2682 = vmatprep.subr.mxu0 0.0
    %2683 = vmatpush1.xpose.msra.mxu0 0.0
    %2684 = vmatprep.subr.mxu0 0.0
    %2685 = vmatpush1.xpose.msra.mxu0 0.0
    %2686 = vmatprep.subr.mxu0 0.0
    %2687 = vmatpush1.xpose.msra.mxu0 0.0
    %2688 = vmatprep.subr.mxu0 0.0
    %2689 = vmatpush1.xpose.msra.mxu0 0.0
    %2690 = vmatprep.subr.mxu0 0.0
    %2691 = vmatpush1.xpose.msra.mxu0 0.0
    %2692 = vmatprep.subr.mxu0 0.0
    %2693 = vmatpush1.xpose.msra.mxu0 0.0
    %2694 = vmatprep.subr.mxu0 0.0
    %2695 = vmatpush1.xpose.msra.mxu0 0.0
    %2696 = vmatprep.mubr.f32.mxu0 0.0
    %2697 = vmatmul.mubr.f32.gmra.mrb[0].mxu0 %v2628
    %v2698 = vpop.f32.mrb[0].mxu0
    %v2699 = vadd.f32 %v2101, %v2698
    %v2700 = vpop.f32.mrb[0].mxu0
    %2701 = vdwg.mxu0
    %v2702 = vsel %vm379, %v2181, -inf
    %2703 = vmax.xlane.f32.xlu0 %v2702
    %v2704 = vpop.xlane.xlu0 %2703
    %v2705 = vsel %vm379, %v2255, -inf
    %2706 = vmax.xlane.f32.xlu0 %v2705
    %v2707 = vpop.xlane.xlu0 %2706
    %v2708 = vsel %vm379, %v2329, -inf
    %2709 = vmax.xlane.f32.xlu0 %v2708
    %v2710 = vpop.xlane.xlu0 %2709
    %v2711 = vsel %vm379, %v2403, -inf
    %2712 = vmax.xlane.f32.xlu0 %v2711
    %v2713 = vpop.xlane.xlu0 %2712
    %v2714 = vsel %vm379, %v2477, -inf
    %2715 = vmax.xlane.f32.xlu0 %v2714
    %v2716 = vpop.xlane.xlu0 %2715
    %v2717 = vsel %vm379, %v2551, -inf
    %2718 = vmax.xlane.f32.xlu0 %v2717
    %v2719 = vpop.xlane.xlu0 %2718
    %v2720 = vsel %vm379, %v2625, -inf
    %2721 = vmax.xlane.f32.xlu0 %v2720
    %v2722 = vpop.xlane.xlu0 %2721
    %v2723 = vsel %vm379, %v2699, -inf
    %2724 = vmax.xlane.f32.xlu0 %v2723
    %v2725 = vpop.xlane.xlu0 %2724
    %v2726 = vsub.f32 %v2181, %v2704
    %v2727 = vsub.f32 %v2255, %v2707
    %v2728 = vsub.f32 %v2329, %v2710
    %v2729 = vsub.f32 %v2403, %v2713
    %v2730 = vsub.f32 %v2477, %v2716
    %v2731 = vsub.f32 %v2551, %v2719
    %v2732 = vsub.f32 %v2625, %v2722
    %v2733 = vsub.f32 %v2699, %v2725
    %v2734 = vmul.f32 %v2726, 1.442695
    %v2735 = vpow.pop %v2734
    %v2736 = vmul.f32 %v2727, 1.442695
    %v2737 = vpow.pop %v2736
    %v2738 = vmul.f32 %v2728, 1.442695
    %v2739 = vpow.pop %v2738
    %v2740 = vmul.f32 %v2729, 1.442695
    %v2741 = vpow.pop %v2740
    %v2742 = vmul.f32 %v2730, 1.442695
    %v2743 = vpow.pop %v2742
    %v2744 = vmul.f32 %v2731, 1.442695
    %v2745 = vpow.pop %v2744
    %v2746 = vmul.f32 %v2732, 1.442695
    %v2747 = vpow.pop %v2746
    %v2748 = vmul.f32 %v2733, 1.442695
    %v2749 = vpow.pop %v2748
    %v2750 = vsel %vm379, %v2735, 0.0
    %2751 = vadd.xlane.f32.xlu0 %v2750
    %v2752 = vpop.xlane.xlu0 %2751
    %v2753 = vsel %vm379, %v2737, 0.0
    %2754 = vadd.xlane.f32.xlu0 %v2753
    %v2755 = vpop.xlane.xlu0 %2754
    %v2756 = vsel %vm379, %v2739, 0.0
    %2757 = vadd.xlane.f32.xlu0 %v2756
    %v2758 = vpop.xlane.xlu0 %2757
    %v2759 = vsel %vm379, %v2741, 0.0
    %2760 = vadd.xlane.f32.xlu0 %v2759
    %v2761 = vpop.xlane.xlu0 %2760
    %v2762 = vsel %vm379, %v2743, 0.0
    %2763 = vadd.xlane.f32.xlu0 %v2762
    %v2764 = vpop.xlane.xlu0 %2763
    %v2765 = vsel %vm379, %v2745, 0.0
    %2766 = vadd.xlane.f32.xlu0 %v2765
    %v2767 = vpop.xlane.xlu0 %2766
    %v2768 = vsel %vm379, %v2747, 0.0
    %2769 = vadd.xlane.f32.xlu0 %v2768
    %v2770 = vpop.xlane.xlu0 %2769
    %v2771 = vsel %vm379, %v2749, 0.0
    %2772 = vadd.xlane.f32.xlu0 %v2771
    %v2773 = vpop.xlane.xlu0 %2772
    %v2774 = vrcp.pop %v2752
    %v2775 = vrcp.pop %v2755
    %v2776 = vrcp.pop %v2758
    %v2777 = vrcp.pop %v2761
    %v2778 = vrcp.pop %v2764
    %v2779 = vrcp.pop %v2767
    %v2780 = vrcp.pop %v2770
    %v2781 = vrcp.pop %v2773
    %v2782 = vmul.f32 %v2735, %v2774
    %v2783 = vmul.f32 %v2737, %v2775
    %v2784 = vmul.f32 %v2739, %v2776
    %v2785 = vmul.f32 %v2741, %v2777
    %v2786 = vmul.f32 %v2743, %v2778
    %v2787 = vmul.f32 %v2745, %v2779
    %v2788 = vmul.f32 %v2747, %v2780
    %v2789 = vmul.f32 %v2749, %v2781
    %2790 = vrot.lane.b32.xlu0 %v2026, 96
    %v2791 = vpop.permute.xlu0 %2790
    %v2794 = vsel %vm379, %v2782, 0
    %2796 = vmatprep.subr.mxu0 0.0
    %2797 = vmatpush1.msra.mxu0 %v2791
    %2798 = vmatprep.subr.mxu0 0.0
    %2799 = vmatpush1.msra.mxu0 0.0
    %2800 = vmatprep.subr.mxu0 0.0
    %2801 = vmatpush1.msra.mxu0 0.0
    %2802 = vmatprep.subr.mxu0 0.0
    %2803 = vmatpush1.msra.mxu0 0.0
    %2804 = vmatprep.subr.mxu0 0.0
    %2805 = vmatpush1.msra.mxu0 0.0
    %2806 = vmatprep.subr.mxu0 0.0
    %2807 = vmatpush1.msra.mxu0 0.0
    %2808 = vmatprep.subr.mxu0 0.0
    %2809 = vmatpush1.msra.mxu0 0.0
    %2810 = vmatprep.subr.mxu0 0.0
    %2811 = vmatpush1.msra.mxu0 0.0
    %2812 = vmatprep.subr.mxu0 0.0
    %2813 = vmatpush1.msra.mxu0 0.0
    %2814 = vmatprep.subr.mxu0 0.0
    %2815 = vmatpush1.msra.mxu0 0.0
    %2816 = vmatprep.subr.mxu0 0.0
    %2817 = vmatpush1.msra.mxu0 0.0
    %2818 = vmatprep.subr.mxu0 0.0
    %2819 = vmatpush1.msra.mxu0 0.0
    %2820 = vmatprep.subr.mxu0 0.0
    %2821 = vmatpush1.msra.mxu0 0.0
    %2822 = vmatprep.subr.mxu0 0.0
    %2823 = vmatpush1.msra.mxu0 0.0
    %2824 = vmatprep.subr.mxu0 0.0
    %2825 = vmatpush1.msra.mxu0 0.0
    %2826 = vmatprep.subr.mxu0 0.0
    %2827 = vmatpush1.msra.mxu0 0.0
    %2828 = vmatprep.subr.mxu0 0.0
    %2829 = vmatpush1.msra.mxu0 0.0
    %2830 = vmatprep.subr.mxu0 0.0
    %2831 = vmatpush1.msra.mxu0 0.0
    %2832 = vmatprep.subr.mxu0 0.0
    %2833 = vmatpush1.msra.mxu0 0.0
    %2834 = vmatprep.subr.mxu0 0.0
    %2835 = vmatpush1.msra.mxu0 0.0
    %2836 = vmatprep.subr.mxu0 0.0
    %2837 = vmatpush1.msra.mxu0 0.0
    %2838 = vmatprep.subr.mxu0 0.0
    %2839 = vmatpush1.msra.mxu0 0.0
    %2840 = vmatprep.subr.mxu0 0.0
    %2841 = vmatpush1.msra.mxu0 0.0
    %2842 = vmatprep.subr.mxu0 0.0
    %2843 = vmatpush1.msra.mxu0 0.0
    %2844 = vmatprep.subr.mxu0 0.0
    %2845 = vmatpush1.msra.mxu0 0.0
    %2846 = vmatprep.subr.mxu0 0.0
    %2847 = vmatpush1.msra.mxu0 0.0
    %2848 = vmatprep.subr.mxu0 0.0
    %2849 = vmatpush1.msra.mxu0 0.0
    %2850 = vmatprep.subr.mxu0 0.0
    %2851 = vmatpush1.msra.mxu0 0.0
    %2852 = vmatprep.subr.mxu0 0.0
    %2853 = vmatpush1.msra.mxu0 0.0
    %2854 = vmatprep.subr.mxu0 0.0
    %2855 = vmatpush1.msra.mxu0 0.0
    %2856 = vmatprep.subr.mxu0 0.0
    %2857 = vmatpush1.msra.mxu0 0.0
    %2858 = vmatprep.subr.mxu0 0.0
    %2859 = vmatpush1.msra.mxu0 0.0
    %2860 = vmatprep.mubr.f32.mxu0 0.0
    %2861 = vmatmul.mubr.f32.gmra.mrb[0].mxu0 %v2794
    %v2862 = vpop.f32.mrb[0].mxu0
    %v2863 = vadd.f32 0.0, %v2862
    %v2864 = vpop.f32.mrb[0].mxu0
    %2865 = vdwg.mxu0
    %2866 = vrot.lane.b32.xlu0 %v2031, 96
    %v2867 = vpop.permute.xlu0 %2866
    %v2870 = vsel %vm379, %v2783, 0
    %2872 = vmatprep.subr.mxu0 0.0
    %2873 = vmatpush1.msra.mxu0 %v2867
    %2874 = vmatprep.subr.mxu0 0.0
    %2875 = vmatpush1.msra.mxu0 0.0
    %2876 = vmatprep.subr.mxu0 0.0
    %2877 = vmatpush1.msra.mxu0 0.0
    %2878 = vmatprep.subr.mxu0 0.0
    %2879 = vmatpush1.msra.mxu0 0.0
    %2880 = vmatprep.subr.mxu0 0.0
    %2881 = vmatpush1.msra.mxu0 0.0
    %2882 = vmatprep.subr.mxu0 0.0
    %2883 = vmatpush1.msra.mxu0 0.0
    %2884 = vmatprep.subr.mxu0 0.0
    %2885 = vmatpush1.msra.mxu0 0.0
    %2886 = vmatprep.subr.mxu0 0.0
    %2887 = vmatpush1.msra.mxu0 0.0
    %2888 = vmatprep.subr.mxu0 0.0
    %2889 = vmatpush1.msra.mxu0 0.0
    %2890 = vmatprep.subr.mxu0 0.0
    %2891 = vmatpush1.msra.mxu0 0.0
    %2892 = vmatprep.subr.mxu0 0.0
    %2893 = vmatpush1.msra.mxu0 0.0
    %2894 = vmatprep.subr.mxu0 0.0
    %2895 = vmatpush1.msra.mxu0 0.0
    %2896 = vmatprep.subr.mxu0 0.0
    %2897 = vmatpush1.msra.mxu0 0.0
    %2898 = vmatprep.subr.mxu0 0.0
    %2899 = vmatpush1.msra.mxu0 0.0
    %2900 = vmatprep.subr.mxu0 0.0
    %2901 = vmatpush1.msra.mxu0 0.0
    %2902 = vmatprep.subr.mxu0 0.0
    %2903 = vmatpush1.msra.mxu0 0.0
    %2904 = vmatprep.subr.mxu0 0.0
    %2905 = vmatpush1.msra.mxu0 0.0
    %2906 = vmatprep.subr.mxu0 0.0
    %2907 = vmatpush1.msra.mxu0 0.0
    %2908 = vmatprep.subr.mxu0 0.0
    %2909 = vmatpush1.msra.mxu0 0.0
    %2910 = vmatprep.subr.mxu0 0.0
    %2911 = vmatpush1.msra.mxu0 0.0
    %2912 = vmatprep.subr.mxu0 0.0
    %2913 = vmatpush1.msra.mxu0 0.0
    %2914 = vmatprep.subr.mxu0 0.0
    %2915 = vmatpush1.msra.mxu0 0.0
    %2916 = vmatprep.subr.mxu0 0.0
    %2917 = vmatpush1.msra.mxu0 0.0
    %2918 = vmatprep.subr.mxu0 0.0
    %2919 = vmatpush1.msra.mxu0 0.0
    %2920 = vmatprep.subr.mxu0 0.0
    %2921 = vmatpush1.msra.mxu0 0.0
    %2922 = vmatprep.subr.mxu0 0.0
    %2923 = vmatpush1.msra.mxu0 0.0
    %2924 = vmatprep.subr.mxu0 0.0
    %2925 = vmatpush1.msra.mxu0 0.0
    %2926 = vmatprep.subr.mxu0 0.0
    %2927 = vmatpush1.msra.mxu0 0.0
    %2928 = vmatprep.subr.mxu0 0.0
    %2929 = vmatpush1.msra.mxu0 0.0
    %2930 = vmatprep.subr.mxu0 0.0
    %2931 = vmatpush1.msra.mxu0 0.0
    %2932 = vmatprep.subr.mxu0 0.0
    %2933 = vmatpush1.msra.mxu0 0.0
    %2934 = vmatprep.subr.mxu0 0.0
    %2935 = vmatpush1.msra.mxu0 0.0
    %2936 = vmatprep.mubr.f32.mxu0 0.0
    %2937 = vmatmul.mubr.f32.gmra.mrb[0].mxu0 %v2870
    %v2938 = vpop.f32.mrb[0].mxu0
    %v2939 = vadd.f32 0.0, %v2938
    %v2940 = vpop.f32.mrb[0].mxu0
    %2941 = vdwg.mxu0
    %2942 = vrot.lane.b32.xlu0 %v2051, 96
    %v2943 = vpop.permute.xlu0 %2942
    %v2946 = vsel %vm379, %v2784, 0
    %2948 = vmatprep.subr.mxu0 0.0
    %2949 = vmatpush1.msra.mxu0 %v2943
    %2950 = vmatprep.subr.mxu0 0.0
    %2951 = vmatpush1.msra.mxu0 0.0
    %2952 = vmatprep.subr.mxu0 0.0
    %2953 = vmatpush1.msra.mxu0 0.0
    %2954 = vmatprep.subr.mxu0 0.0
    %2955 = vmatpush1.msra.mxu0 0.0
    %2956 = vmatprep.subr.mxu0 0.0
    %2957 = vmatpush1.msra.mxu0 0.0
    %2958 = vmatprep.subr.mxu0 0.0
    %2959 = vmatpush1.msra.mxu0 0.0
    %2960 = vmatprep.subr.mxu0 0.0
    %2961 = vmatpush1.msra.mxu0 0.0
    %2962 = vmatprep.subr.mxu0 0.0
    %2963 = vmatpush1.msra.mxu0 0.0
    %2964 = vmatprep.subr.mxu0 0.0
    %2965 = vmatpush1.msra.mxu0 0.0
    %2966 = vmatprep.subr.mxu0 0.0
    %2967 = vmatpush1.msra.mxu0 0.0
    %2968 = vmatprep.subr.mxu0 0.0
    %2969 = vmatpush1.msra.mxu0 0.0
    %2970 = vmatprep.subr.mxu0 0.0
    %2971 = vmatpush1.msra.mxu0 0.0
    %2972 = vmatprep.subr.mxu0 0.0
    %2973 = vmatpush1.msra.mxu0 0.0
    %2974 = vmatprep.subr.mxu0 0.0
    %2975 = vmatpush1.msra.mxu0 0.0
    %2976 = vmatprep.subr.mxu0 0.0
    %2977 = vmatpush1.msra.mxu0 0.0
    %2978 = vmatprep.subr.mxu0 0.0
    %2979 = vmatpush1.msra.mxu0 0.0
    %2980 = vmatprep.subr.mxu0 0.0
    %2981 = vmatpush1.msra.mxu0 0.0
    %2982 = vmatprep.subr.mxu0 0.0
    %2983 = vmatpush1.msra.mxu0 0.0
    %2984 = vmatprep.subr.mxu0 0.0
    %2985 = vmatpush1.msra.mxu0 0.0
    %2986 = vmatprep.subr.mxu0 0.0
    %2987 = vmatpush1.msra.mxu0 0.0
    %2988 = vmatprep.subr.mxu0 0.0
    %2989 = vmatpush1.msra.mxu0 0.0
    %2990 = vmatprep.subr.mxu0 0.0
    %2991 = vmatpush1.msra.mxu0 0.0
    %2992 = vmatprep.subr.mxu0 0.0
    %2993 = vmatpush1.msra.mxu0 0.0
    %2994 = vmatprep.subr.mxu0 0.0
    %2995 = vmatpush1.msra.mxu0 0.0
    %2996 = vmatprep.subr.mxu0 0.0
    %2997 = vmatpush1.msra.mxu0 0.0
    %2998 = vmatprep.subr.mxu0 0.0
    %2999 = vmatpush1.msra.mxu0 0.0
    %3000 = vmatprep.subr.mxu0 0.0
    %3001 = vmatpush1.msra.mxu0 0.0
    %3002 = vmatprep.subr.mxu0 0.0
    %3003 = vmatpush1.msra.mxu0 0.0
    %3004 = vmatprep.subr.mxu0 0.0
    %3005 = vmatpush1.msra.mxu0 0.0
    %3006 = vmatprep.subr.mxu0 0.0
    %3007 = vmatpush1.msra.mxu0 0.0
    %3008 = vmatprep.subr.mxu0 0.0
    %3009 = vmatpush1.msra.mxu0 0.0
    %3010 = vmatprep.subr.mxu0 0.0
    %3011 = vmatpush1.msra.mxu0 0.0
    %3012 = vmatprep.mubr.f32.mxu0 0.0
    %3013 = vmatmul.mubr.f32.gmra.mrb[0].mxu0 %v2946
    %v3014 = vpop.f32.mrb[0].mxu0
    %v3015 = vadd.f32 0.0, %v3014
    %v3016 = vpop.f32.mrb[0].mxu0
    %3017 = vdwg.mxu0
    %3018 = vrot.lane.b32.xlu0 %v2053, 96
    %v3019 = vpop.permute.xlu0 %3018
    %v3022 = vsel %vm379, %v2785, 0
    %3024 = vmatprep.subr.mxu0 0.0
    %3025 = vmatpush1.msra.mxu0 %v3019
    %3026 = vmatprep.subr.mxu0 0.0
    %3027 = vmatpush1.msra.mxu0 0.0
    %3028 = vmatprep.subr.mxu0 0.0
    %3029 = vmatpush1.msra.mxu0 0.0
    %3030 = vmatprep.subr.mxu0 0.0
    %3031 = vmatpush1.msra.mxu0 0.0
    %3032 = vmatprep.subr.mxu0 0.0
    %3033 = vmatpush1.msra.mxu0 0.0
    %3034 = vmatprep.subr.mxu0 0.0
    %3035 = vmatpush1.msra.mxu0 0.0
    %3036 = vmatprep.subr.mxu0 0.0
    %3037 = vmatpush1.msra.mxu0 0.0
    %3038 = vmatprep.subr.mxu0 0.0
    %3039 = vmatpush1.msra.mxu0 0.0
    %3040 = vmatprep.subr.mxu0 0.0
    %3041 = vmatpush1.msra.mxu0 0.0
    %3042 = vmatprep.subr.mxu0 0.0
    %3043 = vmatpush1.msra.mxu0 0.0
    %3044 = vmatprep.subr.mxu0 0.0
    %3045 = vmatpush1.msra.mxu0 0.0
    %3046 = vmatprep.subr.mxu0 0.0
    %3047 = vmatpush1.msra.mxu0 0.0
    %3048 = vmatprep.subr.mxu0 0.0
    %3049 = vmatpush1.msra.mxu0 0.0
    %3050 = vmatprep.subr.mxu0 0.0
    %3051 = vmatpush1.msra.mxu0 0.0
    %3052 = vmatprep.subr.mxu0 0.0
    %3053 = vmatpush1.msra.mxu0 0.0
    %3054 = vmatprep.subr.mxu0 0.0
    %3055 = vmatpush1.msra.mxu0 0.0
    %3056 = vmatprep.subr.mxu0 0.0
    %3057 = vmatpush1.msra.mxu0 0.0
    %3058 = vmatprep.subr.mxu0 0.0
    %3059 = vmatpush1.msra.mxu0 0.0
    %3060 = vmatprep.subr.mxu0 0.0
    %3061 = vmatpush1.msra.mxu0 0.0
    %3062 = vmatprep.subr.mxu0 0.0
    %3063 = vmatpush1.msra.mxu0 0.0
    %3064 = vmatprep.subr.mxu0 0.0
    %3065 = vmatpush1.msra.mxu0 0.0
    %3066 = vmatprep.subr.mxu0 0.0
    %3067 = vmatpush1.msra.mxu0 0.0
    %3068 = vmatprep.subr.mxu0 0.0
    %3069 = vmatpush1.msra.mxu0 0.0
    %3070 = vmatprep.subr.mxu0 0.0
    %3071 = vmatpush1.msra.mxu0 0.0
    %3072 = vmatprep.subr.mxu0 0.0
    %3073 = vmatpush1.msra.mxu0 0.0
    %3074 = vmatprep.subr.mxu0 0.0
    %3075 = vmatpush1.msra.mxu0 0.0
    %3076 = vmatprep.subr.mxu0 0.0
    %3077 = vmatpush1.msra.mxu0 0.0
    %3078 = vmatprep.subr.mxu0 0.0
    %3079 = vmatpush1.msra.mxu0 0.0
    %3080 = vmatprep.subr.mxu0 0.0
    %3081 = vmatpush1.msra.mxu0 0.0
    %3082 = vmatprep.subr.mxu0 0.0
    %3083 = vmatpush1.msra.mxu0 0.0
    %3084 = vmatprep.subr.mxu0 0.0
    %3085 = vmatpush1.msra.mxu0 0.0
    %3086 = vmatprep.subr.mxu0 0.0
    %3087 = vmatpush1.msra.mxu0 0.0
    %3088 = vmatprep.mubr.f32.mxu0 0.0
    %3089 = vmatmul.mubr.f32.gmra.mrb[0].mxu0 %v3022
    %v3090 = vpop.f32.mrb[0].mxu0
    %v3091 = vadd.f32 0.0, %v3090
    %v3092 = vpop.f32.mrb[0].mxu0
    %3093 = vdwg.mxu0
    %3094 = vrot.lane.b32.xlu0 %v2055, 96
    %v3095 = vpop.permute.xlu0 %3094
    %v3098 = vsel %vm379, %v2786, 0
    %3100 = vmatprep.subr.mxu0 0.0
    %3101 = vmatpush1.msra.mxu0 %v3095
    %3102 = vmatprep.subr.mxu0 0.0
    %3103 = vmatpush1.msra.mxu0 0.0
    %3104 = vmatprep.subr.mxu0 0.0
    %3105 = vmatpush1.msra.mxu0 0.0
    %3106 = vmatprep.subr.mxu0 0.0
    %3107 = vmatpush1.msra.mxu0 0.0
    %3108 = vmatprep.subr.mxu0 0.0
    %3109 = vmatpush1.msra.mxu0 0.0
    %3110 = vmatprep.subr.mxu0 0.0
    %3111 = vmatpush1.msra.mxu0 0.0
    %3112 = vmatprep.subr.mxu0 0.0
    %3113 = vmatpush1.msra.mxu0 0.0
    %3114 = vmatprep.subr.mxu0 0.0
    %3115 = vmatpush1.msra.mxu0 0.0
    %3116 = vmatprep.subr.mxu0 0.0
    %3117 = vmatpush1.msra.mxu0 0.0
    %3118 = vmatprep.subr.mxu0 0.0
    %3119 = vmatpush1.msra.mxu0 0.0
    %3120 = vmatprep.subr.mxu0 0.0
    %3121 = vmatpush1.msra.mxu0 0.0
    %3122 = vmatprep.subr.mxu0 0.0
    %3123 = vmatpush1.msra.mxu0 0.0
    %3124 = vmatprep.subr.mxu0 0.0
    %3125 = vmatpush1.msra.mxu0 0.0
    %3126 = vmatprep.subr.mxu0 0.0
    %3127 = vmatpush1.msra.mxu0 0.0
    %3128 = vmatprep.subr.mxu0 0.0
    %3129 = vmatpush1.msra.mxu0 0.0
    %3130 = vmatprep.subr.mxu0 0.0
    %3131 = vmatpush1.msra.mxu0 0.0
    %3132 = vmatprep.subr.mxu0 0.0
    %3133 = vmatpush1.msra.mxu0 0.0
    %3134 = vmatprep.subr.mxu0 0.0
    %3135 = vmatpush1.msra.mxu0 0.0
    %3136 = vmatprep.subr.mxu0 0.0
    %3137 = vmatpush1.msra.mxu0 0.0
    %3138 = vmatprep.subr.mxu0 0.0
    %3139 = vmatpush1.msra.mxu0 0.0
    %3140 = vmatprep.subr.mxu0 0.0
    %3141 = vmatpush1.msra.mxu0 0.0
    %3142 = vmatprep.subr.mxu0 0.0
    %3143 = vmatpush1.msra.mxu0 0.0
    %3144 = vmatprep.subr.mxu0 0.0
    %3145 = vmatpush1.msra.mxu0 0.0
    %3146 = vmatprep.subr.mxu0 0.0
    %3147 = vmatpush1.msra.mxu0 0.0
    %3148 = vmatprep.subr.mxu0 0.0
    %3149 = vmatpush1.msra.mxu0 0.0
    %3150 = vmatprep.subr.mxu0 0.0
    %3151 = vmatpush1.msra.mxu0 0.0
    %3152 = vmatprep.subr.mxu0 0.0
    %3153 = vmatpush1.msra.mxu0 0.0
    %3154 = vmatprep.subr.mxu0 0.0
    %3155 = vmatpush1.msra.mxu0 0.0
    %3156 = vmatprep.subr.mxu0 0.0
    %3157 = vmatpush1.msra.mxu0 0.0
    %3158 = vmatprep.subr.mxu0 0.0
    %3159 = vmatpush1.msra.mxu0 0.0
    %3160 = vmatprep.subr.mxu0 0.0
    %3161 = vmatpush1.msra.mxu0 0.0
    %3162 = vmatprep.subr.mxu0 0.0
    %3163 = vmatpush1.msra.mxu0 0.0
    %3164 = vmatprep.mubr.f32.mxu0 0.0
    %3165 = vmatmul.mubr.f32.gmra.mrb[0].mxu0 %v3098
    %v3166 = vpop.f32.mrb[0].mxu0
    %v3167 = vadd.f32 0.0, %v3166
    %v3168 = vpop.f32.mrb[0].mxu0
    %3169 = vdwg.mxu0
    %3170 = vrot.lane.b32.xlu0 %v2057, 96
    %v3171 = vpop.permute.xlu0 %3170
    %v3174 = vsel %vm379, %v2787, 0
    %3176 = vmatprep.subr.mxu0 0.0
    %3177 = vmatpush1.msra.mxu0 %v3171
    %3178 = vmatprep.subr.mxu0 0.0
    %3179 = vmatpush1.msra.mxu0 0.0
    %3180 = vmatprep.subr.mxu0 0.0
    %3181 = vmatpush1.msra.mxu0 0.0
    %3182 = vmatprep.subr.mxu0 0.0
    %3183 = vmatpush1.msra.mxu0 0.0
    %3184 = vmatprep.subr.mxu0 0.0
    %3185 = vmatpush1.msra.mxu0 0.0
    %3186 = vmatprep.subr.mxu0 0.0
    %3187 = vmatpush1.msra.mxu0 0.0
    %3188 = vmatprep.subr.mxu0 0.0
    %3189 = vmatpush1.msra.mxu0 0.0
    %3190 = vmatprep.subr.mxu0 0.0
    %3191 = vmatpush1.msra.mxu0 0.0
    %3192 = vmatprep.subr.mxu0 0.0
    %3193 = vmatpush1.msra.mxu0 0.0
    %3194 = vmatprep.subr.mxu0 0.0
    %3195 = vmatpush1.msra.mxu0 0.0
    %3196 = vmatprep.subr.mxu0 0.0
    %3197 = vmatpush1.msra.mxu0 0.0
    %3198 = vmatprep.subr.mxu0 0.0
    %3199 = vmatpush1.msra.mxu0 0.0
    %3200 = vmatprep.subr.mxu0 0.0
    %3201 = vmatpush1.msra.mxu0 0.0
    %3202 = vmatprep.subr.mxu0 0.0
    %3203 = vmatpush1.msra.mxu0 0.0
    %3204 = vmatprep.subr.mxu0 0.0
    %3205 = vmatpush1.msra.mxu0 0.0
    %3206 = vmatprep.subr.mxu0 0.0
    %3207 = vmatpush1.msra.mxu0 0.0
    %3208 = vmatprep.subr.mxu0 0.0
    %3209 = vmatpush1.msra.mxu0 0.0
    %3210 = vmatprep.subr.mxu0 0.0
    %3211 = vmatpush1.msra.mxu0 0.0
    %3212 = vmatprep.subr.mxu0 0.0
    %3213 = vmatpush1.msra.mxu0 0.0
    %3214 = vmatprep.subr.mxu0 0.0
    %3215 = vmatpush1.msra.mxu0 0.0
    %3216 = vmatprep.subr.mxu0 0.0
    %3217 = vmatpush1.msra.mxu0 0.0
    %3218 = vmatprep.subr.mxu0 0.0
    %3219 = vmatpush1.msra.mxu0 0.0
    %3220 = vmatprep.subr.mxu0 0.0
    %3221 = vmatpush1.msra.mxu0 0.0
    %3222 = vmatprep.subr.mxu0 0.0
    %3223 = vmatpush1.msra.mxu0 0.0
    %3224 = vmatprep.subr.mxu0 0.0
    %3225 = vmatpush1.msra.mxu0 0.0
    %3226 = vmatprep.subr.mxu0 0.0
    %3227 = vmatpush1.msra.mxu0 0.0
    %3228 = vmatprep.subr.mxu0 0.0
    %3229 = vmatpush1.msra.mxu0 0.0
    %3230 = vmatprep.subr.mxu0 0.0
    %3231 = vmatpush1.msra.mxu0 0.0
    %3232 = vmatprep.subr.mxu0 0.0
    %3233 = vmatpush1.msra.mxu0 0.0
    %3234 = vmatprep.subr.mxu0 0.0
    %3235 = vmatpush1.msra.mxu0 0.0
    %3236 = vmatprep.subr.mxu0 0.0
    %3237 = vmatpush1.msra.mxu0 0.0
    %3238 = vmatprep.subr.mxu0 0.0
    %3239 = vmatpush1.msra.mxu0 0.0
    %3240 = vmatprep.mubr.f32.mxu0 0.0
    %3241 = vmatmul.mubr.f32.gmra.mrb[0].mxu0 %v3174
    %v3242 = vpop.f32.mrb[0].mxu0
    %v3243 = vadd.f32 0.0, %v3242
    %v3244 = vpop.f32.mrb[0].mxu0
    %3245 = vdwg.mxu0
    %3246 = vrot.lane.b32.xlu0 %v2059, 96
    %v3247 = vpop.permute.xlu0 %3246
    %v3250 = vsel %vm379, %v2788, 0
    %3252 = vmatprep.subr.mxu0 0.0
    %3253 = vmatpush1.msra.mxu0 %v3247
    %3254 = vmatprep.subr.mxu0 0.0
    %3255 = vmatpush1.msra.mxu0 0.0
    %3256 = vmatprep.subr.mxu0 0.0
    %3257 = vmatpush1.msra.mxu0 0.0
    %3258 = vmatprep.subr.mxu0 0.0
    %3259 = vmatpush1.msra.mxu0 0.0
    %3260 = vmatprep.subr.mxu0 0.0
    %3261 = vmatpush1.msra.mxu0 0.0
    %3262 = vmatprep.subr.mxu0 0.0
    %3263 = vmatpush1.msra.mxu0 0.0
    %3264 = vmatprep.subr.mxu0 0.0
    %3265 = vmatpush1.msra.mxu0 0.0
    %3266 = vmatprep.subr.mxu0 0.0
    %3267 = vmatpush1.msra.mxu0 0.0
    %3268 = vmatprep.subr.mxu0 0.0
    %3269 = vmatpush1.msra.mxu0 0.0
    %3270 = vmatprep.subr.mxu0 0.0
    %3271 = vmatpush1.msra.mxu0 0.0
    %3272 = vmatprep.subr.mxu0 0.0
    %3273 = vmatpush1.msra.mxu0 0.0
    %3274 = vmatprep.subr.mxu0 0.0
    %3275 = vmatpush1.msra.mxu0 0.0
    %3276 = vmatprep.subr.mxu0 0.0
    %3277 = vmatpush1.msra.mxu0 0.0
    %3278 = vmatprep.subr.mxu0 0.0
    %3279 = vmatpush1.msra.mxu0 0.0
    %3280 = vmatprep.subr.mxu0 0.0
    %3281 = vmatpush1.msra.mxu0 0.0
    %3282 = vmatprep.subr.mxu0 0.0
    %3283 = vmatpush1.msra.mxu0 0.0
    %3284 = vmatprep.subr.mxu0 0.0
    %3285 = vmatpush1.msra.mxu0 0.0
    %3286 = vmatprep.subr.mxu0 0.0
    %3287 = vmatpush1.msra.mxu0 0.0
    %3288 = vmatprep.subr.mxu0 0.0
    %3289 = vmatpush1.msra.mxu0 0.0
    %3290 = vmatprep.subr.mxu0 0.0
    %3291 = vmatpush1.msra.mxu0 0.0
    %3292 = vmatprep.subr.mxu0 0.0
    %3293 = vmatpush1.msra.mxu0 0.0
    %3294 = vmatprep.subr.mxu0 0.0
    %3295 = vmatpush1.msra.mxu0 0.0
    %3296 = vmatprep.subr.mxu0 0.0
    %3297 = vmatpush1.msra.mxu0 0.0
    %3298 = vmatprep.subr.mxu0 0.0
    %3299 = vmatpush1.msra.mxu0 0.0
    %3300 = vmatprep.subr.mxu0 0.0
    %3301 = vmatpush1.msra.mxu0 0.0
    %3302 = vmatprep.subr.mxu0 0.0
    %3303 = vmatpush1.msra.mxu0 0.0
    %3304 = vmatprep.subr.mxu0 0.0
    %3305 = vmatpush1.msra.mxu0 0.0
    %3306 = vmatprep.subr.mxu0 0.0
    %3307 = vmatpush1.msra.mxu0 0.0
    %3308 = vmatprep.subr.mxu0 0.0
    %3309 = vmatpush1.msra.mxu0 0.0
    %3310 = vmatprep.subr.mxu0 0.0
    %3311 = vmatpush1.msra.mxu0 0.0
    %3312 = vmatprep.subr.mxu0 0.0
    %3313 = vmatpush1.msra.mxu0 0.0
    %3314 = vmatprep.subr.mxu0 0.0
    %3315 = vmatpush1.msra.mxu0 0.0
    %3316 = vmatprep.mubr.f32.mxu0 0.0
    %3317 = vmatmul.mubr.f32.gmra.mrb[0].mxu0 %v3250
    %v3318 = vpop.f32.mrb[0].mxu0
    %v3319 = vadd.f32 0.0, %v3318
    %v3320 = vpop.f32.mrb[0].mxu0
    %3321 = vdwg.mxu0
    %3322 = vrot.lane.b32.xlu0 %v2061, 96
    %v3323 = vpop.permute.xlu0 %3322
    %v3326 = vsel %vm379, %v2789, 0
    %3328 = vmatprep.subr.mxu0 0.0
    %3329 = vmatpush1.msra.mxu0 %v3323
    %3330 = vmatprep.subr.mxu0 0.0
    %3331 = vmatpush1.msra.mxu0 0.0
    %3332 = vmatprep.subr.mxu0 0.0
    %3333 = vmatpush1.msra.mxu0 0.0
    %3334 = vmatprep.subr.mxu0 0.0
    %3335 = vmatpush1.msra.mxu0 0.0
    %3336 = vmatprep.subr.mxu0 0.0
    %3337 = vmatpush1.msra.mxu0 0.0
    %3338 = vmatprep.subr.mxu0 0.0
    %3339 = vmatpush1.msra.mxu0 0.0
    %3340 = vmatprep.subr.mxu0 0.0
    %3341 = vmatpush1.msra.mxu0 0.0
    %3342 = vmatprep.subr.mxu0 0.0
    %3343 = vmatpush1.msra.mxu0 0.0
    %3344 = vmatprep.subr.mxu0 0.0
    %3345 = vmatpush1.msra.mxu0 0.0
    %3346 = vmatprep.subr.mxu0 0.0
    %3347 = vmatpush1.msra.mxu0 0.0
    %3348 = vmatprep.subr.mxu0 0.0
    %3349 = vmatpush1.msra.mxu0 0.0
    %3350 = vmatprep.subr.mxu0 0.0
    %3351 = vmatpush1.msra.mxu0 0.0
    %3352 = vmatprep.subr.mxu0 0.0
    %3353 = vmatpush1.msra.mxu0 0.0
    %3354 = vmatprep.subr.mxu0 0.0
    %3355 = vmatpush1.msra.mxu0 0.0
    %3356 = vmatprep.subr.mxu0 0.0
    %3357 = vmatpush1.msra.mxu0 0.0
    %3358 = vmatprep.subr.mxu0 0.0
    %3359 = vmatpush1.msra.mxu0 0.0
    %3360 = vmatprep.subr.mxu0 0.0
    %3361 = vmatpush1.msra.mxu0 0.0
    %3362 = vmatprep.subr.mxu0 0.0
    %3363 = vmatpush1.msra.mxu0 0.0
    %3364 = vmatprep.subr.mxu0 0.0
    %3365 = vmatpush1.msra.mxu0 0.0
    %3366 = vmatprep.subr.mxu0 0.0
    %3367 = vmatpush1.msra.mxu0 0.0
    %3368 = vmatprep.subr.mxu0 0.0
    %3369 = vmatpush1.msra.mxu0 0.0
    %3370 = vmatprep.subr.mxu0 0.0
    %3371 = vmatpush1.msra.mxu0 0.0
    %3372 = vmatprep.subr.mxu0 0.0
    %3373 = vmatpush1.msra.mxu0 0.0
    %3374 = vmatprep.subr.mxu0 0.0
    %3375 = vmatpush1.msra.mxu0 0.0
    %3376 = vmatprep.subr.mxu0 0.0
    %3377 = vmatpush1.msra.mxu0 0.0
    %3378 = vmatprep.subr.mxu0 0.0
    %3379 = vmatpush1.msra.mxu0 0.0
    %3380 = vmatprep.subr.mxu0 0.0
    %3381 = vmatpush1.msra.mxu0 0.0
    %3382 = vmatprep.subr.mxu0 0.0
    %3383 = vmatpush1.msra.mxu0 0.0
    %3384 = vmatprep.subr.mxu0 0.0
    %3385 = vmatpush1.msra.mxu0 0.0
    %3386 = vmatprep.subr.mxu0 0.0
    %3387 = vmatpush1.msra.mxu0 0.0
    %3388 = vmatprep.subr.mxu0 0.0
    %3389 = vmatpush1.msra.mxu0 0.0
    %3390 = vmatprep.subr.mxu0 0.0
    %3391 = vmatpush1.msra.mxu0 0.0
    %3392 = vmatprep.mubr.f32.mxu0 0.0
    %3393 = vmatmul.mubr.f32.gmra.mrb[0].mxu0 %v3326
    %v3394 = vpop.f32.mrb[0].mxu0
    %v3395 = vadd.f32 0.0, %v3394
    %v3396 = vpop.f32.mrb[0].mxu0
    %3397 = vdwg.mxu0
    %3400 = vrot.lane.b32.xlu0 %v3015, 8
    %v3401 = vpop.permute.xlu0 %3400
    %3402 = vrot.lane.b32.xlu0 %v3091, 8
    %v3403 = vpop.permute.xlu0 %3402
    %3408 = vrot.lane.b32.xlu0 %v3167, 16
    %v3409 = vpop.permute.xlu0 %3408
    %3410 = vrot.lane.b32.xlu0 %v3243, 16
    %v3411 = vpop.permute.xlu0 %3410
    %3416 = vrot.lane.b32.xlu0 %v3319, 24
    %v3417 = vpop.permute.xlu0 %3416
    %3418 = vrot.lane.b32.xlu0 %v3395, 24
    %v3419 = vpop.permute.xlu0 %3418
    %v3422 = vsel %vm379, %v2863, %v3401
    %v3423 = vsel %vm379, %v2939, %v3403
    %v3424 = vsel %vm1708, %v3422, %v3409
    %v3425 = vsel %vm1708, %v3423, %v3411
    %v3426 = vsel %vm1711, %v3424, %v3417
    %v3427 = vsel %vm1711, %v3425, %v3419
    %v3428 = vlaneseq
    %v3429 = vshrl.u32 %v3428, 7
    %v3430 = vsub.s32 3, %v3429
    %v3431 = vrot.slane %v279, %v3430
    %3432 = vrot.lane.b32.xlu0 %v263, 32
    %v3433 = vpop.permute.xlu0 %3432
    %3434 = vrot.lane.b32.xlu0 %v264, 32
    %v3435 = vpop.permute.xlu0 %3434
    %3436 = vrot.lane.b32.xlu0 %v265, 32
    %v3437 = vpop.permute.xlu0 %3436
    %3438 = vrot.lane.b32.xlu0 %v266, 32
    %v3439 = vpop.permute.xlu0 %3438
    %v3445 = vsel %vm281, %v3426, 0
    %v3448 = vsel %vm281, %v3427, 0
    %3450 = vmatprep.subr.mxu0 0.0
    %3451 = vmatpush1.msra.mxu0 %v3433
    %3452 = vmatprep.subr.mxu0 0.0
    %3453 = vmatpush1.msra.mxu0 %v3435
    %3454 = vmatprep.subr.mxu0 0.0
    %3455 = vmatpush1.msra.mxu0 %v3437
    %3456 = vmatprep.subr.mxu0 0.0
    %3457 = vmatpush1.msra.mxu0 %v3439
    %3458 = vmatprep.subr.mxu0 0.0
    %3459 = vmatpush1.msra.mxu0 0.0
    %3460 = vmatprep.subr.mxu0 0.0
    %3461 = vmatpush1.msra.mxu0 0.0
    %3462 = vmatprep.subr.mxu0 0.0
    %3463 = vmatpush1.msra.mxu0 0.0
    %3464 = vmatprep.subr.mxu0 0.0
    %3465 = vmatpush1.msra.mxu0 0.0
    %3466 = vmatprep.subr.mxu0 0.0
    %3467 = vmatpush1.msra.mxu0 0.0
    %3468 = vmatprep.subr.mxu0 0.0
    %3469 = vmatpush1.msra.mxu0 0.0
    %3470 = vmatprep.subr.mxu0 0.0
    %3471 = vmatpush1.msra.mxu0 0.0
    %3472 = vmatprep.subr.mxu0 0.0
    %3473 = vmatpush1.msra.mxu0 0.0
    %3474 = vmatprep.subr.mxu0 0.0
    %3475 = vmatpush1.msra.mxu0 0.0
    %3476 = vmatprep.subr.mxu0 0.0
    %3477 = vmatpush1.msra.mxu0 0.0
    %3478 = vmatprep.subr.mxu0 0.0
    %3479 = vmatpush1.msra.mxu0 0.0
    %3480 = vmatprep.subr.mxu0 0.0
    %3481 = vmatpush1.msra.mxu0 0.0
    %3482 = vmatprep.subr.mxu0 0.0
    %3483 = vmatpush1.msra.mxu0 0.0
    %3484 = vmatprep.subr.mxu0 0.0
    %3485 = vmatpush1.msra.mxu0 0.0
    %3486 = vmatprep.subr.mxu0 0.0
    %3487 = vmatpush1.msra.mxu0 0.0
    %3488 = vmatprep.subr.mxu0 0.0
    %3489 = vmatpush1.msra.mxu0 0.0
    %3490 = vmatprep.subr.mxu0 0.0
    %3491 = vmatpush1.msra.mxu0 0.0
    %3492 = vmatprep.subr.mxu0 0.0
    %3493 = vmatpush1.msra.mxu0 0.0
    %3494 = vmatprep.subr.mxu0 0.0
    %3495 = vmatpush1.msra.mxu0 0.0
    %3496 = vmatprep.subr.mxu0 0.0
    %3497 = vmatpush1.msra.mxu0 0.0
    %3498 = vmatprep.subr.mxu0 0.0
    %3499 = vmatpush1.msra.mxu0 0.0
    %3500 = vmatprep.subr.mxu0 0.0
    %3501 = vmatpush1.msra.mxu0 0.0
    %3502 = vmatprep.subr.mxu0 0.0
    %3503 = vmatpush1.msra.mxu0 0.0
    %3504 = vmatprep.subr.mxu0 0.0
    %3505 = vmatpush1.msra.mxu0 0.0
    %3506 = vmatprep.subr.mxu0 0.0
    %3507 = vmatpush1.msra.mxu0 0.0
    %3508 = vmatprep.subr.mxu0 0.0
    %3509 = vmatpush1.msra.mxu0 0.0
    %3510 = vmatprep.subr.mxu0 0.0
    %3511 = vmatpush1.msra.mxu0 0.0
    %3512 = vmatprep.subr.mxu0 0.0
    %3513 = vmatpush1.msra.mxu0 0.0
    %3514 = vmatprep.mubr.f32.mxu0 0.0
    %3515 = vmatmul.mubr.f32.gmra.mrb[0].mxu0 %v3445
    %v3516 = vpop.f32.mrb[0].mxu0
    %v3517 = vadd.f32 %v3431, %v3516
    %v3518 = vpop.f32.mrb[0].mxu0
    %3519 = vmatprep.mubr.f32.mxu0 0.0
    %3520 = vmatmul.mubr.f32.gmra.mrb[0].mxu0 %v3448
    %v3521 = vpop.f32.mrb[0].mxu0
    %v3522 = vadd.f32 %v3431, %v3521
    %v3523 = vpop.f32.mrb[0].mxu0
    %3524 = vdwg.mxu0
    %v3525 = vadd.f32 %v3517, %v1854
    %v3526 = vadd.f32 %v3522, %v1855
    %v3527 = vsel %vm281, %v3525, 0.0
    %3528 = vadd.xlane.f32.xlu0 %v3527
    %v3529 = vpop.xlane.xlu0 %3528
    %v3530 = vsel %vm281, %v3526, 0.0
    %3531 = vadd.xlane.f32.xlu0 %v3530
    %v3532 = vpop.xlane.xlu0 %3531
    %v3533 = vmul.f32 %v3529, %v1823
    %v3534 = vmul.f32 %v3532, %v1823
    %v3535 = vsub.f32 %v3525, %v3533
    %v3536 = vsub.f32 %v3526, %v3534
    %v3537 = vmul.f32 %v3535, %v3535
    %v3538 = vmul.f32 %v3536, %v3536
    %v3539 = vsel %vm281, %v3537, 0.0
    %3540 = vadd.xlane.f32.xlu0 %v3539
    %v3541 = vpop.xlane.xlu0 %3540
    %v3542 = vsel %vm281, %v3538, 0.0
    %3543 = vadd.xlane.f32.xlu0 %v3542
    %v3544 = vpop.xlane.xlu0 %3543
    %v3545 = vmul.f32 %v3541, %v1823
    %v3546 = vmul.f32 %v3544, %v1823
    %v3547 = vadd.f32 %v3545, 1e-05
    %v3548 = vadd.f32 %v3546, 1e-05
    %v3549 = vrsqrt.pop %v3547
    %v3550 = vrsqrt.pop %v3548
    %v3551 = vmul.f32 %v3535, %v3549
    %v3552 = vmul.f32 %v3536, %v3550
    %v3553 = vlaneseq
    %v3554 = vshrl.u32 %v3553, 7
    %v3555 = vsub.s32 4, %v3554
    %v3556 = vrot.slane %v279, %v3555
    %v3557 = vmul.f32 %v3551, %v3556
    %v3558 = vmul.f32 %v3552, %v3556
    %v3559 = vlaneseq
    %v3560 = vshrl.u32 %v3559, 7
    %v3561 = vsub.s32 5, %v3560
    %v3562 = vrot.slane %v279, %v3561
    %v3563 = vadd.f32 %v3557, %v3562
    %v3564 = vadd.f32 %v3558, %v3562
    %v3565 = vlaneseq
    %v3566 = vshrl.u32 %v3565, 7
    %v3567 = vsub.s32 1, %v3566
    %v3568 = vrot.slane %v280, %v3567
    %v3570 = vsel %vm281, %v3563, 0
    %v3573 = vsel %vm281, %v3564, 0
    %3575 = vmatprep.subr.mxu0 0.0
    %3576 = vmatpush1.msra.mxu0 %v267
    %3577 = vmatprep.subr.mxu0 0.0
    %3578 = vmatpush1.msra.mxu0 %v268
    %3579 = vmatprep.subr.mxu0 0.0
    %3580 = vmatpush1.msra.mxu0 %v269
    %3581 = vmatprep.subr.mxu0 0.0
    %3582 = vmatpush1.msra.mxu0 %v270
    %3583 = vmatprep.subr.mxu0 0.0
    %3584 = vmatpush1.msra.mxu0 0.0
    %3585 = vmatprep.subr.mxu0 0.0
    %3586 = vmatpush1.msra.mxu0 0.0
    %3587 = vmatprep.subr.mxu0 0.0
    %3588 = vmatpush1.msra.mxu0 0.0
    %3589 = vmatprep.subr.mxu0 0.0
    %3590 = vmatpush1.msra.mxu0 0.0
    %3591 = vmatprep.subr.mxu0 0.0
    %3592 = vmatpush1.msra.mxu0 0.0
    %3593 = vmatprep.subr.mxu0 0.0
    %3594 = vmatpush1.msra.mxu0 0.0
    %3595 = vmatprep.subr.mxu0 0.0
    %3596 = vmatpush1.msra.mxu0 0.0
    %3597 = vmatprep.subr.mxu0 0.0
    %3598 = vmatpush1.msra.mxu0 0.0
    %3599 = vmatprep.subr.mxu0 0.0
    %3600 = vmatpush1.msra.mxu0 0.0
    %3601 = vmatprep.subr.mxu0 0.0
    %3602 = vmatpush1.msra.mxu0 0.0
    %3603 = vmatprep.subr.mxu0 0.0
    %3604 = vmatpush1.msra.mxu0 0.0
    %3605 = vmatprep.subr.mxu0 0.0
    %3606 = vmatpush1.msra.mxu0 0.0
    %3607 = vmatprep.subr.mxu0 0.0
    %3608 = vmatpush1.msra.mxu0 0.0
    %3609 = vmatprep.subr.mxu0 0.0
    %3610 = vmatpush1.msra.mxu0 0.0
    %3611 = vmatprep.subr.mxu0 0.0
    %3612 = vmatpush1.msra.mxu0 0.0
    %3613 = vmatprep.subr.mxu0 0.0
    %3614 = vmatpush1.msra.mxu0 0.0
    %3615 = vmatprep.subr.mxu0 0.0
    %3616 = vmatpush1.msra.mxu0 0.0
    %3617 = vmatprep.subr.mxu0 0.0
    %3618 = vmatpush1.msra.mxu0 0.0
    %3619 = vmatprep.subr.mxu0 0.0
    %3620 = vmatpush1.msra.mxu0 0.0
    %3621 = vmatprep.subr.mxu0 0.0
    %3622 = vmatpush1.msra.mxu0 0.0
    %3623 = vmatprep.subr.mxu0 0.0
    %3624 = vmatpush1.msra.mxu0 0.0
    %3625 = vmatprep.subr.mxu0 0.0
    %3626 = vmatpush1.msra.mxu0 0.0
    %3627 = vmatprep.subr.mxu0 0.0
    %3628 = vmatpush1.msra.mxu0 0.0
    %3629 = vmatprep.subr.mxu0 0.0
    %3630 = vmatpush1.msra.mxu0 0.0
    %3631 = vmatprep.subr.mxu0 0.0
    %3632 = vmatpush1.msra.mxu0 0.0
    %3633 = vmatprep.subr.mxu0 0.0
    %3634 = vmatpush1.msra.mxu0 0.0
    %3635 = vmatprep.subr.mxu0 0.0
    %3636 = vmatpush1.msra.mxu0 0.0
    %3637 = vmatprep.subr.mxu0 0.0
    %3638 = vmatpush1.msra.mxu0 0.0
    %3639 = vmatprep.mubr.f32.mxu0 0.0
    %3640 = vmatmul.mubr.f32.gmra.mrb[0].mxu0 %v3570
    %v3641 = vpop.f32.mrb[0].mxu0
    %v3642 = vadd.f32 %v3568, %v3641
    %v3643 = vpop.f32.mrb[0].mxu0
    %3644 = vmatprep.mubr.f32.mxu0 0.0
    %3645 = vmatmul.mubr.f32.gmra.mrb[0].mxu0 %v3573
    %v3646 = vpop.f32.mrb[0].mxu0
    %v3647 = vadd.f32 %v3568, %v3646
    %v3648 = vpop.f32.mrb[0].mxu0
    %3649 = vdwg.mxu0
    %v3650 = vmax.f32 %v3642, 0.0
    %v3651 = vmax.f32 %v3647, 0.0
    %v3652 = vlaneseq
    %v3653 = vshrl.u32 %v3652, 7
    %v3654 = vsub.s32 0, %v3653
    %v3655 = vrot.slane %v280, %v3654
    %vm3656 = vcmask 523264
    %v3658 = vsel %vm3656, %v3650, 0
    %v3661 = vsel %vm3656, %v3651, 0
    %3663 = vmatprep.subr.mxu0 0.0
    %3664 = vmatpush1.msra.mxu0 %v271
    %3665 = vmatprep.subr.mxu0 0.0
    %3666 = vmatpush1.msra.mxu0 %v272
    %3667 = vmatprep.subr.mxu0 0.0
    %3668 = vmatpush1.msra.mxu0 %v273
    %3669 = vmatprep.subr.mxu0 0.0
    %3670 = vmatpush1.msra.mxu0 %v274
    %3671 = vmatprep.subr.mxu0 0.0
    %3672 = vmatpush1.msra.mxu0 %v275
    %3673 = vmatprep.subr.mxu0 0.0
    %3674 = vmatpush1.msra.mxu0 %v276
    %3675 = vmatprep.subr.mxu0 0.0
    %3676 = vmatpush1.msra.mxu0 %v277
    %3677 = vmatprep.subr.mxu0 0.0
    %3678 = vmatpush1.msra.mxu0 %v278
    %3679 = vmatprep.subr.mxu0 0.0
    %3680 = vmatpush1.msra.mxu0 0.0
    %3681 = vmatprep.subr.mxu0 0.0
    %3682 = vmatpush1.msra.mxu0 0.0
    %3683 = vmatprep.subr.mxu0 0.0
    %3684 = vmatpush1.msra.mxu0 0.0
    %3685 = vmatprep.subr.mxu0 0.0
    %3686 = vmatpush1.msra.mxu0 0.0
    %3687 = vmatprep.subr.mxu0 0.0
    %3688 = vmatpush1.msra.mxu0 0.0
    %3689 = vmatprep.subr.mxu0 0.0
    %3690 = vmatpush1.msra.mxu0 0.0
    %3691 = vmatprep.subr.mxu0 0.0
    %3692 = vmatpush1.msra.mxu0 0.0
    %3693 = vmatprep.subr.mxu0 0.0
    %3694 = vmatpush1.msra.mxu0 0.0
    %3695 = vmatprep.subr.mxu0 0.0
    %3696 = vmatpush1.msra.mxu0 0.0
    %3697 = vmatprep.subr.mxu0 0.0
    %3698 = vmatpush1.msra.mxu0 0.0
    %3699 = vmatprep.subr.mxu0 0.0
    %3700 = vmatpush1.msra.mxu0 0.0
    %3701 = vmatprep.subr.mxu0 0.0
    %3702 = vmatpush1.msra.mxu0 0.0
    %3703 = vmatprep.subr.mxu0 0.0
    %3704 = vmatpush1.msra.mxu0 0.0
    %3705 = vmatprep.subr.mxu0 0.0
    %3706 = vmatpush1.msra.mxu0 0.0
    %3707 = vmatprep.subr.mxu0 0.0
    %3708 = vmatpush1.msra.mxu0 0.0
    %3709 = vmatprep.subr.mxu0 0.0
    %3710 = vmatpush1.msra.mxu0 0.0
    %3711 = vmatprep.subr.mxu0 0.0
    %3712 = vmatpush1.msra.mxu0 0.0
    %3713 = vmatprep.subr.mxu0 0.0
    %3714 = vmatpush1.msra.mxu0 0.0
    %3715 = vmatprep.subr.mxu0 0.0
    %3716 = vmatpush1.msra.mxu0 0.0
    %3717 = vmatprep.subr.mxu0 0.0
    %3718 = vmatpush1.msra.mxu0 0.0
    %3719 = vmatprep.subr.mxu0 0.0
    %3720 = vmatpush1.msra.mxu0 0.0
    %3721 = vmatprep.subr.mxu0 0.0
    %3722 = vmatpush1.msra.mxu0 0.0
    %3723 = vmatprep.subr.mxu0 0.0
    %3724 = vmatpush1.msra.mxu0 0.0
    %3725 = vmatprep.subr.mxu0 0.0
    %3726 = vmatpush1.msra.mxu0 0.0
    %3727 = vmatprep.mubr.f32.mxu0 0.0
    %3728 = vmatmul.mubr.f32.gmra.mrb[0].mxu0 %v3658
    %v3729 = vpop.f32.mrb[0].mxu0
    %v3730 = vadd.f32 %v3655, %v3729
    %v3731 = vpop.f32.mrb[0].mxu0
    %3732 = vmatprep.mubr.f32.mxu0 0.0
    %3733 = vmatmul.mubr.f32.gmra.mrb[0].mxu0 %v3661
    %v3734 = vpop.f32.mrb[0].mxu0
    %v3735 = vadd.f32 %v3655, %v3734
    %v3736 = vpop.f32.mrb[0].mxu0
    %3737 = vdwg.mxu0
    %v3738 = vadd.f32 %v3730, %v3563
    %v3739 = vadd.f32 %v3735, %v3564
    %v3740 = vsel %vm281, %v3738, 0.0
    %3741 = vadd.xlane.f32.xlu0 %v3740
    %v3742 = vpop.xlane.xlu0 %3741
    %v3743 = vsel %vm281, %v3739, 0.0
    %3744 = vadd.xlane.f32.xlu0 %v3743
    %v3745 = vpop.xlane.xlu0 %3744
    %v3746 = vmul.f32 %v3742, %v1823
    %v3747 = vmul.f32 %v3745, %v1823
    %v3748 = vsub.f32 %v3738, %v3746
    %v3749 = vsub.f32 %v3739, %v3747
    %v3750 = vmul.f32 %v3748, %v3748
    %v3751 = vmul.f32 %v3749, %v3749
    %v3752 = vsel %vm281, %v3750, 0.0
    %3753 = vadd.xlane.f32.xlu0 %v3752
    %v3754 = vpop.xlane.xlu0 %3753
    %v3755 = vsel %vm281, %v3751, 0.0
    %3756 = vadd.xlane.f32.xlu0 %v3755
    %v3757 = vpop.xlane.xlu0 %3756
    %v3758 = vmul.f32 %v3754, %v1823
    %v3759 = vmul.f32 %v3757, %v1823
    %v3760 = vadd.f32 %v3758, 1e-05
    %v3761 = vadd.f32 %v3759, 1e-05
    %v3762 = vrsqrt.pop %v3760
    %v3763 = vrsqrt.pop %v3761
    %v3764 = vmul.f32 %v3748, %v3762
    %v3765 = vmul.f32 %v3749, %v3763
    %v3766 = vlaneseq
    %v3767 = vshrl.u32 %v3766, 7
    %v3768 = vsub.s32 6, %v3767
    %v3769 = vrot.slane %v279, %v3768
    %v3770 = vmul.f32 %v3764, %v3769
    %v3771 = vmul.f32 %v3765, %v3769
    %v3772 = vlaneseq
    %v3773 = vshrl.u32 %v3772, 7
    %v3774 = vsub.s32 7, %v3773
    %v3775 = vrot.slane %v279, %v3774
    %v3776 = vadd.f32 %v3770, %v3775
    %v3777 = vadd.f32 %v3771, %v3775
    %s3778 = scalar_lea.vmem %s7, 96
    %v3779 = vld [vmem:[%s3778] sm:$0xff]
    %v3780 = vld [vmem:[%s3778 + $0x18] sm:$0xff]
    %v3781 = vld [vmem:[%s3778 + $0x30] sm:$0xff]
    %v3782 = vld [vmem:[%s3778 + $0x48] sm:$0xff]
    %v3783 = vld [vmem:[%s3778 + $0x8] sm:$0xff]
    %v3784 = vld [vmem:[%s3778 + $0x20] sm:$0xff]
    %v3785 = vld [vmem:[%s3778 + $0x38] sm:$0xff]
    %v3786 = vld [vmem:[%s3778 + $0x50] sm:$0xff]
    %v3787 = vld [vmem:[%s3778 + $0x10] sm:$0xff]
    %v3788 = vld [vmem:[%s3778 + $0x28] sm:$0xff]
    %v3789 = vld [vmem:[%s3778 + $0x40] sm:$0xff]
    %v3790 = vld [vmem:[%s3778 + $0x58] sm:$0xff]
    %s3791 = scalar_lea.vmem %s8, 64
    %v3792 = vld [vmem:[%s3791] sm:$0xff]
    %v3793 = vld [vmem:[%s3791 + $0x8] sm:$0xff]
    %v3794 = vld [vmem:[%s3791 + $0x10] sm:$0xff]
    %v3795 = vld [vmem:[%s3791 + $0x18] sm:$0xff]
    %v3796 = vld [vmem:[%s3791 + $0x20] sm:$0xff]
    %v3797 = vld [vmem:[%s3791 + $0x28] sm:$0xff]
    %v3798 = vld [vmem:[%s3791 + $0x30] sm:$0xff]
    %v3799 = vld [vmem:[%s3791 + $0x38] sm:$0xff]
    %s3800 = scalar_lea.vmem %s9, 16
    %v3801 = vld [vmem:[%s3800] sm:$0xff]
    %v3802 = vld [vmem:[%s3800 + $0x8] sm:$0x3]
    %v3804 = vsel %vm281, %v3776, 0
    %v3807 = vsel %vm281, %v3777, 0
    %3809 = vmatprep.subr.mxu0 0.0
    %3810 = vmatpush1.msra.mxu0 %v3779
    %3811 = vmatprep.subr.mxu0 0.0
    %3812 = vmatpush1.msra.mxu0 %v3780
    %3813 = vmatprep.subr.mxu0 0.0
    %3814 = vmatpush1.msra.mxu0 %v3781
    %3815 = vmatprep.subr.mxu0 0.0
    %3816 = vmatpush1.msra.mxu0 %v3782
    %3817 = vmatprep.subr.mxu0 0.0
    %3818 = vmatpush1.msra.mxu0 0.0
    %3819 = vmatprep.subr.mxu0 0.0
    %3820 = vmatpush1.msra.mxu0 0.0
    %3821 = vmatprep.subr.mxu0 0.0
    %3822 = vmatpush1.msra.mxu0 0.0
    %3823 = vmatprep.subr.mxu0 0.0
    %3824 = vmatpush1.msra.mxu0 0.0
    %3825 = vmatprep.subr.mxu0 0.0
    %3826 = vmatpush1.msra.mxu0 0.0
    %3827 = vmatprep.subr.mxu0 0.0
    %3828 = vmatpush1.msra.mxu0 0.0
    %3829 = vmatprep.subr.mxu0 0.0
    %3830 = vmatpush1.msra.mxu0 0.0
    %3831 = vmatprep.subr.mxu0 0.0
    %3832 = vmatpush1.msra.mxu0 0.0
    %3833 = vmatprep.subr.mxu0 0.0
    %3834 = vmatpush1.msra.mxu0 0.0
    %3835 = vmatprep.subr.mxu0 0.0
    %3836 = vmatpush1.msra.mxu0 0.0
    %3837 = vmatprep.subr.mxu0 0.0
    %3838 = vmatpush1.msra.mxu0 0.0
    %3839 = vmatprep.subr.mxu0 0.0
    %3840 = vmatpush1.msra.mxu0 0.0
    %3841 = vmatprep.subr.mxu0 0.0
    %3842 = vmatpush1.msra.mxu0 0.0
    %3843 = vmatprep.subr.mxu0 0.0
    %3844 = vmatpush1.msra.mxu0 0.0
    %3845 = vmatprep.subr.mxu0 0.0
    %3846 = vmatpush1.msra.mxu0 0.0
    %3847 = vmatprep.subr.mxu0 0.0
    %3848 = vmatpush1.msra.mxu0 0.0
    %3849 = vmatprep.subr.mxu0 0.0
    %3850 = vmatpush1.msra.mxu0 0.0
    %3851 = vmatprep.subr.mxu0 0.0
    %3852 = vmatpush1.msra.mxu0 0.0
    %3853 = vmatprep.subr.mxu0 0.0
    %3854 = vmatpush1.msra.mxu0 0.0
    %3855 = vmatprep.subr.mxu0 0.0
    %3856 = vmatpush1.msra.mxu0 0.0
    %3857 = vmatprep.subr.mxu0 0.0
    %3858 = vmatpush1.msra.mxu0 0.0
    %3859 = vmatprep.subr.mxu0 0.0
    %3860 = vmatpush1.msra.mxu0 0.0
    %3861 = vmatprep.subr.mxu0 0.0
    %3862 = vmatpush1.msra.mxu0 0.0
    %3863 = vmatprep.subr.mxu0 0.0
    %3864 = vmatpush1.msra.mxu0 0.0
    %3865 = vmatprep.subr.mxu0 0.0
    %3866 = vmatpush1.msra.mxu0 0.0
    %3867 = vmatprep.subr.mxu0 0.0
    %3868 = vmatpush1.msra.mxu0 0.0
    %3869 = vmatprep.subr.mxu0 0.0
    %3870 = vmatpush1.msra.mxu0 0.0
    %3871 = vmatprep.subr.mxu0 0.0
    %3872 = vmatpush1.msra.mxu0 0.0
    %3873 = vmatprep.mubr.f32.mxu0 0.0
    %3874 = vmatmul.mubr.f32.gmra.mrb[0].mxu0 %v3804
    %v3875 = vpop.f32.mrb[0].mxu0
    %v3876 = vadd.f32 0.0, %v3875
    %v3877 = vpop.f32.mrb[0].mxu0
    %3878 = vmatprep.mubr.f32.mxu0 0.0
    %3879 = vmatmul.mubr.f32.gmra.mrb[0].mxu0 %v3807
    %v3880 = vpop.f32.mrb[0].mxu0
    %v3881 = vadd.f32 0.0, %v3880
    %v3882 = vpop.f32.mrb[0].mxu0
    %3883 = vdwg.mxu0
    %3886 = vrot.lane.b32.xlu0 %v3876, 120
    %v3887 = vpop.permute.xlu0 %3886
    %3888 = vrot.lane.b32.xlu0 %v3881, 120
    %v3889 = vpop.permute.xlu0 %3888
    %3890 = vrot.lane.b32.xlu0 %v3876, 112
    %v3891 = vpop.permute.xlu0 %3890
    %3892 = vrot.lane.b32.xlu0 %v3881, 112
    %v3893 = vpop.permute.xlu0 %3892
    %3894 = vrot.lane.b32.xlu0 %v3876, 104
    %v3895 = vpop.permute.xlu0 %3894
    %3896 = vrot.lane.b32.xlu0 %v3881, 104
    %v3897 = vpop.permute.xlu0 %3896
    %3898 = vrot.lane.b32.xlu0 %v3876, 96
    %v3899 = vpop.permute.xlu0 %3898
    %v3900 = vsel %vm379, %v3876, 0
    %v3902 = vsel %vm379, %v3899, 0
    %3904 = vmatprep.subr.mxu0 0.0
    %3905 = vmatpush1.xpose.msra.mxu0 %v3902
    %3906 = vmatprep.subr.mxu0 0.0
    %3907 = vmatpush1.xpose.msra.mxu0 0.0
    %3908 = vmatprep.subr.mxu0 0.0
    %3909 = vmatpush1.xpose.msra.mxu0 0.0
    %3910 = vmatprep.subr.mxu0 0.0
    %3911 = vmatpush1.xpose.msra.mxu0 0.0
    %3912 = vmatprep.subr.mxu0 0.0
    %3913 = vmatpush1.xpose.msra.mxu0 0.0
    %3914 = vmatprep.subr.mxu0 0.0
    %3915 = vmatpush1.xpose.msra.mxu0 0.0
    %3916 = vmatprep.subr.mxu0 0.0
    %3917 = vmatpush1.xpose.msra.mxu0 0.0
    %3918 = vmatprep.subr.mxu0 0.0
    %3919 = vmatpush1.xpose.msra.mxu0 0.0
    %3920 = vmatprep.subr.mxu0 0.0
    %3921 = vmatpush1.xpose.msra.mxu0 0.0
    %3922 = vmatprep.subr.mxu0 0.0
    %3923 = vmatpush1.xpose.msra.mxu0 0.0
    %3924 = vmatprep.subr.mxu0 0.0
    %3925 = vmatpush1.xpose.msra.mxu0 0.0
    %3926 = vmatprep.subr.mxu0 0.0
    %3927 = vmatpush1.xpose.msra.mxu0 0.0
    %3928 = vmatprep.subr.mxu0 0.0
    %3929 = vmatpush1.xpose.msra.mxu0 0.0
    %3930 = vmatprep.subr.mxu0 0.0
    %3931 = vmatpush1.xpose.msra.mxu0 0.0
    %3932 = vmatprep.subr.mxu0 0.0
    %3933 = vmatpush1.xpose.msra.mxu0 0.0
    %3934 = vmatprep.subr.mxu0 0.0
    %3935 = vmatpush1.xpose.msra.mxu0 0.0
    %3936 = vmatprep.subr.mxu0 0.0
    %3937 = vmatpush1.xpose.msra.mxu0 0.0
    %3938 = vmatprep.subr.mxu0 0.0
    %3939 = vmatpush1.xpose.msra.mxu0 0.0
    %3940 = vmatprep.subr.mxu0 0.0
    %3941 = vmatpush1.xpose.msra.mxu0 0.0
    %3942 = vmatprep.subr.mxu0 0.0
    %3943 = vmatpush1.xpose.msra.mxu0 0.0
    %3944 = vmatprep.subr.mxu0 0.0
    %3945 = vmatpush1.xpose.msra.mxu0 0.0
    %3946 = vmatprep.subr.mxu0 0.0
    %3947 = vmatpush1.xpose.msra.mxu0 0.0
    %3948 = vmatprep.subr.mxu0 0.0
    %3949 = vmatpush1.xpose.msra.mxu0 0.0
    %3950 = vmatprep.subr.mxu0 0.0
    %3951 = vmatpush1.xpose.msra.mxu0 0.0
    %3952 = vmatprep.subr.mxu0 0.0
    %3953 = vmatpush1.xpose.msra.mxu0 0.0
    %3954 = vmatprep.subr.mxu0 0.0
    %3955 = vmatpush1.xpose.msra.mxu0 0.0
    %3956 = vmatprep.subr.mxu0 0.0
    %3957 = vmatpush1.xpose.msra.mxu0 0.0
    %3958 = vmatprep.subr.mxu0 0.0
    %3959 = vmatpush1.xpose.msra.mxu0 0.0
    %3960 = vmatprep.subr.mxu0 0.0
    %3961 = vmatpush1.xpose.msra.mxu0 0.0
    %3962 = vmatprep.subr.mxu0 0.0
    %3963 = vmatpush1.xpose.msra.mxu0 0.0
    %3964 = vmatprep.subr.mxu0 0.0
    %3965 = vmatpush1.xpose.msra.mxu0 0.0
    %3966 = vmatprep.subr.mxu0 0.0
    %3967 = vmatpush1.xpose.msra.mxu0 0.0
    %3968 = vmatprep.mubr.f32.mxu0 0.0
    %3969 = vmatmul.mubr.f32.gmra.mrb[0].mxu0 %v3900
    %v3970 = vpop.f32.mrb[0].mxu0
    %v3971 = vadd.f32 %v248, %v3970
    %v3972 = vpop.f32.mrb[0].mxu0
    %3973 = vdwg.mxu0
    %3974 = vrot.lane.b32.xlu0 %v3881, 96
    %v3975 = vpop.permute.xlu0 %3974
    %v3976 = vsel %vm379, %v3881, 0
    %v3978 = vsel %vm379, %v3975, 0
    %3980 = vmatprep.subr.mxu0 0.0
    %3981 = vmatpush1.xpose.msra.mxu0 %v3978
    %3982 = vmatprep.subr.mxu0 0.0
    %3983 = vmatpush1.xpose.msra.mxu0 0.0
    %3984 = vmatprep.subr.mxu0 0.0
    %3985 = vmatpush1.xpose.msra.mxu0 0.0
    %3986 = vmatprep.subr.mxu0 0.0
    %3987 = vmatpush1.xpose.msra.mxu0 0.0
    %3988 = vmatprep.subr.mxu0 0.0
    %3989 = vmatpush1.xpose.msra.mxu0 0.0
    %3990 = vmatprep.subr.mxu0 0.0
    %3991 = vmatpush1.xpose.msra.mxu0 0.0
    %3992 = vmatprep.subr.mxu0 0.0
    %3993 = vmatpush1.xpose.msra.mxu0 0.0
    %3994 = vmatprep.subr.mxu0 0.0
    %3995 = vmatpush1.xpose.msra.mxu0 0.0
    %3996 = vmatprep.subr.mxu0 0.0
    %3997 = vmatpush1.xpose.msra.mxu0 0.0
    %3998 = vmatprep.subr.mxu0 0.0
    %3999 = vmatpush1.xpose.msra.mxu0 0.0
    %4000 = vmatprep.subr.mxu0 0.0
    %4001 = vmatpush1.xpose.msra.mxu0 0.0
    %4002 = vmatprep.subr.mxu0 0.0
    %4003 = vmatpush1.xpose.msra.mxu0 0.0
    %4004 = vmatprep.subr.mxu0 0.0
    %4005 = vmatpush1.xpose.msra.mxu0 0.0
    %4006 = vmatprep.subr.mxu0 0.0
    %4007 = vmatpush1.xpose.msra.mxu0 0.0
    %4008 = vmatprep.subr.mxu0 0.0
    %4009 = vmatpush1.xpose.msra.mxu0 0.0
    %4010 = vmatprep.subr.mxu0 0.0
    %4011 = vmatpush1.xpose.msra.mxu0 0.0
    %4012 = vmatprep.subr.mxu0 0.0
    %4013 = vmatpush1.xpose.msra.mxu0 0.0
    %4014 = vmatprep.subr.mxu0 0.0
    %4015 = vmatpush1.xpose.msra.mxu0 0.0
    %4016 = vmatprep.subr.mxu0 0.0
    %4017 = vmatpush1.xpose.msra.mxu0 0.0
    %4018 = vmatprep.subr.mxu0 0.0
    %4019 = vmatpush1.xpose.msra.mxu0 0.0
    %4020 = vmatprep.subr.mxu0 0.0
    %4021 = vmatpush1.xpose.msra.mxu0 0.0
    %4022 = vmatprep.subr.mxu0 0.0
    %4023 = vmatpush1.xpose.msra.mxu0 0.0
    %4024 = vmatprep.subr.mxu0 0.0
    %4025 = vmatpush1.xpose.msra.mxu0 0.0
    %4026 = vmatprep.subr.mxu0 0.0
    %4027 = vmatpush1.xpose.msra.mxu0 0.0
    %4028 = vmatprep.subr.mxu0 0.0
    %4029 = vmatpush1.xpose.msra.mxu0 0.0
    %4030 = vmatprep.subr.mxu0 0.0
    %4031 = vmatpush1.xpose.msra.mxu0 0.0
    %4032 = vmatprep.subr.mxu0 0.0
    %4033 = vmatpush1.xpose.msra.mxu0 0.0
    %4034 = vmatprep.subr.mxu0 0.0
    %4035 = vmatpush1.xpose.msra.mxu0 0.0
    %4036 = vmatprep.subr.mxu0 0.0
    %4037 = vmatpush1.xpose.msra.mxu0 0.0
    %4038 = vmatprep.subr.mxu0 0.0
    %4039 = vmatpush1.xpose.msra.mxu0 0.0
    %4040 = vmatprep.subr.mxu0 0.0
    %4041 = vmatpush1.xpose.msra.mxu0 0.0
    %4042 = vmatprep.subr.mxu0 0.0
    %4043 = vmatpush1.xpose.msra.mxu0 0.0
    %4044 = vmatprep.mubr.f32.mxu0 0.0
    %4045 = vmatmul.mubr.f32.gmra.mrb[0].mxu0 %v3976
    %v4046 = vpop.f32.mrb[0].mxu0
    %v4047 = vadd.f32 %v248, %v4046
    %v4048 = vpop.f32.mrb[0].mxu0
    %4049 = vdwg.mxu0
    %4050 = vrot.lane.b32.xlu0 %v3887, 96
    %v4051 = vpop.permute.xlu0 %4050
    %v4052 = vsel %vm379, %v3887, 0
    %v4054 = vsel %vm379, %v4051, 0
    %4056 = vmatprep.subr.mxu0 0.0
    %4057 = vmatpush1.xpose.msra.mxu0 %v4054
    %4058 = vmatprep.subr.mxu0 0.0
    %4059 = vmatpush1.xpose.msra.mxu0 0.0
    %4060 = vmatprep.subr.mxu0 0.0
    %4061 = vmatpush1.xpose.msra.mxu0 0.0
    %4062 = vmatprep.subr.mxu0 0.0
    %4063 = vmatpush1.xpose.msra.mxu0 0.0
    %4064 = vmatprep.subr.mxu0 0.0
    %4065 = vmatpush1.xpose.msra.mxu0 0.0
    %4066 = vmatprep.subr.mxu0 0.0
    %4067 = vmatpush1.xpose.msra.mxu0 0.0
    %4068 = vmatprep.subr.mxu0 0.0
    %4069 = vmatpush1.xpose.msra.mxu0 0.0
    %4070 = vmatprep.subr.mxu0 0.0
    %4071 = vmatpush1.xpose.msra.mxu0 0.0
    %4072 = vmatprep.subr.mxu0 0.0
    %4073 = vmatpush1.xpose.msra.mxu0 0.0
    %4074 = vmatprep.subr.mxu0 0.0
    %4075 = vmatpush1.xpose.msra.mxu0 0.0
    %4076 = vmatprep.subr.mxu0 0.0
    %4077 = vmatpush1.xpose.msra.mxu0 0.0
    %4078 = vmatprep.subr.mxu0 0.0
    %4079 = vmatpush1.xpose.msra.mxu0 0.0
    %4080 = vmatprep.subr.mxu0 0.0
    %4081 = vmatpush1.xpose.msra.mxu0 0.0
    %4082 = vmatprep.subr.mxu0 0.0
    %4083 = vmatpush1.xpose.msra.mxu0 0.0
    %4084 = vmatprep.subr.mxu0 0.0
    %4085 = vmatpush1.xpose.msra.mxu0 0.0
    %4086 = vmatprep.subr.mxu0 0.0
    %4087 = vmatpush1.xpose.msra.mxu0 0.0
    %4088 = vmatprep.subr.mxu0 0.0
    %4089 = vmatpush1.xpose.msra.mxu0 0.0
    %4090 = vmatprep.subr.mxu0 0.0
    %4091 = vmatpush1.xpose.msra.mxu0 0.0
    %4092 = vmatprep.subr.mxu0 0.0
    %4093 = vmatpush1.xpose.msra.mxu0 0.0
    %4094 = vmatprep.subr.mxu0 0.0
    %4095 = vmatpush1.xpose.msra.mxu0 0.0
    %4096 = vmatprep.subr.mxu0 0.0
    %4097 = vmatpush1.xpose.msra.mxu0 0.0
    %4098 = vmatprep.subr.mxu0 0.0
    %4099 = vmatpush1.xpose.msra.mxu0 0.0
    %4100 = vmatprep.subr.mxu0 0.0
    %4101 = vmatpush1.xpose.msra.mxu0 0.0
    %4102 = vmatprep.subr.mxu0 0.0
    %4103 = vmatpush1.xpose.msra.mxu0 0.0
    %4104 = vmatprep.subr.mxu0 0.0
    %4105 = vmatpush1.xpose.msra.mxu0 0.0
    %4106 = vmatprep.subr.mxu0 0.0
    %4107 = vmatpush1.xpose.msra.mxu0 0.0
    %4108 = vmatprep.subr.mxu0 0.0
    %4109 = vmatpush1.xpose.msra.mxu0 0.0
    %4110 = vmatprep.subr.mxu0 0.0
    %4111 = vmatpush1.xpose.msra.mxu0 0.0
    %4112 = vmatprep.subr.mxu0 0.0
    %4113 = vmatpush1.xpose.msra.mxu0 0.0
    %4114 = vmatprep.subr.mxu0 0.0
    %4115 = vmatpush1.xpose.msra.mxu0 0.0
    %4116 = vmatprep.subr.mxu0 0.0
    %4117 = vmatpush1.xpose.msra.mxu0 0.0
    %4118 = vmatprep.subr.mxu0 0.0
    %4119 = vmatpush1.xpose.msra.mxu0 0.0
    %4120 = vmatprep.mubr.f32.mxu0 0.0
    %4121 = vmatmul.mubr.f32.gmra.mrb[0].mxu0 %v4052
    %v4122 = vpop.f32.mrb[0].mxu0
    %v4123 = vadd.f32 %v248, %v4122
    %v4124 = vpop.f32.mrb[0].mxu0
    %4125 = vdwg.mxu0
    %4126 = vrot.lane.b32.xlu0 %v3889, 96
    %v4127 = vpop.permute.xlu0 %4126
    %v4128 = vsel %vm379, %v3889, 0
    %v4130 = vsel %vm379, %v4127, 0
    %4132 = vmatprep.subr.mxu0 0.0
    %4133 = vmatpush1.xpose.msra.mxu0 %v4130
    %4134 = vmatprep.subr.mxu0 0.0
    %4135 = vmatpush1.xpose.msra.mxu0 0.0
    %4136 = vmatprep.subr.mxu0 0.0
    %4137 = vmatpush1.xpose.msra.mxu0 0.0
    %4138 = vmatprep.subr.mxu0 0.0
    %4139 = vmatpush1.xpose.msra.mxu0 0.0
    %4140 = vmatprep.subr.mxu0 0.0
    %4141 = vmatpush1.xpose.msra.mxu0 0.0
    %4142 = vmatprep.subr.mxu0 0.0
    %4143 = vmatpush1.xpose.msra.mxu0 0.0
    %4144 = vmatprep.subr.mxu0 0.0
    %4145 = vmatpush1.xpose.msra.mxu0 0.0
    %4146 = vmatprep.subr.mxu0 0.0
    %4147 = vmatpush1.xpose.msra.mxu0 0.0
    %4148 = vmatprep.subr.mxu0 0.0
    %4149 = vmatpush1.xpose.msra.mxu0 0.0
    %4150 = vmatprep.subr.mxu0 0.0
    %4151 = vmatpush1.xpose.msra.mxu0 0.0
    %4152 = vmatprep.subr.mxu0 0.0
    %4153 = vmatpush1.xpose.msra.mxu0 0.0
    %4154 = vmatprep.subr.mxu0 0.0
    %4155 = vmatpush1.xpose.msra.mxu0 0.0
    %4156 = vmatprep.subr.mxu0 0.0
    %4157 = vmatpush1.xpose.msra.mxu0 0.0
    %4158 = vmatprep.subr.mxu0 0.0
    %4159 = vmatpush1.xpose.msra.mxu0 0.0
    %4160 = vmatprep.subr.mxu0 0.0
    %4161 = vmatpush1.xpose.msra.mxu0 0.0
    %4162 = vmatprep.subr.mxu0 0.0
    %4163 = vmatpush1.xpose.msra.mxu0 0.0
    %4164 = vmatprep.subr.mxu0 0.0
    %4165 = vmatpush1.xpose.msra.mxu0 0.0
    %4166 = vmatprep.subr.mxu0 0.0
    %4167 = vmatpush1.xpose.msra.mxu0 0.0
    %4168 = vmatprep.subr.mxu0 0.0
    %4169 = vmatpush1.xpose.msra.mxu0 0.0
    %4170 = vmatprep.subr.mxu0 0.0
    %4171 = vmatpush1.xpose.msra.mxu0 0.0
    %4172 = vmatprep.subr.mxu0 0.0
    %4173 = vmatpush1.xpose.msra.mxu0 0.0
    %4174 = vmatprep.subr.mxu0 0.0
    %4175 = vmatpush1.xpose.msra.mxu0 0.0
    %4176 = vmatprep.subr.mxu0 0.0
    %4177 = vmatpush1.xpose.msra.mxu0 0.0
    %4178 = vmatprep.subr.mxu0 0.0
    %4179 = vmatpush1.xpose.msra.mxu0 0.0
    %4180 = vmatprep.subr.mxu0 0.0
    %4181 = vmatpush1.xpose.msra.mxu0 0.0
    %4182 = vmatprep.subr.mxu0 0.0
    %4183 = vmatpush1.xpose.msra.mxu0 0.0
    %4184 = vmatprep.subr.mxu0 0.0
    %4185 = vmatpush1.xpose.msra.mxu0 0.0
    %4186 = vmatprep.subr.mxu0 0.0
    %4187 = vmatpush1.xpose.msra.mxu0 0.0
    %4188 = vmatprep.subr.mxu0 0.0
    %4189 = vmatpush1.xpose.msra.mxu0 0.0
    %4190 = vmatprep.subr.mxu0 0.0
    %4191 = vmatpush1.xpose.msra.mxu0 0.0
    %4192 = vmatprep.subr.mxu0 0.0
    %4193 = vmatpush1.xpose.msra.mxu0 0.0
    %4194 = vmatprep.subr.mxu0 0.0
    %4195 = vmatpush1.xpose.msra.mxu0 0.0
    %4196 = vmatprep.mubr.f32.mxu0 0.0
    %4197 = vmatmul.mubr.f32.gmra.mrb[0].mxu0 %v4128
    %v4198 = vpop.f32.mrb[0].mxu0
    %v4199 = vadd.f32 %v248, %v4198
    %v4200 = vpop.f32.mrb[0].mxu0
    %4201 = vdwg.mxu0
    %4202 = vrot.lane.b32.xlu0 %v3891, 96
    %v4203 = vpop.permute.xlu0 %4202
    %v4204 = vsel %vm379, %v3891, 0
    %v4206 = vsel %vm379, %v4203, 0
    %4208 = vmatprep.subr.mxu0 0.0
    %4209 = vmatpush1.xpose.msra.mxu0 %v4206
    %4210 = vmatprep.subr.mxu0 0.0
    %4211 = vmatpush1.xpose.msra.mxu0 0.0
    %4212 = vmatprep.subr.mxu0 0.0
    %4213 = vmatpush1.xpose.msra.mxu0 0.0
    %4214 = vmatprep.subr.mxu0 0.0
    %4215 = vmatpush1.xpose.msra.mxu0 0.0
    %4216 = vmatprep.subr.mxu0 0.0
    %4217 = vmatpush1.xpose.msra.mxu0 0.0
    %4218 = vmatprep.subr.mxu0 0.0
    %4219 = vmatpush1.xpose.msra.mxu0 0.0
    %4220 = vmatprep.subr.mxu0 0.0
    %4221 = vmatpush1.xpose.msra.mxu0 0.0
    %4222 = vmatprep.subr.mxu0 0.0
    %4223 = vmatpush1.xpose.msra.mxu0 0.0
    %4224 = vmatprep.subr.mxu0 0.0
    %4225 = vmatpush1.xpose.msra.mxu0 0.0
    %4226 = vmatprep.subr.mxu0 0.0
    %4227 = vmatpush1.xpose.msra.mxu0 0.0
    %4228 = vmatprep.subr.mxu0 0.0
    %4229 = vmatpush1.xpose.msra.mxu0 0.0
    %4230 = vmatprep.subr.mxu0 0.0
    %4231 = vmatpush1.xpose.msra.mxu0 0.0
    %4232 = vmatprep.subr.mxu0 0.0
    %4233 = vmatpush1.xpose.msra.mxu0 0.0
    %4234 = vmatprep.subr.mxu0 0.0
    %4235 = vmatpush1.xpose.msra.mxu0 0.0
    %4236 = vmatprep.subr.mxu0 0.0
    %4237 = vmatpush1.xpose.msra.mxu0 0.0
    %4238 = vmatprep.subr.mxu0 0.0
    %4239 = vmatpush1.xpose.msra.mxu0 0.0
    %4240 = vmatprep.subr.mxu0 0.0
    %4241 = vmatpush1.xpose.msra.mxu0 0.0
    %4242 = vmatprep.subr.mxu0 0.0
    %4243 = vmatpush1.xpose.msra.mxu0 0.0
    %4244 = vmatprep.subr.mxu0 0.0
    %4245 = vmatpush1.xpose.msra.mxu0 0.0
    %4246 = vmatprep.subr.mxu0 0.0
    %4247 = vmatpush1.xpose.msra.mxu0 0.0
    %4248 = vmatprep.subr.mxu0 0.0
    %4249 = vmatpush1.xpose.msra.mxu0 0.0
    %4250 = vmatprep.subr.mxu0 0.0
    %4251 = vmatpush1.xpose.msra.mxu0 0.0
    %4252 = vmatprep.subr.mxu0 0.0
    %4253 = vmatpush1.xpose.msra.mxu0 0.0
    %4254 = vmatprep.subr.mxu0 0.0
    %4255 = vmatpush1.xpose.msra.mxu0 0.0
    %4256 = vmatprep.subr.mxu0 0.0
    %4257 = vmatpush1.xpose.msra.mxu0 0.0
    %4258 = vmatprep.subr.mxu0 0.0
    %4259 = vmatpush1.xpose.msra.mxu0 0.0
    %4260 = vmatprep.subr.mxu0 0.0
    %4261 = vmatpush1.xpose.msra.mxu0 0.0
    %4262 = vmatprep.subr.mxu0 0.0
    %4263 = vmatpush1.xpose.msra.mxu0 0.0
    %4264 = vmatprep.subr.mxu0 0.0
    %4265 = vmatpush1.xpose.msra.mxu0 0.0
    %4266 = vmatprep.subr.mxu0 0.0
    %4267 = vmatpush1.xpose.msra.mxu0 0.0
    %4268 = vmatprep.subr.mxu0 0.0
    %4269 = vmatpush1.xpose.msra.mxu0 0.0
    %4270 = vmatprep.subr.mxu0 0.0
    %4271 = vmatpush1.xpose.msra.mxu0 0.0
    %4272 = vmatprep.mubr.f32.mxu0 0.0
    %4273 = vmatmul.mubr.f32.gmra.mrb[0].mxu0 %v4204
    %v4274 = vpop.f32.mrb[0].mxu0
    %v4275 = vadd.f32 %v248, %v4274
    %v4276 = vpop.f32.mrb[0].mxu0
    %4277 = vdwg.mxu0
    %4278 = vrot.lane.b32.xlu0 %v3893, 96
    %v4279 = vpop.permute.xlu0 %4278
    %v4280 = vsel %vm379, %v3893, 0
    %v4282 = vsel %vm379, %v4279, 0
    %4284 = vmatprep.subr.mxu0 0.0
    %4285 = vmatpush1.xpose.msra.mxu0 %v4282
    %4286 = vmatprep.subr.mxu0 0.0
    %4287 = vmatpush1.xpose.msra.mxu0 0.0
    %4288 = vmatprep.subr.mxu0 0.0
    %4289 = vmatpush1.xpose.msra.mxu0 0.0
    %4290 = vmatprep.subr.mxu0 0.0
    %4291 = vmatpush1.xpose.msra.mxu0 0.0
    %4292 = vmatprep.subr.mxu0 0.0
    %4293 = vmatpush1.xpose.msra.mxu0 0.0
    %4294 = vmatprep.subr.mxu0 0.0
    %4295 = vmatpush1.xpose.msra.mxu0 0.0
    %4296 = vmatprep.subr.mxu0 0.0
    %4297 = vmatpush1.xpose.msra.mxu0 0.0
    %4298 = vmatprep.subr.mxu0 0.0
    %4299 = vmatpush1.xpose.msra.mxu0 0.0
    %4300 = vmatprep.subr.mxu0 0.0
    %4301 = vmatpush1.xpose.msra.mxu0 0.0
    %4302 = vmatprep.subr.mxu0 0.0
    %4303 = vmatpush1.xpose.msra.mxu0 0.0
    %4304 = vmatprep.subr.mxu0 0.0
    %4305 = vmatpush1.xpose.msra.mxu0 0.0
    %4306 = vmatprep.subr.mxu0 0.0
    %4307 = vmatpush1.xpose.msra.mxu0 0.0
    %4308 = vmatprep.subr.mxu0 0.0
    %4309 = vmatpush1.xpose.msra.mxu0 0.0
    %4310 = vmatprep.subr.mxu0 0.0
    %4311 = vmatpush1.xpose.msra.mxu0 0.0
    %4312 = vmatprep.subr.mxu0 0.0
    %4313 = vmatpush1.xpose.msra.mxu0 0.0
    %4314 = vmatprep.subr.mxu0 0.0
    %4315 = vmatpush1.xpose.msra.mxu0 0.0
    %4316 = vmatprep.subr.mxu0 0.0
    %4317 = vmatpush1.xpose.msra.mxu0 0.0
    %4318 = vmatprep.subr.mxu0 0.0
    %4319 = vmatpush1.xpose.msra.mxu0 0.0
    %4320 = vmatprep.subr.mxu0 0.0
    %4321 = vmatpush1.xpose.msra.mxu0 0.0
    %4322 = vmatprep.subr.mxu0 0.0
    %4323 = vmatpush1.xpose.msra.mxu0 0.0
    %4324 = vmatprep.subr.mxu0 0.0
    %4325 = vmatpush1.xpose.msra.mxu0 0.0
    %4326 = vmatprep.subr.mxu0 0.0
    %4327 = vmatpush1.xpose.msra.mxu0 0.0
    %4328 = vmatprep.subr.mxu0 0.0
    %4329 = vmatpush1.xpose.msra.mxu0 0.0
    %4330 = vmatprep.subr.mxu0 0.0
    %4331 = vmatpush1.xpose.msra.mxu0 0.0
    %4332 = vmatprep.subr.mxu0 0.0
    %4333 = vmatpush1.xpose.msra.mxu0 0.0
    %4334 = vmatprep.subr.mxu0 0.0
    %4335 = vmatpush1.xpose.msra.mxu0 0.0
    %4336 = vmatprep.subr.mxu0 0.0
    %4337 = vmatpush1.xpose.msra.mxu0 0.0
    %4338 = vmatprep.subr.mxu0 0.0
    %4339 = vmatpush1.xpose.msra.mxu0 0.0
    %4340 = vmatprep.subr.mxu0 0.0
    %4341 = vmatpush1.xpose.msra.mxu0 0.0
    %4342 = vmatprep.subr.mxu0 0.0
    %4343 = vmatpush1.xpose.msra.mxu0 0.0
    %4344 = vmatprep.subr.mxu0 0.0
    %4345 = vmatpush1.xpose.msra.mxu0 0.0
    %4346 = vmatprep.subr.mxu0 0.0
    %4347 = vmatpush1.xpose.msra.mxu0 0.0
    %4348 = vmatprep.mubr.f32.mxu0 0.0
    %4349 = vmatmul.mubr.f32.gmra.mrb[0].mxu0 %v4280
    %v4350 = vpop.f32.mrb[0].mxu0
    %v4351 = vadd.f32 %v248, %v4350
    %v4352 = vpop.f32.mrb[0].mxu0
    %4353 = vdwg.mxu0
    %4354 = vrot.lane.b32.xlu0 %v3895, 96
    %v4355 = vpop.permute.xlu0 %4354
    %v4356 = vsel %vm379, %v3895, 0
    %v4358 = vsel %vm379, %v4355, 0
    %4360 = vmatprep.subr.mxu0 0.0
    %4361 = vmatpush1.xpose.msra.mxu0 %v4358
    %4362 = vmatprep.subr.mxu0 0.0
    %4363 = vmatpush1.xpose.msra.mxu0 0.0
    %4364 = vmatprep.subr.mxu0 0.0
    %4365 = vmatpush1.xpose.msra.mxu0 0.0
    %4366 = vmatprep.subr.mxu0 0.0
    %4367 = vmatpush1.xpose.msra.mxu0 0.0
    %4368 = vmatprep.subr.mxu0 0.0
    %4369 = vmatpush1.xpose.msra.mxu0 0.0
    %4370 = vmatprep.subr.mxu0 0.0
    %4371 = vmatpush1.xpose.msra.mxu0 0.0
    %4372 = vmatprep.subr.mxu0 0.0
    %4373 = vmatpush1.xpose.msra.mxu0 0.0
    %4374 = vmatprep.subr.mxu0 0.0
    %4375 = vmatpush1.xpose.msra.mxu0 0.0
    %4376 = vmatprep.subr.mxu0 0.0
    %4377 = vmatpush1.xpose.msra.mxu0 0.0
    %4378 = vmatprep.subr.mxu0 0.0
    %4379 = vmatpush1.xpose.msra.mxu0 0.0
    %4380 = vmatprep.subr.mxu0 0.0
    %4381 = vmatpush1.xpose.msra.mxu0 0.0
    %4382 = vmatprep.subr.mxu0 0.0
    %4383 = vmatpush1.xpose.msra.mxu0 0.0
    %4384 = vmatprep.subr.mxu0 0.0
    %4385 = vmatpush1.xpose.msra.mxu0 0.0
    %4386 = vmatprep.subr.mxu0 0.0
    %4387 = vmatpush1.xpose.msra.mxu0 0.0
    %4388 = vmatprep.subr.mxu0 0.0
    %4389 = vmatpush1.xpose.msra.mxu0 0.0
    %4390 = vmatprep.subr.mxu0 0.0
    %4391 = vmatpush1.xpose.msra.mxu0 0.0
    %4392 = vmatprep.subr.mxu0 0.0
    %4393 = vmatpush1.xpose.msra.mxu0 0.0
    %4394 = vmatprep.subr.mxu0 0.0
    %4395 = vmatpush1.xpose.msra.mxu0 0.0
    %4396 = vmatprep.subr.mxu0 0.0
    %4397 = vmatpush1.xpose.msra.mxu0 0.0
    %4398 = vmatprep.subr.mxu0 0.0
    %4399 = vmatpush1.xpose.msra.mxu0 0.0
    %4400 = vmatprep.subr.mxu0 0.0
    %4401 = vmatpush1.xpose.msra.mxu0 0.0
    %4402 = vmatprep.subr.mxu0 0.0
    %4403 = vmatpush1.xpose.msra.mxu0 0.0
    %4404 = vmatprep.subr.mxu0 0.0
    %4405 = vmatpush1.xpose.msra.mxu0 0.0
    %4406 = vmatprep.subr.mxu0 0.0
    %4407 = vmatpush1.xpose.msra.mxu0 0.0
    %4408 = vmatprep.subr.mxu0 0.0
    %4409 = vmatpush1.xpose.msra.mxu0 0.0
    %4410 = vmatprep.subr.mxu0 0.0
    %4411 = vmatpush1.xpose.msra.mxu0 0.0
    %4412 = vmatprep.subr.mxu0 0.0
    %4413 = vmatpush1.xpose.msra.mxu0 0.0
    %4414 = vmatprep.subr.mxu0 0.0
    %4415 = vmatpush1.xpose.msra.mxu0 0.0
    %4416 = vmatprep.subr.mxu0 0.0
    %4417 = vmatpush1.xpose.msra.mxu0 0.0
    %4418 = vmatprep.subr.mxu0 0.0
    %4419 = vmatpush1.xpose.msra.mxu0 0.0
    %4420 = vmatprep.subr.mxu0 0.0
    %4421 = vmatpush1.xpose.msra.mxu0 0.0
    %4422 = vmatprep.subr.mxu0 0.0
    %4423 = vmatpush1.xpose.msra.mxu0 0.0
    %4424 = vmatprep.mubr.f32.mxu0 0.0
    %4425 = vmatmul.mubr.f32.gmra.mrb[0].mxu0 %v4356
    %v4426 = vpop.f32.mrb[0].mxu0
    %v4427 = vadd.f32 %v248, %v4426
    %v4428 = vpop.f32.mrb[0].mxu0
    %4429 = vdwg.mxu0
    %4430 = vrot.lane.b32.xlu0 %v3897, 96
    %v4431 = vpop.permute.xlu0 %4430
    %v4432 = vsel %vm379, %v3897, 0
    %v4434 = vsel %vm379, %v4431, 0
    %4436 = vmatprep.subr.mxu0 0.0
    %4437 = vmatpush1.xpose.msra.mxu0 %v4434
    %4438 = vmatprep.subr.mxu0 0.0
    %4439 = vmatpush1.xpose.msra.mxu0 0.0
    %4440 = vmatprep.subr.mxu0 0.0
    %4441 = vmatpush1.xpose.msra.mxu0 0.0
    %4442 = vmatprep.subr.mxu0 0.0
    %4443 = vmatpush1.xpose.msra.mxu0 0.0
    %4444 = vmatprep.subr.mxu0 0.0
    %4445 = vmatpush1.xpose.msra.mxu0 0.0
    %4446 = vmatprep.subr.mxu0 0.0
    %4447 = vmatpush1.xpose.msra.mxu0 0.0
    %4448 = vmatprep.subr.mxu0 0.0
    %4449 = vmatpush1.xpose.msra.mxu0 0.0
    %4450 = vmatprep.subr.mxu0 0.0
    %4451 = vmatpush1.xpose.msra.mxu0 0.0
    %4452 = vmatprep.subr.mxu0 0.0
    %4453 = vmatpush1.xpose.msra.mxu0 0.0
    %4454 = vmatprep.subr.mxu0 0.0
    %4455 = vmatpush1.xpose.msra.mxu0 0.0
    %4456 = vmatprep.subr.mxu0 0.0
    %4457 = vmatpush1.xpose.msra.mxu0 0.0
    %4458 = vmatprep.subr.mxu0 0.0
    %4459 = vmatpush1.xpose.msra.mxu0 0.0
    %4460 = vmatprep.subr.mxu0 0.0
    %4461 = vmatpush1.xpose.msra.mxu0 0.0
    %4462 = vmatprep.subr.mxu0 0.0
    %4463 = vmatpush1.xpose.msra.mxu0 0.0
    %4464 = vmatprep.subr.mxu0 0.0
    %4465 = vmatpush1.xpose.msra.mxu0 0.0
    %4466 = vmatprep.subr.mxu0 0.0
    %4467 = vmatpush1.xpose.msra.mxu0 0.0
    %4468 = vmatprep.subr.mxu0 0.0
    %4469 = vmatpush1.xpose.msra.mxu0 0.0
    %4470 = vmatprep.subr.mxu0 0.0
    %4471 = vmatpush1.xpose.msra.mxu0 0.0
    %4472 = vmatprep.subr.mxu0 0.0
    %4473 = vmatpush1.xpose.msra.mxu0 0.0
    %4474 = vmatprep.subr.mxu0 0.0
    %4475 = vmatpush1.xpose.msra.mxu0 0.0
    %4476 = vmatprep.subr.mxu0 0.0
    %4477 = vmatpush1.xpose.msra.mxu0 0.0
    %4478 = vmatprep.subr.mxu0 0.0
    %4479 = vmatpush1.xpose.msra.mxu0 0.0
    %4480 = vmatprep.subr.mxu0 0.0
    %4481 = vmatpush1.xpose.msra.mxu0 0.0
    %4482 = vmatprep.subr.mxu0 0.0
    %4483 = vmatpush1.xpose.msra.mxu0 0.0
    %4484 = vmatprep.subr.mxu0 0.0
    %4485 = vmatpush1.xpose.msra.mxu0 0.0
    %4486 = vmatprep.subr.mxu0 0.0
    %4487 = vmatpush1.xpose.msra.mxu0 0.0
    %4488 = vmatprep.subr.mxu0 0.0
    %4489 = vmatpush1.xpose.msra.mxu0 0.0
    %4490 = vmatprep.subr.mxu0 0.0
    %4491 = vmatpush1.xpose.msra.mxu0 0.0
    %4492 = vmatprep.subr.mxu0 0.0
    %4493 = vmatpush1.xpose.msra.mxu0 0.0
    %4494 = vmatprep.subr.mxu0 0.0
    %4495 = vmatpush1.xpose.msra.mxu0 0.0
    %4496 = vmatprep.subr.mxu0 0.0
    %4497 = vmatpush1.xpose.msra.mxu0 0.0
    %4498 = vmatprep.subr.mxu0 0.0
    %4499 = vmatpush1.xpose.msra.mxu0 0.0
    %4500 = vmatprep.mubr.f32.mxu0 0.0
    %4501 = vmatmul.mubr.f32.gmra.mrb[0].mxu0 %v4432
    %v4502 = vpop.f32.mrb[0].mxu0
    %v4503 = vadd.f32 %v248, %v4502
    %v4504 = vpop.f32.mrb[0].mxu0
    %4505 = vdwg.mxu0
    %v4506 = vsel %vm379, %v3971, -inf
    %4507 = vmax.xlane.f32.xlu0 %v4506
    %v4508 = vpop.xlane.xlu0 %4507
    %v4509 = vsel %vm379, %v4047, -inf
    %4510 = vmax.xlane.f32.xlu0 %v4509
    %v4511 = vpop.xlane.xlu0 %4510
    %v4512 = vsel %vm379, %v4123, -inf
    %4513 = vmax.xlane.f32.xlu0 %v4512
    %v4514 = vpop.xlane.xlu0 %4513
    %v4515 = vsel %vm379, %v4199, -inf
    %4516 = vmax.xlane.f32.xlu0 %v4515
    %v4517 = vpop.xlane.xlu0 %4516
    %v4518 = vsel %vm379, %v4275, -inf
    %4519 = vmax.xlane.f32.xlu0 %v4518
    %v4520 = vpop.xlane.xlu0 %4519
    %v4521 = vsel %vm379, %v4351, -inf
    %4522 = vmax.xlane.f32.xlu0 %v4521
    %v4523 = vpop.xlane.xlu0 %4522
    %v4524 = vsel %vm379, %v4427, -inf
    %4525 = vmax.xlane.f32.xlu0 %v4524
    %v4526 = vpop.xlane.xlu0 %4525
    %v4527 = vsel %vm379, %v4503, -inf
    %4528 = vmax.xlane.f32.xlu0 %v4527
    %v4529 = vpop.xlane.xlu0 %4528
    %v4530 = vsub.f32 %v3971, %v4508
    %v4531 = vsub.f32 %v4047, %v4511
    %v4532 = vsub.f32 %v4123, %v4514
    %v4533 = vsub.f32 %v4199, %v4517
    %v4534 = vsub.f32 %v4275, %v4520
    %v4535 = vsub.f32 %v4351, %v4523
    %v4536 = vsub.f32 %v4427, %v4526
    %v4537 = vsub.f32 %v4503, %v4529
    %v4538 = vmul.f32 %v4530, 1.442695
    %v4539 = vpow.pop %v4538
    %v4540 = vmul.f32 %v4531, 1.442695
    %v4541 = vpow.pop %v4540
    %v4542 = vmul.f32 %v4532, 1.442695
    %v4543 = vpow.pop %v4542
    %v4544 = vmul.f32 %v4533, 1.442695
    %v4545 = vpow.pop %v4544
    %v4546 = vmul.f32 %v4534, 1.442695
    %v4547 = vpow.pop %v4546
    %v4548 = vmul.f32 %v4535, 1.442695
    %v4549 = vpow.pop %v4548
    %v4550 = vmul.f32 %v4536, 1.442695
    %v4551 = vpow.pop %v4550
    %v4552 = vmul.f32 %v4537, 1.442695
    %v4553 = vpow.pop %v4552
    %v4554 = vsel %vm379, %v4539, 0.0
    %4555 = vadd.xlane.f32.xlu0 %v4554
    %v4556 = vpop.xlane.xlu0 %4555
    %v4557 = vsel %vm379, %v4541, 0.0
    %4558 = vadd.xlane.f32.xlu0 %v4557
    %v4559 = vpop.xlane.xlu0 %4558
    %v4560 = vsel %vm379, %v4543, 0.0
    %4561 = vadd.xlane.f32.xlu0 %v4560
    %v4562 = vpop.xlane.xlu0 %4561
    %v4563 = vsel %vm379, %v4545, 0.0
    %4564 = vadd.xlane.f32.xlu0 %v4563
    %v4565 = vpop.xlane.xlu0 %4564
    %v4566 = vsel %vm379, %v4547, 0.0
    %4567 = vadd.xlane.f32.xlu0 %v4566
    %v4568 = vpop.xlane.xlu0 %4567
    %v4569 = vsel %vm379, %v4549, 0.0
    %4570 = vadd.xlane.f32.xlu0 %v4569
    %v4571 = vpop.xlane.xlu0 %4570
    %v4572 = vsel %vm379, %v4551, 0.0
    %4573 = vadd.xlane.f32.xlu0 %v4572
    %v4574 = vpop.xlane.xlu0 %4573
    %v4575 = vsel %vm379, %v4553, 0.0
    %4576 = vadd.xlane.f32.xlu0 %v4575
    %v4577 = vpop.xlane.xlu0 %4576
    %v4578 = vrcp.pop %v4556
    %v4579 = vrcp.pop %v4559
    %v4580 = vrcp.pop %v4562
    %v4581 = vrcp.pop %v4565
    %v4582 = vrcp.pop %v4568
    %v4583 = vrcp.pop %v4571
    %v4584 = vrcp.pop %v4574
    %v4585 = vrcp.pop %v4577
    %v4586 = vmul.f32 %v4539, %v4578
    %v4587 = vmul.f32 %v4541, %v4579
    %v4588 = vmul.f32 %v4543, %v4580
    %v4589 = vmul.f32 %v4545, %v4581
    %v4590 = vmul.f32 %v4547, %v4582
    %v4591 = vmul.f32 %v4549, %v4583
    %v4592 = vmul.f32 %v4551, %v4584
    %v4593 = vmul.f32 %v4553, %v4585
    %4594 = vrot.lane.b32.xlu0 %v3876, 64
    %v4595 = vpop.permute.xlu0 %4594
    %v4598 = vsel %vm379, %v4586, 0
    %4600 = vmatprep.subr.mxu0 0.0
    %4601 = vmatpush1.msra.mxu0 %v4595
    %4602 = vmatprep.subr.mxu0 0.0
    %4603 = vmatpush1.msra.mxu0 0.0
    %4604 = vmatprep.subr.mxu0 0.0
    %4605 = vmatpush1.msra.mxu0 0.0
    %4606 = vmatprep.subr.mxu0 0.0
    %4607 = vmatpush1.msra.mxu0 0.0
    %4608 = vmatprep.subr.mxu0 0.0
    %4609 = vmatpush1.msra.mxu0 0.0
    %4610 = vmatprep.subr.mxu0 0.0
    %4611 = vmatpush1.msra.mxu0 0.0
    %4612 = vmatprep.subr.mxu0 0.0
    %4613 = vmatpush1.msra.mxu0 0.0
    %4614 = vmatprep.subr.mxu0 0.0
    %4615 = vmatpush1.msra.mxu0 0.0
    %4616 = vmatprep.subr.mxu0 0.0
    %4617 = vmatpush1.msra.mxu0 0.0
    %4618 = vmatprep.subr.mxu0 0.0
    %4619 = vmatpush1.msra.mxu0 0.0
    %4620 = vmatprep.subr.mxu0 0.0
    %4621 = vmatpush1.msra.mxu0 0.0
    %4622 = vmatprep.subr.mxu0 0.0
    %4623 = vmatpush1.msra.mxu0 0.0
    %4624 = vmatprep.subr.mxu0 0.0
    %4625 = vmatpush1.msra.mxu0 0.0
    %4626 = vmatprep.subr.mxu0 0.0
    %4627 = vmatpush1.msra.mxu0 0.0
    %4628 = vmatprep.subr.mxu0 0.0
    %4629 = vmatpush1.msra.mxu0 0.0
    %4630 = vmatprep.subr.mxu0 0.0
    %4631 = vmatpush1.msra.mxu0 0.0
    %4632 = vmatprep.subr.mxu0 0.0
    %4633 = vmatpush1.msra.mxu0 0.0
    %4634 = vmatprep.subr.mxu0 0.0
    %4635 = vmatpush1.msra.mxu0 0.0
    %4636 = vmatprep.subr.mxu0 0.0
    %4637 = vmatpush1.msra.mxu0 0.0
    %4638 = vmatprep.subr.mxu0 0.0
    %4639 = vmatpush1.msra.mxu0 0.0
    %4640 = vmatprep.subr.mxu0 0.0
    %4641 = vmatpush1.msra.mxu0 0.0
    %4642 = vmatprep.subr.mxu0 0.0
    %4643 = vmatpush1.msra.mxu0 0.0
    %4644 = vmatprep.subr.mxu0 0.0
    %4645 = vmatpush1.msra.mxu0 0.0
    %4646 = vmatprep.subr.mxu0 0.0
    %4647 = vmatpush1.msra.mxu0 0.0
    %4648 = vmatprep.subr.mxu0 0.0
    %4649 = vmatpush1.msra.mxu0 0.0
    %4650 = vmatprep.subr.mxu0 0.0
    %4651 = vmatpush1.msra.mxu0 0.0
    %4652 = vmatprep.subr.mxu0 0.0
    %4653 = vmatpush1.msra.mxu0 0.0
    %4654 = vmatprep.subr.mxu0 0.0
    %4655 = vmatpush1.msra.mxu0 0.0
    %4656 = vmatprep.subr.mxu0 0.0
    %4657 = vmatpush1.msra.mxu0 0.0
    %4658 = vmatprep.subr.mxu0 0.0
    %4659 = vmatpush1.msra.mxu0 0.0
    %4660 = vmatprep.subr.mxu0 0.0
    %4661 = vmatpush1.msra.mxu0 0.0
    %4662 = vmatprep.subr.mxu0 0.0
    %4663 = vmatpush1.msra.mxu0 0.0
    %4664 = vmatprep.mubr.f32.mxu0 0.0
    %4665 = vmatmul.mubr.f32.gmra.mrb[0].mxu0 %v4598
    %v4666 = vpop.f32.mrb[0].mxu0
    %v4667 = vadd.f32 0.0, %v4666
    %v4668 = vpop.f32.mrb[0].mxu0
    %4669 = vdwg.mxu0
    %4670 = vrot.lane.b32.xlu0 %v3881, 64
    %v4671 = vpop.permute.xlu0 %4670
    %v4674 = vsel %vm379, %v4587, 0
    %4676 = vmatprep.subr.mxu0 0.0
    %4677 = vmatpush1.msra.mxu0 %v4671
    %4678 = vmatprep.subr.mxu0 0.0
    %4679 = vmatpush1.msra.mxu0 0.0
    %4680 = vmatprep.subr.mxu0 0.0
    %4681 = vmatpush1.msra.mxu0 0.0
    %4682 = vmatprep.subr.mxu0 0.0
    %4683 = vmatpush1.msra.mxu0 0.0
    %4684 = vmatprep.subr.mxu0 0.0
    %4685 = vmatpush1.msra.mxu0 0.0
    %4686 = vmatprep.subr.mxu0 0.0
    %4687 = vmatpush1.msra.mxu0 0.0
    %4688 = vmatprep.subr.mxu0 0.0
    %4689 = vmatpush1.msra.mxu0 0.0
    %4690 = vmatprep.subr.mxu0 0.0
    %4691 = vmatpush1.msra.mxu0 0.0
    %4692 = vmatprep.subr.mxu0 0.0
    %4693 = vmatpush1.msra.mxu0 0.0
    %4694 = vmatprep.subr.mxu0 0.0
    %4695 = vmatpush1.msra.mxu0 0.0
    %4696 = vmatprep.subr.mxu0 0.0
    %4697 = vmatpush1.msra.mxu0 0.0
    %4698 = vmatprep.subr.mxu0 0.0
    %4699 = vmatpush1.msra.mxu0 0.0
    %4700 = vmatprep.subr.mxu0 0.0
    %4701 = vmatpush1.msra.mxu0 0.0
    %4702 = vmatprep.subr.mxu0 0.0
    %4703 = vmatpush1.msra.mxu0 0.0
    %4704 = vmatprep.subr.mxu0 0.0
    %4705 = vmatpush1.msra.mxu0 0.0
    %4706 = vmatprep.subr.mxu0 0.0
    %4707 = vmatpush1.msra.mxu0 0.0
    %4708 = vmatprep.subr.mxu0 0.0
    %4709 = vmatpush1.msra.mxu0 0.0
    %4710 = vmatprep.subr.mxu0 0.0
    %4711 = vmatpush1.msra.mxu0 0.0
    %4712 = vmatprep.subr.mxu0 0.0
    %4713 = vmatpush1.msra.mxu0 0.0
    %4714 = vmatprep.subr.mxu0 0.0
    %4715 = vmatpush1.msra.mxu0 0.0
    %4716 = vmatprep.subr.mxu0 0.0
    %4717 = vmatpush1.msra.mxu0 0.0
    %4718 = vmatprep.subr.mxu0 0.0
    %4719 = vmatpush1.msra.mxu0 0.0
    %4720 = vmatprep.subr.mxu0 0.0
    %4721 = vmatpush1.msra.mxu0 0.0
    %4722 = vmatprep.subr.mxu0 0.0
    %4723 = vmatpush1.msra.mxu0 0.0
    %4724 = vmatprep.subr.mxu0 0.0
    %4725 = vmatpush1.msra.mxu0 0.0
    %4726 = vmatprep.subr.mxu0 0.0
    %4727 = vmatpush1.msra.mxu0 0.0
    %4728 = vmatprep.subr.mxu0 0.0
    %4729 = vmatpush1.msra.mxu0 0.0
    %4730 = vmatprep.subr.mxu0 0.0
    %4731 = vmatpush1.msra.mxu0 0.0
    %4732 = vmatprep.subr.mxu0 0.0
    %4733 = vmatpush1.msra.mxu0 0.0
    %4734 = vmatprep.subr.mxu0 0.0
    %4735 = vmatpush1.msra.mxu0 0.0
    %4736 = vmatprep.subr.mxu0 0.0
    %4737 = vmatpush1.msra.mxu0 0.0
    %4738 = vmatprep.subr.mxu0 0.0
    %4739 = vmatpush1.msra.mxu0 0.0
    %4740 = vmatprep.mubr.f32.mxu0 0.0
    %4741 = vmatmul.mubr.f32.gmra.mrb[0].mxu0 %v4674
    %v4742 = vpop.f32.mrb[0].mxu0
    %v4743 = vadd.f32 0.0, %v4742
    %v4744 = vpop.f32.mrb[0].mxu0
    %4745 = vdwg.mxu0
    %4746 = vrot.lane.b32.xlu0 %v3887, 64
    %v4747 = vpop.permute.xlu0 %4746
    %v4750 = vsel %vm379, %v4588, 0
    %4752 = vmatprep.subr.mxu0 0.0
    %4753 = vmatpush1.msra.mxu0 %v4747
    %4754 = vmatprep.subr.mxu0 0.0
    %4755 = vmatpush1.msra.mxu0 0.0
    %4756 = vmatprep.subr.mxu0 0.0
    %4757 = vmatpush1.msra.mxu0 0.0
    %4758 = vmatprep.subr.mxu0 0.0
    %4759 = vmatpush1.msra.mxu0 0.0
    %4760 = vmatprep.subr.mxu0 0.0
    %4761 = vmatpush1.msra.mxu0 0.0
    %4762 = vmatprep.subr.mxu0 0.0
    %4763 = vmatpush1.msra.mxu0 0.0
    %4764 = vmatprep.subr.mxu0 0.0
    %4765 = vmatpush1.msra.mxu0 0.0
    %4766 = vmatprep.subr.mxu0 0.0
    %4767 = vmatpush1.msra.mxu0 0.0
    %4768 = vmatprep.subr.mxu0 0.0
    %4769 = vmatpush1.msra.mxu0 0.0
    %4770 = vmatprep.subr.mxu0 0.0
    %4771 = vmatpush1.msra.mxu0 0.0
    %4772 = vmatprep.subr.mxu0 0.0
    %4773 = vmatpush1.msra.mxu0 0.0
    %4774 = vmatprep.subr.mxu0 0.0
    %4775 = vmatpush1.msra.mxu0 0.0
    %4776 = vmatprep.subr.mxu0 0.0
    %4777 = vmatpush1.msra.mxu0 0.0
    %4778 = vmatprep.subr.mxu0 0.0
    %4779 = vmatpush1.msra.mxu0 0.0
    %4780 = vmatprep.subr.mxu0 0.0
    %4781 = vmatpush1.msra.mxu0 0.0
    %4782 = vmatprep.subr.mxu0 0.0
    %4783 = vmatpush1.msra.mxu0 0.0
    %4784 = vmatprep.subr.mxu0 0.0
    %4785 = vmatpush1.msra.mxu0 0.0
    %4786 = vmatprep.subr.mxu0 0.0
    %4787 = vmatpush1.msra.mxu0 0.0
    %4788 = vmatprep.subr.mxu0 0.0
    %4789 = vmatpush1.msra.mxu0 0.0
    %4790 = vmatprep.subr.mxu0 0.0
    %4791 = vmatpush1.msra.mxu0 0.0
    %4792 = vmatprep.subr.mxu0 0.0
    %4793 = vmatpush1.msra.mxu0 0.0
    %4794 = vmatprep.subr.mxu0 0.0
    %4795 = vmatpush1.msra.mxu0 0.0
    %4796 = vmatprep.subr.mxu0 0.0
    %4797 = vmatpush1.msra.mxu0 0.0
    %4798 = vmatprep.subr.mxu0 0.0
    %4799 = vmatpush1.msra.mxu0 0.0
    %4800 = vmatprep.subr.mxu0 0.0
    %4801 = vmatpush1.msra.mxu0 0.0
    %4802 = vmatprep.subr.mxu0 0.0
    %4803 = vmatpush1.msra.mxu0 0.0
    %4804 = vmatprep.subr.mxu0 0.0
    %4805 = vmatpush1.msra.mxu0 0.0
    %4806 = vmatprep.subr.mxu0 0.0
    %4807 = vmatpush1.msra.mxu0 0.0
    %4808 = vmatprep.subr.mxu0 0.0
    %4809 = vmatpush1.msra.mxu0 0.0
    %4810 = vmatprep.subr.mxu0 0.0
    %4811 = vmatpush1.msra.mxu0 0.0
    %4812 = vmatprep.subr.mxu0 0.0
    %4813 = vmatpush1.msra.mxu0 0.0
    %4814 = vmatprep.subr.mxu0 0.0
    %4815 = vmatpush1.msra.mxu0 0.0
    %4816 = vmatprep.mubr.f32.mxu0 0.0
    %4817 = vmatmul.mubr.f32.gmra.mrb[0].mxu0 %v4750
    %v4818 = vpop.f32.mrb[0].mxu0
    %v4819 = vadd.f32 0.0, %v4818
    %v4820 = vpop.f32.mrb[0].mxu0
    %4821 = vdwg.mxu0
    %4822 = vrot.lane.b32.xlu0 %v3889, 64
    %v4823 = vpop.permute.xlu0 %4822
    %v4826 = vsel %vm379, %v4589, 0
    %4828 = vmatprep.subr.mxu0 0.0
    %4829 = vmatpush1.msra.mxu0 %v4823
    %4830 = vmatprep.subr.mxu0 0.0
    %4831 = vmatpush1.msra.mxu0 0.0
    %4832 = vmatprep.subr.mxu0 0.0
    %4833 = vmatpush1.msra.mxu0 0.0
    %4834 = vmatprep.subr.mxu0 0.0
    %4835 = vmatpush1.msra.mxu0 0.0
    %4836 = vmatprep.subr.mxu0 0.0
    %4837 = vmatpush1.msra.mxu0 0.0
    %4838 = vmatprep.subr.mxu0 0.0
    %4839 = vmatpush1.msra.mxu0 0.0
    %4840 = vmatprep.subr.mxu0 0.0
    %4841 = vmatpush1.msra.mxu0 0.0
    %4842 = vmatprep.subr.mxu0 0.0
    %4843 = vmatpush1.msra.mxu0 0.0
    %4844 = vmatprep.subr.mxu0 0.0
    %4845 = vmatpush1.msra.mxu0 0.0
    %4846 = vmatprep.subr.mxu0 0.0
    %4847 = vmatpush1.msra.mxu0 0.0
    %4848 = vmatprep.subr.mxu0 0.0
    %4849 = vmatpush1.msra.mxu0 0.0
    %4850 = vmatprep.subr.mxu0 0.0
    %4851 = vmatpush1.msra.mxu0 0.0
    %4852 = vmatprep.subr.mxu0 0.0
    %4853 = vmatpush1.msra.mxu0 0.0
    %4854 = vmatprep.subr.mxu0 0.0
    %4855 = vmatpush1.msra.mxu0 0.0
    %4856 = vmatprep.subr.mxu0 0.0
    %4857 = vmatpush1.msra.mxu0 0.0
    %4858 = vmatprep.subr.mxu0 0.0
    %4859 = vmatpush1.msra.mxu0 0.0
    %4860 = vmatprep.subr.mxu0 0.0
    %4861 = vmatpush1.msra.mxu0 0.0
    %4862 = vmatprep.subr.mxu0 0.0
    %4863 = vmatpush1.msra.mxu0 0.0
    %4864 = vmatprep.subr.mxu0 0.0
    %4865 = vmatpush1.msra.mxu0 0.0
    %4866 = vmatprep.subr.mxu0 0.0
    %4867 = vmatpush1.msra.mxu0 0.0
    %4868 = vmatprep.subr.mxu0 0.0
    %4869 = vmatpush1.msra.mxu0 0.0
    %4870 = vmatprep.subr.mxu0 0.0
    %4871 = vmatpush1.msra.mxu0 0.0
    %4872 = vmatprep.subr.mxu0 0.0
    %4873 = vmatpush1.msra.mxu0 0.0
    %4874 = vmatprep.subr.mxu0 0.0
    %4875 = vmatpush1.msra.mxu0 0.0
    %4876 = vmatprep.subr.mxu0 0.0
    %4877 = vmatpush1.msra.mxu0 0.0
    %4878 = vmatprep.subr.mxu0 0.0
    %4879 = vmatpush1.msra.mxu0 0.0
    %4880 = vmatprep.subr.mxu0 0.0
    %4881 = vmatpush1.msra.mxu0 0.0
    %4882 = vmatprep.subr.mxu0 0.0
    %4883 = vmatpush1.msra.mxu0 0.0
    %4884 = vmatprep.subr.mxu0 0.0
    %4885 = vmatpush1.msra.mxu0 0.0
    %4886 = vmatprep.subr.mxu0 0.0
    %4887 = vmatpush1.msra.mxu0 0.0
    %4888 = vmatprep.subr.mxu0 0.0
    %4889 = vmatpush1.msra.mxu0 0.0
    %4890 = vmatprep.subr.mxu0 0.0
    %4891 = vmatpush1.msra.mxu0 0.0
    %4892 = vmatprep.mubr.f32.mxu0 0.0
    %4893 = vmatmul.mubr.f32.gmra.mrb[0].mxu0 %v4826
    %v4894 = vpop.f32.mrb[0].mxu0
    %v4895 = vadd.f32 0.0, %v4894
    %v4896 = vpop.f32.mrb[0].mxu0
    %4897 = vdwg.mxu0
    %4898 = vrot.lane.b32.xlu0 %v3891, 64
    %v4899 = vpop.permute.xlu0 %4898
    %v4902 = vsel %vm379, %v4590, 0
    %4904 = vmatprep.subr.mxu0 0.0
    %4905 = vmatpush1.msra.mxu0 %v4899
    %4906 = vmatprep.subr.mxu0 0.0
    %4907 = vmatpush1.msra.mxu0 0.0
    %4908 = vmatprep.subr.mxu0 0.0
    %4909 = vmatpush1.msra.mxu0 0.0
    %4910 = vmatprep.subr.mxu0 0.0
    %4911 = vmatpush1.msra.mxu0 0.0
    %4912 = vmatprep.subr.mxu0 0.0
    %4913 = vmatpush1.msra.mxu0 0.0
    %4914 = vmatprep.subr.mxu0 0.0
    %4915 = vmatpush1.msra.mxu0 0.0
    %4916 = vmatprep.subr.mxu0 0.0
    %4917 = vmatpush1.msra.mxu0 0.0
    %4918 = vmatprep.subr.mxu0 0.0
    %4919 = vmatpush1.msra.mxu0 0.0
    %4920 = vmatprep.subr.mxu0 0.0
    %4921 = vmatpush1.msra.mxu0 0.0
    %4922 = vmatprep.subr.mxu0 0.0
    %4923 = vmatpush1.msra.mxu0 0.0
    %4924 = vmatprep.subr.mxu0 0.0
    %4925 = vmatpush1.msra.mxu0 0.0
    %4926 = vmatprep.subr.mxu0 0.0
    %4927 = vmatpush1.msra.mxu0 0.0
    %4928 = vmatprep.subr.mxu0 0.0
    %4929 = vmatpush1.msra.mxu0 0.0
    %4930 = vmatprep.subr.mxu0 0.0
    %4931 = vmatpush1.msra.mxu0 0.0
    %4932 = vmatprep.subr.mxu0 0.0
    %4933 = vmatpush1.msra.mxu0 0.0
    %4934 = vmatprep.subr.mxu0 0.0
    %4935 = vmatpush1.msra.mxu0 0.0
    %4936 = vmatprep.subr.mxu0 0.0
    %4937 = vmatpush1.msra.mxu0 0.0
    %4938 = vmatprep.subr.mxu0 0.0
    %4939 = vmatpush1.msra.mxu0 0.0
    %4940 = vmatprep.subr.mxu0 0.0
    %4941 = vmatpush1.msra.mxu0 0.0
    %4942 = vmatprep.subr.mxu0 0.0
    %4943 = vmatpush1.msra.mxu0 0.0
    %4944 = vmatprep.subr.mxu0 0.0
    %4945 = vmatpush1.msra.mxu0 0.0
    %4946 = vmatprep.subr.mxu0 0.0
    %4947 = vmatpush1.msra.mxu0 0.0
    %4948 = vmatprep.subr.mxu0 0.0
    %4949 = vmatpush1.msra.mxu0 0.0
    %4950 = vmatprep.subr.mxu0 0.0
    %4951 = vmatpush1.msra.mxu0 0.0
    %4952 = vmatprep.subr.mxu0 0.0
    %4953 = vmatpush1.msra.mxu0 0.0
    %4954 = vmatprep.subr.mxu0 0.0
    %4955 = vmatpush1.msra.mxu0 0.0
    %4956 = vmatprep.subr.mxu0 0.0
    %4957 = vmatpush1.msra.mxu0 0.0
    %4958 = vmatprep.subr.mxu0 0.0
    %4959 = vmatpush1.msra.mxu0 0.0
    %4960 = vmatprep.subr.mxu0 0.0
    %4961 = vmatpush1.msra.mxu0 0.0
    %4962 = vmatprep.subr.mxu0 0.0
    %4963 = vmatpush1.msra.mxu0 0.0
    %4964 = vmatprep.subr.mxu0 0.0
    %4965 = vmatpush1.msra.mxu0 0.0
    %4966 = vmatprep.subr.mxu0 0.0
    %4967 = vmatpush1.msra.mxu0 0.0
    %4968 = vmatprep.mubr.f32.mxu0 0.0
    %4969 = vmatmul.mubr.f32.gmra.mrb[0].mxu0 %v4902
    %v4970 = vpop.f32.mrb[0].mxu0
    %v4971 = vadd.f32 0.0, %v4970
    %v4972 = vpop.f32.mrb[0].mxu0
    %4973 = vdwg.mxu0
    %4974 = vrot.lane.b32.xlu0 %v3893, 64
    %v4975 = vpop.permute.xlu0 %4974
    %v4978 = vsel %vm379, %v4591, 0
    %4980 = vmatprep.subr.mxu0 0.0
    %4981 = vmatpush1.msra.mxu0 %v4975
    %4982 = vmatprep.subr.mxu0 0.0
    %4983 = vmatpush1.msra.mxu0 0.0
    %4984 = vmatprep.subr.mxu0 0.0
    %4985 = vmatpush1.msra.mxu0 0.0
    %4986 = vmatprep.subr.mxu0 0.0
    %4987 = vmatpush1.msra.mxu0 0.0
    %4988 = vmatprep.subr.mxu0 0.0
    %4989 = vmatpush1.msra.mxu0 0.0
    %4990 = vmatprep.subr.mxu0 0.0
    %4991 = vmatpush1.msra.mxu0 0.0
    %4992 = vmatprep.subr.mxu0 0.0
    %4993 = vmatpush1.msra.mxu0 0.0
    %4994 = vmatprep.subr.mxu0 0.0
    %4995 = vmatpush1.msra.mxu0 0.0
    %4996 = vmatprep.subr.mxu0 0.0
    %4997 = vmatpush1.msra.mxu0 0.0
    %4998 = vmatprep.subr.mxu0 0.0
    %4999 = vmatpush1.msra.mxu0 0.0
    %5000 = vmatprep.subr.mxu0 0.0
    %5001 = vmatpush1.msra.mxu0 0.0
    %5002 = vmatprep.subr.mxu0 0.0
    %5003 = vmatpush1.msra.mxu0 0.0
    %5004 = vmatprep.subr.mxu0 0.0
    %5005 = vmatpush1.msra.mxu0 0.0
    %5006 = vmatprep.subr.mxu0 0.0
    %5007 = vmatpush1.msra.mxu0 0.0
    %5008 = vmatprep.subr.mxu0 0.0
    %5009 = vmatpush1.msra.mxu0 0.0
    %5010 = vmatprep.subr.mxu0 0.0
    %5011 = vmatpush1.msra.mxu0 0.0
    %5012 = vmatprep.subr.mxu0 0.0
    %5013 = vmatpush1.msra.mxu0 0.0
    %5014 = vmatprep.subr.mxu0 0.0
    %5015 = vmatpush1.msra.mxu0 0.0
    %5016 = vmatprep.subr.mxu0 0.0
    %5017 = vmatpush1.msra.mxu0 0.0
    %5018 = vmatprep.subr.mxu0 0.0
    %5019 = vmatpush1.msra.mxu0 0.0
    %5020 = vmatprep.subr.mxu0 0.0
    %5021 = vmatpush1.msra.mxu0 0.0
    %5022 = vmatprep.subr.mxu0 0.0
    %5023 = vmatpush1.msra.mxu0 0.0
    %5024 = vmatprep.subr.mxu0 0.0
    %5025 = vmatpush1.msra.mxu0 0.0
    %5026 = vmatprep.subr.mxu0 0.0
    %5027 = vmatpush1.msra.mxu0 0.0
    %5028 = vmatprep.subr.mxu0 0.0
    %5029 = vmatpush1.msra.mxu0 0.0
    %5030 = vmatprep.subr.mxu0 0.0
    %5031 = vmatpush1.msra.mxu0 0.0
    %5032 = vmatprep.subr.mxu0 0.0
    %5033 = vmatpush1.msra.mxu0 0.0
    %5034 = vmatprep.subr.mxu0 0.0
    %5035 = vmatpush1.msra.mxu0 0.0
    %5036 = vmatprep.subr.mxu0 0.0
    %5037 = vmatpush1.msra.mxu0 0.0
    %5038 = vmatprep.subr.mxu0 0.0
    %5039 = vmatpush1.msra.mxu0 0.0
    %5040 = vmatprep.subr.mxu0 0.0
    %5041 = vmatpush1.msra.mxu0 0.0
    %5042 = vmatprep.subr.mxu0 0.0
    %5043 = vmatpush1.msra.mxu0 0.0
    %5044 = vmatprep.mubr.f32.mxu0 0.0
    %5045 = vmatmul.mubr.f32.gmra.mrb[0].mxu0 %v4978
    %v5046 = vpop.f32.mrb[0].mxu0
    %v5047 = vadd.f32 0.0, %v5046
    %v5048 = vpop.f32.mrb[0].mxu0
    %5049 = vdwg.mxu0
    %5050 = vrot.lane.b32.xlu0 %v3895, 64
    %v5051 = vpop.permute.xlu0 %5050
    %v5054 = vsel %vm379, %v4592, 0
    %5056 = vmatprep.subr.mxu0 0.0
    %5057 = vmatpush1.msra.mxu0 %v5051
    %5058 = vmatprep.subr.mxu0 0.0
    %5059 = vmatpush1.msra.mxu0 0.0
    %5060 = vmatprep.subr.mxu0 0.0
    %5061 = vmatpush1.msra.mxu0 0.0
    %5062 = vmatprep.subr.mxu0 0.0
    %5063 = vmatpush1.msra.mxu0 0.0
    %5064 = vmatprep.subr.mxu0 0.0
    %5065 = vmatpush1.msra.mxu0 0.0
    %5066 = vmatprep.subr.mxu0 0.0
    %5067 = vmatpush1.msra.mxu0 0.0
    %5068 = vmatprep.subr.mxu0 0.0
    %5069 = vmatpush1.msra.mxu0 0.0
    %5070 = vmatprep.subr.mxu0 0.0
    %5071 = vmatpush1.msra.mxu0 0.0
    %5072 = vmatprep.subr.mxu0 0.0
    %5073 = vmatpush1.msra.mxu0 0.0
    %5074 = vmatprep.subr.mxu0 0.0
    %5075 = vmatpush1.msra.mxu0 0.0
    %5076 = vmatprep.subr.mxu0 0.0
    %5077 = vmatpush1.msra.mxu0 0.0
    %5078 = vmatprep.subr.mxu0 0.0
    %5079 = vmatpush1.msra.mxu0 0.0
    %5080 = vmatprep.subr.mxu0 0.0
    %5081 = vmatpush1.msra.mxu0 0.0
    %5082 = vmatprep.subr.mxu0 0.0
    %5083 = vmatpush1.msra.mxu0 0.0
    %5084 = vmatprep.subr.mxu0 0.0
    %5085 = vmatpush1.msra.mxu0 0.0
    %5086 = vmatprep.subr.mxu0 0.0
    %5087 = vmatpush1.msra.mxu0 0.0
    %5088 = vmatprep.subr.mxu0 0.0
    %5089 = vmatpush1.msra.mxu0 0.0
    %5090 = vmatprep.subr.mxu0 0.0
    %5091 = vmatpush1.msra.mxu0 0.0
    %5092 = vmatprep.subr.mxu0 0.0
    %5093 = vmatpush1.msra.mxu0 0.0
    %5094 = vmatprep.subr.mxu0 0.0
    %5095 = vmatpush1.msra.mxu0 0.0
    %5096 = vmatprep.subr.mxu0 0.0
    %5097 = vmatpush1.msra.mxu0 0.0
    %5098 = vmatprep.subr.mxu0 0.0
    %5099 = vmatpush1.msra.mxu0 0.0
    %5100 = vmatprep.subr.mxu0 0.0
    %5101 = vmatpush1.msra.mxu0 0.0
    %5102 = vmatprep.subr.mxu0 0.0
    %5103 = vmatpush1.msra.mxu0 0.0
    %5104 = vmatprep.subr.mxu0 0.0
    %5105 = vmatpush1.msra.mxu0 0.0
    %5106 = vmatprep.subr.mxu0 0.0
    %5107 = vmatpush1.msra.mxu0 0.0
    %5108 = vmatprep.subr.mxu0 0.0
    %5109 = vmatpush1.msra.mxu0 0.0
    %5110 = vmatprep.subr.mxu0 0.0
    %5111 = vmatpush1.msra.mxu0 0.0
    %5112 = vmatprep.subr.mxu0 0.0
    %5113 = vmatpush1.msra.mxu0 0.0
    %5114 = vmatprep.subr.mxu0 0.0
    %5115 = vmatpush1.msra.mxu0 0.0
    %5116 = vmatprep.subr.mxu0 0.0
    %5117 = vmatpush1.msra.mxu0 0.0
    %5118 = vmatprep.subr.mxu0 0.0
    %5119 = vmatpush1.msra.mxu0 0.0
    %5120 = vmatprep.mubr.f32.mxu0 0.0
    %5121 = vmatmul.mubr.f32.gmra.mrb[0].mxu0 %v5054
    %v5122 = vpop.f32.mrb[0].mxu0
    %v5123 = vadd.f32 0.0, %v5122
    %v5124 = vpop.f32.mrb[0].mxu0
    %5125 = vdwg.mxu0
    %5126 = vrot.lane.b32.xlu0 %v3897, 64
    %v5127 = vpop.permute.xlu0 %5126
    %v5130 = vsel %vm379, %v4593, 0
    %5132 = vmatprep.subr.mxu0 0.0
    %5133 = vmatpush1.msra.mxu0 %v5127
    %5134 = vmatprep.subr.mxu0 0.0
    %5135 = vmatpush1.msra.mxu0 0.0
    %5136 = vmatprep.subr.mxu0 0.0
    %5137 = vmatpush1.msra.mxu0 0.0
    %5138 = vmatprep.subr.mxu0 0.0
    %5139 = vmatpush1.msra.mxu0 0.0
    %5140 = vmatprep.subr.mxu0 0.0
    %5141 = vmatpush1.msra.mxu0 0.0
    %5142 = vmatprep.subr.mxu0 0.0
    %5143 = vmatpush1.msra.mxu0 0.0
    %5144 = vmatprep.subr.mxu0 0.0
    %5145 = vmatpush1.msra.mxu0 0.0
    %5146 = vmatprep.subr.mxu0 0.0
    %5147 = vmatpush1.msra.mxu0 0.0
    %5148 = vmatprep.subr.mxu0 0.0
    %5149 = vmatpush1.msra.mxu0 0.0
    %5150 = vmatprep.subr.mxu0 0.0
    %5151 = vmatpush1.msra.mxu0 0.0
    %5152 = vmatprep.subr.mxu0 0.0
    %5153 = vmatpush1.msra.mxu0 0.0
    %5154 = vmatprep.subr.mxu0 0.0
    %5155 = vmatpush1.msra.mxu0 0.0
    %5156 = vmatprep.subr.mxu0 0.0
    %5157 = vmatpush1.msra.mxu0 0.0
    %5158 = vmatprep.subr.mxu0 0.0
    %5159 = vmatpush1.msra.mxu0 0.0
    %5160 = vmatprep.subr.mxu0 0.0
    %5161 = vmatpush1.msra.mxu0 0.0
    %5162 = vmatprep.subr.mxu0 0.0
    %5163 = vmatpush1.msra.mxu0 0.0
    %5164 = vmatprep.subr.mxu0 0.0
    %5165 = vmatpush1.msra.mxu0 0.0
    %5166 = vmatprep.subr.mxu0 0.0
    %5167 = vmatpush1.msra.mxu0 0.0
    %5168 = vmatprep.subr.mxu0 0.0
    %5169 = vmatpush1.msra.mxu0 0.0
    %5170 = vmatprep.subr.mxu0 0.0
    %5171 = vmatpush1.msra.mxu0 0.0
    %5172 = vmatprep.subr.mxu0 0.0
    %5173 = vmatpush1.msra.mxu0 0.0
    %5174 = vmatprep.subr.mxu0 0.0
    %5175 = vmatpush1.msra.mxu0 0.0
    %5176 = vmatprep.subr.mxu0 0.0
    %5177 = vmatpush1.msra.mxu0 0.0
    %5178 = vmatprep.subr.mxu0 0.0
    %5179 = vmatpush1.msra.mxu0 0.0
    %5180 = vmatprep.subr.mxu0 0.0
    %5181 = vmatpush1.msra.mxu0 0.0
    %5182 = vmatprep.subr.mxu0 0.0
    %5183 = vmatpush1.msra.mxu0 0.0
    %5184 = vmatprep.subr.mxu0 0.0
    %5185 = vmatpush1.msra.mxu0 0.0
    %5186 = vmatprep.subr.mxu0 0.0
    %5187 = vmatpush1.msra.mxu0 0.0
    %5188 = vmatprep.subr.mxu0 0.0
    %5189 = vmatpush1.msra.mxu0 0.0
    %5190 = vmatprep.subr.mxu0 0.0
    %5191 = vmatpush1.msra.mxu0 0.0
    %5192 = vmatprep.subr.mxu0 0.0
    %5193 = vmatpush1.msra.mxu0 0.0
    %5194 = vmatprep.subr.mxu0 0.0
    %5195 = vmatpush1.msra.mxu0 0.0
    %5196 = vmatprep.mubr.f32.mxu0 0.0
    %5197 = vmatmul.mubr.f32.gmra.mrb[0].mxu0 %v5130
    %v5198 = vpop.f32.mrb[0].mxu0
    %v5199 = vadd.f32 0.0, %v5198
    %v5200 = vpop.f32.mrb[0].mxu0
    %5201 = vdwg.mxu0
    %5204 = vrot.lane.b32.xlu0 %v4819, 8
    %v5205 = vpop.permute.xlu0 %5204
    %5206 = vrot.lane.b32.xlu0 %v4895, 8
    %v5207 = vpop.permute.xlu0 %5206
    %5212 = vrot.lane.b32.xlu0 %v4971, 16
    %v5213 = vpop.permute.xlu0 %5212
    %5214 = vrot.lane.b32.xlu0 %v5047, 16
    %v5215 = vpop.permute.xlu0 %5214
    %5220 = vrot.lane.b32.xlu0 %v5123, 24
    %v5221 = vpop.permute.xlu0 %5220
    %5222 = vrot.lane.b32.xlu0 %v5199, 24
    %v5223 = vpop.permute.xlu0 %5222
    %v5226 = vsel %vm379, %v4667, %v5205
    %v5227 = vsel %vm379, %v4743, %v5207
    %v5228 = vsel %vm1708, %v5226, %v5213
    %v5229 = vsel %vm1708, %v5227, %v5215
    %v5230 = vsel %vm1711, %v5228, %v5221
    %v5231 = vsel %vm1711, %v5229, %v5223
    %v5232 = vlaneseq
    %v5233 = vshrl.u32 %v5232, 7
    %v5234 = vsub.s32 0, %v5233
    %v5235 = vrot.slane %v3801, %v5234
    %5240 = vrot.lane.b32.xlu0 %v3779, 32
    %v5241 = vpop.permute.xlu0 %5240
    %5242 = vrot.lane.b32.xlu0 %v3780, 32
    %v5243 = vpop.permute.xlu0 %5242
    %5244 = vrot.lane.b32.xlu0 %v3781, 32
    %v5245 = vpop.permute.xlu0 %5244
    %5246 = vrot.lane.b32.xlu0 %v3782, 32
    %v5247 = vpop.permute.xlu0 %5246
    %v5253 = vsel %vm281, %v5230, 0
    %v5256 = vsel %vm281, %v5231, 0
    %5258 = vmatprep.subr.mxu0 0.0
    %5259 = vmatpush1.msra.mxu0 %v5241
    %5260 = vmatprep.subr.mxu0 0.0
    %5261 = vmatpush1.msra.mxu0 %v5243
    %5262 = vmatprep.subr.mxu0 0.0
    %5263 = vmatpush1.msra.mxu0 %v5245
    %5264 = vmatprep.subr.mxu0 0.0
    %5265 = vmatpush1.msra.mxu0 %v5247
    %5266 = vmatprep.subr.mxu0 0.0
    %5267 = vmatpush1.msra.mxu0 0.0
    %5268 = vmatprep.subr.mxu0 0.0
    %5269 = vmatpush1.msra.mxu0 0.0
    %5270 = vmatprep.subr.mxu0 0.0
    %5271 = vmatpush1.msra.mxu0 0.0
    %5272 = vmatprep.subr.mxu0 0.0
    %5273 = vmatpush1.msra.mxu0 0.0
    %5274 = vmatprep.subr.mxu0 0.0
    %5275 = vmatpush1.msra.mxu0 0.0
    %5276 = vmatprep.subr.mxu0 0.0
    %5277 = vmatpush1.msra.mxu0 0.0
    %5278 = vmatprep.subr.mxu0 0.0
    %5279 = vmatpush1.msra.mxu0 0.0
    %5280 = vmatprep.subr.mxu0 0.0
    %5281 = vmatpush1.msra.mxu0 0.0
    %5282 = vmatprep.subr.mxu0 0.0
    %5283 = vmatpush1.msra.mxu0 0.0
    %5284 = vmatprep.subr.mxu0 0.0
    %5285 = vmatpush1.msra.mxu0 0.0
    %5286 = vmatprep.subr.mxu0 0.0
    %5287 = vmatpush1.msra.mxu0 0.0
    %5288 = vmatprep.subr.mxu0 0.0
    %5289 = vmatpush1.msra.mxu0 0.0
    %5290 = vmatprep.subr.mxu0 0.0
    %5291 = vmatpush1.msra.mxu0 0.0
    %5292 = vmatprep.subr.mxu0 0.0
    %5293 = vmatpush1.msra.mxu0 0.0
    %5294 = vmatprep.subr.mxu0 0.0
    %5295 = vmatpush1.msra.mxu0 0.0
    %5296 = vmatprep.subr.mxu0 0.0
    %5297 = vmatpush1.msra.mxu0 0.0
    %5298 = vmatprep.subr.mxu0 0.0
    %5299 = vmatpush1.msra.mxu0 0.0
    %5300 = vmatprep.subr.mxu0 0.0
    %5301 = vmatpush1.msra.mxu0 0.0
    %5302 = vmatprep.subr.mxu0 0.0
    %5303 = vmatpush1.msra.mxu0 0.0
    %5304 = vmatprep.subr.mxu0 0.0
    %5305 = vmatpush1.msra.mxu0 0.0
    %5306 = vmatprep.subr.mxu0 0.0
    %5307 = vmatpush1.msra.mxu0 0.0
    %5308 = vmatprep.subr.mxu0 0.0
    %5309 = vmatpush1.msra.mxu0 0.0
    %5310 = vmatprep.subr.mxu0 0.0
    %5311 = vmatpush1.msra.mxu0 0.0
    %5312 = vmatprep.subr.mxu0 0.0
    %5313 = vmatpush1.msra.mxu0 0.0
    %5314 = vmatprep.subr.mxu0 0.0
    %5315 = vmatpush1.msra.mxu0 0.0
    %5316 = vmatprep.subr.mxu0 0.0
    %5317 = vmatpush1.msra.mxu0 0.0
    %5318 = vmatprep.subr.mxu0 0.0
    %5319 = vmatpush1.msra.mxu0 0.0
    %5320 = vmatprep.subr.mxu0 0.0
    %5321 = vmatpush1.msra.mxu0 0.0
    %5322 = vmatprep.mubr.f32.mxu0 0.0
    %5323 = vmatmul.mubr.f32.gmra.mrb[0].mxu0 %v5253
    %v5324 = vpop.f32.mrb[0].mxu0
    %v5325 = vadd.f32 %v5235, %v5324
    %v5326 = vpop.f32.mrb[0].mxu0
    %5327 = vmatprep.mubr.f32.mxu0 0.0
    %5328 = vmatmul.mubr.f32.gmra.mrb[0].mxu0 %v5256
    %v5329 = vpop.f32.mrb[0].mxu0
    %v5330 = vadd.f32 %v5235, %v5329
    %v5331 = vpop.f32.mrb[0].mxu0
    %5332 = vdwg.mxu0
    %v5333 = vadd.f32 %v5325, %v3776
    %v5334 = vadd.f32 %v5330, %v3777
    %v5335 = vsel %vm281, %v5333, 0.0
    %5336 = vadd.xlane.f32.xlu0 %v5335
    %v5337 = vpop.xlane.xlu0 %5336
    %v5338 = vsel %vm281, %v5334, 0.0
    %5339 = vadd.xlane.f32.xlu0 %v5338
    %v5340 = vpop.xlane.xlu0 %5339
    %v5341 = vmul.f32 %v5337, %v1823
    %v5342 = vmul.f32 %v5340, %v1823
    %v5343 = vsub.f32 %v5333, %v5341
    %v5344 = vsub.f32 %v5334, %v5342
    %v5345 = vmul.f32 %v5343, %v5343
    %v5346 = vmul.f32 %v5344, %v5344
    %v5347 = vsel %vm281, %v5345, 0.0
    %5348 = vadd.xlane.f32.xlu0 %v5347
    %v5349 = vpop.xlane.xlu0 %5348
    %v5350 = vsel %vm281, %v5346, 0.0
    %5351 = vadd.xlane.f32.xlu0 %v5350
    %v5352 = vpop.xlane.xlu0 %5351
    %v5353 = vmul.f32 %v5349, %v1823
    %v5354 = vmul.f32 %v5352, %v1823
    %v5355 = vadd.f32 %v5353, 1e-05
    %v5356 = vadd.f32 %v5354, 1e-05
    %v5357 = vrsqrt.pop %v5355
    %v5358 = vrsqrt.pop %v5356
    %v5359 = vmul.f32 %v5343, %v5357
    %v5360 = vmul.f32 %v5344, %v5358
    %v5361 = vlaneseq
    %v5362 = vshrl.u32 %v5361, 7
    %v5363 = vsub.s32 1, %v5362
    %v5364 = vrot.slane %v3801, %v5363
    %v5365 = vmul.f32 %v5359, %v5364
    %v5366 = vmul.f32 %v5360, %v5364
    %v5367 = vlaneseq
    %v5368 = vshrl.u32 %v5367, 7
    %v5369 = vsub.s32 2, %v5368
    %v5370 = vrot.slane %v3801, %v5369
    %v5371 = vadd.f32 %v5365, %v5370
    %v5372 = vadd.f32 %v5366, %v5370
    %v5374 = vsel %vm281, %v5371, 0
    %v5377 = vsel %vm281, %v5372, 0
    %5379 = vmatprep.subr.mxu0 0.0
    %5380 = vmatpush1.msra.mxu0 %v3783
    %5381 = vmatprep.subr.mxu0 0.0
    %5382 = vmatpush1.msra.mxu0 %v3784
    %5383 = vmatprep.subr.mxu0 0.0
    %5384 = vmatpush1.msra.mxu0 %v3785
    %5385 = vmatprep.subr.mxu0 0.0
    %5386 = vmatpush1.msra.mxu0 %v3786
    %5387 = vmatprep.subr.mxu0 0.0
    %5388 = vmatpush1.msra.mxu0 0.0
    %5389 = vmatprep.subr.mxu0 0.0
    %5390 = vmatpush1.msra.mxu0 0.0
    %5391 = vmatprep.subr.mxu0 0.0
    %5392 = vmatpush1.msra.mxu0 0.0
    %5393 = vmatprep.subr.mxu0 0.0
    %5394 = vmatpush1.msra.mxu0 0.0
    %5395 = vmatprep.subr.mxu0 0.0
    %5396 = vmatpush1.msra.mxu0 0.0
    %5397 = vmatprep.subr.mxu0 0.0
    %5398 = vmatpush1.msra.mxu0 0.0
    %5399 = vmatprep.subr.mxu0 0.0
    %5400 = vmatpush1.msra.mxu0 0.0
    %5401 = vmatprep.subr.mxu0 0.0
    %5402 = vmatpush1.msra.mxu0 0.0
    %5403 = vmatprep.subr.mxu0 0.0
    %5404 = vmatpush1.msra.mxu0 0.0
    %5405 = vmatprep.subr.mxu0 0.0
    %5406 = vmatpush1.msra.mxu0 0.0
    %5407 = vmatprep.subr.mxu0 0.0
    %5408 = vmatpush1.msra.mxu0 0.0
    %5409 = vmatprep.subr.mxu0 0.0
    %5410 = vmatpush1.msra.mxu0 0.0
    %5411 = vmatprep.subr.mxu0 0.0
    %5412 = vmatpush1.msra.mxu0 0.0
    %5413 = vmatprep.subr.mxu0 0.0
    %5414 = vmatpush1.msra.mxu0 0.0
    %5415 = vmatprep.subr.mxu0 0.0
    %5416 = vmatpush1.msra.mxu0 0.0
    %5417 = vmatprep.subr.mxu0 0.0
    %5418 = vmatpush1.msra.mxu0 0.0
    %5419 = vmatprep.subr.mxu0 0.0
    %5420 = vmatpush1.msra.mxu0 0.0
    %5421 = vmatprep.subr.mxu0 0.0
    %5422 = vmatpush1.msra.mxu0 0.0
    %5423 = vmatprep.subr.mxu0 0.0
    %5424 = vmatpush1.msra.mxu0 0.0
    %5425 = vmatprep.subr.mxu0 0.0
    %5426 = vmatpush1.msra.mxu0 0.0
    %5427 = vmatprep.subr.mxu0 0.0
    %5428 = vmatpush1.msra.mxu0 0.0
    %5429 = vmatprep.subr.mxu0 0.0
    %5430 = vmatpush1.msra.mxu0 0.0
    %5431 = vmatprep.subr.mxu0 0.0
    %5432 = vmatpush1.msra.mxu0 0.0
    %5433 = vmatprep.subr.mxu0 0.0
    %5434 = vmatpush1.msra.mxu0 0.0
    %5435 = vmatprep.subr.mxu0 0.0
    %5436 = vmatpush1.msra.mxu0 0.0
    %5437 = vmatprep.subr.mxu0 0.0
    %5438 = vmatpush1.msra.mxu0 0.0
    %5439 = vmatprep.subr.mxu0 0.0
    %5440 = vmatpush1.msra.mxu0 0.0
    %5441 = vmatprep.subr.mxu0 0.0
    %5442 = vmatpush1.msra.mxu0 0.0
    %5443 = vmatprep.mubr.f32.mxu0 0.0
    %5444 = vmatmul.mubr.f32.gmra.mrb[0].mxu0 %v5374
    %v5445 = vpop.f32.mrb[0].mxu0
    %v5446 = vadd.f32 0.0, %v5445
    %v5447 = vpop.f32.mrb[0].mxu0
    %5448 = vmatprep.mubr.f32.mxu0 0.0
    %5449 = vmatmul.mubr.f32.gmra.mrb[0].mxu0 %v5377
    %v5450 = vpop.f32.mrb[0].mxu0
    %v5451 = vadd.f32 0.0, %v5450
    %v5452 = vpop.f32.mrb[0].mxu0
    %5453 = vdwg.mxu0
    %5458 = vrot.lane.b32.xlu0 %v3783, 96
    %v5459 = vpop.permute.xlu0 %5458
    %5460 = vrot.lane.b32.xlu0 %v3784, 96
    %v5461 = vpop.permute.xlu0 %5460
    %5462 = vrot.lane.b32.xlu0 %v3785, 96
    %v5463 = vpop.permute.xlu0 %5462
    %5464 = vrot.lane.b32.xlu0 %v3786, 96
    %v5465 = vpop.permute.xlu0 %5464
    %5470 = vmatprep.subr.mxu0 0.0
    %5471 = vmatpush1.msra.mxu0 %v5459
    %5472 = vmatprep.subr.mxu0 0.0
    %5473 = vmatpush1.msra.mxu0 %v5461
    %5474 = vmatprep.subr.mxu0 0.0
    %5475 = vmatpush1.msra.mxu0 %v5463
    %5476 = vmatprep.subr.mxu0 0.0
    %5477 = vmatpush1.msra.mxu0 %v5465
    %5478 = vmatprep.subr.mxu0 0.0
    %5479 = vmatpush1.msra.mxu0 0.0
    %5480 = vmatprep.subr.mxu0 0.0
    %5481 = vmatpush1.msra.mxu0 0.0
    %5482 = vmatprep.subr.mxu0 0.0
    %5483 = vmatpush1.msra.mxu0 0.0
    %5484 = vmatprep.subr.mxu0 0.0
    %5485 = vmatpush1.msra.mxu0 0.0
    %5486 = vmatprep.subr.mxu0 0.0
    %5487 = vmatpush1.msra.mxu0 0.0
    %5488 = vmatprep.subr.mxu0 0.0
    %5489 = vmatpush1.msra.mxu0 0.0
    %5490 = vmatprep.subr.mxu0 0.0
    %5491 = vmatpush1.msra.mxu0 0.0
    %5492 = vmatprep.subr.mxu0 0.0
    %5493 = vmatpush1.msra.mxu0 0.0
    %5494 = vmatprep.subr.mxu0 0.0
    %5495 = vmatpush1.msra.mxu0 0.0
    %5496 = vmatprep.subr.mxu0 0.0
    %5497 = vmatpush1.msra.mxu0 0.0
    %5498 = vmatprep.subr.mxu0 0.0
    %5499 = vmatpush1.msra.mxu0 0.0
    %5500 = vmatprep.subr.mxu0 0.0
    %5501 = vmatpush1.msra.mxu0 0.0
    %5502 = vmatprep.subr.mxu0 0.0
    %5503 = vmatpush1.msra.mxu0 0.0
    %5504 = vmatprep.subr.mxu0 0.0
    %5505 = vmatpush1.msra.mxu0 0.0
    %5506 = vmatprep.subr.mxu0 0.0
    %5507 = vmatpush1.msra.mxu0 0.0
    %5508 = vmatprep.subr.mxu0 0.0
    %5509 = vmatpush1.msra.mxu0 0.0
    %5510 = vmatprep.subr.mxu0 0.0
    %5511 = vmatpush1.msra.mxu0 0.0
    %5512 = vmatprep.subr.mxu0 0.0
    %5513 = vmatpush1.msra.mxu0 0.0
    %5514 = vmatprep.subr.mxu0 0.0
    %5515 = vmatpush1.msra.mxu0 0.0
    %5516 = vmatprep.subr.mxu0 0.0
    %5517 = vmatpush1.msra.mxu0 0.0
    %5518 = vmatprep.subr.mxu0 0.0
    %5519 = vmatpush1.msra.mxu0 0.0
    %5520 = vmatprep.subr.mxu0 0.0
    %5521 = vmatpush1.msra.mxu0 0.0
    %5522 = vmatprep.subr.mxu0 0.0
    %5523 = vmatpush1.msra.mxu0 0.0
    %5524 = vmatprep.subr.mxu0 0.0
    %5525 = vmatpush1.msra.mxu0 0.0
    %5526 = vmatprep.subr.mxu0 0.0
    %5527 = vmatpush1.msra.mxu0 0.0
    %5528 = vmatprep.subr.mxu0 0.0
    %5529 = vmatpush1.msra.mxu0 0.0
    %5530 = vmatprep.subr.mxu0 0.0
    %5531 = vmatpush1.msra.mxu0 0.0
    %5532 = vmatprep.subr.mxu0 0.0
    %5533 = vmatpush1.msra.mxu0 0.0
    %5534 = vmatprep.mubr.f32.mxu0 0.0
    %5535 = vmatmul.mubr.f32.gmra.mrb[0].mxu0 %v1954
    %v5536 = vpop.f32.mrb[0].mxu0
    %v5537 = vadd.f32 0.0, %v5536
    %v5538 = vpop.f32.mrb[0].mxu0
    %5539 = vmatprep.mubr.f32.mxu0 0.0
    %5540 = vmatmul.mubr.f32.gmra.mrb[0].mxu0 %v1957
    %v5541 = vpop.f32.mrb[0].mxu0
    %v5542 = vadd.f32 0.0, %v5541
    %v5543 = vpop.f32.mrb[0].mxu0
    %5544 = vdwg.mxu0
    %5547 = vrot.lane.b32.xlu0 %v5446, 120
    %v5548 = vpop.permute.xlu0 %5547
    %5549 = vrot.lane.b32.xlu0 %v5451, 120
    %v5550 = vpop.permute.xlu0 %5549
    %5551 = vrot.lane.b32.xlu0 %v5446, 112
    %v5552 = vpop.permute.xlu0 %5551
    %5553 = vrot.lane.b32.xlu0 %v5451, 112
    %v5554 = vpop.permute.xlu0 %5553
    %5555 = vrot.lane.b32.xlu0 %v5446, 104
    %v5556 = vpop.permute.xlu0 %5555
    %5557 = vrot.lane.b32.xlu0 %v5451, 104
    %v5558 = vpop.permute.xlu0 %5557
    %5561 = vrot.lane.b32.xlu0 %v5537, 120
    %v5562 = vpop.permute.xlu0 %5561
    %5563 = vrot.lane.b32.xlu0 %v5542, 120
    %v5564 = vpop.permute.xlu0 %5563
    %5565 = vrot.lane.b32.xlu0 %v5537, 112
    %v5566 = vpop.permute.xlu0 %5565
    %5567 = vrot.lane.b32.xlu0 %v5542, 112
    %v5568 = vpop.permute.xlu0 %5567
    %5569 = vrot.lane.b32.xlu0 %v5537, 104
    %v5570 = vpop.permute.xlu0 %5569
    %5571 = vrot.lane.b32.xlu0 %v5542, 104
    %v5572 = vpop.permute.xlu0 %5571
    %v5573 = vsel %vm379, %v5446, 0
    %v5575 = vsel %vm379, %v5537, 0
    %5577 = vmatprep.subr.mxu0 0.0
    %5578 = vmatpush1.xpose.msra.mxu0 %v5575
    %5579 = vmatprep.subr.mxu0 0.0
    %5580 = vmatpush1.xpose.msra.mxu0 0.0
    %5581 = vmatprep.subr.mxu0 0.0
    %5582 = vmatpush1.xpose.msra.mxu0 0.0
    %5583 = vmatprep.subr.mxu0 0.0
    %5584 = vmatpush1.xpose.msra.mxu0 0.0
    %5585 = vmatprep.subr.mxu0 0.0
    %5586 = vmatpush1.xpose.msra.mxu0 0.0
    %5587 = vmatprep.subr.mxu0 0.0
    %5588 = vmatpush1.xpose.msra.mxu0 0.0
    %5589 = vmatprep.subr.mxu0 0.0
    %5590 = vmatpush1.xpose.msra.mxu0 0.0
    %5591 = vmatprep.subr.mxu0 0.0
    %5592 = vmatpush1.xpose.msra.mxu0 0.0
    %5593 = vmatprep.subr.mxu0 0.0
    %5594 = vmatpush1.xpose.msra.mxu0 0.0
    %5595 = vmatprep.subr.mxu0 0.0
    %5596 = vmatpush1.xpose.msra.mxu0 0.0
    %5597 = vmatprep.subr.mxu0 0.0
    %5598 = vmatpush1.xpose.msra.mxu0 0.0
    %5599 = vmatprep.subr.mxu0 0.0
    %5600 = vmatpush1.xpose.msra.mxu0 0.0
    %5601 = vmatprep.subr.mxu0 0.0
    %5602 = vmatpush1.xpose.msra.mxu0 0.0
    %5603 = vmatprep.subr.mxu0 0.0
    %5604 = vmatpush1.xpose.msra.mxu0 0.0
    %5605 = vmatprep.subr.mxu0 0.0
    %5606 = vmatpush1.xpose.msra.mxu0 0.0
    %5607 = vmatprep.subr.mxu0 0.0
    %5608 = vmatpush1.xpose.msra.mxu0 0.0
    %5609 = vmatprep.subr.mxu0 0.0
    %5610 = vmatpush1.xpose.msra.mxu0 0.0
    %5611 = vmatprep.subr.mxu0 0.0
    %5612 = vmatpush1.xpose.msra.mxu0 0.0
    %5613 = vmatprep.subr.mxu0 0.0
    %5614 = vmatpush1.xpose.msra.mxu0 0.0
    %5615 = vmatprep.subr.mxu0 0.0
    %5616 = vmatpush1.xpose.msra.mxu0 0.0
    %5617 = vmatprep.subr.mxu0 0.0
    %5618 = vmatpush1.xpose.msra.mxu0 0.0
    %5619 = vmatprep.subr.mxu0 0.0
    %5620 = vmatpush1.xpose.msra.mxu0 0.0
    %5621 = vmatprep.subr.mxu0 0.0
    %5622 = vmatpush1.xpose.msra.mxu0 0.0
    %5623 = vmatprep.subr.mxu0 0.0
    %5624 = vmatpush1.xpose.msra.mxu0 0.0
    %5625 = vmatprep.subr.mxu0 0.0
    %5626 = vmatpush1.xpose.msra.mxu0 0.0
    %5627 = vmatprep.subr.mxu0 0.0
    %5628 = vmatpush1.xpose.msra.mxu0 0.0
    %5629 = vmatprep.subr.mxu0 0.0
    %5630 = vmatpush1.xpose.msra.mxu0 0.0
    %5631 = vmatprep.subr.mxu0 0.0
    %5632 = vmatpush1.xpose.msra.mxu0 0.0
    %5633 = vmatprep.subr.mxu0 0.0
    %5634 = vmatpush1.xpose.msra.mxu0 0.0
    %5635 = vmatprep.subr.mxu0 0.0
    %5636 = vmatpush1.xpose.msra.mxu0 0.0
    %5637 = vmatprep.subr.mxu0 0.0
    %5638 = vmatpush1.xpose.msra.mxu0 0.0
    %5639 = vmatprep.subr.mxu0 0.0
    %5640 = vmatpush1.xpose.msra.mxu0 0.0
    %5641 = vmatprep.mubr.f32.mxu0 0.0
    %5642 = vmatmul.mubr.f32.gmra.mrb[0].mxu0 %v5573
    %v5643 = vpop.f32.mrb[0].mxu0
    %v5644 = vadd.f32 %v2073, %v5643
    %v5645 = vpop.f32.mrb[0].mxu0
    %5646 = vdwg.mxu0
    %v5647 = vsel %vm379, %v5451, 0
    %v5649 = vsel %vm379, %v5542, 0
    %5651 = vmatprep.subr.mxu0 0.0
    %5652 = vmatpush1.xpose.msra.mxu0 %v5649
    %5653 = vmatprep.subr.mxu0 0.0
    %5654 = vmatpush1.xpose.msra.mxu0 0.0
    %5655 = vmatprep.subr.mxu0 0.0
    %5656 = vmatpush1.xpose.msra.mxu0 0.0
    %5657 = vmatprep.subr.mxu0 0.0
    %5658 = vmatpush1.xpose.msra.mxu0 0.0
    %5659 = vmatprep.subr.mxu0 0.0
    %5660 = vmatpush1.xpose.msra.mxu0 0.0
    %5661 = vmatprep.subr.mxu0 0.0
    %5662 = vmatpush1.xpose.msra.mxu0 0.0
    %5663 = vmatprep.subr.mxu0 0.0
    %5664 = vmatpush1.xpose.msra.mxu0 0.0
    %5665 = vmatprep.subr.mxu0 0.0
    %5666 = vmatpush1.xpose.msra.mxu0 0.0
    %5667 = vmatprep.subr.mxu0 0.0
    %5668 = vmatpush1.xpose.msra.mxu0 0.0
    %5669 = vmatprep.subr.mxu0 0.0
    %5670 = vmatpush1.xpose.msra.mxu0 0.0
    %5671 = vmatprep.subr.mxu0 0.0
    %5672 = vmatpush1.xpose.msra.mxu0 0.0
    %5673 = vmatprep.subr.mxu0 0.0
    %5674 = vmatpush1.xpose.msra.mxu0 0.0
    %5675 = vmatprep.subr.mxu0 0.0
    %5676 = vmatpush1.xpose.msra.mxu0 0.0
    %5677 = vmatprep.subr.mxu0 0.0
    %5678 = vmatpush1.xpose.msra.mxu0 0.0
    %5679 = vmatprep.subr.mxu0 0.0
    %5680 = vmatpush1.xpose.msra.mxu0 0.0
    %5681 = vmatprep.subr.mxu0 0.0
    %5682 = vmatpush1.xpose.msra.mxu0 0.0
    %5683 = vmatprep.subr.mxu0 0.0
    %5684 = vmatpush1.xpose.msra.mxu0 0.0
    %5685 = vmatprep.subr.mxu0 0.0
    %5686 = vmatpush1.xpose.msra.mxu0 0.0
    %5687 = vmatprep.subr.mxu0 0.0
    %5688 = vmatpush1.xpose.msra.mxu0 0.0
    %5689 = vmatprep.subr.mxu0 0.0
    %5690 = vmatpush1.xpose.msra.mxu0 0.0
    %5691 = vmatprep.subr.mxu0 0.0
    %5692 = vmatpush1.xpose.msra.mxu0 0.0
    %5693 = vmatprep.subr.mxu0 0.0
    %5694 = vmatpush1.xpose.msra.mxu0 0.0
    %5695 = vmatprep.subr.mxu0 0.0
    %5696 = vmatpush1.xpose.msra.mxu0 0.0
    %5697 = vmatprep.subr.mxu0 0.0
    %5698 = vmatpush1.xpose.msra.mxu0 0.0
    %5699 = vmatprep.subr.mxu0 0.0
    %5700 = vmatpush1.xpose.msra.mxu0 0.0
    %5701 = vmatprep.subr.mxu0 0.0
    %5702 = vmatpush1.xpose.msra.mxu0 0.0
    %5703 = vmatprep.subr.mxu0 0.0
    %5704 = vmatpush1.xpose.msra.mxu0 0.0
    %5705 = vmatprep.subr.mxu0 0.0
    %5706 = vmatpush1.xpose.msra.mxu0 0.0
    %5707 = vmatprep.subr.mxu0 0.0
    %5708 = vmatpush1.xpose.msra.mxu0 0.0
    %5709 = vmatprep.subr.mxu0 0.0
    %5710 = vmatpush1.xpose.msra.mxu0 0.0
    %5711 = vmatprep.subr.mxu0 0.0
    %5712 = vmatpush1.xpose.msra.mxu0 0.0
    %5713 = vmatprep.subr.mxu0 0.0
    %5714 = vmatpush1.xpose.msra.mxu0 0.0
    %5715 = vmatprep.mubr.f32.mxu0 0.0
    %5716 = vmatmul.mubr.f32.gmra.mrb[0].mxu0 %v5647
    %v5717 = vpop.f32.mrb[0].mxu0
    %v5718 = vadd.f32 %v2077, %v5717
    %v5719 = vpop.f32.mrb[0].mxu0
    %5720 = vdwg.mxu0
    %v5721 = vsel %vm379, %v5548, 0
    %v5723 = vsel %vm379, %v5562, 0
    %5725 = vmatprep.subr.mxu0 0.0
    %5726 = vmatpush1.xpose.msra.mxu0 %v5723
    %5727 = vmatprep.subr.mxu0 0.0
    %5728 = vmatpush1.xpose.msra.mxu0 0.0
    %5729 = vmatprep.subr.mxu0 0.0
    %5730 = vmatpush1.xpose.msra.mxu0 0.0
    %5731 = vmatprep.subr.mxu0 0.0
    %5732 = vmatpush1.xpose.msra.mxu0 0.0
    %5733 = vmatprep.subr.mxu0 0.0
    %5734 = vmatpush1.xpose.msra.mxu0 0.0
    %5735 = vmatprep.subr.mxu0 0.0
    %5736 = vmatpush1.xpose.msra.mxu0 0.0
    %5737 = vmatprep.subr.mxu0 0.0
    %5738 = vmatpush1.xpose.msra.mxu0 0.0
    %5739 = vmatprep.subr.mxu0 0.0
    %5740 = vmatpush1.xpose.msra.mxu0 0.0
    %5741 = vmatprep.subr.mxu0 0.0
    %5742 = vmatpush1.xpose.msra.mxu0 0.0
    %5743 = vmatprep.subr.mxu0 0.0
    %5744 = vmatpush1.xpose.msra.mxu0 0.0
    %5745 = vmatprep.subr.mxu0 0.0
    %5746 = vmatpush1.xpose.msra.mxu0 0.0
    %5747 = vmatprep.subr.mxu0 0.0
    %5748 = vmatpush1.xpose.msra.mxu0 0.0
    %5749 = vmatprep.subr.mxu0 0.0
    %5750 = vmatpush1.xpose.msra.mxu0 0.0
    %5751 = vmatprep.subr.mxu0 0.0
    %5752 = vmatpush1.xpose.msra.mxu0 0.0
    %5753 = vmatprep.subr.mxu0 0.0
    %5754 = vmatpush1.xpose.msra.mxu0 0.0
    %5755 = vmatprep.subr.mxu0 0.0
    %5756 = vmatpush1.xpose.msra.mxu0 0.0
    %5757 = vmatprep.subr.mxu0 0.0
    %5758 = vmatpush1.xpose.msra.mxu0 0.0
    %5759 = vmatprep.subr.mxu0 0.0
    %5760 = vmatpush1.xpose.msra.mxu0 0.0
    %5761 = vmatprep.subr.mxu0 0.0
    %5762 = vmatpush1.xpose.msra.mxu0 0.0
    %5763 = vmatprep.subr.mxu0 0.0
    %5764 = vmatpush1.xpose.msra.mxu0 0.0
    %5765 = vmatprep.subr.mxu0 0.0
    %5766 = vmatpush1.xpose.msra.mxu0 0.0
    %5767 = vmatprep.subr.mxu0 0.0
    %5768 = vmatpush1.xpose.msra.mxu0 0.0
    %5769 = vmatprep.subr.mxu0 0.0
    %5770 = vmatpush1.xpose.msra.mxu0 0.0
    %5771 = vmatprep.subr.mxu0 0.0
    %5772 = vmatpush1.xpose.msra.mxu0 0.0
    %5773 = vmatprep.subr.mxu0 0.0
    %5774 = vmatpush1.xpose.msra.mxu0 0.0
    %5775 = vmatprep.subr.mxu0 0.0
    %5776 = vmatpush1.xpose.msra.mxu0 0.0
    %5777 = vmatprep.subr.mxu0 0.0
    %5778 = vmatpush1.xpose.msra.mxu0 0.0
    %5779 = vmatprep.subr.mxu0 0.0
    %5780 = vmatpush1.xpose.msra.mxu0 0.0
    %5781 = vmatprep.subr.mxu0 0.0
    %5782 = vmatpush1.xpose.msra.mxu0 0.0
    %5783 = vmatprep.subr.mxu0 0.0
    %5784 = vmatpush1.xpose.msra.mxu0 0.0
    %5785 = vmatprep.subr.mxu0 0.0
    %5786 = vmatpush1.xpose.msra.mxu0 0.0
    %5787 = vmatprep.subr.mxu0 0.0
    %5788 = vmatpush1.xpose.msra.mxu0 0.0
    %5789 = vmatprep.mubr.f32.mxu0 0.0
    %5790 = vmatmul.mubr.f32.gmra.mrb[0].mxu0 %v5721
    %v5791 = vpop.f32.mrb[0].mxu0
    %v5792 = vadd.f32 %v2081, %v5791
    %v5793 = vpop.f32.mrb[0].mxu0
    %5794 = vdwg.mxu0
    %v5795 = vsel %vm379, %v5550, 0
    %v5797 = vsel %vm379, %v5564, 0
    %5799 = vmatprep.subr.mxu0 0.0
    %5800 = vmatpush1.xpose.msra.mxu0 %v5797
    %5801 = vmatprep.subr.mxu0 0.0
    %5802 = vmatpush1.xpose.msra.mxu0 0.0
    %5803 = vmatprep.subr.mxu0 0.0
    %5804 = vmatpush1.xpose.msra.mxu0 0.0
    %5805 = vmatprep.subr.mxu0 0.0
    %5806 = vmatpush1.xpose.msra.mxu0 0.0
    %5807 = vmatprep.subr.mxu0 0.0
    %5808 = vmatpush1.xpose.msra.mxu0 0.0
    %5809 = vmatprep.subr.mxu0 0.0
    %5810 = vmatpush1.xpose.msra.mxu0 0.0
    %5811 = vmatprep.subr.mxu0 0.0
    %5812 = vmatpush1.xpose.msra.mxu0 0.0
    %5813 = vmatprep.subr.mxu0 0.0
    %5814 = vmatpush1.xpose.msra.mxu0 0.0
    %5815 = vmatprep.subr.mxu0 0.0
    %5816 = vmatpush1.xpose.msra.mxu0 0.0
    %5817 = vmatprep.subr.mxu0 0.0
    %5818 = vmatpush1.xpose.msra.mxu0 0.0
    %5819 = vmatprep.subr.mxu0 0.0
    %5820 = vmatpush1.xpose.msra.mxu0 0.0
    %5821 = vmatprep.subr.mxu0 0.0
    %5822 = vmatpush1.xpose.msra.mxu0 0.0
    %5823 = vmatprep.subr.mxu0 0.0
    %5824 = vmatpush1.xpose.msra.mxu0 0.0
    %5825 = vmatprep.subr.mxu0 0.0
    %5826 = vmatpush1.xpose.msra.mxu0 0.0
    %5827 = vmatprep.subr.mxu0 0.0
    %5828 = vmatpush1.xpose.msra.mxu0 0.0
    %5829 = vmatprep.subr.mxu0 0.0
    %5830 = vmatpush1.xpose.msra.mxu0 0.0
    %5831 = vmatprep.subr.mxu0 0.0
    %5832 = vmatpush1.xpose.msra.mxu0 0.0
    %5833 = vmatprep.subr.mxu0 0.0
    %5834 = vmatpush1.xpose.msra.mxu0 0.0
    %5835 = vmatprep.subr.mxu0 0.0
    %5836 = vmatpush1.xpose.msra.mxu0 0.0
    %5837 = vmatprep.subr.mxu0 0.0
    %5838 = vmatpush1.xpose.msra.mxu0 0.0
    %5839 = vmatprep.subr.mxu0 0.0
    %5840 = vmatpush1.xpose.msra.mxu0 0.0
    %5841 = vmatprep.subr.mxu0 0.0
    %5842 = vmatpush1.xpose.msra.mxu0 0.0
    %5843 = vmatprep.subr.mxu0 0.0
    %5844 = vmatpush1.xpose.msra.mxu0 0.0
    %5845 = vmatprep.subr.mxu0 0.0
    %5846 = vmatpush1.xpose.msra.mxu0 0.0
    %5847 = vmatprep.subr.mxu0 0.0
    %5848 = vmatpush1.xpose.msra.mxu0 0.0
    %5849 = vmatprep.subr.mxu0 0.0
    %5850 = vmatpush1.xpose.msra.mxu0 0.0
    %5851 = vmatprep.subr.mxu0 0.0
    %5852 = vmatpush1.xpose.msra.mxu0 0.0
    %5853 = vmatprep.subr.mxu0 0.0
    %5854 = vmatpush1.xpose.msra.mxu0 0.0
    %5855 = vmatprep.subr.mxu0 0.0
    %5856 = vmatpush1.xpose.msra.mxu0 0.0
    %5857 = vmatprep.subr.mxu0 0.0
    %5858 = vmatpush1.xpose.msra.mxu0 0.0
    %5859 = vmatprep.subr.mxu0 0.0
    %5860 = vmatpush1.xpose.msra.mxu0 0.0
    %5861 = vmatprep.subr.mxu0 0.0
    %5862 = vmatpush1.xpose.msra.mxu0 0.0
    %5863 = vmatprep.mubr.f32.mxu0 0.0
    %5864 = vmatmul.mubr.f32.gmra.mrb[0].mxu0 %v5795
    %v5865 = vpop.f32.mrb[0].mxu0
    %v5866 = vadd.f32 %v2085, %v5865
    %v5867 = vpop.f32.mrb[0].mxu0
    %5868 = vdwg.mxu0
    %v5869 = vsel %vm379, %v5552, 0
    %v5871 = vsel %vm379, %v5566, 0
    %5873 = vmatprep.subr.mxu0 0.0
    %5874 = vmatpush1.xpose.msra.mxu0 %v5871
    %5875 = vmatprep.subr.mxu0 0.0
    %5876 = vmatpush1.xpose.msra.mxu0 0.0
    %5877 = vmatprep.subr.mxu0 0.0
    %5878 = vmatpush1.xpose.msra.mxu0 0.0
    %5879 = vmatprep.subr.mxu0 0.0
    %5880 = vmatpush1.xpose.msra.mxu0 0.0
    %5881 = vmatprep.subr.mxu0 0.0
    %5882 = vmatpush1.xpose.msra.mxu0 0.0
    %5883 = vmatprep.subr.mxu0 0.0
    %5884 = vmatpush1.xpose.msra.mxu0 0.0
    %5885 = vmatprep.subr.mxu0 0.0
    %5886 = vmatpush1.xpose.msra.mxu0 0.0
    %5887 = vmatprep.subr.mxu0 0.0
    %5888 = vmatpush1.xpose.msra.mxu0 0.0
    %5889 = vmatprep.subr.mxu0 0.0
    %5890 = vmatpush1.xpose.msra.mxu0 0.0
    %5891 = vmatprep.subr.mxu0 0.0
    %5892 = vmatpush1.xpose.msra.mxu0 0.0
    %5893 = vmatprep.subr.mxu0 0.0
    %5894 = vmatpush1.xpose.msra.mxu0 0.0
    %5895 = vmatprep.subr.mxu0 0.0
    %5896 = vmatpush1.xpose.msra.mxu0 0.0
    %5897 = vmatprep.subr.mxu0 0.0
    %5898 = vmatpush1.xpose.msra.mxu0 0.0
    %5899 = vmatprep.subr.mxu0 0.0
    %5900 = vmatpush1.xpose.msra.mxu0 0.0
    %5901 = vmatprep.subr.mxu0 0.0
    %5902 = vmatpush1.xpose.msra.mxu0 0.0
    %5903 = vmatprep.subr.mxu0 0.0
    %5904 = vmatpush1.xpose.msra.mxu0 0.0
    %5905 = vmatprep.subr.mxu0 0.0
    %5906 = vmatpush1.xpose.msra.mxu0 0.0
    %5907 = vmatprep.subr.mxu0 0.0
    %5908 = vmatpush1.xpose.msra.mxu0 0.0
    %5909 = vmatprep.subr.mxu0 0.0
    %5910 = vmatpush1.xpose.msra.mxu0 0.0
    %5911 = vmatprep.subr.mxu0 0.0
    %5912 = vmatpush1.xpose.msra.mxu0 0.0
    %5913 = vmatprep.subr.mxu0 0.0
    %5914 = vmatpush1.xpose.msra.mxu0 0.0
    %5915 = vmatprep.subr.mxu0 0.0
    %5916 = vmatpush1.xpose.msra.mxu0 0.0
    %5917 = vmatprep.subr.mxu0 0.0
    %5918 = vmatpush1.xpose.msra.mxu0 0.0
    %5919 = vmatprep.subr.mxu0 0.0
    %5920 = vmatpush1.xpose.msra.mxu0 0.0
    %5921 = vmatprep.subr.mxu0 0.0
    %5922 = vmatpush1.xpose.msra.mxu0 0.0
    %5923 = vmatprep.subr.mxu0 0.0
    %5924 = vmatpush1.xpose.msra.mxu0 0.0
    %5925 = vmatprep.subr.mxu0 0.0
    %5926 = vmatpush1.xpose.msra.mxu0 0.0
    %5927 = vmatprep.subr.mxu0 0.0
    %5928 = vmatpush1.xpose.msra.mxu0 0.0
    %5929 = vmatprep.subr.mxu0 0.0
    %5930 = vmatpush1.xpose.msra.mxu0 0.0
    %5931 = vmatprep.subr.mxu0 0.0
    %5932 = vmatpush1.xpose.msra.mxu0 0.0
    %5933 = vmatprep.subr.mxu0 0.0
    %5934 = vmatpush1.xpose.msra.mxu0 0.0
    %5935 = vmatprep.subr.mxu0 0.0
    %5936 = vmatpush1.xpose.msra.mxu0 0.0
    %5937 = vmatprep.mubr.f32.mxu0 0.0
    %5938 = vmatmul.mubr.f32.gmra.mrb[0].mxu0 %v5869
    %v5939 = vpop.f32.mrb[0].mxu0
    %v5940 = vadd.f32 %v2089, %v5939
    %v5941 = vpop.f32.mrb[0].mxu0
    %5942 = vdwg.mxu0
    %v5943 = vsel %vm379, %v5554, 0
    %v5945 = vsel %vm379, %v5568, 0
    %5947 = vmatprep.subr.mxu0 0.0
    %5948 = vmatpush1.xpose.msra.mxu0 %v5945
    %5949 = vmatprep.subr.mxu0 0.0
    %5950 = vmatpush1.xpose.msra.mxu0 0.0
    %5951 = vmatprep.subr.mxu0 0.0
    %5952 = vmatpush1.xpose.msra.mxu0 0.0
    %5953 = vmatprep.subr.mxu0 0.0
    %5954 = vmatpush1.xpose.msra.mxu0 0.0
    %5955 = vmatprep.subr.mxu0 0.0
    %5956 = vmatpush1.xpose.msra.mxu0 0.0
    %5957 = vmatprep.subr.mxu0 0.0
    %5958 = vmatpush1.xpose.msra.mxu0 0.0
    %5959 = vmatprep.subr.mxu0 0.0
    %5960 = vmatpush1.xpose.msra.mxu0 0.0
    %5961 = vmatprep.subr.mxu0 0.0
    %5962 = vmatpush1.xpose.msra.mxu0 0.0
    %5963 = vmatprep.subr.mxu0 0.0
    %5964 = vmatpush1.xpose.msra.mxu0 0.0
    %5965 = vmatprep.subr.mxu0 0.0
    %5966 = vmatpush1.xpose.msra.mxu0 0.0
    %5967 = vmatprep.subr.mxu0 0.0
    %5968 = vmatpush1.xpose.msra.mxu0 0.0
    %5969 = vmatprep.subr.mxu0 0.0
    %5970 = vmatpush1.xpose.msra.mxu0 0.0
    %5971 = vmatprep.subr.mxu0 0.0
    %5972 = vmatpush1.xpose.msra.mxu0 0.0
    %5973 = vmatprep.subr.mxu0 0.0
    %5974 = vmatpush1.xpose.msra.mxu0 0.0
    %5975 = vmatprep.subr.mxu0 0.0
    %5976 = vmatpush1.xpose.msra.mxu0 0.0
    %5977 = vmatprep.subr.mxu0 0.0
    %5978 = vmatpush1.xpose.msra.mxu0 0.0
    %5979 = vmatprep.subr.mxu0 0.0
    %5980 = vmatpush1.xpose.msra.mxu0 0.0
    %5981 = vmatprep.subr.mxu0 0.0
    %5982 = vmatpush1.xpose.msra.mxu0 0.0
    %5983 = vmatprep.subr.mxu0 0.0
    %5984 = vmatpush1.xpose.msra.mxu0 0.0
    %5985 = vmatprep.subr.mxu0 0.0
    %5986 = vmatpush1.xpose.msra.mxu0 0.0
    %5987 = vmatprep.subr.mxu0 0.0
    %5988 = vmatpush1.xpose.msra.mxu0 0.0
    %5989 = vmatprep.subr.mxu0 0.0
    %5990 = vmatpush1.xpose.msra.mxu0 0.0
    %5991 = vmatprep.subr.mxu0 0.0
    %5992 = vmatpush1.xpose.msra.mxu0 0.0
    %5993 = vmatprep.subr.mxu0 0.0
    %5994 = vmatpush1.xpose.msra.mxu0 0.0
    %5995 = vmatprep.subr.mxu0 0.0
    %5996 = vmatpush1.xpose.msra.mxu0 0.0
    %5997 = vmatprep.subr.mxu0 0.0
    %5998 = vmatpush1.xpose.msra.mxu0 0.0
    %5999 = vmatprep.subr.mxu0 0.0
    %6000 = vmatpush1.xpose.msra.mxu0 0.0
    %6001 = vmatprep.subr.mxu0 0.0
    %6002 = vmatpush1.xpose.msra.mxu0 0.0
    %6003 = vmatprep.subr.mxu0 0.0
    %6004 = vmatpush1.xpose.msra.mxu0 0.0
    %6005 = vmatprep.subr.mxu0 0.0
    %6006 = vmatpush1.xpose.msra.mxu0 0.0
    %6007 = vmatprep.subr.mxu0 0.0
    %6008 = vmatpush1.xpose.msra.mxu0 0.0
    %6009 = vmatprep.subr.mxu0 0.0
    %6010 = vmatpush1.xpose.msra.mxu0 0.0
    %6011 = vmatprep.mubr.f32.mxu0 0.0
    %6012 = vmatmul.mubr.f32.gmra.mrb[0].mxu0 %v5943
    %v6013 = vpop.f32.mrb[0].mxu0
    %v6014 = vadd.f32 %v2093, %v6013
    %v6015 = vpop.f32.mrb[0].mxu0
    %6016 = vdwg.mxu0
    %v6017 = vsel %vm379, %v5556, 0
    %v6019 = vsel %vm379, %v5570, 0
    %6021 = vmatprep.subr.mxu0 0.0
    %6022 = vmatpush1.xpose.msra.mxu0 %v6019
    %6023 = vmatprep.subr.mxu0 0.0
    %6024 = vmatpush1.xpose.msra.mxu0 0.0
    %6025 = vmatprep.subr.mxu0 0.0
    %6026 = vmatpush1.xpose.msra.mxu0 0.0
    %6027 = vmatprep.subr.mxu0 0.0
    %6028 = vmatpush1.xpose.msra.mxu0 0.0
    %6029 = vmatprep.subr.mxu0 0.0
    %6030 = vmatpush1.xpose.msra.mxu0 0.0
    %6031 = vmatprep.subr.mxu0 0.0
    %6032 = vmatpush1.xpose.msra.mxu0 0.0
    %6033 = vmatprep.subr.mxu0 0.0
    %6034 = vmatpush1.xpose.msra.mxu0 0.0
    %6035 = vmatprep.subr.mxu0 0.0
    %6036 = vmatpush1.xpose.msra.mxu0 0.0
    %6037 = vmatprep.subr.mxu0 0.0
    %6038 = vmatpush1.xpose.msra.mxu0 0.0
    %6039 = vmatprep.subr.mxu0 0.0
    %6040 = vmatpush1.xpose.msra.mxu0 0.0
    %6041 = vmatprep.subr.mxu0 0.0
    %6042 = vmatpush1.xpose.msra.mxu0 0.0
    %6043 = vmatprep.subr.mxu0 0.0
    %6044 = vmatpush1.xpose.msra.mxu0 0.0
    %6045 = vmatprep.subr.mxu0 0.0
    %6046 = vmatpush1.xpose.msra.mxu0 0.0
    %6047 = vmatprep.subr.mxu0 0.0
    %6048 = vmatpush1.xpose.msra.mxu0 0.0
    %6049 = vmatprep.subr.mxu0 0.0
    %6050 = vmatpush1.xpose.msra.mxu0 0.0
    %6051 = vmatprep.subr.mxu0 0.0
    %6052 = vmatpush1.xpose.msra.mxu0 0.0
    %6053 = vmatprep.subr.mxu0 0.0
    %6054 = vmatpush1.xpose.msra.mxu0 0.0
    %6055 = vmatprep.subr.mxu0 0.0
    %6056 = vmatpush1.xpose.msra.mxu0 0.0
    %6057 = vmatprep.subr.mxu0 0.0
    %6058 = vmatpush1.xpose.msra.mxu0 0.0
    %6059 = vmatprep.subr.mxu0 0.0
    %6060 = vmatpush1.xpose.msra.mxu0 0.0
    %6061 = vmatprep.subr.mxu0 0.0
    %6062 = vmatpush1.xpose.msra.mxu0 0.0
    %6063 = vmatprep.subr.mxu0 0.0
    %6064 = vmatpush1.xpose.msra.mxu0 0.0
    %6065 = vmatprep.subr.mxu0 0.0
    %6066 = vmatpush1.xpose.msra.mxu0 0.0
    %6067 = vmatprep.subr.mxu0 0.0
    %6068 = vmatpush1.xpose.msra.mxu0 0.0
    %6069 = vmatprep.subr.mxu0 0.0
    %6070 = vmatpush1.xpose.msra.mxu0 0.0
    %6071 = vmatprep.subr.mxu0 0.0
    %6072 = vmatpush1.xpose.msra.mxu0 0.0
    %6073 = vmatprep.subr.mxu0 0.0
    %6074 = vmatpush1.xpose.msra.mxu0 0.0
    %6075 = vmatprep.subr.mxu0 0.0
    %6076 = vmatpush1.xpose.msra.mxu0 0.0
    %6077 = vmatprep.subr.mxu0 0.0
    %6078 = vmatpush1.xpose.msra.mxu0 0.0
    %6079 = vmatprep.subr.mxu0 0.0
    %6080 = vmatpush1.xpose.msra.mxu0 0.0
    %6081 = vmatprep.subr.mxu0 0.0
    %6082 = vmatpush1.xpose.msra.mxu0 0.0
    %6083 = vmatprep.subr.mxu0 0.0
    %6084 = vmatpush1.xpose.msra.mxu0 0.0
    %6085 = vmatprep.mubr.f32.mxu0 0.0
    %6086 = vmatmul.mubr.f32.gmra.mrb[0].mxu0 %v6017
    %v6087 = vpop.f32.mrb[0].mxu0
    %v6088 = vadd.f32 %v2097, %v6087
    %v6089 = vpop.f32.mrb[0].mxu0
    %6090 = vdwg.mxu0
    %v6091 = vsel %vm379, %v5558, 0
    %v6093 = vsel %vm379, %v5572, 0
    %6095 = vmatprep.subr.mxu0 0.0
    %6096 = vmatpush1.xpose.msra.mxu0 %v6093
    %6097 = vmatprep.subr.mxu0 0.0
    %6098 = vmatpush1.xpose.msra.mxu0 0.0
    %6099 = vmatprep.subr.mxu0 0.0
    %6100 = vmatpush1.xpose.msra.mxu0 0.0
    %6101 = vmatprep.subr.mxu0 0.0
    %6102 = vmatpush1.xpose.msra.mxu0 0.0
    %6103 = vmatprep.subr.mxu0 0.0
    %6104 = vmatpush1.xpose.msra.mxu0 0.0
    %6105 = vmatprep.subr.mxu0 0.0
    %6106 = vmatpush1.xpose.msra.mxu0 0.0
    %6107 = vmatprep.subr.mxu0 0.0
    %6108 = vmatpush1.xpose.msra.mxu0 0.0
    %6109 = vmatprep.subr.mxu0 0.0
    %6110 = vmatpush1.xpose.msra.mxu0 0.0
    %6111 = vmatprep.subr.mxu0 0.0
    %6112 = vmatpush1.xpose.msra.mxu0 0.0
    %6113 = vmatprep.subr.mxu0 0.0
    %6114 = vmatpush1.xpose.msra.mxu0 0.0
    %6115 = vmatprep.subr.mxu0 0.0
    %6116 = vmatpush1.xpose.msra.mxu0 0.0
    %6117 = vmatprep.subr.mxu0 0.0
    %6118 = vmatpush1.xpose.msra.mxu0 0.0
    %6119 = vmatprep.subr.mxu0 0.0
    %6120 = vmatpush1.xpose.msra.mxu0 0.0
    %6121 = vmatprep.subr.mxu0 0.0
    %6122 = vmatpush1.xpose.msra.mxu0 0.0
    %6123 = vmatprep.subr.mxu0 0.0
    %6124 = vmatpush1.xpose.msra.mxu0 0.0
    %6125 = vmatprep.subr.mxu0 0.0
    %6126 = vmatpush1.xpose.msra.mxu0 0.0
    %6127 = vmatprep.subr.mxu0 0.0
    %6128 = vmatpush1.xpose.msra.mxu0 0.0
    %6129 = vmatprep.subr.mxu0 0.0
    %6130 = vmatpush1.xpose.msra.mxu0 0.0
    %6131 = vmatprep.subr.mxu0 0.0
    %6132 = vmatpush1.xpose.msra.mxu0 0.0
    %6133 = vmatprep.subr.mxu0 0.0
    %6134 = vmatpush1.xpose.msra.mxu0 0.0
    %6135 = vmatprep.subr.mxu0 0.0
    %6136 = vmatpush1.xpose.msra.mxu0 0.0
    %6137 = vmatprep.subr.mxu0 0.0
    %6138 = vmatpush1.xpose.msra.mxu0 0.0
    %6139 = vmatprep.subr.mxu0 0.0
    %6140 = vmatpush1.xpose.msra.mxu0 0.0
    %6141 = vmatprep.subr.mxu0 0.0
    %6142 = vmatpush1.xpose.msra.mxu0 0.0
    %6143 = vmatprep.subr.mxu0 0.0
    %6144 = vmatpush1.xpose.msra.mxu0 0.0
    %6145 = vmatprep.subr.mxu0 0.0
    %6146 = vmatpush1.xpose.msra.mxu0 0.0
    %6147 = vmatprep.subr.mxu0 0.0
    %6148 = vmatpush1.xpose.msra.mxu0 0.0
    %6149 = vmatprep.subr.mxu0 0.0
    %6150 = vmatpush1.xpose.msra.mxu0 0.0
    %6151 = vmatprep.subr.mxu0 0.0
    %6152 = vmatpush1.xpose.msra.mxu0 0.0
    %6153 = vmatprep.subr.mxu0 0.0
    %6154 = vmatpush1.xpose.msra.mxu0 0.0
    %6155 = vmatprep.subr.mxu0 0.0
    %6156 = vmatpush1.xpose.msra.mxu0 0.0
    %6157 = vmatprep.subr.mxu0 0.0
    %6158 = vmatpush1.xpose.msra.mxu0 0.0
    %6159 = vmatprep.mubr.f32.mxu0 0.0
    %6160 = vmatmul.mubr.f32.gmra.mrb[0].mxu0 %v6091
    %v6161 = vpop.f32.mrb[0].mxu0
    %v6162 = vadd.f32 %v2101, %v6161
    %v6163 = vpop.f32.mrb[0].mxu0
    %6164 = vdwg.mxu0
    %v6165 = vsel %vm379, %v5644, -inf
    %6166 = vmax.xlane.f32.xlu0 %v6165
    %v6167 = vpop.xlane.xlu0 %6166
    %v6168 = vsel %vm379, %v5718, -inf
    %6169 = vmax.xlane.f32.xlu0 %v6168
    %v6170 = vpop.xlane.xlu0 %6169
    %v6171 = vsel %vm379, %v5792, -inf
    %6172 = vmax.xlane.f32.xlu0 %v6171
    %v6173 = vpop.xlane.xlu0 %6172
    %v6174 = vsel %vm379, %v5866, -inf
    %6175 = vmax.xlane.f32.xlu0 %v6174
    %v6176 = vpop.xlane.xlu0 %6175
    %v6177 = vsel %vm379, %v5940, -inf
    %6178 = vmax.xlane.f32.xlu0 %v6177
    %v6179 = vpop.xlane.xlu0 %6178
    %v6180 = vsel %vm379, %v6014, -inf
    %6181 = vmax.xlane.f32.xlu0 %v6180
    %v6182 = vpop.xlane.xlu0 %6181
    %v6183 = vsel %vm379, %v6088, -inf
    %6184 = vmax.xlane.f32.xlu0 %v6183
    %v6185 = vpop.xlane.xlu0 %6184
    %v6186 = vsel %vm379, %v6162, -inf
    %6187 = vmax.xlane.f32.xlu0 %v6186
    %v6188 = vpop.xlane.xlu0 %6187
    %v6189 = vsub.f32 %v5644, %v6167
    %v6190 = vsub.f32 %v5718, %v6170
    %v6191 = vsub.f32 %v5792, %v6173
    %v6192 = vsub.f32 %v5866, %v6176
    %v6193 = vsub.f32 %v5940, %v6179
    %v6194 = vsub.f32 %v6014, %v6182
    %v6195 = vsub.f32 %v6088, %v6185
    %v6196 = vsub.f32 %v6162, %v6188
    %v6197 = vmul.f32 %v6189, 1.442695
    %v6198 = vpow.pop %v6197
    %v6199 = vmul.f32 %v6190, 1.442695
    %v6200 = vpow.pop %v6199
    %v6201 = vmul.f32 %v6191, 1.442695
    %v6202 = vpow.pop %v6201
    %v6203 = vmul.f32 %v6192, 1.442695
    %v6204 = vpow.pop %v6203
    %v6205 = vmul.f32 %v6193, 1.442695
    %v6206 = vpow.pop %v6205
    %v6207 = vmul.f32 %v6194, 1.442695
    %v6208 = vpow.pop %v6207
    %v6209 = vmul.f32 %v6195, 1.442695
    %v6210 = vpow.pop %v6209
    %v6211 = vmul.f32 %v6196, 1.442695
    %v6212 = vpow.pop %v6211
    %v6213 = vsel %vm379, %v6198, 0.0
    %6214 = vadd.xlane.f32.xlu0 %v6213
    %v6215 = vpop.xlane.xlu0 %6214
    %v6216 = vsel %vm379, %v6200, 0.0
    %6217 = vadd.xlane.f32.xlu0 %v6216
    %v6218 = vpop.xlane.xlu0 %6217
    %v6219 = vsel %vm379, %v6202, 0.0
    %6220 = vadd.xlane.f32.xlu0 %v6219
    %v6221 = vpop.xlane.xlu0 %6220
    %v6222 = vsel %vm379, %v6204, 0.0
    %6223 = vadd.xlane.f32.xlu0 %v6222
    %v6224 = vpop.xlane.xlu0 %6223
    %v6225 = vsel %vm379, %v6206, 0.0
    %6226 = vadd.xlane.f32.xlu0 %v6225
    %v6227 = vpop.xlane.xlu0 %6226
    %v6228 = vsel %vm379, %v6208, 0.0
    %6229 = vadd.xlane.f32.xlu0 %v6228
    %v6230 = vpop.xlane.xlu0 %6229
    %v6231 = vsel %vm379, %v6210, 0.0
    %6232 = vadd.xlane.f32.xlu0 %v6231
    %v6233 = vpop.xlane.xlu0 %6232
    %v6234 = vsel %vm379, %v6212, 0.0
    %6235 = vadd.xlane.f32.xlu0 %v6234
    %v6236 = vpop.xlane.xlu0 %6235
    %v6237 = vrcp.pop %v6215
    %v6238 = vrcp.pop %v6218
    %v6239 = vrcp.pop %v6221
    %v6240 = vrcp.pop %v6224
    %v6241 = vrcp.pop %v6227
    %v6242 = vrcp.pop %v6230
    %v6243 = vrcp.pop %v6233
    %v6244 = vrcp.pop %v6236
    %v6245 = vmul.f32 %v6198, %v6237
    %v6246 = vmul.f32 %v6200, %v6238
    %v6247 = vmul.f32 %v6202, %v6239
    %v6248 = vmul.f32 %v6204, %v6240
    %v6249 = vmul.f32 %v6206, %v6241
    %v6250 = vmul.f32 %v6208, %v6242
    %v6251 = vmul.f32 %v6210, %v6243
    %v6252 = vmul.f32 %v6212, %v6244
    %6253 = vrot.lane.b32.xlu0 %v5537, 96
    %v6254 = vpop.permute.xlu0 %6253
    %v6257 = vsel %vm379, %v6245, 0
    %6259 = vmatprep.subr.mxu0 0.0
    %6260 = vmatpush1.msra.mxu0 %v6254
    %6261 = vmatprep.subr.mxu0 0.0
    %6262 = vmatpush1.msra.mxu0 0.0
    %6263 = vmatprep.subr.mxu0 0.0
    %6264 = vmatpush1.msra.mxu0 0.0
    %6265 = vmatprep.subr.mxu0 0.0
    %6266 = vmatpush1.msra.mxu0 0.0
    %6267 = vmatprep.subr.mxu0 0.0
    %6268 = vmatpush1.msra.mxu0 0.0
    %6269 = vmatprep.subr.mxu0 0.0
    %6270 = vmatpush1.msra.mxu0 0.0
    %6271 = vmatprep.subr.mxu0 0.0
    %6272 = vmatpush1.msra.mxu0 0.0
    %6273 = vmatprep.subr.mxu0 0.0
    %6274 = vmatpush1.msra.mxu0 0.0
    %6275 = vmatprep.subr.mxu0 0.0
    %6276 = vmatpush1.msra.mxu0 0.0
    %6277 = vmatprep.subr.mxu0 0.0
    %6278 = vmatpush1.msra.mxu0 0.0
    %6279 = vmatprep.subr.mxu0 0.0
    %6280 = vmatpush1.msra.mxu0 0.0
    %6281 = vmatprep.subr.mxu0 0.0
    %6282 = vmatpush1.msra.mxu0 0.0
    %6283 = vmatprep.subr.mxu0 0.0
    %6284 = vmatpush1.msra.mxu0 0.0
    %6285 = vmatprep.subr.mxu0 0.0
    %6286 = vmatpush1.msra.mxu0 0.0
    %6287 = vmatprep.subr.mxu0 0.0
    %6288 = vmatpush1.msra.mxu0 0.0
    %6289 = vmatprep.subr.mxu0 0.0
    %6290 = vmatpush1.msra.mxu0 0.0
    %6291 = vmatprep.subr.mxu0 0.0
    %6292 = vmatpush1.msra.mxu0 0.0
    %6293 = vmatprep.subr.mxu0 0.0
    %6294 = vmatpush1.msra.mxu0 0.0
    %6295 = vmatprep.subr.mxu0 0.0
    %6296 = vmatpush1.msra.mxu0 0.0
    %6297 = vmatprep.subr.mxu0 0.0
    %6298 = vmatpush1.msra.mxu0 0.0
    %6299 = vmatprep.subr.mxu0 0.0
    %6300 = vmatpush1.msra.mxu0 0.0
    %6301 = vmatprep.subr.mxu0 0.0
    %6302 = vmatpush1.msra.mxu0 0.0
    %6303 = vmatprep.subr.mxu0 0.0
    %6304 = vmatpush1.msra.mxu0 0.0
    %6305 = vmatprep.subr.mxu0 0.0
    %6306 = vmatpush1.msra.mxu0 0.0
    %6307 = vmatprep.subr.mxu0 0.0
    %6308 = vmatpush1.msra.mxu0 0.0
    %6309 = vmatprep.subr.mxu0 0.0
    %6310 = vmatpush1.msra.mxu0 0.0
    %6311 = vmatprep.subr.mxu0 0.0
    %6312 = vmatpush1.msra.mxu0 0.0
    %6313 = vmatprep.subr.mxu0 0.0
    %6314 = vmatpush1.msra.mxu0 0.0
    %6315 = vmatprep.subr.mxu0 0.0
    %6316 = vmatpush1.msra.mxu0 0.0
    %6317 = vmatprep.subr.mxu0 0.0
    %6318 = vmatpush1.msra.mxu0 0.0
    %6319 = vmatprep.subr.mxu0 0.0
    %6320 = vmatpush1.msra.mxu0 0.0
    %6321 = vmatprep.subr.mxu0 0.0
    %6322 = vmatpush1.msra.mxu0 0.0
    %6323 = vmatprep.mubr.f32.mxu0 0.0
    %6324 = vmatmul.mubr.f32.gmra.mrb[0].mxu0 %v6257
    %v6325 = vpop.f32.mrb[0].mxu0
    %v6326 = vadd.f32 0.0, %v6325
    %v6327 = vpop.f32.mrb[0].mxu0
    %6328 = vdwg.mxu0
    %6329 = vrot.lane.b32.xlu0 %v5542, 96
    %v6330 = vpop.permute.xlu0 %6329
    %v6333 = vsel %vm379, %v6246, 0
    %6335 = vmatprep.subr.mxu0 0.0
    %6336 = vmatpush1.msra.mxu0 %v6330
    %6337 = vmatprep.subr.mxu0 0.0
    %6338 = vmatpush1.msra.mxu0 0.0
    %6339 = vmatprep.subr.mxu0 0.0
    %6340 = vmatpush1.msra.mxu0 0.0
    %6341 = vmatprep.subr.mxu0 0.0
    %6342 = vmatpush1.msra.mxu0 0.0
    %6343 = vmatprep.subr.mxu0 0.0
    %6344 = vmatpush1.msra.mxu0 0.0
    %6345 = vmatprep.subr.mxu0 0.0
    %6346 = vmatpush1.msra.mxu0 0.0
    %6347 = vmatprep.subr.mxu0 0.0
    %6348 = vmatpush1.msra.mxu0 0.0
    %6349 = vmatprep.subr.mxu0 0.0
    %6350 = vmatpush1.msra.mxu0 0.0
    %6351 = vmatprep.subr.mxu0 0.0
    %6352 = vmatpush1.msra.mxu0 0.0
    %6353 = vmatprep.subr.mxu0 0.0
    %6354 = vmatpush1.msra.mxu0 0.0
    %6355 = vmatprep.subr.mxu0 0.0
    %6356 = vmatpush1.msra.mxu0 0.0
    %6357 = vmatprep.subr.mxu0 0.0
    %6358 = vmatpush1.msra.mxu0 0.0
    %6359 = vmatprep.subr.mxu0 0.0
    %6360 = vmatpush1.msra.mxu0 0.0
    %6361 = vmatprep.subr.mxu0 0.0
    %6362 = vmatpush1.msra.mxu0 0.0
    %6363 = vmatprep.subr.mxu0 0.0
    %6364 = vmatpush1.msra.mxu0 0.0
    %6365 = vmatprep.subr.mxu0 0.0
    %6366 = vmatpush1.msra.mxu0 0.0
    %6367 = vmatprep.subr.mxu0 0.0
    %6368 = vmatpush1.msra.mxu0 0.0
    %6369 = vmatprep.subr.mxu0 0.0
    %6370 = vmatpush1.msra.mxu0 0.0
    %6371 = vmatprep.subr.mxu0 0.0
    %6372 = vmatpush1.msra.mxu0 0.0
    %6373 = vmatprep.subr.mxu0 0.0
    %6374 = vmatpush1.msra.mxu0 0.0
    %6375 = vmatprep.subr.mxu0 0.0
    %6376 = vmatpush1.msra.mxu0 0.0
    %6377 = vmatprep.subr.mxu0 0.0
    %6378 = vmatpush1.msra.mxu0 0.0
    %6379 = vmatprep.subr.mxu0 0.0
    %6380 = vmatpush1.msra.mxu0 0.0
    %6381 = vmatprep.subr.mxu0 0.0
    %6382 = vmatpush1.msra.mxu0 0.0
    %6383 = vmatprep.subr.mxu0 0.0
    %6384 = vmatpush1.msra.mxu0 0.0
    %6385 = vmatprep.subr.mxu0 0.0
    %6386 = vmatpush1.msra.mxu0 0.0
    %6387 = vmatprep.subr.mxu0 0.0
    %6388 = vmatpush1.msra.mxu0 0.0
    %6389 = vmatprep.subr.mxu0 0.0
    %6390 = vmatpush1.msra.mxu0 0.0
    %6391 = vmatprep.subr.mxu0 0.0
    %6392 = vmatpush1.msra.mxu0 0.0
    %6393 = vmatprep.subr.mxu0 0.0
    %6394 = vmatpush1.msra.mxu0 0.0
    %6395 = vmatprep.subr.mxu0 0.0
    %6396 = vmatpush1.msra.mxu0 0.0
    %6397 = vmatprep.subr.mxu0 0.0
    %6398 = vmatpush1.msra.mxu0 0.0
    %6399 = vmatprep.mubr.f32.mxu0 0.0
    %6400 = vmatmul.mubr.f32.gmra.mrb[0].mxu0 %v6333
    %v6401 = vpop.f32.mrb[0].mxu0
    %v6402 = vadd.f32 0.0, %v6401
    %v6403 = vpop.f32.mrb[0].mxu0
    %6404 = vdwg.mxu0
    %6405 = vrot.lane.b32.xlu0 %v5562, 96
    %v6406 = vpop.permute.xlu0 %6405
    %v6409 = vsel %vm379, %v6247, 0
    %6411 = vmatprep.subr.mxu0 0.0
    %6412 = vmatpush1.msra.mxu0 %v6406
    %6413 = vmatprep.subr.mxu0 0.0
    %6414 = vmatpush1.msra.mxu0 0.0
    %6415 = vmatprep.subr.mxu0 0.0
    %6416 = vmatpush1.msra.mxu0 0.0
    %6417 = vmatprep.subr.mxu0 0.0
    %6418 = vmatpush1.msra.mxu0 0.0
    %6419 = vmatprep.subr.mxu0 0.0
    %6420 = vmatpush1.msra.mxu0 0.0
    %6421 = vmatprep.subr.mxu0 0.0
    %6422 = vmatpush1.msra.mxu0 0.0
    %6423 = vmatprep.subr.mxu0 0.0
    %6424 = vmatpush1.msra.mxu0 0.0
    %6425 = vmatprep.subr.mxu0 0.0
    %6426 = vmatpush1.msra.mxu0 0.0
    %6427 = vmatprep.subr.mxu0 0.0
    %6428 = vmatpush1.msra.mxu0 0.0
    %6429 = vmatprep.subr.mxu0 0.0
    %6430 = vmatpush1.msra.mxu0 0.0
    %6431 = vmatprep.subr.mxu0 0.0
    %6432 = vmatpush1.msra.mxu0 0.0
    %6433 = vmatprep.subr.mxu0 0.0
    %6434 = vmatpush1.msra.mxu0 0.0
    %6435 = vmatprep.subr.mxu0 0.0
    %6436 = vmatpush1.msra.mxu0 0.0
    %6437 = vmatprep.subr.mxu0 0.0
    %6438 = vmatpush1.msra.mxu0 0.0
    %6439 = vmatprep.subr.mxu0 0.0
    %6440 = vmatpush1.msra.mxu0 0.0
    %6441 = vmatprep.subr.mxu0 0.0
    %6442 = vmatpush1.msra.mxu0 0.0
    %6443 = vmatprep.subr.mxu0 0.0
    %6444 = vmatpush1.msra.mxu0 0.0
    %6445 = vmatprep.subr.mxu0 0.0
    %6446 = vmatpush1.msra.mxu0 0.0
    %6447 = vmatprep.subr.mxu0 0.0
    %6448 = vmatpush1.msra.mxu0 0.0
    %6449 = vmatprep.subr.mxu0 0.0
    %6450 = vmatpush1.msra.mxu0 0.0
    %6451 = vmatprep.subr.mxu0 0.0
    %6452 = vmatpush1.msra.mxu0 0.0
    %6453 = vmatprep.subr.mxu0 0.0
    %6454 = vmatpush1.msra.mxu0 0.0
    %6455 = vmatprep.subr.mxu0 0.0
    %6456 = vmatpush1.msra.mxu0 0.0
    %6457 = vmatprep.subr.mxu0 0.0
    %6458 = vmatpush1.msra.mxu0 0.0
    %6459 = vmatprep.subr.mxu0 0.0
    %6460 = vmatpush1.msra.mxu0 0.0
    %6461 = vmatprep.subr.mxu0 0.0
    %6462 = vmatpush1.msra.mxu0 0.0
    %6463 = vmatprep.subr.mxu0 0.0
    %6464 = vmatpush1.msra.mxu0 0.0
    %6465 = vmatprep.subr.mxu0 0.0
    %6466 = vmatpush1.msra.mxu0 0.0
    %6467 = vmatprep.subr.mxu0 0.0
    %6468 = vmatpush1.msra.mxu0 0.0
    %6469 = vmatprep.subr.mxu0 0.0
    %6470 = vmatpush1.msra.mxu0 0.0
    %6471 = vmatprep.subr.mxu0 0.0
    %6472 = vmatpush1.msra.mxu0 0.0
    %6473 = vmatprep.subr.mxu0 0.0
    %6474 = vmatpush1.msra.mxu0 0.0
    %6475 = vmatprep.mubr.f32.mxu0 0.0
    %6476 = vmatmul.mubr.f32.gmra.mrb[0].mxu0 %v6409
    %v6477 = vpop.f32.mrb[0].mxu0
    %v6478 = vadd.f32 0.0, %v6477
    %v6479 = vpop.f32.mrb[0].mxu0
    %6480 = vdwg.mxu0
    %6481 = vrot.lane.b32.xlu0 %v5564, 96
    %v6482 = vpop.permute.xlu0 %6481
    %v6485 = vsel %vm379, %v6248, 0
    %6487 = vmatprep.subr.mxu0 0.0
    %6488 = vmatpush1.msra.mxu0 %v6482
    %6489 = vmatprep.subr.mxu0 0.0
    %6490 = vmatpush1.msra.mxu0 0.0
    %6491 = vmatprep.subr.mxu0 0.0
    %6492 = vmatpush1.msra.mxu0 0.0
    %6493 = vmatprep.subr.mxu0 0.0
    %6494 = vmatpush1.msra.mxu0 0.0
    %6495 = vmatprep.subr.mxu0 0.0
    %6496 = vmatpush1.msra.mxu0 0.0
    %6497 = vmatprep.subr.mxu0 0.0
    %6498 = vmatpush1.msra.mxu0 0.0
    %6499 = vmatprep.subr.mxu0 0.0
    %6500 = vmatpush1.msra.mxu0 0.0
    %6501 = vmatprep.subr.mxu0 0.0
    %6502 = vmatpush1.msra.mxu0 0.0
    %6503 = vmatprep.subr.mxu0 0.0
    %6504 = vmatpush1.msra.mxu0 0.0
    %6505 = vmatprep.subr.mxu0 0.0
    %6506 = vmatpush1.msra.mxu0 0.0
    %6507 = vmatprep.subr.mxu0 0.0
    %6508 = vmatpush1.msra.mxu0 0.0
    %6509 = vmatprep.subr.mxu0 0.0
    %6510 = vmatpush1.msra.mxu0 0.0
    %6511 = vmatprep.subr.mxu0 0.0
    %6512 = vmatpush1.msra.mxu0 0.0
    %6513 = vmatprep.subr.mxu0 0.0
    %6514 = vmatpush1.msra.mxu0 0.0
    %6515 = vmatprep.subr.mxu0 0.0
    %6516 = vmatpush1.msra.mxu0 0.0
    %6517 = vmatprep.subr.mxu0 0.0
    %6518 = vmatpush1.msra.mxu0 0.0
    %6519 = vmatprep.subr.mxu0 0.0
    %6520 = vmatpush1.msra.mxu0 0.0
    %6521 = vmatprep.subr.mxu0 0.0
    %6522 = vmatpush1.msra.mxu0 0.0
    %6523 = vmatprep.subr.mxu0 0.0
    %6524 = vmatpush1.msra.mxu0 0.0
    %6525 = vmatprep.subr.mxu0 0.0
    %6526 = vmatpush1.msra.mxu0 0.0
    %6527 = vmatprep.subr.mxu0 0.0
    %6528 = vmatpush1.msra.mxu0 0.0
    %6529 = vmatprep.subr.mxu0 0.0
    %6530 = vmatpush1.msra.mxu0 0.0
    %6531 = vmatprep.subr.mxu0 0.0
    %6532 = vmatpush1.msra.mxu0 0.0
    %6533 = vmatprep.subr.mxu0 0.0
    %6534 = vmatpush1.msra.mxu0 0.0
    %6535 = vmatprep.subr.mxu0 0.0
    %6536 = vmatpush1.msra.mxu0 0.0
    %6537 = vmatprep.subr.mxu0 0.0
    %6538 = vmatpush1.msra.mxu0 0.0
    %6539 = vmatprep.subr.mxu0 0.0
    %6540 = vmatpush1.msra.mxu0 0.0
    %6541 = vmatprep.subr.mxu0 0.0
    %6542 = vmatpush1.msra.mxu0 0.0
    %6543 = vmatprep.subr.mxu0 0.0
    %6544 = vmatpush1.msra.mxu0 0.0
    %6545 = vmatprep.subr.mxu0 0.0
    %6546 = vmatpush1.msra.mxu0 0.0
    %6547 = vmatprep.subr.mxu0 0.0
    %6548 = vmatpush1.msra.mxu0 0.0
    %6549 = vmatprep.subr.mxu0 0.0
    %6550 = vmatpush1.msra.mxu0 0.0
    %6551 = vmatprep.mubr.f32.mxu0 0.0
    %6552 = vmatmul.mubr.f32.gmra.mrb[0].mxu0 %v6485
    %v6553 = vpop.f32.mrb[0].mxu0
    %v6554 = vadd.f32 0.0, %v6553
    %v6555 = vpop.f32.mrb[0].mxu0
    %6556 = vdwg.mxu0
    %6557 = vrot.lane.b32.xlu0 %v5566, 96
    %v6558 = vpop.permute.xlu0 %6557
    %v6561 = vsel %vm379, %v6249, 0
    %6563 = vmatprep.subr.mxu0 0.0
    %6564 = vmatpush1.msra.mxu0 %v6558
    %6565 = vmatprep.subr.mxu0 0.0
    %6566 = vmatpush1.msra.mxu0 0.0
    %6567 = vmatprep.subr.mxu0 0.0
    %6568 = vmatpush1.msra.mxu0 0.0
    %6569 = vmatprep.subr.mxu0 0.0
    %6570 = vmatpush1.msra.mxu0 0.0
    %6571 = vmatprep.subr.mxu0 0.0
    %6572 = vmatpush1.msra.mxu0 0.0
    %6573 = vmatprep.subr.mxu0 0.0
    %6574 = vmatpush1.msra.mxu0 0.0
    %6575 = vmatprep.subr.mxu0 0.0
    %6576 = vmatpush1.msra.mxu0 0.0
    %6577 = vmatprep.subr.mxu0 0.0
    %6578 = vmatpush1.msra.mxu0 0.0
    %6579 = vmatprep.subr.mxu0 0.0
    %6580 = vmatpush1.msra.mxu0 0.0
    %6581 = vmatprep.subr.mxu0 0.0
    %6582 = vmatpush1.msra.mxu0 0.0
    %6583 = vmatprep.subr.mxu0 0.0
    %6584 = vmatpush1.msra.mxu0 0.0
    %6585 = vmatprep.subr.mxu0 0.0
    %6586 = vmatpush1.msra.mxu0 0.0
    %6587 = vmatprep.subr.mxu0 0.0
    %6588 = vmatpush1.msra.mxu0 0.0
    %6589 = vmatprep.subr.mxu0 0.0
    %6590 = vmatpush1.msra.mxu0 0.0
    %6591 = vmatprep.subr.mxu0 0.0
    %6592 = vmatpush1.msra.mxu0 0.0
    %6593 = vmatprep.subr.mxu0 0.0
    %6594 = vmatpush1.msra.mxu0 0.0
    %6595 = vmatprep.subr.mxu0 0.0
    %6596 = vmatpush1.msra.mxu0 0.0
    %6597 = vmatprep.subr.mxu0 0.0
    %6598 = vmatpush1.msra.mxu0 0.0
    %6599 = vmatprep.subr.mxu0 0.0
    %6600 = vmatpush1.msra.mxu0 0.0
    %6601 = vmatprep.subr.mxu0 0.0
    %6602 = vmatpush1.msra.mxu0 0.0
    %6603 = vmatprep.subr.mxu0 0.0
    %6604 = vmatpush1.msra.mxu0 0.0
    %6605 = vmatprep.subr.mxu0 0.0
    %6606 = vmatpush1.msra.mxu0 0.0
    %6607 = vmatprep.subr.mxu0 0.0
    %6608 = vmatpush1.msra.mxu0 0.0
    %6609 = vmatprep.subr.mxu0 0.0
    %6610 = vmatpush1.msra.mxu0 0.0
    %6611 = vmatprep.subr.mxu0 0.0
    %6612 = vmatpush1.msra.mxu0 0.0
    %6613 = vmatprep.subr.mxu0 0.0
    %6614 = vmatpush1.msra.mxu0 0.0
    %6615 = vmatprep.subr.mxu0 0.0
    %6616 = vmatpush1.msra.mxu0 0.0
    %6617 = vmatprep.subr.mxu0 0.0
    %6618 = vmatpush1.msra.mxu0 0.0
    %6619 = vmatprep.subr.mxu0 0.0
    %6620 = vmatpush1.msra.mxu0 0.0
    %6621 = vmatprep.subr.mxu0 0.0
    %6622 = vmatpush1.msra.mxu0 0.0
    %6623 = vmatprep.subr.mxu0 0.0
    %6624 = vmatpush1.msra.mxu0 0.0
    %6625 = vmatprep.subr.mxu0 0.0
    %6626 = vmatpush1.msra.mxu0 0.0
    %6627 = vmatprep.mubr.f32.mxu0 0.0
    %6628 = vmatmul.mubr.f32.gmra.mrb[0].mxu0 %v6561
    %v6629 = vpop.f32.mrb[0].mxu0
    %v6630 = vadd.f32 0.0, %v6629
    %v6631 = vpop.f32.mrb[0].mxu0
    %6632 = vdwg.mxu0
    %6633 = vrot.lane.b32.xlu0 %v5568, 96
    %v6634 = vpop.permute.xlu0 %6633
    %v6637 = vsel %vm379, %v6250, 0
    %6639 = vmatprep.subr.mxu0 0.0
    %6640 = vmatpush1.msra.mxu0 %v6634
    %6641 = vmatprep.subr.mxu0 0.0
    %6642 = vmatpush1.msra.mxu0 0.0
    %6643 = vmatprep.subr.mxu0 0.0
    %6644 = vmatpush1.msra.mxu0 0.0
    %6645 = vmatprep.subr.mxu0 0.0
    %6646 = vmatpush1.msra.mxu0 0.0
    %6647 = vmatprep.subr.mxu0 0.0
    %6648 = vmatpush1.msra.mxu0 0.0
    %6649 = vmatprep.subr.mxu0 0.0
    %6650 = vmatpush1.msra.mxu0 0.0
    %6651 = vmatprep.subr.mxu0 0.0
    %6652 = vmatpush1.msra.mxu0 0.0
    %6653 = vmatprep.subr.mxu0 0.0
    %6654 = vmatpush1.msra.mxu0 0.0
    %6655 = vmatprep.subr.mxu0 0.0
    %6656 = vmatpush1.msra.mxu0 0.0
    %6657 = vmatprep.subr.mxu0 0.0
    %6658 = vmatpush1.msra.mxu0 0.0
    %6659 = vmatprep.subr.mxu0 0.0
    %6660 = vmatpush1.msra.mxu0 0.0
    %6661 = vmatprep.subr.mxu0 0.0
    %6662 = vmatpush1.msra.mxu0 0.0
    %6663 = vmatprep.subr.mxu0 0.0
    %6664 = vmatpush1.msra.mxu0 0.0
    %6665 = vmatprep.subr.mxu0 0.0
    %6666 = vmatpush1.msra.mxu0 0.0
    %6667 = vmatprep.subr.mxu0 0.0
    %6668 = vmatpush1.msra.mxu0 0.0
    %6669 = vmatprep.subr.mxu0 0.0
    %6670 = vmatpush1.msra.mxu0 0.0
    %6671 = vmatprep.subr.mxu0 0.0
    %6672 = vmatpush1.msra.mxu0 0.0
    %6673 = vmatprep.subr.mxu0 0.0
    %6674 = vmatpush1.msra.mxu0 0.0
    %6675 = vmatprep.subr.mxu0 0.0
    %6676 = vmatpush1.msra.mxu0 0.0
    %6677 = vmatprep.subr.mxu0 0.0
    %6678 = vmatpush1.msra.mxu0 0.0
    %6679 = vmatprep.subr.mxu0 0.0
    %6680 = vmatpush1.msra.mxu0 0.0
    %6681 = vmatprep.subr.mxu0 0.0
    %6682 = vmatpush1.msra.mxu0 0.0
    %6683 = vmatprep.subr.mxu0 0.0
    %6684 = vmatpush1.msra.mxu0 0.0
    %6685 = vmatprep.subr.mxu0 0.0
    %6686 = vmatpush1.msra.mxu0 0.0
    %6687 = vmatprep.subr.mxu0 0.0
    %6688 = vmatpush1.msra.mxu0 0.0
    %6689 = vmatprep.subr.mxu0 0.0
    %6690 = vmatpush1.msra.mxu0 0.0
    %6691 = vmatprep.subr.mxu0 0.0
    %6692 = vmatpush1.msra.mxu0 0.0
    %6693 = vmatprep.subr.mxu0 0.0
    %6694 = vmatpush1.msra.mxu0 0.0
    %6695 = vmatprep.subr.mxu0 0.0
    %6696 = vmatpush1.msra.mxu0 0.0
    %6697 = vmatprep.subr.mxu0 0.0
    %6698 = vmatpush1.msra.mxu0 0.0
    %6699 = vmatprep.subr.mxu0 0.0
    %6700 = vmatpush1.msra.mxu0 0.0
    %6701 = vmatprep.subr.mxu0 0.0
    %6702 = vmatpush1.msra.mxu0 0.0
    %6703 = vmatprep.mubr.f32.mxu0 0.0
    %6704 = vmatmul.mubr.f32.gmra.mrb[0].mxu0 %v6637
    %v6705 = vpop.f32.mrb[0].mxu0
    %v6706 = vadd.f32 0.0, %v6705
    %v6707 = vpop.f32.mrb[0].mxu0
    %6708 = vdwg.mxu0
    %6709 = vrot.lane.b32.xlu0 %v5570, 96
    %v6710 = vpop.permute.xlu0 %6709
    %v6713 = vsel %vm379, %v6251, 0
    %6715 = vmatprep.subr.mxu0 0.0
    %6716 = vmatpush1.msra.mxu0 %v6710
    %6717 = vmatprep.subr.mxu0 0.0
    %6718 = vmatpush1.msra.mxu0 0.0
    %6719 = vmatprep.subr.mxu0 0.0
    %6720 = vmatpush1.msra.mxu0 0.0
    %6721 = vmatprep.subr.mxu0 0.0
    %6722 = vmatpush1.msra.mxu0 0.0
    %6723 = vmatprep.subr.mxu0 0.0
    %6724 = vmatpush1.msra.mxu0 0.0
    %6725 = vmatprep.subr.mxu0 0.0
    %6726 = vmatpush1.msra.mxu0 0.0
    %6727 = vmatprep.subr.mxu0 0.0
    %6728 = vmatpush1.msra.mxu0 0.0
    %6729 = vmatprep.subr.mxu0 0.0
    %6730 = vmatpush1.msra.mxu0 0.0
    %6731 = vmatprep.subr.mxu0 0.0
    %6732 = vmatpush1.msra.mxu0 0.0
    %6733 = vmatprep.subr.mxu0 0.0
    %6734 = vmatpush1.msra.mxu0 0.0
    %6735 = vmatprep.subr.mxu0 0.0
    %6736 = vmatpush1.msra.mxu0 0.0
    %6737 = vmatprep.subr.mxu0 0.0
    %6738 = vmatpush1.msra.mxu0 0.0
    %6739 = vmatprep.subr.mxu0 0.0
    %6740 = vmatpush1.msra.mxu0 0.0
    %6741 = vmatprep.subr.mxu0 0.0
    %6742 = vmatpush1.msra.mxu0 0.0
    %6743 = vmatprep.subr.mxu0 0.0
    %6744 = vmatpush1.msra.mxu0 0.0
    %6745 = vmatprep.subr.mxu0 0.0
    %6746 = vmatpush1.msra.mxu0 0.0
    %6747 = vmatprep.subr.mxu0 0.0
    %6748 = vmatpush1.msra.mxu0 0.0
    %6749 = vmatprep.subr.mxu0 0.0
    %6750 = vmatpush1.msra.mxu0 0.0
    %6751 = vmatprep.subr.mxu0 0.0
    %6752 = vmatpush1.msra.mxu0 0.0
    %6753 = vmatprep.subr.mxu0 0.0
    %6754 = vmatpush1.msra.mxu0 0.0
    %6755 = vmatprep.subr.mxu0 0.0
    %6756 = vmatpush1.msra.mxu0 0.0
    %6757 = vmatprep.subr.mxu0 0.0
    %6758 = vmatpush1.msra.mxu0 0.0
    %6759 = vmatprep.subr.mxu0 0.0
    %6760 = vmatpush1.msra.mxu0 0.0
    %6761 = vmatprep.subr.mxu0 0.0
    %6762 = vmatpush1.msra.mxu0 0.0
    %6763 = vmatprep.subr.mxu0 0.0
    %6764 = vmatpush1.msra.mxu0 0.0
    %6765 = vmatprep.subr.mxu0 0.0
    %6766 = vmatpush1.msra.mxu0 0.0
    %6767 = vmatprep.subr.mxu0 0.0
    %6768 = vmatpush1.msra.mxu0 0.0
    %6769 = vmatprep.subr.mxu0 0.0
    %6770 = vmatpush1.msra.mxu0 0.0
    %6771 = vmatprep.subr.mxu0 0.0
    %6772 = vmatpush1.msra.mxu0 0.0
    %6773 = vmatprep.subr.mxu0 0.0
    %6774 = vmatpush1.msra.mxu0 0.0
    %6775 = vmatprep.subr.mxu0 0.0
    %6776 = vmatpush1.msra.mxu0 0.0
    %6777 = vmatprep.subr.mxu0 0.0
    %6778 = vmatpush1.msra.mxu0 0.0
    %6779 = vmatprep.mubr.f32.mxu0 0.0
    %6780 = vmatmul.mubr.f32.gmra.mrb[0].mxu0 %v6713
    %v6781 = vpop.f32.mrb[0].mxu0
    %v6782 = vadd.f32 0.0, %v6781
    %v6783 = vpop.f32.mrb[0].mxu0
    %6784 = vdwg.mxu0
    %6785 = vrot.lane.b32.xlu0 %v5572, 96
    %v6786 = vpop.permute.xlu0 %6785
    %v6789 = vsel %vm379, %v6252, 0
    %6791 = vmatprep.subr.mxu0 0.0
    %6792 = vmatpush1.msra.mxu0 %v6786
    %6793 = vmatprep.subr.mxu0 0.0
    %6794 = vmatpush1.msra.mxu0 0.0
    %6795 = vmatprep.subr.mxu0 0.0
    %6796 = vmatpush1.msra.mxu0 0.0
    %6797 = vmatprep.subr.mxu0 0.0
    %6798 = vmatpush1.msra.mxu0 0.0
    %6799 = vmatprep.subr.mxu0 0.0
    %6800 = vmatpush1.msra.mxu0 0.0
    %6801 = vmatprep.subr.mxu0 0.0
    %6802 = vmatpush1.msra.mxu0 0.0
    %6803 = vmatprep.subr.mxu0 0.0
    %6804 = vmatpush1.msra.mxu0 0.0
    %6805 = vmatprep.subr.mxu0 0.0
    %6806 = vmatpush1.msra.mxu0 0.0
    %6807 = vmatprep.subr.mxu0 0.0
    %6808 = vmatpush1.msra.mxu0 0.0
    %6809 = vmatprep.subr.mxu0 0.0
    %6810 = vmatpush1.msra.mxu0 0.0
    %6811 = vmatprep.subr.mxu0 0.0
    %6812 = vmatpush1.msra.mxu0 0.0
    %6813 = vmatprep.subr.mxu0 0.0
    %6814 = vmatpush1.msra.mxu0 0.0
    %6815 = vmatprep.subr.mxu0 0.0
    %6816 = vmatpush1.msra.mxu0 0.0
    %6817 = vmatprep.subr.mxu0 0.0
    %6818 = vmatpush1.msra.mxu0 0.0
    %6819 = vmatprep.subr.mxu0 0.0
    %6820 = vmatpush1.msra.mxu0 0.0
    %6821 = vmatprep.subr.mxu0 0.0
    %6822 = vmatpush1.msra.mxu0 0.0
    %6823 = vmatprep.subr.mxu0 0.0
    %6824 = vmatpush1.msra.mxu0 0.0
    %6825 = vmatprep.subr.mxu0 0.0
    %6826 = vmatpush1.msra.mxu0 0.0
    %6827 = vmatprep.subr.mxu0 0.0
    %6828 = vmatpush1.msra.mxu0 0.0
    %6829 = vmatprep.subr.mxu0 0.0
    %6830 = vmatpush1.msra.mxu0 0.0
    %6831 = vmatprep.subr.mxu0 0.0
    %6832 = vmatpush1.msra.mxu0 0.0
    %6833 = vmatprep.subr.mxu0 0.0
    %6834 = vmatpush1.msra.mxu0 0.0
    %6835 = vmatprep.subr.mxu0 0.0
    %6836 = vmatpush1.msra.mxu0 0.0
    %6837 = vmatprep.subr.mxu0 0.0
    %6838 = vmatpush1.msra.mxu0 0.0
    %6839 = vmatprep.subr.mxu0 0.0
    %6840 = vmatpush1.msra.mxu0 0.0
    %6841 = vmatprep.subr.mxu0 0.0
    %6842 = vmatpush1.msra.mxu0 0.0
    %6843 = vmatprep.subr.mxu0 0.0
    %6844 = vmatpush1.msra.mxu0 0.0
    %6845 = vmatprep.subr.mxu0 0.0
    %6846 = vmatpush1.msra.mxu0 0.0
    %6847 = vmatprep.subr.mxu0 0.0
    %6848 = vmatpush1.msra.mxu0 0.0
    %6849 = vmatprep.subr.mxu0 0.0
    %6850 = vmatpush1.msra.mxu0 0.0
    %6851 = vmatprep.subr.mxu0 0.0
    %6852 = vmatpush1.msra.mxu0 0.0
    %6853 = vmatprep.subr.mxu0 0.0
    %6854 = vmatpush1.msra.mxu0 0.0
    %6855 = vmatprep.mubr.f32.mxu0 0.0
    %6856 = vmatmul.mubr.f32.gmra.mrb[0].mxu0 %v6789
    %v6857 = vpop.f32.mrb[0].mxu0
    %v6858 = vadd.f32 0.0, %v6857
    %v6859 = vpop.f32.mrb[0].mxu0
    %6860 = vdwg.mxu0
    %6863 = vrot.lane.b32.xlu0 %v6478, 8
    %v6864 = vpop.permute.xlu0 %6863
    %6865 = vrot.lane.b32.xlu0 %v6554, 8
    %v6866 = vpop.permute.xlu0 %6865
    %6871 = vrot.lane.b32.xlu0 %v6630, 16
    %v6872 = vpop.permute.xlu0 %6871
    %6873 = vrot.lane.b32.xlu0 %v6706, 16
    %v6874 = vpop.permute.xlu0 %6873
    %6879 = vrot.lane.b32.xlu0 %v6782, 24
    %v6880 = vpop.permute.xlu0 %6879
    %6881 = vrot.lane.b32.xlu0 %v6858, 24
    %v6882 = vpop.permute.xlu0 %6881
    %v6885 = vsel %vm379, %v6326, %v6864
    %v6886 = vsel %vm379, %v6402, %v6866
    %v6887 = vsel %vm1708, %v6885, %v6872
    %v6888 = vsel %vm1708, %v6886, %v6874
    %v6889 = vsel %vm1711, %v6887, %v6880
    %v6890 = vsel %vm1711, %v6888, %v6882
    %v6891 = vlaneseq
    %v6892 = vshrl.u32 %v6891, 7
    %v6893 = vsub.s32 3, %v6892
    %v6894 = vrot.slane %v3801, %v6893
    %6895 = vrot.lane.b32.xlu0 %v3783, 32
    %v6896 = vpop.permute.xlu0 %6895
    %6897 = vrot.lane.b32.xlu0 %v3784, 32
    %v6898 = vpop.permute.xlu0 %6897
    %6899 = vrot.lane.b32.xlu0 %v3785, 32
    %v6900 = vpop.permute.xlu0 %6899
    %6901 = vrot.lane.b32.xlu0 %v3786, 32
    %v6902 = vpop.permute.xlu0 %6901
    %v6908 = vsel %vm281, %v6889, 0
    %v6911 = vsel %vm281, %v6890, 0
    %6913 = vmatprep.subr.mxu0 0.0
    %6914 = vmatpush1.msra.mxu0 %v6896
    %6915 = vmatprep.subr.mxu0 0.0
    %6916 = vmatpush1.msra.mxu0 %v6898
    %6917 = vmatprep.subr.mxu0 0.0
    %6918 = vmatpush1.msra.mxu0 %v6900
    %6919 = vmatprep.subr.mxu0 0.0
    %6920 = vmatpush1.msra.mxu0 %v6902
    %6921 = vmatprep.subr.mxu0 0.0
    %6922 = vmatpush1.msra.mxu0 0.0
    %6923 = vmatprep.subr.mxu0 0.0
    %6924 = vmatpush1.msra.mxu0 0.0
    %6925 = vmatprep.subr.mxu0 0.0
    %6926 = vmatpush1.msra.mxu0 0.0
    %6927 = vmatprep.subr.mxu0 0.0
    %6928 = vmatpush1.msra.mxu0 0.0
    %6929 = vmatprep.subr.mxu0 0.0
    %6930 = vmatpush1.msra.mxu0 0.0
    %6931 = vmatprep.subr.mxu0 0.0
    %6932 = vmatpush1.msra.mxu0 0.0
    %6933 = vmatprep.subr.mxu0 0.0
    %6934 = vmatpush1.msra.mxu0 0.0
    %6935 = vmatprep.subr.mxu0 0.0
    %6936 = vmatpush1.msra.mxu0 0.0
    %6937 = vmatprep.subr.mxu0 0.0
    %6938 = vmatpush1.msra.mxu0 0.0
    %6939 = vmatprep.subr.mxu0 0.0
    %6940 = vmatpush1.msra.mxu0 0.0
    %6941 = vmatprep.subr.mxu0 0.0
    %6942 = vmatpush1.msra.mxu0 0.0
    %6943 = vmatprep.subr.mxu0 0.0
    %6944 = vmatpush1.msra.mxu0 0.0
    %6945 = vmatprep.subr.mxu0 0.0
    %6946 = vmatpush1.msra.mxu0 0.0
    %6947 = vmatprep.subr.mxu0 0.0
    %6948 = vmatpush1.msra.mxu0 0.0
    %6949 = vmatprep.subr.mxu0 0.0
    %6950 = vmatpush1.msra.mxu0 0.0
    %6951 = vmatprep.subr.mxu0 0.0
    %6952 = vmatpush1.msra.mxu0 0.0
    %6953 = vmatprep.subr.mxu0 0.0
    %6954 = vmatpush1.msra.mxu0 0.0
    %6955 = vmatprep.subr.mxu0 0.0
    %6956 = vmatpush1.msra.mxu0 0.0
    %6957 = vmatprep.subr.mxu0 0.0
    %6958 = vmatpush1.msra.mxu0 0.0
    %6959 = vmatprep.subr.mxu0 0.0
    %6960 = vmatpush1.msra.mxu0 0.0
    %6961 = vmatprep.subr.mxu0 0.0
    %6962 = vmatpush1.msra.mxu0 0.0
    %6963 = vmatprep.subr.mxu0 0.0
    %6964 = vmatpush1.msra.mxu0 0.0
    %6965 = vmatprep.subr.mxu0 0.0
    %6966 = vmatpush1.msra.mxu0 0.0
    %6967 = vmatprep.subr.mxu0 0.0
    %6968 = vmatpush1.msra.mxu0 0.0
    %6969 = vmatprep.subr.mxu0 0.0
    %6970 = vmatpush1.msra.mxu0 0.0
    %6971 = vmatprep.subr.mxu0 0.0
    %6972 = vmatpush1.msra.mxu0 0.0
    %6973 = vmatprep.subr.mxu0 0.0
    %6974 = vmatpush1.msra.mxu0 0.0
    %6975 = vmatprep.subr.mxu0 0.0
    %6976 = vmatpush1.msra.mxu0 0.0
    %6977 = vmatprep.mubr.f32.mxu0 0.0
    %6978 = vmatmul.mubr.f32.gmra.mrb[0].mxu0 %v6908
    %v6979 = vpop.f32.mrb[0].mxu0
    %v6980 = vadd.f32 %v6894, %v6979
    %v6981 = vpop.f32.mrb[0].mxu0
    %6982 = vmatprep.mubr.f32.mxu0 0.0
    %6983 = vmatmul.mubr.f32.gmra.mrb[0].mxu0 %v6911
    %v6984 = vpop.f32.mrb[0].mxu0
    %v6985 = vadd.f32 %v6894, %v6984
    %v6986 = vpop.f32.mrb[0].mxu0
    %6987 = vdwg.mxu0
    %v6988 = vadd.f32 %v6980, %v5371
    %v6989 = vadd.f32 %v6985, %v5372
    %v6990 = vsel %vm281, %v6988, 0.0
    %6991 = vadd.xlane.f32.xlu0 %v6990
    %v6992 = vpop.xlane.xlu0 %6991
    %v6993 = vsel %vm281, %v6989, 0.0
    %6994 = vadd.xlane.f32.xlu0 %v6993
    %v6995 = vpop.xlane.xlu0 %6994
    %v6996 = vmul.f32 %v6992, %v1823
    %v6997 = vmul.f32 %v6995, %v1823
    %v6998 = vsub.f32 %v6988, %v6996
    %v6999 = vsub.f32 %v6989, %v6997
    %v7000 = vmul.f32 %v6998, %v6998
    %v7001 = vmul.f32 %v6999, %v6999
    %v7002 = vsel %vm281, %v7000, 0.0
    %7003 = vadd.xlane.f32.xlu0 %v7002
    %v7004 = vpop.xlane.xlu0 %7003
    %v7005 = vsel %vm281, %v7001, 0.0
    %7006 = vadd.xlane.f32.xlu0 %v7005
    %v7007 = vpop.xlane.xlu0 %7006
    %v7008 = vmul.f32 %v7004, %v1823
    %v7009 = vmul.f32 %v7007, %v1823
    %v7010 = vadd.f32 %v7008, 1e-05
    %v7011 = vadd.f32 %v7009, 1e-05
    %v7012 = vrsqrt.pop %v7010
    %v7013 = vrsqrt.pop %v7011
    %v7014 = vmul.f32 %v6998, %v7012
    %v7015 = vmul.f32 %v6999, %v7013
    %v7016 = vlaneseq
    %v7017 = vshrl.u32 %v7016, 7
    %v7018 = vsub.s32 4, %v7017
    %v7019 = vrot.slane %v3801, %v7018
    %v7020 = vmul.f32 %v7014, %v7019
    %v7021 = vmul.f32 %v7015, %v7019
    %v7022 = vlaneseq
    %v7023 = vshrl.u32 %v7022, 7
    %v7024 = vsub.s32 5, %v7023
    %v7025 = vrot.slane %v3801, %v7024
    %v7026 = vadd.f32 %v7020, %v7025
    %v7027 = vadd.f32 %v7021, %v7025
    %v7028 = vlaneseq
    %v7029 = vshrl.u32 %v7028, 7
    %v7030 = vsub.s32 1, %v7029
    %v7031 = vrot.slane %v3802, %v7030
    %v7033 = vsel %vm281, %v7026, 0
    %v7036 = vsel %vm281, %v7027, 0
    %7038 = vmatprep.subr.mxu0 0.0
    %7039 = vmatpush1.msra.mxu0 %v3787
    %7040 = vmatprep.subr.mxu0 0.0
    %7041 = vmatpush1.msra.mxu0 %v3788
    %7042 = vmatprep.subr.mxu0 0.0
    %7043 = vmatpush1.msra.mxu0 %v3789
    %7044 = vmatprep.subr.mxu0 0.0
    %7045 = vmatpush1.msra.mxu0 %v3790
    %7046 = vmatprep.subr.mxu0 0.0
    %7047 = vmatpush1.msra.mxu0 0.0
    %7048 = vmatprep.subr.mxu0 0.0
    %7049 = vmatpush1.msra.mxu0 0.0
    %7050 = vmatprep.subr.mxu0 0.0
    %7051 = vmatpush1.msra.mxu0 0.0
    %7052 = vmatprep.subr.mxu0 0.0
    %7053 = vmatpush1.msra.mxu0 0.0
    %7054 = vmatprep.subr.mxu0 0.0
    %7055 = vmatpush1.msra.mxu0 0.0
    %7056 = vmatprep.subr.mxu0 0.0
    %7057 = vmatpush1.msra.mxu0 0.0
    %7058 = vmatprep.subr.mxu0 0.0
    %7059 = vmatpush1.msra.mxu0 0.0
    %7060 = vmatprep.subr.mxu0 0.0
    %7061 = vmatpush1.msra.mxu0 0.0
    %7062 = vmatprep.subr.mxu0 0.0
    %7063 = vmatpush1.msra.mxu0 0.0
    %7064 = vmatprep.subr.mxu0 0.0
    %7065 = vmatpush1.msra.mxu0 0.0
    %7066 = vmatprep.subr.mxu0 0.0
    %7067 = vmatpush1.msra.mxu0 0.0
    %7068 = vmatprep.subr.mxu0 0.0
    %7069 = vmatpush1.msra.mxu0 0.0
    %7070 = vmatprep.subr.mxu0 0.0
    %7071 = vmatpush1.msra.mxu0 0.0
    %7072 = vmatprep.subr.mxu0 0.0
    %7073 = vmatpush1.msra.mxu0 0.0
    %7074 = vmatprep.subr.mxu0 0.0
    %7075 = vmatpush1.msra.mxu0 0.0
    %7076 = vmatprep.subr.mxu0 0.0
    %7077 = vmatpush1.msra.mxu0 0.0
    %7078 = vmatprep.subr.mxu0 0.0
    %7079 = vmatpush1.msra.mxu0 0.0
    %7080 = vmatprep.subr.mxu0 0.0
    %7081 = vmatpush1.msra.mxu0 0.0
    %7082 = vmatprep.subr.mxu0 0.0
    %7083 = vmatpush1.msra.mxu0 0.0
    %7084 = vmatprep.subr.mxu0 0.0
    %7085 = vmatpush1.msra.mxu0 0.0
    %7086 = vmatprep.subr.mxu0 0.0
    %7087 = vmatpush1.msra.mxu0 0.0
    %7088 = vmatprep.subr.mxu0 0.0
    %7089 = vmatpush1.msra.mxu0 0.0
    %7090 = vmatprep.subr.mxu0 0.0
    %7091 = vmatpush1.msra.mxu0 0.0
    %7092 = vmatprep.subr.mxu0 0.0
    %7093 = vmatpush1.msra.mxu0 0.0
    %7094 = vmatprep.subr.mxu0 0.0
    %7095 = vmatpush1.msra.mxu0 0.0
    %7096 = vmatprep.subr.mxu0 0.0
    %7097 = vmatpush1.msra.mxu0 0.0
    %7098 = vmatprep.subr.mxu0 0.0
    %7099 = vmatpush1.msra.mxu0 0.0
    %7100 = vmatprep.subr.mxu0 0.0
    %7101 = vmatpush1.msra.mxu0 0.0
    %7102 = vmatprep.mubr.f32.mxu0 0.0
    %7103 = vmatmul.mubr.f32.gmra.mrb[0].mxu0 %v7033
    %v7104 = vpop.f32.mrb[0].mxu0
    %v7105 = vadd.f32 %v7031, %v7104
    %v7106 = vpop.f32.mrb[0].mxu0
    %7107 = vmatprep.mubr.f32.mxu0 0.0
    %7108 = vmatmul.mubr.f32.gmra.mrb[0].mxu0 %v7036
    %v7109 = vpop.f32.mrb[0].mxu0
    %v7110 = vadd.f32 %v7031, %v7109
    %v7111 = vpop.f32.mrb[0].mxu0
    %7112 = vdwg.mxu0
    %v7113 = vmax.f32 %v7105, 0.0
    %v7114 = vmax.f32 %v7110, 0.0
    %v7115 = vlaneseq
    %v7116 = vshrl.u32 %v7115, 7
    %v7117 = vsub.s32 0, %v7116
    %v7118 = vrot.slane %v3802, %v7117
    %v7120 = vsel %vm3656, %v7113, 0
    %v7123 = vsel %vm3656, %v7114, 0
    %7125 = vmatprep.subr.mxu0 0.0
    %7126 = vmatpush1.msra.mxu0 %v3792
    %7127 = vmatprep.subr.mxu0 0.0
    %7128 = vmatpush1.msra.mxu0 %v3793
    %7129 = vmatprep.subr.mxu0 0.0
    %7130 = vmatpush1.msra.mxu0 %v3794
    %7131 = vmatprep.subr.mxu0 0.0
    %7132 = vmatpush1.msra.mxu0 %v3795
    %7133 = vmatprep.subr.mxu0 0.0
    %7134 = vmatpush1.msra.mxu0 %v3796
    %7135 = vmatprep.subr.mxu0 0.0
    %7136 = vmatpush1.msra.mxu0 %v3797
    %7137 = vmatprep.subr.mxu0 0.0
    %7138 = vmatpush1.msra.mxu0 %v3798
    %7139 = vmatprep.subr.mxu0 0.0
    %7140 = vmatpush1.msra.mxu0 %v3799
    %7141 = vmatprep.subr.mxu0 0.0
    %7142 = vmatpush1.msra.mxu0 0.0
    %7143 = vmatprep.subr.mxu0 0.0
    %7144 = vmatpush1.msra.mxu0 0.0
    %7145 = vmatprep.subr.mxu0 0.0
    %7146 = vmatpush1.msra.mxu0 0.0
    %7147 = vmatprep.subr.mxu0 0.0
    %7148 = vmatpush1.msra.mxu0 0.0
    %7149 = vmatprep.subr.mxu0 0.0
    %7150 = vmatpush1.msra.mxu0 0.0
    %7151 = vmatprep.subr.mxu0 0.0
    %7152 = vmatpush1.msra.mxu0 0.0
    %7153 = vmatprep.subr.mxu0 0.0
    %7154 = vmatpush1.msra.mxu0 0.0
    %7155 = vmatprep.subr.mxu0 0.0
    %7156 = vmatpush1.msra.mxu0 0.0
    %7157 = vmatprep.subr.mxu0 0.0
    %7158 = vmatpush1.msra.mxu0 0.0
    %7159 = vmatprep.subr.mxu0 0.0
    %7160 = vmatpush1.msra.mxu0 0.0
    %7161 = vmatprep.subr.mxu0 0.0
    %7162 = vmatpush1.msra.mxu0 0.0
    %7163 = vmatprep.subr.mxu0 0.0
    %7164 = vmatpush1.msra.mxu0 0.0
    %7165 = vmatprep.subr.mxu0 0.0
    %7166 = vmatpush1.msra.mxu0 0.0
    %7167 = vmatprep.subr.mxu0 0.0
    %7168 = vmatpush1.msra.mxu0 0.0
    %7169 = vmatprep.subr.mxu0 0.0
    %7170 = vmatpush1.msra.mxu0 0.0
    %7171 = vmatprep.subr.mxu0 0.0
    %7172 = vmatpush1.msra.mxu0 0.0
    %7173 = vmatprep.subr.mxu0 0.0
    %7174 = vmatpush1.msra.mxu0 0.0
    %7175 = vmatprep.subr.mxu0 0.0
    %7176 = vmatpush1.msra.mxu0 0.0
    %7177 = vmatprep.subr.mxu0 0.0
    %7178 = vmatpush1.msra.mxu0 0.0
    %7179 = vmatprep.subr.mxu0 0.0
    %7180 = vmatpush1.msra.mxu0 0.0
    %7181 = vmatprep.subr.mxu0 0.0
    %7182 = vmatpush1.msra.mxu0 0.0
    %7183 = vmatprep.subr.mxu0 0.0
    %7184 = vmatpush1.msra.mxu0 0.0
    %7185 = vmatprep.subr.mxu0 0.0
    %7186 = vmatpush1.msra.mxu0 0.0
    %7187 = vmatprep.subr.mxu0 0.0
    %7188 = vmatpush1.msra.mxu0 0.0
    %7189 = vmatprep.mubr.f32.mxu0 0.0
    %7190 = vmatmul.mubr.f32.gmra.mrb[0].mxu0 %v7120
    %v7191 = vpop.f32.mrb[0].mxu0
    %v7192 = vadd.f32 %v7118, %v7191
    %v7193 = vpop.f32.mrb[0].mxu0
    %7194 = vmatprep.mubr.f32.mxu0 0.0
    %7195 = vmatmul.mubr.f32.gmra.mrb[0].mxu0 %v7123
    %v7196 = vpop.f32.mrb[0].mxu0
    %v7197 = vadd.f32 %v7118, %v7196
    %v7198 = vpop.f32.mrb[0].mxu0
    %7199 = vdwg.mxu0
    %v7200 = vadd.f32 %v7192, %v7026
    %v7201 = vadd.f32 %v7197, %v7027
    %v7202 = vsel %vm281, %v7200, 0.0
    %7203 = vadd.xlane.f32.xlu0 %v7202
    %v7204 = vpop.xlane.xlu0 %7203
    %v7205 = vsel %vm281, %v7201, 0.0
    %7206 = vadd.xlane.f32.xlu0 %v7205
    %v7207 = vpop.xlane.xlu0 %7206
    %v7208 = vmul.f32 %v7204, %v1823
    %v7209 = vmul.f32 %v7207, %v1823
    %v7210 = vsub.f32 %v7200, %v7208
    %v7211 = vsub.f32 %v7201, %v7209
    %v7212 = vmul.f32 %v7210, %v7210
    %v7213 = vmul.f32 %v7211, %v7211
    %v7214 = vsel %vm281, %v7212, 0.0
    %7215 = vadd.xlane.f32.xlu0 %v7214
    %v7216 = vpop.xlane.xlu0 %7215
    %v7217 = vsel %vm281, %v7213, 0.0
    %7218 = vadd.xlane.f32.xlu0 %v7217
    %v7219 = vpop.xlane.xlu0 %7218
    %v7220 = vmul.f32 %v7216, %v1823
    %v7221 = vmul.f32 %v7219, %v1823
    %v7222 = vadd.f32 %v7220, 1e-05
    %v7223 = vadd.f32 %v7221, 1e-05
    %v7224 = vrsqrt.pop %v7222
    %v7225 = vrsqrt.pop %v7223
    %v7226 = vmul.f32 %v7210, %v7224
    %v7227 = vmul.f32 %v7211, %v7225
    %v7228 = vlaneseq
    %v7229 = vshrl.u32 %v7228, 7
    %v7230 = vsub.s32 6, %v7229
    %v7231 = vrot.slane %v3801, %v7230
    %v7232 = vmul.f32 %v7226, %v7231
    %v7233 = vmul.f32 %v7227, %v7231
    %v7234 = vlaneseq
    %v7235 = vshrl.u32 %v7234, 7
    %v7236 = vsub.s32 7, %v7235
    %v7237 = vrot.slane %v3801, %v7236
    %v7238 = vadd.f32 %v7232, %v7237
    %v7239 = vadd.f32 %v7233, %v7237
    %v7240 = vld [vmem:[%s5] sm:$0xff]
    %v7241 = vld [vmem:[%s5 + $0x8] sm:$0xff]
    %v7242 = vld [vmem:[%s5 + $0x10] sm:$0xff]
    %v7243 = vld [vmem:[%s5 + $0x18] sm:$0xff]
    %v7244 = vld [vmem:[%s6] sm:$0x1]
    %v7246 = vlaneseq
    %v7247 = vshrl.u32 %v7246, 7
    %v7248 = vsub.s32 0, %v7247
    %v7249 = vrot.slane %v7244, %v7248
    %v7252 = vsel %vm281, %v7238, 0
    %v7255 = vsel %vm281, %v7239, 0
    %7257 = vmatprep.subr.mxu0 0.0
    %7258 = vmatpush1.msra.mxu0 %v7240
    %7259 = vmatprep.subr.mxu0 0.0
    %7260 = vmatpush1.msra.mxu0 %v7241
    %7261 = vmatprep.subr.mxu0 0.0
    %7262 = vmatpush1.msra.mxu0 %v7242
    %7263 = vmatprep.subr.mxu0 0.0
    %7264 = vmatpush1.msra.mxu0 %v7243
    %7265 = vmatprep.subr.mxu0 0.0
    %7266 = vmatpush1.msra.mxu0 0.0
    %7267 = vmatprep.subr.mxu0 0.0
    %7268 = vmatpush1.msra.mxu0 0.0
    %7269 = vmatprep.subr.mxu0 0.0
    %7270 = vmatpush1.msra.mxu0 0.0
    %7271 = vmatprep.subr.mxu0 0.0
    %7272 = vmatpush1.msra.mxu0 0.0
    %7273 = vmatprep.subr.mxu0 0.0
    %7274 = vmatpush1.msra.mxu0 0.0
    %7275 = vmatprep.subr.mxu0 0.0
    %7276 = vmatpush1.msra.mxu0 0.0
    %7277 = vmatprep.subr.mxu0 0.0
    %7278 = vmatpush1.msra.mxu0 0.0
    %7279 = vmatprep.subr.mxu0 0.0
    %7280 = vmatpush1.msra.mxu0 0.0
    %7281 = vmatprep.subr.mxu0 0.0
    %7282 = vmatpush1.msra.mxu0 0.0
    %7283 = vmatprep.subr.mxu0 0.0
    %7284 = vmatpush1.msra.mxu0 0.0
    %7285 = vmatprep.subr.mxu0 0.0
    %7286 = vmatpush1.msra.mxu0 0.0
    %7287 = vmatprep.subr.mxu0 0.0
    %7288 = vmatpush1.msra.mxu0 0.0
    %7289 = vmatprep.subr.mxu0 0.0
    %7290 = vmatpush1.msra.mxu0 0.0
    %7291 = vmatprep.subr.mxu0 0.0
    %7292 = vmatpush1.msra.mxu0 0.0
    %7293 = vmatprep.subr.mxu0 0.0
    %7294 = vmatpush1.msra.mxu0 0.0
    %7295 = vmatprep.subr.mxu0 0.0
    %7296 = vmatpush1.msra.mxu0 0.0
    %7297 = vmatprep.subr.mxu0 0.0
    %7298 = vmatpush1.msra.mxu0 0.0
    %7299 = vmatprep.subr.mxu0 0.0
    %7300 = vmatpush1.msra.mxu0 0.0
    %7301 = vmatprep.subr.mxu0 0.0
    %7302 = vmatpush1.msra.mxu0 0.0
    %7303 = vmatprep.subr.mxu0 0.0
    %7304 = vmatpush1.msra.mxu0 0.0
    %7305 = vmatprep.subr.mxu0 0.0
    %7306 = vmatpush1.msra.mxu0 0.0
    %7307 = vmatprep.subr.mxu0 0.0
    %7308 = vmatpush1.msra.mxu0 0.0
    %7309 = vmatprep.subr.mxu0 0.0
    %7310 = vmatpush1.msra.mxu0 0.0
    %7311 = vmatprep.subr.mxu0 0.0
    %7312 = vmatpush1.msra.mxu0 0.0
    %7313 = vmatprep.subr.mxu0 0.0
    %7314 = vmatpush1.msra.mxu0 0.0
    %7315 = vmatprep.subr.mxu0 0.0
    %7316 = vmatpush1.msra.mxu0 0.0
    %7317 = vmatprep.subr.mxu0 0.0
    %7318 = vmatpush1.msra.mxu0 0.0
    %7319 = vmatprep.subr.mxu0 0.0
    %7320 = vmatpush1.msra.mxu0 0.0
    %7321 = vmatprep.mubr.f32.mxu0 0.0
    %7322 = vmatmul.mubr.f32.gmra.mrb[0].mxu0 %v7252
    %v7323 = vpop.f32.mrb[0].mxu0
    %v7324 = vadd.f32 %v7249, %v7323
    %v7325 = vpop.f32.mrb[0].mxu0
    %7326 = vmatprep.mubr.f32.mxu0 0.0
    %7327 = vmatmul.mubr.f32.gmra.mrb[0].mxu0 %v7255
    %v7328 = vpop.f32.mrb[0].mxu0
    %v7329 = vadd.f32 %v7249, %v7328
    %v7330 = vpop.f32.mrb[0].mxu0
    %7331 = vdwg.mxu0
    %7332 = vst [vmem:[#allocation5] sm:$0xff] %v7324
    %7333 = vst [vmem:[#allocation5 + $0x8] sm:$0xff] %v7329
    // Predicated region
    $region46: #{tpu_custom_call.1} parent=1 // pred_check
      _
    $region47: #{tpu_custom_call.1} parent=1 // pred_check_branch
      %7335 = sbr.rel (0) target = $region49
    $region48: #{tpu_custom_call.1} parent=1 // pred_region
      %s7337 = ssub.s32 256, 256
      %7338 = vsyncadd [#allocation3], %s7337
      %s7339 = sshll.u32 [#allocation5], 4
      %s7340 = int_to_ptr.vmem [resolvable:$true] %s7339
      %7345 = dma.vmem_to_hbm [thread:$0]  %s7340, 256, %s10, [#allocation3], 128, 128, 8
    $region49: #{tpu_custom_call.1} parent=1 // pred_fallthru
      _
    // Predicated region
    $region50: #{tpu_custom_call.1} parent=1 // pred_check
      _
    $region51: #{tpu_custom_call.1} parent=1 // pred_check_branch
      %7347 = sbr.rel (0) target = $region53
    $region52: #{tpu_custom_call.1} parent=1 // pred_region
      %7348 = dma.done [#allocation3], 256
    $region53: #{tpu_custom_call.1} parent=1 // pred_fallthru
      _
    %7349 = vsyncpa [#allocation3], 1
    %7350 = vsyncpa [#allocation4], 1

</llo_original>
